<compile_context>
chip_gen: v6e
topology: v6e:2x2x1
jax: 0.10.0
libtpu: 0.0.40
codegen_flags: <defaults>
</compile_context>

<pallas_src>
import numpy as np
import jax
import jax.numpy as jnp
from jax import lax
from jax.experimental import pallas as pl
from jax.experimental.pallas import tpu as pltpu


# ----------------------------------------------------------------------------
# Kernel 1: fused conv1+ReLU+pool -> conv2+ReLU+pool  (one block of images)
# ----------------------------------------------------------------------------
def _conv_block_kernel(ra_ref, ra2_ref, w1a_ref, w1b_ref, b1_ref,
                       t20_ref, t21_ref, t22_ref, b2_ref, out_ref):
    f32 = jnp.float32
    bf16 = jnp.bfloat16
    ra = ra_ref[...]       # (R, 128) bf16: slab row k = padded img rows 4k..4k+3
    ra2 = ra2_ref[...]     # (R, 128) bf16: slab row k = padded img rows 4k-2..4k+1
    r = ra.shape[0]

    # ---- conv1 (1->32) as banded matmuls; output lanes = dw*512+(w2+1)*32+c ----
    o_a = jnp.dot(ra, w1a_ref[...], preferred_element_type=f32)    # conv rows 4k
    o_b = jnp.dot(ra, w1b_ref[...], preferred_element_type=f32)    # conv rows 4k+1
    e_a = jnp.dot(ra2, w1a_ref[...], preferred_element_type=f32)   # conv rows 4k-2
    e_b = jnp.dot(ra2, w1b_ref[...], preferred_element_type=f32)   # conv rows 4k-1

    b1 = b1_ref[...]                                   # (1, 512) f32
    o_p = jnp.maximum(o_a, o_b)                        # 2x2 pool: row tap
    e_p = jnp.maximum(e_a, e_b)
    o_p = jnp.maximum(o_p[:, :512], o_p[:, 512:])      # 2x2 pool: width tap
    e_p = jnp.maximum(e_p[:, :512], e_p[:, 512:])
    o_act = jnp.maximum(o_p + b1, 0.0)
    e_act = jnp.maximum(e_p + b1, 0.0)

    # Row k within an image: E[k] = conv2-padded-input row 2k, O[k] = row 2k+1.
    # Rows 0 (E) and 15 (O) are conv2 zero padding -> mask them.
    k_idx = lax.broadcasted_iota(jnp.int32, (r, 512), 0) % 8
    e_slab = jnp.where(k_idx >= 1, e_act, 0.0).astype(bf16)
    o_slab = jnp.where(k_idx <= 6, o_act, 0.0).astype(bf16)

    # Row-shifted slabs X1[k] = X[k+1], built as an exact 0/1 matmul on the MXU
    # (cheap, and avoids relying on unaligned sublane slicing).
    ri = lax.broadcasted_iota(jnp.int32, (r, r), 0)
    ci = lax.broadcasted_iota(jnp.int32, (r, r), 1)
    shift1 = (ci == ri + 1).astype(bf16)
    e1_slab = jnp.dot(shift1, e_slab, preferred_element_type=f32).astype(bf16)
    o1_slab = jnp.dot(shift1, o_slab, preferred_element_type=f32).astype(bf16)

    # ---- conv2 (32->64) banded matmuls; output lanes = dw*512 + w2*64 + d ----
    t20 = t20_ref[...]
    t21 = t21_ref[...]
    t22 = t22_ref[...]
    c_even = (jnp.dot(e_slab, t20, preferred_element_type=f32)
              + jnp.dot(o_slab, t21, preferred_element_type=f32)
              + jnp.dot(e1_slab, t22, preferred_element_type=f32))   # conv2 rows 2t
    c_odd = (jnp.dot(o_slab, t20, preferred_element_type=f32)
             + jnp.dot(e1_slab, t21, preferred_element_type=f32)
             + jnp.dot(o1_slab, t22, preferred_element_type=f32))    # conv2 rows 2t+1

    p = jnp.maximum(c_even, c_odd)                     # 2x2 pool: row tap
    p = jnp.maximum(p[:, :512], p[:, 512:])            # 2x2 pool: width tap
    out = jnp.maximum(p + b2_ref[...], 0.0)
    out_ref[...] = out.astype(out_ref.dtype)


def conv_block(prep, x_nchw, block_images=16):
    n = x_nchw.shape[0]
    x = x_nchw.reshape(n, 28, 28).astype(jnp.bfloat16)
    # 32x32 zero canvases (tiny raw input only; no activation-sized XLA glue):
    # canvas1[r, j] = x[r-1, j-1]; canvas2[r, j] = x[r-3, j-1]
    canvas1 = jnp.pad(x, ((0, 0), (1, 3), (1, 3)))
    canvas2 = jnp.pad(x, ((0, 0), (3, 1), (1, 3)))
    # one slab row = 4 consecutive padded image rows side by side (128 lanes)
    ra = canvas1.reshape(n * 8, 128)
    ra2 = canvas2.reshape(n * 8, 128)

    bb = block_images if n >= block_images else n
    n_pad = ((n + bb - 1) // bb) * bb
    if n_pad != n:
        extra = (n_pad - n) * 8
        ra = jnp.pad(ra, ((0, extra), (0, 0)))
        ra2 = jnp.pad(ra2, ((0, extra), (0, 0)))
    rb = bb * 8

    out = pl.pallas_call(
        _conv_block_kernel,
        out_shape=jax.ShapeDtypeStruct((n_pad * 8, 512), jnp.bfloat16),
        grid=(n_pad // bb,),
        in_specs=[
            pl.BlockSpec((rb, 128), lambda i: (i, 0)),
            pl.BlockSpec((rb, 128), lambda i: (i, 0)),
            pl.BlockSpec((128, 1024), lambda i: (0, 0)),
            pl.BlockSpec((128, 1024), lambda i: (0, 0)),
            pl.BlockSpec((1, 512), lambda i: (0, 0)),
            pl.BlockSpec((512, 1024), lambda i: (0, 0)),
            pl.BlockSpec((512, 1024), lambda i: (0, 0)),
            pl.BlockSpec((512, 1024), lambda i: (0, 0)),
            pl.BlockSpec((1, 512), lambda i: (0, 0)),
        ],
        out_specs=pl.BlockSpec((rb, 512), lambda i: (i, 0)),
        compiler_params=pltpu.CompilerParams(
            dimension_semantics=("parallel",),
            vmem_limit_bytes=32 * 1024 * 1024),
    )(ra, ra2, prep["w1a"], prep["w1b"], prep["b1v"],
      prep["t20"], prep["t21"], prep["t22"], prep["b2v"])

    return out[: n * 8].reshape(n, 8 * 512)


# ----------------------------------------------------------------------------
# Kernel 2: fused FC head  Linear -> ReLU -> Linear
# ----------------------------------------------------------------------------
def _fc_head_kernel(x_ref, w1_ref, b1_ref, w2_ref, b2_ref, out_ref):
    h = jnp.dot(x_ref[...], w1_ref[...], preferred_element_type=jnp.float32)
    h = jnp.maximum(h + b1_ref[...], 0.0)
    logits = jnp.dot(h.astype(w2_ref.dtype), w2_ref[...],
                     preferred_element_type=jnp.float32)
    out_ref[...] = (logits + b2_ref[...]).astype(out_ref.dtype)


def fc_head(prep, x):
    n, k = x.shape
    d1 = prep["fc1_w"].shape[1]
    d2 = prep["fc2_w"].shape[1]
    if n > 128:
        tn = 256 if n >= 512 else 128
    else:
        tn = n
    n_pad = ((n + tn - 1) // tn) * tn
    if n_pad != n:
        x = jnp.pad(x, ((0, n_pad - n), (0, 0)))

    out = pl.pallas_call(
        _fc_head_kernel,
        out_shape=jax.ShapeDtypeStruct((n_pad, d2), jnp.float32),
        grid=(n_pad // tn,),
        in_specs=[
            pl.BlockSpec((tn, k), lambda i: (i, 0)),
            pl.BlockSpec((k, d1), lambda i: (0, 0)),
            pl.BlockSpec((1, d1), lambda i: (0, 0)),
            pl.BlockSpec((d1, d2), lambda i: (0, 0)),
            pl.BlockSpec((1, d2), lambda i: (0, 0)),
        ],
        out_specs=pl.BlockSpec((tn, d2), lambda i: (i, 0)),
        compiler_params=pltpu.CompilerParams(
            dimension_semantics=("parallel",)),
    )(x, prep["fc1_w"], prep["fc1_b"], prep["fc2_w"], prep["fc2_b"])
    return out[:n]


# ----------------------------------------------------------------------------
# Parameters (PyTorch layouts) and one-time layout / dtype prep
# ----------------------------------------------------------------------------
def init_params(key):
    ks = jax.random.split(key, 8)
    s = 0.05
    return {
        "conv1_w": s * jax.random.normal(ks[0], (32, 1, 3, 3), jnp.float32),
        "conv1_b": s * jax.random.normal(ks[1], (32,), jnp.float32),
        "conv2_w": s * jax.random.normal(ks[2], (64, 32, 3, 3), jnp.float32),
        "conv2_b": s * jax.random.normal(ks[3], (64,), jnp.float32),
        "fc1_w": s * jax.random.normal(ks[4], (128, 64 * 7 * 7), jnp.float32),
        "fc1_b": s * jax.random.normal(ks[5], (128,), jnp.float32),
        "fc2_w": s * jax.random.normal(ks[6], (10, 128), jnp.float32),
        "fc2_b": s * jax.random.normal(ks[7], (10,), jnp.float32),
    }


def prepare_params(p):
    """One-time repack of the PyTorch-layout weights into the banded matrices
    consumed by the fused conv kernel (numpy, outside the hot path)."""
    w1 = np.asarray(p["conv1_w"], np.float32)[:, 0]      # (32, 3, 3)  [c, ky, kx]
    b1 = np.asarray(p["conv1_b"], np.float32)            # (32,)
    w2 = np.asarray(p["conv2_w"], np.float32)            # (64, 32, 3, 3) [d,c,ky,kx]
    b2 = np.asarray(p["conv2_b"], np.float32)            # (64,)

    # conv1: T1[ky][j, dw*512 + (wo+1)*32 + c] = w1[c, ky, j - (2*wo+dw)]
    t1 = np.zeros((3, 32, 1024), np.float32)
    for ky in range(3):
        for wo in range(14):                # pooled output column
            for dw in range(2):             # pooling width tap
                w_col = 2 * wo + dw
                lane0 = dw * 512 + (wo + 1) * 32
                for kx in range(3):
                    j = w_col + kx          # padded input column (0..29)
                    t1[ky, j, lane0:lane0 + 32] = w1[:, ky, kx]
    w1a = np.zeros((128, 1024), np.float32)   # conv rows 4k   (slab rows +0,+1,+2)
    w1b = np.zeros((128, 1024), np.float32)   # conv rows 4k+1 (slab rows +1,+2,+3)
    w1a[0:96] = t1.reshape(96, 1024)
    w1b[32:128] = t1.reshape(96, 1024)

    b1v = np.zeros((1, 512), np.float32)      # zero on conv2 padding columns 0,15
    for j2 in range(1, 15):
        b1v[0, j2 * 32:(j2 + 1) * 32] = b1

    # conv2: T2[ky][j*32 + c, dw*512 + wo*64 + d] = w2[d, c, ky, j - (2*wo+dw)]
    t2 = np.zeros((3, 512, 1024), np.float32)
    for ky in range(3):
        for wo in range(7):
            for dw in range(2):
                w_col = 2 * wo + dw
                lane0 = dw * 512 + wo * 64
                for kx in range(3):
                    j = w_col + kx          # padded conv2-input column (0..15)
                    t2[ky, j * 32:(j + 1) * 32, lane0:lane0 + 64] = w2[:, :, ky, kx].T
    b2v = np.zeros((1, 512), np.float32)
    for wo in range(7):
        b2v[0, wo * 64:(wo + 1) * 64] = b2

    # fc1: permute rows so the kernel's (row t, wo*64+d) flatten (with 64 unused
    # lanes per row and one junk row per image, all zero-weighted) matches
    # PyTorch's NCHW Flatten + Linear semantics.
    fc1 = np.asarray(p["fc1_w"], np.float32)                        # (128, 3136)
    fc1_perm = fc1.reshape(128, 64, 7, 7).transpose(2, 3, 1, 0)     # (t, wo, d, out)
    fc1_wp = np.zeros((8, 512, 128), np.float32)
    fc1_wp[:7, :448, :] = fc1_perm.reshape(7, 448, 128)
    fc1_wp = fc1_wp.reshape(4096, 128)

    return {
        "w1a": jnp.asarray(w1a, jnp.bfloat16),
        "w1b": jnp.asarray(w1b, jnp.bfloat16),
        "b1v": jnp.asarray(b1v),
        "t20": jnp.asarray(t2[0], jnp.bfloat16),
        "t21": jnp.asarray(t2[1], jnp.bfloat16),
        "t22": jnp.asarray(t2[2], jnp.bfloat16),
        "b2v": jnp.asarray(b2v),
        "fc1_w": jnp.asarray(fc1_wp, jnp.bfloat16),
        "fc1_b": jnp.asarray(p["fc1_b"], jnp.float32).reshape(1, 128),
        "fc2_w": jnp.asarray(np.asarray(p["fc2_w"], np.float32).T, jnp.bfloat16),
        "fc2_b": jnp.asarray(p["fc2_b"], jnp.float32).reshape(1, 10),
    }


# ----------------------------------------------------------------------------
# Forward pass (eval mode)
# ----------------------------------------------------------------------------
def forward(prep, x_nchw):
    feats = conv_block(prep, x_nchw)          # (N, 4096) bf16, lane-dense
    return fc_head(prep, feats)               # (N, 10) f32 logits


# ----------------------------------------------------------------------------
# Pure-JAX reference (mirrors the PyTorch module exactly, f32)
# ----------------------------------------------------------------------------
def reference_forward(p, x_nchw):
    x = x_nchw.astype(jnp.float32)

    def block(x, w, b):
        y = lax.conv_general_dilated(
            x, w, window_strides=(1, 1), padding=((1, 1), (1, 1)),
            dimension_numbers=("NCHW", "OIHW", "NCHW"))
        y = jnp.maximum(y + b[None, :, None, None], 0.0)
        return lax.reduce_window(y, -jnp.inf, lax.max,
                                 (1, 1, 2, 2), (1, 1, 2, 2), "VALID")

    x = block(x, p["conv1_w"], p["conv1_b"])
    x = block(x, p["conv2_w"], p["conv2_b"])
    x = x.reshape(x.shape[0], -1)
    x = jnp.maximum(x @ p["fc1_w"].T + p["fc1_b"], 0.0)
    return x @ p["fc2_w"].T + p["fc2_b"]


if __name__ == "__main__":
    key = jax.random.PRNGKey(0)
    pkey, xkey = jax.random.split(key)
    params = init_params(pkey)
    prep = prepare_params(params)

    # Fashion-MNIST shaped input, small batch: NCHW (2, 1, 28, 28).
    x = jax.random.normal(xkey, (2, 1, 28, 28), jnp.float32)

    out = jax.jit(forward)(prep, x)
    out = jax.block_until_ready(out)

    assert out.shape == (2, 10), out.shape
    assert out.dtype == jnp.float32
    assert bool(jnp.all(jnp.isfinite(out)))

    # Cross-check against the f32 XLA reference (bf16 MXU operands in the
    # kernels => small tolerance).
    ref = reference_forward(params, x)
    max_err = float(jnp.max(jnp.abs(out - ref)))
    assert max_err < 5e-2, f"max abs error vs reference: {max_err}"

    print("KERNEL_OK")
</pallas_src>

<mosaic_0001>
module attributes {stable_mosaic.version = 11 : i64} {
  func.func @_conv_block_kernel(%arg0: i32, %arg1: memref<16x128xbf16, #tpu.memory_space<vmem>>, %arg2: memref<16x128xbf16, #tpu.memory_space<vmem>>, %arg3: memref<128x1024xbf16, #tpu.memory_space<vmem>>, %arg4: memref<128x1024xbf16, #tpu.memory_space<vmem>>, %arg5: memref<1x512xf32, #tpu.memory_space<vmem>>, %arg6: memref<512x1024xbf16, #tpu.memory_space<vmem>>, %arg7: memref<512x1024xbf16, #tpu.memory_space<vmem>>, %arg8: memref<512x1024xbf16, #tpu.memory_space<vmem>>, %arg9: memref<1x512xf32, #tpu.memory_space<vmem>>, %arg10: memref<16x512xbf16, #tpu.memory_space<vmem>>) attributes {dimension_semantics = [#tpu.dimension_semantics<parallel>], iteration_bounds = array<i64: 1>, scalar_prefetch = 0 : i64, scratch_operands = 0 : i64, tpu.core_type = #tpu.core_type<tc>, window_params = [{transform_indices = @transform_0, window_bounds = array<i64: 16, 128>}, {transform_indices = @transform_1, window_bounds = array<i64: 16, 128>}, {pipeline_mode = #tpu.pipeline_mode<synchronous>, transform_indices = @transform_2, window_bounds = array<i64: 128, 1024>}, {pipeline_mode = #tpu.pipeline_mode<synchronous>, transform_indices = @transform_3, window_bounds = array<i64: 128, 1024>}, {pipeline_mode = #tpu.pipeline_mode<synchronous>, transform_indices = @transform_4, window_bounds = array<i64: 1, 512>}, {pipeline_mode = #tpu.pipeline_mode<synchronous>, transform_indices = @transform_5, window_bounds = array<i64: 512, 1024>}, {pipeline_mode = #tpu.pipeline_mode<synchronous>, transform_indices = @transform_6, window_bounds = array<i64: 512, 1024>}, {pipeline_mode = #tpu.pipeline_mode<synchronous>, transform_indices = @transform_7, window_bounds = array<i64: 512, 1024>}, {pipeline_mode = #tpu.pipeline_mode<synchronous>, transform_indices = @transform_8, window_bounds = array<i64: 1, 512>}, {transform_indices = @transform_9, window_bounds = array<i64: 16, 512>}]} {
    %c0 = arith.constant 0 : index
    %c0_0 = arith.constant 0 : index
    %0 = vector.load %arg1[%c0, %c0_0] : memref<16x128xbf16, #tpu.memory_space<vmem>>, vector<16x128xbf16>
    %c0_1 = arith.constant 0 : index
    %c0_2 = arith.constant 0 : index
    %1 = vector.load %arg2[%c0_1, %c0_2] : memref<16x128xbf16, #tpu.memory_space<vmem>>, vector<16x128xbf16>
    %c0_3 = arith.constant 0 : index
    %c0_4 = arith.constant 0 : index
    %2 = vector.load %arg3[%c0_3, %c0_4] : memref<128x1024xbf16, #tpu.memory_space<vmem>>, vector<128x1024xbf16>
    %cst = arith.constant dense<0.000000e+00> : vector<16x1024xf32>
    %3 = tpu.matmul %0, %2, %cst {dimension_numbers = #tpu.dot_dimension_numbers<[1], [0], [0], [1], [0, 0, 1, 1], [], []>} : vector<16x128xbf16>, vector<128x1024xbf16>, vector<16x1024xf32> -> vector<16x1024xf32>
    %c0_5 = arith.constant 0 : index
    %c0_6 = arith.constant 0 : index
    %4 = vector.load %arg4[%c0_5, %c0_6] : memref<128x1024xbf16, #tpu.memory_space<vmem>>, vector<128x1024xbf16>
    %cst_7 = arith.constant dense<0.000000e+00> : vector<16x1024xf32>
    %5 = tpu.matmul %0, %4, %cst_7 {dimension_numbers = #tpu.dot_dimension_numbers<[1], [0], [0], [1], [0, 0, 1, 1], [], []>} : vector<16x128xbf16>, vector<128x1024xbf16>, vector<16x1024xf32> -> vector<16x1024xf32>
    %c0_8 = arith.constant 0 : index
    %c0_9 = arith.constant 0 : index
    %6 = vector.load %arg3[%c0_8, %c0_9] : memref<128x1024xbf16, #tpu.memory_space<vmem>>, vector<128x1024xbf16>
    %cst_10 = arith.constant dense<0.000000e+00> : vector<16x1024xf32>
    %7 = tpu.matmul %1, %6, %cst_10 {dimension_numbers = #tpu.dot_dimension_numbers<[1], [0], [0], [1], [0, 0, 1, 1], [], []>} : vector<16x128xbf16>, vector<128x1024xbf16>, vector<16x1024xf32> -> vector<16x1024xf32>
    %c0_11 = arith.constant 0 : index
    %c0_12 = arith.constant 0 : index
    %8 = vector.load %arg4[%c0_11, %c0_12] : memref<128x1024xbf16, #tpu.memory_space<vmem>>, vector<128x1024xbf16>
    %cst_13 = arith.constant dense<0.000000e+00> : vector<16x1024xf32>
    %9 = tpu.matmul %1, %8, %cst_13 {dimension_numbers = #tpu.dot_dimension_numbers<[1], [0], [0], [1], [0, 0, 1, 1], [], []>} : vector<16x128xbf16>, vector<128x1024xbf16>, vector<16x1024xf32> -> vector<16x1024xf32>
    %c0_14 = arith.constant 0 : index
    %c0_15 = arith.constant 0 : index
    %10 = vector.load %arg5[%c0_14, %c0_15] : memref<1x512xf32, #tpu.memory_space<vmem>>, vector<1x512xf32>
    %11 = arith.maximumf %3, %5 : vector<16x1024xf32>
    %12 = arith.maximumf %7, %9 : vector<16x1024xf32>
    %13 = vector.extract_strided_slice %11 {offsets = [0, 0], sizes = [16, 512], strides = [1, 1]} : vector<16x1024xf32> to vector<16x512xf32>
    %14 = vector.extract_strided_slice %11 {offsets = [0, 512], sizes = [16, 512], strides = [1, 1]} : vector<16x1024xf32> to vector<16x512xf32>
    %15 = arith.maximumf %13, %14 : vector<16x512xf32>
    %16 = vector.extract_strided_slice %12 {offsets = [0, 0], sizes = [16, 512], strides = [1, 1]} : vector<16x1024xf32> to vector<16x512xf32>
    %17 = vector.extract_strided_slice %12 {offsets = [0, 512], sizes = [16, 512], strides = [1, 1]} : vector<16x1024xf32> to vector<16x512xf32>
    %18 = arith.maximumf %16, %17 : vector<16x512xf32>
    %19 = vector.broadcast %10 : vector<1x512xf32> to vector<16x512xf32>
    %20 = arith.addf %15, %19 : vector<16x512xf32>
    %cst_16 = arith.constant 0.000000e+00 : f32
    %21 = vector.broadcast %cst_16 : f32 to vector<16x512xf32>
    %22 = arith.maximumf %20, %21 : vector<16x512xf32>
    %23 = vector.broadcast %10 : vector<1x512xf32> to vector<16x512xf32>
    %24 = arith.addf %18, %23 : vector<16x512xf32>
    %cst_17 = arith.constant 0.000000e+00 : f32
    %25 = vector.broadcast %cst_17 : f32 to vector<16x512xf32>
    %26 = arith.maximumf %24, %25 : vector<16x512xf32>
    %27 = tpu.iota {dimensions = array<i32: 0>} : vector<16x512xi32>
    %c8_i32 = arith.constant 8 : i32
    %c0_i32 = arith.constant 0 : i32
    %28 = arith.cmpi eq, %c8_i32, %c0_i32 : i32
    %c1_i32 = arith.constant 1 : i32
    %29 = arith.select %28, %c1_i32, %c8_i32 : i32
    %30 = vector.broadcast %29 : i32 to vector<16x512xi32>
    %31 = arith.remsi %27, %30 : vector<16x512xi32>
    %c0_i32_18 = arith.constant 0 : i32
    %32 = vector.broadcast %c0_i32_18 : i32 to vector<16x512xi32>
    %33 = arith.cmpi ne, %31, %32 : vector<16x512xi32>
    %c0_i32_19 = arith.constant 0 : i32
    %34 = vector.broadcast %c0_i32_19 : i32 to vector<16x512xi32>
    %35 = arith.cmpi slt, %31, %34 : vector<16x512xi32>
    %c0_i32_20 = arith.constant 0 : i32
    %36 = arith.cmpi slt, %29, %c0_i32_20 : i32
    %37 = vector.broadcast %36 : i1 to vector<16x512xi1>
    %38 = vector.broadcast %37 : vector<16x512xi1> to vector<16x512xi1>
    %39 = arith.xori %35, %38 : vector<16x512xi1>
    %40 = arith.andi %39, %33 : vector<16x512xi1>
    %41 = vector.broadcast %29 : i32 to vector<16x512xi32>
    %42 = arith.addi %31, %41 : vector<16x512xi32>
    %43 = arith.select %40, %42, %31 : vector<16x512xi1>, vector<16x512xi32>
    %c1_i32_21 = arith.constant 1 : i32
    %44 = vector.broadcast %c1_i32_21 : i32 to vector<16x512xi32>
    %45 = arith.cmpi sge, %43, %44 : vector<16x512xi32>
    %cst_22 = arith.constant 0.000000e+00 : f32
    %46 = vector.broadcast %cst_22 : f32 to vector<16x512xf32>
    %47 = arith.select %45, %26, %46 : vector<16x512xi1>, vector<16x512xf32>
    %48 = arith.truncf %47 : vector<16x512xf32> to vector<16x512xbf16>
    %c6_i32 = arith.constant 6 : i32
    %49 = vector.broadcast %c6_i32 : i32 to vector<16x512xi32>
    %50 = arith.cmpi sle, %43, %49 : vector<16x512xi32>
    %cst_23 = arith.constant 0.000000e+00 : f32
    %51 = vector.broadcast %cst_23 : f32 to vector<16x512xf32>
    %52 = arith.select %50, %22, %51 : vector<16x512xi1>, vector<16x512xf32>
    %53 = arith.truncf %52 : vector<16x512xf32> to vector<16x512xbf16>
    %54 = tpu.iota {dimensions = array<i32: 0>} : vector<16x16xi32>
    %55 = tpu.iota {dimensions = array<i32: 1>} : vector<16x16xi32>
    %c1_i32_24 = arith.constant 1 : i32
    %56 = vector.broadcast %c1_i32_24 : i32 to vector<16x16xi32>
    %57 = arith.addi %54, %56 : vector<16x16xi32>
    %58 = arith.cmpi eq, %55, %57 : vector<16x16xi32>
    %59 = arith.extui %58 : vector<16x16xi1> to vector<16x16xi32>
    %60 = arith.sitofp %59 : vector<16x16xi32> to vector<16x16xf32>
    %61 = arith.truncf %60 : vector<16x16xf32> to vector<16x16xbf16>
    %cst_25 = arith.constant dense<0.000000e+00> : vector<16x512xf32>
    %62 = tpu.matmul %61, %48, %cst_25 {dimension_numbers = #tpu.dot_dimension_numbers<[1], [0], [0], [1], [0, 0, 1, 1], [], []>} : vector<16x16xbf16>, vector<16x512xbf16>, vector<16x512xf32> -> vector<16x512xf32>
    %63 = arith.truncf %62 : vector<16x512xf32> to vector<16x512xbf16>
    %cst_26 = arith.constant dense<0.000000e+00> : vector<16x512xf32>
    %64 = tpu.matmul %61, %53, %cst_26 {dimension_numbers = #tpu.dot_dimension_numbers<[1], [0], [0], [1], [0, 0, 1, 1], [], []>} : vector<16x16xbf16>, vector<16x512xbf16>, vector<16x512xf32> -> vector<16x512xf32>
    %65 = arith.truncf %64 : vector<16x512xf32> to vector<16x512xbf16>
    %c0_27 = arith.constant 0 : index
    %c0_28 = arith.constant 0 : index
    %66 = vector.load %arg6[%c0_27, %c0_28] : memref<512x1024xbf16, #tpu.memory_space<vmem>>, vector<512x1024xbf16>
    %c0_29 = arith.constant 0 : index
    %c0_30 = arith.constant 0 : index
    %67 = vector.load %arg7[%c0_29, %c0_30] : memref<512x1024xbf16, #tpu.memory_space<vmem>>, vector<512x1024xbf16>
    %c0_31 = arith.constant 0 : index
    %c0_32 = arith.constant 0 : index
    %68 = vector.load %arg8[%c0_31, %c0_32] : memref<512x1024xbf16, #tpu.memory_space<vmem>>, vector<512x1024xbf16>
    %cst_33 = arith.constant dense<0.000000e+00> : vector<16x1024xf32>
    %69 = tpu.matmul %48, %66, %cst_33 {dimension_numbers = #tpu.dot_dimension_numbers<[1], [0], [0], [1], [0, 0, 1, 1], [], []>} : vector<16x512xbf16>, vector<512x1024xbf16>, vector<16x1024xf32> -> vector<16x1024xf32>
    %cst_34 = arith.constant dense<0.000000e+00> : vector<16x1024xf32>
    %70 = tpu.matmul %53, %67, %cst_34 {dimension_numbers = #tpu.dot_dimension_numbers<[1], [0], [0], [1], [0, 0, 1, 1], [], []>} : vector<16x512xbf16>, vector<512x1024xbf16>, vector<16x1024xf32> -> vector<16x1024xf32>
    %71 = arith.addf %69, %70 : vector<16x1024xf32>
    %cst_35 = arith.constant dense<0.000000e+00> : vector<16x1024xf32>
    %72 = tpu.matmul %63, %68, %cst_35 {dimension_numbers = #tpu.dot_dimension_numbers<[1], [0], [0], [1], [0, 0, 1, 1], [], []>} : vector<16x512xbf16>, vector<512x1024xbf16>, vector<16x1024xf32> -> vector<16x1024xf32>
    %73 = arith.addf %71, %72 : vector<16x1024xf32>
    %cst_36 = arith.constant dense<0.000000e+00> : vector<16x1024xf32>
    %74 = tpu.matmul %53, %66, %cst_36 {dimension_numbers = #tpu.dot_dimension_numbers<[1], [0], [0], [1], [0, 0, 1, 1], [], []>} : vector<16x512xbf16>, vector<512x1024xbf16>, vector<16x1024xf32> -> vector<16x1024xf32>
    %cst_37 = arith.constant dense<0.000000e+00> : vector<16x1024xf32>
    %75 = tpu.matmul %63, %67, %cst_37 {dimension_numbers = #tpu.dot_dimension_numbers<[1], [0], [0], [1], [0, 0, 1, 1], [], []>} : vector<16x512xbf16>, vector<512x1024xbf16>, vector<16x1024xf32> -> vector<16x1024xf32>
    %76 = arith.addf %74, %75 : vector<16x1024xf32>
    %cst_38 = arith.constant dense<0.000000e+00> : vector<16x1024xf32>
    %77 = tpu.matmul %65, %68, %cst_38 {dimension_numbers = #tpu.dot_dimension_numbers<[1], [0], [0], [1], [0, 0, 1, 1], [], []>} : vector<16x512xbf16>, vector<512x1024xbf16>, vector<16x1024xf32> -> vector<16x1024xf32>
    %78 = arith.addf %76, %77 : vector<16x1024xf32>
    %79 = arith.maximumf %73, %78 : vector<16x1024xf32>
    %80 = vector.extract_strided_slice %79 {offsets = [0, 0], sizes = [16, 512], strides = [1, 1]} : vector<16x1024xf32> to vector<16x512xf32>
    %81 = vector.extract_strided_slice %79 {offsets = [0, 512], sizes = [16, 512], strides = [1, 1]} : vector<16x1024xf32> to vector<16x512xf32>
    %82 = arith.maximumf %80, %81 : vector<16x512xf32>
    %c0_39 = arith.constant 0 : index
    %c0_40 = arith.constant 0 : index
    %83 = vector.load %arg9[%c0_39, %c0_40] : memref<1x512xf32, #tpu.memory_space<vmem>>, vector<1x512xf32>
    %84 = vector.broadcast %83 : vector<1x512xf32> to vector<16x512xf32>
    %85 = arith.addf %82, %84 : vector<16x512xf32>
    %cst_41 = arith.constant 0.000000e+00 : f32
    %86 = vector.broadcast %cst_41 : f32 to vector<16x512xf32>
    %87 = arith.maximumf %85, %86 : vector<16x512xf32>
    %88 = arith.truncf %87 : vector<16x512xf32> to vector<16x512xbf16>
    %c0_42 = arith.constant 0 : index
    %c0_43 = arith.constant 0 : index
    %89 = vector.load %arg10[%c0_42, %c0_43] : memref<16x512xbf16, #tpu.memory_space<vmem>>, vector<16x512xbf16>
    tpu.vector_store %arg10[%c0_42, %c0_43], %88 {strides = array<i32>} : memref<16x512xbf16, #tpu.memory_space<vmem>>, vector<16x512xbf16>,
    return
  }
  func.func @transform_0(%arg0: i32) -> (i32, i32) {
    %c0_i32 = arith.constant 0 : i32
    %c0_i32_0 = arith.constant 0 : i32
    return %arg0, %c0_i32 : i32, i32
  }
  func.func @transform_1(%arg0: i32) -> (i32, i32) {
    %c0_i32 = arith.constant 0 : i32
    %c0_i32_0 = arith.constant 0 : i32
    return %arg0, %c0_i32 : i32, i32
  }
  func.func @transform_2(%arg0: i32) -> (i32, i32) {
    %c0_i32 = arith.constant 0 : i32
    %c0_i32_0 = arith.constant 0 : i32
    %c0_i32_1 = arith.constant 0 : i32
    return %c0_i32, %c0_i32_0 : i32, i32
  }
  func.func @transform_3(%arg0: i32) -> (i32, i32) {
    %c0_i32 = arith.constant 0 : i32
    %c0_i32_0 = arith.constant 0 : i32
    %c0_i32_1 = arith.constant 0 : i32
    return %c0_i32, %c0_i32_0 : i32, i32
  }
  func.func @transform_4(%arg0: i32) -> (i32, i32) {
    %c0_i32 = arith.constant 0 : i32
    %c0_i32_0 = arith.constant 0 : i32
    %c0_i32_1 = arith.constant 0 : i32
    return %c0_i32, %c0_i32_0 : i32, i32
  }
  func.func @transform_5(%arg0: i32) -> (i32, i32) {
    %c0_i32 = arith.constant 0 : i32
    %c0_i32_0 = arith.constant 0 : i32
    %c0_i32_1 = arith.constant 0 : i32
    return %c0_i32, %c0_i32_0 : i32, i32
  }
  func.func @transform_6(%arg0: i32) -> (i32, i32) {
    %c0_i32 = arith.constant 0 : i32
    %c0_i32_0 = arith.constant 0 : i32
    %c0_i32_1 = arith.constant 0 : i32
    return %c0_i32, %c0_i32_0 : i32, i32
  }
  func.func @transform_7(%arg0: i32) -> (i32, i32) {
    %c0_i32 = arith.constant 0 : i32
    %c0_i32_0 = arith.constant 0 : i32
    %c0_i32_1 = arith.constant 0 : i32
    return %c0_i32, %c0_i32_0 : i32, i32
  }
  func.func @transform_8(%arg0: i32) -> (i32, i32) {
    %c0_i32 = arith.constant 0 : i32
    %c0_i32_0 = arith.constant 0 : i32
    %c0_i32_1 = arith.constant 0 : i32
    return %c0_i32, %c0_i32_0 : i32, i32
  }
  func.func @transform_9(%arg0: i32) -> (i32, i32) {
    %c0_i32 = arith.constant 0 : i32
    %c0_i32_0 = arith.constant 0 : i32
    return %arg0, %c0_i32 : i32, i32
  }
}

module attributes {stable_mosaic.version = 11 : i64} {
  func.func @_fc_head_kernel(%arg0: i32, %arg1: memref<2x4096xbf16, #tpu.memory_space<vmem>>, %arg2: memref<4096x128xbf16, #tpu.memory_space<vmem>>, %arg3: memref<1x128xf32, #tpu.memory_space<vmem>>, %arg4: memref<128x10xbf16, #tpu.memory_space<vmem>>, %arg5: memref<1x10xf32, #tpu.memory_space<vmem>>, %arg6: memref<2x10xf32, #tpu.memory_space<vmem>>) attributes {dimension_semantics = [#tpu.dimension_semantics<parallel>], iteration_bounds = array<i64: 1>, scalar_prefetch = 0 : i64, scratch_operands = 0 : i64, tpu.core_type = #tpu.core_type<tc>, window_params = [{transform_indices = @transform_0, window_bounds = array<i64: 2, 4096>}, {pipeline_mode = #tpu.pipeline_mode<synchronous>, transform_indices = @transform_1, window_bounds = array<i64: 4096, 128>}, {pipeline_mode = #tpu.pipeline_mode<synchronous>, transform_indices = @transform_2, window_bounds = array<i64: 1, 128>}, {pipeline_mode = #tpu.pipeline_mode<synchronous>, transform_indices = @transform_3, window_bounds = array<i64: 128, 10>}, {pipeline_mode = #tpu.pipeline_mode<synchronous>, transform_indices = @transform_4, window_bounds = array<i64: 1, 10>}, {transform_indices = @transform_5, window_bounds = array<i64: 2, 10>}]} {
    %c0 = arith.constant 0 : index
    %c0_0 = arith.constant 0 : index
    %0 = vector.load %arg1[%c0, %c0_0] : memref<2x4096xbf16, #tpu.memory_space<vmem>>, vector<2x4096xbf16>
    %c0_1 = arith.constant 0 : index
    %c0_2 = arith.constant 0 : index
    %1 = vector.load %arg2[%c0_1, %c0_2] : memref<4096x128xbf16, #tpu.memory_space<vmem>>, vector<4096x128xbf16>
    %cst = arith.constant dense<0.000000e+00> : vector<2x128xf32>
    %2 = tpu.matmul %0, %1, %cst {dimension_numbers = #tpu.dot_dimension_numbers<[1], [0], [0], [1], [0, 0, 1, 1], [], []>} : vector<2x4096xbf16>, vector<4096x128xbf16>, vector<2x128xf32> -> vector<2x128xf32>
    %c0_3 = arith.constant 0 : index
    %c0_4 = arith.constant 0 : index
    %3 = vector.load %arg3[%c0_3, %c0_4] : memref<1x128xf32, #tpu.memory_space<vmem>>, vector<1x128xf32>
    %4 = vector.broadcast %3 : vector<1x128xf32> to vector<2x128xf32>
    %5 = arith.addf %2, %4 : vector<2x128xf32>
    %cst_5 = arith.constant 0.000000e+00 : f32
    %6 = vector.broadcast %cst_5 : f32 to vector<2x128xf32>
    %7 = arith.maximumf %5, %6 : vector<2x128xf32>
    %8 = arith.truncf %7 : vector<2x128xf32> to vector<2x128xbf16>
    %c0_6 = arith.constant 0 : index
    %c0_7 = arith.constant 0 : index
    %9 = vector.load %arg4[%c0_6, %c0_7] : memref<128x10xbf16, #tpu.memory_space<vmem>>, vector<128x10xbf16>
    %cst_8 = arith.constant dense<0.000000e+00> : vector<2x10xf32>
    %10 = tpu.matmul %8, %9, %cst_8 {dimension_numbers = #tpu.dot_dimension_numbers<[1], [0], [0], [1], [0, 0, 1, 1], [], []>} : vector<2x128xbf16>, vector<128x10xbf16>, vector<2x10xf32> -> vector<2x10xf32>
    %c0_9 = arith.constant 0 : index
    %c0_10 = arith.constant 0 : index
    %11 = vector.load %arg5[%c0_9, %c0_10] : memref<1x10xf32, #tpu.memory_space<vmem>>, vector<1x10xf32>
    %12 = vector.broadcast %11 : vector<1x10xf32> to vector<2x10xf32>
    %13 = arith.addf %10, %12 : vector<2x10xf32>
    %c0_11 = arith.constant 0 : index
    %c0_12 = arith.constant 0 : index
    %14 = vector.load %arg6[%c0_11, %c0_12] : memref<2x10xf32, #tpu.memory_space<vmem>>, vector<2x10xf32>
    tpu.vector_store %arg6[%c0_11, %c0_12], %13 {strides = array<i32>} : memref<2x10xf32, #tpu.memory_space<vmem>>, vector<2x10xf32>,
    return
  }
  func.func @transform_0(%arg0: i32) -> (i32, i32) {
    %c0_i32 = arith.constant 0 : i32
    %c0_i32_0 = arith.constant 0 : i32
    return %arg0, %c0_i32 : i32, i32
  }
  func.func @transform_1(%arg0: i32) -> (i32, i32) {
    %c0_i32 = arith.constant 0 : i32
    %c0_i32_0 = arith.constant 0 : i32
    %c0_i32_1 = arith.constant 0 : i32
    return %c0_i32, %c0_i32_0 : i32, i32
  }
  func.func @transform_2(%arg0: i32) -> (i32, i32) {
    %c0_i32 = arith.constant 0 : i32
    %c0_i32_0 = arith.constant 0 : i32
    %c0_i32_1 = arith.constant 0 : i32
    return %c0_i32, %c0_i32_0 : i32, i32
  }
  func.func @transform_3(%arg0: i32) -> (i32, i32) {
    %c0_i32 = arith.constant 0 : i32
    %c0_i32_0 = arith.constant 0 : i32
    %c0_i32_1 = arith.constant 0 : i32
    return %c0_i32, %c0_i32_0 : i32, i32
  }
  func.func @transform_4(%arg0: i32) -> (i32, i32) {
    %c0_i32 = arith.constant 0 : i32
    %c0_i32_0 = arith.constant 0 : i32
    %c0_i32_1 = arith.constant 0 : i32
    return %c0_i32, %c0_i32_0 : i32, i32
  }
  func.func @transform_5(%arg0: i32) -> (i32, i32) {
    %c0_i32 = arith.constant 0 : i32
    %c0_i32_0 = arith.constant 0 : i32
    return %arg0, %c0_i32 : i32, i32
  }
}

</mosaic_0001>

<llo_original>
// kernel: forward.3
$region0: #{forward.3}
  #allocation0 [shape = 'u32[]', space=smem, size = 0x4, offset = 0x4, fixed_abs, tag = 'smem constant byte address 0x4 - core index']
  #allocation1 [shape = 'u32[144,128]{1,0:T(1,128)}', space=vmem, size = 0x12000, scoped, tag = 'internal scratch']
  %s0 = inlined_call_operand.vmem [shape: bf16[2,4096], index: 0, kind: input, shape index: {}]
  %s1 = inlined_call_operand.vmem [shape: bf16[4096,128], index: 1, kind: input, shape index: {}]
  %s2 = inlined_call_operand.vmem [shape: f32[1,128], index: 2, kind: input, shape index: {}]
  %s3 = inlined_call_operand.vmem [shape: bf16[128,10], index: 3, kind: input, shape index: {}]
  %s4 = inlined_call_operand.vmem [shape: f32[1,10], index: 4, kind: input, shape index: {}]
  %s5 = inlined_call_operand.hbm [shape: f32[2,10], index: 5, kind: output, shape index: {}]
  %s6 = sld [smem:[#allocation0]]
  $region30: #{forward.3} parent=0
    _
  %s8 = ssub.s32 1, %s6
  %s9 = scalar_select 0, %s8, %s6
  $region1: #{forward.3} parent=0
    #allocation2 [shape = 'u8[1024]{0}', space=vmem, size = 0x400, scoped, tag = 'output window, operand 0, single buffered']
    #allocation3 [shape = 's32[1]{0}', space=sflag, size = 0x4, scoped, tag = 'scoped memory for forward.3']
    %10 = vsyncpa [#allocation3], 0
    // Predicated region
    $region2: #{forward.3} parent=1 // pred_check
      _
    $region3: #{forward.3} parent=1 // pred_check_branch
      %12 = sbr.rel (0) target = $region5
    $region4: #{forward.3} parent=1 // pred_region
      _
    $region5: #{forward.3} parent=1 // pred_fallthru
      _
    // Predicated region
    $region6: #{forward.3} parent=1 // pred_check
      _
    $region7: #{forward.3} parent=1 // pred_check_branch
      %14 = sbr.rel (0) target = $region9
    $region8: #{forward.3} parent=1 // pred_region
      _
    $region9: #{forward.3} parent=1 // pred_fallthru
      _
    // Predicated region
    $region10: #{forward.3} parent=1 // pred_check
      _
    $region11: #{forward.3} parent=1 // pred_check_branch
      %16 = sbr.rel (0) target = $region13
    $region12: #{forward.3} parent=1 // pred_region
      _
    $region13: #{forward.3} parent=1 // pred_fallthru
      _
    // Predicated region
    $region14: #{forward.3} parent=1 // pred_check
      _
    $region15: #{forward.3} parent=1 // pred_check_branch
      %18 = sbr.rel (0) target = $region17
    $region16: #{forward.3} parent=1 // pred_region
      _
    $region17: #{forward.3} parent=1 // pred_fallthru
      _
    // Predicated region
    $region18: #{forward.3} parent=1 // pred_check
      _
    $region19: #{forward.3} parent=1 // pred_check_branch
      %20 = sbr.rel (0) target = $region21
    $region20: #{forward.3} parent=1 // pred_region
      _
    $region21: #{forward.3} parent=1 // pred_fallthru
      _
    %v22 = vld [vmem:[%s0] sm:$0xff]
    %v23 = vld [vmem:[%s0 + $0x8] sm:$0xff]
    %v24 = vld [vmem:[%s0 + $0x10] sm:$0xff]
    %v25 = vld [vmem:[%s0 + $0x18] sm:$0xff]
    %v26 = vld [vmem:[%s1] sm:$0xf]
    %v27 = vld [vmem:[%s1 + $0x4] sm:$0xf]
    %v28 = vld [vmem:[%s1 + $0x8] sm:$0xf]
    %v29 = vld [vmem:[%s1 + $0xc] sm:$0xf]
    %v30 = vld [vmem:[%s1 + $0x10] sm:$0xf]
    %v31 = vld [vmem:[%s1 + $0x14] sm:$0xf]
    %v32 = vld [vmem:[%s1 + $0x18] sm:$0xf]
    %v33 = vld [vmem:[%s1 + $0x1c] sm:$0xf]
    %v34 = vld [vmem:[%s1 + $0x20] sm:$0xf]
    %v35 = vld [vmem:[%s1 + $0x24] sm:$0xf]
    %v36 = vld [vmem:[%s1 + $0x28] sm:$0xf]
    %v37 = vld [vmem:[%s1 + $0x2c] sm:$0xf]
    %v38 = vld [vmem:[%s1 + $0x30] sm:$0xf]
    %v39 = vld [vmem:[%s1 + $0x34] sm:$0xf]
    %v40 = vld [vmem:[%s1 + $0x38] sm:$0xf]
    %v41 = vld [vmem:[%s1 + $0x3c] sm:$0xf]
    %v42 = vld [vmem:[%s1 + $0x40] sm:$0xf]
    %v43 = vld [vmem:[%s1 + $0x44] sm:$0xf]
    %v44 = vld [vmem:[%s1 + $0x48] sm:$0xf]
    %v45 = vld [vmem:[%s1 + $0x4c] sm:$0xf]
    %v46 = vld [vmem:[%s1 + $0x50] sm:$0xf]
    %v47 = vld [vmem:[%s1 + $0x54] sm:$0xf]
    %v48 = vld [vmem:[%s1 + $0x58] sm:$0xf]
    %v49 = vld [vmem:[%s1 + $0x5c] sm:$0xf]
    %v50 = vld [vmem:[%s1 + $0x60] sm:$0xf]
    %v51 = vld [vmem:[%s1 + $0x64] sm:$0xf]
    %v52 = vld [vmem:[%s1 + $0x68] sm:$0xf]
    %v53 = vld [vmem:[%s1 + $0x6c] sm:$0xf]
    %v54 = vld [vmem:[%s1 + $0x70] sm:$0xf]
    %v55 = vld [vmem:[%s1 + $0x74] sm:$0xf]
    %v56 = vld [vmem:[%s1 + $0x78] sm:$0xf]
    %v57 = vld [vmem:[%s1 + $0x7c] sm:$0xf]
    %v58 = vld [vmem:[%s1 + $0x80] sm:$0xf]
    %v59 = vld [vmem:[%s1 + $0x84] sm:$0xf]
    %v60 = vld [vmem:[%s1 + $0x88] sm:$0xf]
    %v61 = vld [vmem:[%s1 + $0x8c] sm:$0xf]
    %v62 = vld [vmem:[%s1 + $0x90] sm:$0xf]
    %v63 = vld [vmem:[%s1 + $0x94] sm:$0xf]
    %v64 = vld [vmem:[%s1 + $0x98] sm:$0xf]
    %v65 = vld [vmem:[%s1 + $0x9c] sm:$0xf]
    %v66 = vld [vmem:[%s1 + $0xa0] sm:$0xf]
    %v67 = vld [vmem:[%s1 + $0xa4] sm:$0xf]
    %v68 = vld [vmem:[%s1 + $0xa8] sm:$0xf]
    %v69 = vld [vmem:[%s1 + $0xac] sm:$0xf]
    %v70 = vld [vmem:[%s1 + $0xb0] sm:$0xf]
    %v71 = vld [vmem:[%s1 + $0xb4] sm:$0xf]
    %v72 = vld [vmem:[%s1 + $0xb8] sm:$0xf]
    %v73 = vld [vmem:[%s1 + $0xbc] sm:$0xf]
    %v74 = vld [vmem:[%s1 + $0xc0] sm:$0xf]
    %v75 = vld [vmem:[%s1 + $0xc4] sm:$0xf]
    %v76 = vld [vmem:[%s1 + $0xc8] sm:$0xf]
    %v77 = vld [vmem:[%s1 + $0xcc] sm:$0xf]
    %v78 = vld [vmem:[%s1 + $0xd0] sm:$0xf]
    %v79 = vld [vmem:[%s1 + $0xd4] sm:$0xf]
    %v80 = vld [vmem:[%s1 + $0xd8] sm:$0xf]
    %v81 = vld [vmem:[%s1 + $0xdc] sm:$0xf]
    %v82 = vld [vmem:[%s1 + $0xe0] sm:$0xf]
    %v83 = vld [vmem:[%s1 + $0xe4] sm:$0xf]
    %v84 = vld [vmem:[%s1 + $0xe8] sm:$0xf]
    %v85 = vld [vmem:[%s1 + $0xec] sm:$0xf]
    %v86 = vld [vmem:[%s1 + $0xf0] sm:$0xf]
    %v87 = vld [vmem:[%s1 + $0xf4] sm:$0xf]
    %v88 = vld [vmem:[%s1 + $0xf8] sm:$0xf]
    %v89 = vld [vmem:[%s1 + $0xfc] sm:$0xf]
    %v90 = vld [vmem:[%s1 + $0x100] sm:$0xf]
    %v91 = vld [vmem:[%s1 + $0x104] sm:$0xf]
    %v92 = vld [vmem:[%s1 + $0x108] sm:$0xf]
    %v93 = vld [vmem:[%s1 + $0x10c] sm:$0xf]
    %v94 = vld [vmem:[%s1 + $0x110] sm:$0xf]
    %v95 = vld [vmem:[%s1 + $0x114] sm:$0xf]
    %v96 = vld [vmem:[%s1 + $0x118] sm:$0xf]
    %v97 = vld [vmem:[%s1 + $0x11c] sm:$0xf]
    %v98 = vld [vmem:[%s1 + $0x120] sm:$0xf]
    %v99 = vld [vmem:[%s1 + $0x124] sm:$0xf]
    %v100 = vld [vmem:[%s1 + $0x128] sm:$0xf]
    %v101 = vld [vmem:[%s1 + $0x12c] sm:$0xf]
    %v102 = vld [vmem:[%s1 + $0x130] sm:$0xf]
    %v103 = vld [vmem:[%s1 + $0x134] sm:$0xf]
    %v104 = vld [vmem:[%s1 + $0x138] sm:$0xf]
    %v105 = vld [vmem:[%s1 + $0x13c] sm:$0xf]
    %v106 = vld [vmem:[%s1 + $0x140] sm:$0xf]
    %v107 = vld [vmem:[%s1 + $0x144] sm:$0xf]
    %v108 = vld [vmem:[%s1 + $0x148] sm:$0xf]
    %v109 = vld [vmem:[%s1 + $0x14c] sm:$0xf]
    %v110 = vld [vmem:[%s1 + $0x150] sm:$0xf]
    %v111 = vld [vmem:[%s1 + $0x154] sm:$0xf]
    %v112 = vld [vmem:[%s1 + $0x158] sm:$0xf]
    %v113 = vld [vmem:[%s1 + $0x15c] sm:$0xf]
    %v114 = vld [vmem:[%s1 + $0x160] sm:$0xf]
    %v115 = vld [vmem:[%s1 + $0x164] sm:$0xf]
    %v116 = vld [vmem:[%s1 + $0x168] sm:$0xf]
    %v117 = vld [vmem:[%s1 + $0x16c] sm:$0xf]
    %v118 = vld [vmem:[%s1 + $0x170] sm:$0xf]
    %v119 = vld [vmem:[%s1 + $0x174] sm:$0xf]
    %v120 = vld [vmem:[%s1 + $0x178] sm:$0xf]
    %v121 = vld [vmem:[%s1 + $0x17c] sm:$0xf]
    %v122 = vld [vmem:[%s1 + $0x180] sm:$0xf]
    %v123 = vld [vmem:[%s1 + $0x184] sm:$0xf]
    %v124 = vld [vmem:[%s1 + $0x188] sm:$0xf]
    %v125 = vld [vmem:[%s1 + $0x18c] sm:$0xf]
    %v126 = vld [vmem:[%s1 + $0x190] sm:$0xf]
    %v127 = vld [vmem:[%s1 + $0x194] sm:$0xf]
    %v128 = vld [vmem:[%s1 + $0x198] sm:$0xf]
    %v129 = vld [vmem:[%s1 + $0x19c] sm:$0xf]
    %v130 = vld [vmem:[%s1 + $0x1a0] sm:$0xf]
    %v131 = vld [vmem:[%s1 + $0x1a4] sm:$0xf]
    %v132 = vld [vmem:[%s1 + $0x1a8] sm:$0xf]
    %v133 = vld [vmem:[%s1 + $0x1ac] sm:$0xf]
    %v134 = vld [vmem:[%s1 + $0x1b0] sm:$0xf]
    %v135 = vld [vmem:[%s1 + $0x1b4] sm:$0xf]
    %v136 = vld [vmem:[%s1 + $0x1b8] sm:$0xf]
    %v137 = vld [vmem:[%s1 + $0x1bc] sm:$0xf]
    %v138 = vld [vmem:[%s1 + $0x1c0] sm:$0xf]
    %v139 = vld [vmem:[%s1 + $0x1c4] sm:$0xf]
    %v140 = vld [vmem:[%s1 + $0x1c8] sm:$0xf]
    %v141 = vld [vmem:[%s1 + $0x1cc] sm:$0xf]
    %v142 = vld [vmem:[%s1 + $0x1d0] sm:$0xf]
    %v143 = vld [vmem:[%s1 + $0x1d4] sm:$0xf]
    %v144 = vld [vmem:[%s1 + $0x1d8] sm:$0xf]
    %v145 = vld [vmem:[%s1 + $0x1dc] sm:$0xf]
    %v146 = vld [vmem:[%s1 + $0x1e0] sm:$0xf]
    %v147 = vld [vmem:[%s1 + $0x1e4] sm:$0xf]
    %v148 = vld [vmem:[%s1 + $0x1e8] sm:$0xf]
    %v149 = vld [vmem:[%s1 + $0x1ec] sm:$0xf]
    %v150 = vld [vmem:[%s1 + $0x1f0] sm:$0xf]
    %v151 = vld [vmem:[%s1 + $0x1f4] sm:$0xf]
    %v152 = vld [vmem:[%s1 + $0x1f8] sm:$0xf]
    %v153 = vld [vmem:[%s1 + $0x1fc] sm:$0xf]
    %v154 = vld [vmem:[%s1 + $0x200] sm:$0xf]
    %v155 = vld [vmem:[%s1 + $0x204] sm:$0xf]
    %v156 = vld [vmem:[%s1 + $0x208] sm:$0xf]
    %v157 = vld [vmem:[%s1 + $0x20c] sm:$0xf]
    %v158 = vld [vmem:[%s1 + $0x210] sm:$0xf]
    %v159 = vld [vmem:[%s1 + $0x214] sm:$0xf]
    %v160 = vld [vmem:[%s1 + $0x218] sm:$0xf]
    %v161 = vld [vmem:[%s1 + $0x21c] sm:$0xf]
    %v162 = vld [vmem:[%s1 + $0x220] sm:$0xf]
    %v163 = vld [vmem:[%s1 + $0x224] sm:$0xf]
    %v164 = vld [vmem:[%s1 + $0x228] sm:$0xf]
    %v165 = vld [vmem:[%s1 + $0x22c] sm:$0xf]
    %v166 = vld [vmem:[%s1 + $0x230] sm:$0xf]
    %v167 = vld [vmem:[%s1 + $0x234] sm:$0xf]
    %v168 = vld [vmem:[%s1 + $0x238] sm:$0xf]
    %v169 = vld [vmem:[%s1 + $0x23c] sm:$0xf]
    %v170 = vld [vmem:[%s1 + $0x240] sm:$0xf]
    %v171 = vld [vmem:[%s1 + $0x244] sm:$0xf]
    %v172 = vld [vmem:[%s1 + $0x248] sm:$0xf]
    %v173 = vld [vmem:[%s1 + $0x24c] sm:$0xf]
    %v174 = vld [vmem:[%s1 + $0x250] sm:$0xf]
    %v175 = vld [vmem:[%s1 + $0x254] sm:$0xf]
    %v176 = vld [vmem:[%s1 + $0x258] sm:$0xf]
    %v177 = vld [vmem:[%s1 + $0x25c] sm:$0xf]
    %v178 = vld [vmem:[%s1 + $0x260] sm:$0xf]
    %v179 = vld [vmem:[%s1 + $0x264] sm:$0xf]
    %v180 = vld [vmem:[%s1 + $0x268] sm:$0xf]
    %v181 = vld [vmem:[%s1 + $0x26c] sm:$0xf]
    %v182 = vld [vmem:[%s1 + $0x270] sm:$0xf]
    %v183 = vld [vmem:[%s1 + $0x274] sm:$0xf]
    %v184 = vld [vmem:[%s1 + $0x278] sm:$0xf]
    %v185 = vld [vmem:[%s1 + $0x27c] sm:$0xf]
    %v186 = vld [vmem:[%s1 + $0x280] sm:$0xf]
    %v187 = vld [vmem:[%s1 + $0x284] sm:$0xf]
    %v188 = vld [vmem:[%s1 + $0x288] sm:$0xf]
    %v189 = vld [vmem:[%s1 + $0x28c] sm:$0xf]
    %v190 = vld [vmem:[%s1 + $0x290] sm:$0xf]
    %v191 = vld [vmem:[%s1 + $0x294] sm:$0xf]
    %v192 = vld [vmem:[%s1 + $0x298] sm:$0xf]
    %v193 = vld [vmem:[%s1 + $0x29c] sm:$0xf]
    %v194 = vld [vmem:[%s1 + $0x2a0] sm:$0xf]
    %v195 = vld [vmem:[%s1 + $0x2a4] sm:$0xf]
    %v196 = vld [vmem:[%s1 + $0x2a8] sm:$0xf]
    %v197 = vld [vmem:[%s1 + $0x2ac] sm:$0xf]
    %v198 = vld [vmem:[%s1 + $0x2b0] sm:$0xf]
    %v199 = vld [vmem:[%s1 + $0x2b4] sm:$0xf]
    %v200 = vld [vmem:[%s1 + $0x2b8] sm:$0xf]
    %v201 = vld [vmem:[%s1 + $0x2bc] sm:$0xf]
    %v202 = vld [vmem:[%s1 + $0x2c0] sm:$0xf]
    %v203 = vld [vmem:[%s1 + $0x2c4] sm:$0xf]
    %v204 = vld [vmem:[%s1 + $0x2c8] sm:$0xf]
    %v205 = vld [vmem:[%s1 + $0x2cc] sm:$0xf]
    %v206 = vld [vmem:[%s1 + $0x2d0] sm:$0xf]
    %v207 = vld [vmem:[%s1 + $0x2d4] sm:$0xf]
    %v208 = vld [vmem:[%s1 + $0x2d8] sm:$0xf]
    %v209 = vld [vmem:[%s1 + $0x2dc] sm:$0xf]
    %v210 = vld [vmem:[%s1 + $0x2e0] sm:$0xf]
    %v211 = vld [vmem:[%s1 + $0x2e4] sm:$0xf]
    %v212 = vld [vmem:[%s1 + $0x2e8] sm:$0xf]
    %v213 = vld [vmem:[%s1 + $0x2ec] sm:$0xf]
    %v214 = vld [vmem:[%s1 + $0x2f0] sm:$0xf]
    %v215 = vld [vmem:[%s1 + $0x2f4] sm:$0xf]
    %v216 = vld [vmem:[%s1 + $0x2f8] sm:$0xf]
    %v217 = vld [vmem:[%s1 + $0x2fc] sm:$0xf]
    %v218 = vld [vmem:[%s1 + $0x300] sm:$0xf]
    %v219 = vld [vmem:[%s1 + $0x304] sm:$0xf]
    %v220 = vld [vmem:[%s1 + $0x308] sm:$0xf]
    %v221 = vld [vmem:[%s1 + $0x30c] sm:$0xf]
    %v222 = vld [vmem:[%s1 + $0x310] sm:$0xf]
    %v223 = vld [vmem:[%s1 + $0x314] sm:$0xf]
    %v224 = vld [vmem:[%s1 + $0x318] sm:$0xf]
    %v225 = vld [vmem:[%s1 + $0x31c] sm:$0xf]
    %v226 = vld [vmem:[%s1 + $0x320] sm:$0xf]
    %v227 = vld [vmem:[%s1 + $0x324] sm:$0xf]
    %v228 = vld [vmem:[%s1 + $0x328] sm:$0xf]
    %v229 = vld [vmem:[%s1 + $0x32c] sm:$0xf]
    %v230 = vld [vmem:[%s1 + $0x330] sm:$0xf]
    %v231 = vld [vmem:[%s1 + $0x334] sm:$0xf]
    %v232 = vld [vmem:[%s1 + $0x338] sm:$0xf]
    %v233 = vld [vmem:[%s1 + $0x33c] sm:$0xf]
    %v234 = vld [vmem:[%s1 + $0x340] sm:$0xf]
    %v235 = vld [vmem:[%s1 + $0x344] sm:$0xf]
    %v236 = vld [vmem:[%s1 + $0x348] sm:$0xf]
    %v237 = vld [vmem:[%s1 + $0x34c] sm:$0xf]
    %v238 = vld [vmem:[%s1 + $0x350] sm:$0xf]
    %v239 = vld [vmem:[%s1 + $0x354] sm:$0xf]
    %v240 = vld [vmem:[%s1 + $0x358] sm:$0xf]
    %v241 = vld [vmem:[%s1 + $0x35c] sm:$0xf]
    %v242 = vld [vmem:[%s1 + $0x360] sm:$0xf]
    %v243 = vld [vmem:[%s1 + $0x364] sm:$0xf]
    %v244 = vld [vmem:[%s1 + $0x368] sm:$0xf]
    %v245 = vld [vmem:[%s1 + $0x36c] sm:$0xf]
    %v246 = vld [vmem:[%s1 + $0x370] sm:$0xf]
    %v247 = vld [vmem:[%s1 + $0x374] sm:$0xf]
    %v248 = vld [vmem:[%s1 + $0x378] sm:$0xf]
    %v249 = vld [vmem:[%s1 + $0x37c] sm:$0xf]
    %v250 = vld [vmem:[%s1 + $0x380] sm:$0xf]
    %v251 = vld [vmem:[%s1 + $0x384] sm:$0xf]
    %v252 = vld [vmem:[%s1 + $0x388] sm:$0xf]
    %v253 = vld [vmem:[%s1 + $0x38c] sm:$0xf]
    %v254 = vld [vmem:[%s1 + $0x390] sm:$0xf]
    %v255 = vld [vmem:[%s1 + $0x394] sm:$0xf]
    %v256 = vld [vmem:[%s1 + $0x398] sm:$0xf]
    %v257 = vld [vmem:[%s1 + $0x39c] sm:$0xf]
    %v258 = vld [vmem:[%s1 + $0x3a0] sm:$0xf]
    %v259 = vld [vmem:[%s1 + $0x3a4] sm:$0xf]
    %v260 = vld [vmem:[%s1 + $0x3a8] sm:$0xf]
    %v261 = vld [vmem:[%s1 + $0x3ac] sm:$0xf]
    %v262 = vld [vmem:[%s1 + $0x3b0] sm:$0xf]
    %v263 = vld [vmem:[%s1 + $0x3b4] sm:$0xf]
    %v264 = vld [vmem:[%s1 + $0x3b8] sm:$0xf]
    %v265 = vld [vmem:[%s1 + $0x3bc] sm:$0xf]
    %v266 = vld [vmem:[%s1 + $0x3c0] sm:$0xf]
    %v267 = vld [vmem:[%s1 + $0x3c4] sm:$0xf]
    %v268 = vld [vmem:[%s1 + $0x3c8] sm:$0xf]
    %v269 = vld [vmem:[%s1 + $0x3cc] sm:$0xf]
    %v270 = vld [vmem:[%s1 + $0x3d0] sm:$0xf]
    %v271 = vld [vmem:[%s1 + $0x3d4] sm:$0xf]
    %v272 = vld [vmem:[%s1 + $0x3d8] sm:$0xf]
    %v273 = vld [vmem:[%s1 + $0x3dc] sm:$0xf]
    %v274 = vld [vmem:[%s1 + $0x3e0] sm:$0xf]
    %v275 = vld [vmem:[%s1 + $0x3e4] sm:$0xf]
    %v276 = vld [vmem:[%s1 + $0x3e8] sm:$0xf]
    %v277 = vld [vmem:[%s1 + $0x3ec] sm:$0xf]
    %v278 = vld [vmem:[%s1 + $0x3f0] sm:$0xf]
    %v279 = vld [vmem:[%s1 + $0x3f4] sm:$0xf]
    %v280 = vld [vmem:[%s1 + $0x3f8] sm:$0xf]
    %v281 = vld [vmem:[%s1 + $0x3fc] sm:$0xf]
    %v282 = vld [vmem:[%s1 + $0x400] sm:$0xf]
    %v283 = vld [vmem:[%s1 + $0x404] sm:$0xf]
    %v284 = vld [vmem:[%s1 + $0x408] sm:$0xf]
    %v285 = vld [vmem:[%s1 + $0x40c] sm:$0xf]
    %v286 = vld [vmem:[%s1 + $0x410] sm:$0xf]
    %v287 = vld [vmem:[%s1 + $0x414] sm:$0xf]
    %v288 = vld [vmem:[%s1 + $0x418] sm:$0xf]
    %v289 = vld [vmem:[%s1 + $0x41c] sm:$0xf]
    %v290 = vld [vmem:[%s1 + $0x420] sm:$0xf]
    %v291 = vld [vmem:[%s1 + $0x424] sm:$0xf]
    %v292 = vld [vmem:[%s1 + $0x428] sm:$0xf]
    %v293 = vld [vmem:[%s1 + $0x42c] sm:$0xf]
    %v294 = vld [vmem:[%s1 + $0x430] sm:$0xf]
    %v295 = vld [vmem:[%s1 + $0x434] sm:$0xf]
    %v296 = vld [vmem:[%s1 + $0x438] sm:$0xf]
    %v297 = vld [vmem:[%s1 + $0x43c] sm:$0xf]
    %v298 = vld [vmem:[%s1 + $0x440] sm:$0xf]
    %v299 = vld [vmem:[%s1 + $0x444] sm:$0xf]
    %v300 = vld [vmem:[%s1 + $0x448] sm:$0xf]
    %v301 = vld [vmem:[%s1 + $0x44c] sm:$0xf]
    %v302 = vld [vmem:[%s1 + $0x450] sm:$0xf]
    %v303 = vld [vmem:[%s1 + $0x454] sm:$0xf]
    %v304 = vld [vmem:[%s1 + $0x458] sm:$0xf]
    %v305 = vld [vmem:[%s1 + $0x45c] sm:$0xf]
    %v306 = vld [vmem:[%s1 + $0x460] sm:$0xf]
    %v307 = vld [vmem:[%s1 + $0x464] sm:$0xf]
    %v308 = vld [vmem:[%s1 + $0x468] sm:$0xf]
    %v309 = vld [vmem:[%s1 + $0x46c] sm:$0xf]
    %v310 = vld [vmem:[%s1 + $0x470] sm:$0xf]
    %v311 = vld [vmem:[%s1 + $0x474] sm:$0xf]
    %v312 = vld [vmem:[%s1 + $0x478] sm:$0xf]
    %v313 = vld [vmem:[%s1 + $0x47c] sm:$0xf]
    %v314 = vld [vmem:[%s1 + $0x480] sm:$0xf]
    %v315 = vld [vmem:[%s1 + $0x484] sm:$0xf]
    %v316 = vld [vmem:[%s1 + $0x488] sm:$0xf]
    %v317 = vld [vmem:[%s1 + $0x48c] sm:$0xf]
    %v318 = vld [vmem:[%s1 + $0x490] sm:$0xf]
    %v319 = vld [vmem:[%s1 + $0x494] sm:$0xf]
    %v320 = vld [vmem:[%s1 + $0x498] sm:$0xf]
    %v321 = vld [vmem:[%s1 + $0x49c] sm:$0xf]
    %v322 = vld [vmem:[%s1 + $0x4a0] sm:$0xf]
    %v323 = vld [vmem:[%s1 + $0x4a4] sm:$0xf]
    %v324 = vld [vmem:[%s1 + $0x4a8] sm:$0xf]
    %v325 = vld [vmem:[%s1 + $0x4ac] sm:$0xf]
    %v326 = vld [vmem:[%s1 + $0x4b0] sm:$0xf]
    %v327 = vld [vmem:[%s1 + $0x4b4] sm:$0xf]
    %v328 = vld [vmem:[%s1 + $0x4b8] sm:$0xf]
    %v329 = vld [vmem:[%s1 + $0x4bc] sm:$0xf]
    %v330 = vld [vmem:[%s1 + $0x4c0] sm:$0xf]
    %v331 = vld [vmem:[%s1 + $0x4c4] sm:$0xf]
    %v332 = vld [vmem:[%s1 + $0x4c8] sm:$0xf]
    %v333 = vld [vmem:[%s1 + $0x4cc] sm:$0xf]
    %v334 = vld [vmem:[%s1 + $0x4d0] sm:$0xf]
    %v335 = vld [vmem:[%s1 + $0x4d4] sm:$0xf]
    %v336 = vld [vmem:[%s1 + $0x4d8] sm:$0xf]
    %v337 = vld [vmem:[%s1 + $0x4dc] sm:$0xf]
    %v338 = vld [vmem:[%s1 + $0x4e0] sm:$0xf]
    %v339 = vld [vmem:[%s1 + $0x4e4] sm:$0xf]
    %v340 = vld [vmem:[%s1 + $0x4e8] sm:$0xf]
    %v341 = vld [vmem:[%s1 + $0x4ec] sm:$0xf]
    %v342 = vld [vmem:[%s1 + $0x4f0] sm:$0xf]
    %v343 = vld [vmem:[%s1 + $0x4f4] sm:$0xf]
    %v344 = vld [vmem:[%s1 + $0x4f8] sm:$0xf]
    %v345 = vld [vmem:[%s1 + $0x4fc] sm:$0xf]
    %v346 = vld [vmem:[%s1 + $0x500] sm:$0xf]
    %v347 = vld [vmem:[%s1 + $0x504] sm:$0xf]
    %v348 = vld [vmem:[%s1 + $0x508] sm:$0xf]
    %v349 = vld [vmem:[%s1 + $0x50c] sm:$0xf]
    %v350 = vld [vmem:[%s1 + $0x510] sm:$0xf]
    %v351 = vld [vmem:[%s1 + $0x514] sm:$0xf]
    %v352 = vld [vmem:[%s1 + $0x518] sm:$0xf]
    %v353 = vld [vmem:[%s1 + $0x51c] sm:$0xf]
    %v354 = vld [vmem:[%s1 + $0x520] sm:$0xf]
    %v355 = vld [vmem:[%s1 + $0x524] sm:$0xf]
    %v356 = vld [vmem:[%s1 + $0x528] sm:$0xf]
    %v357 = vld [vmem:[%s1 + $0x52c] sm:$0xf]
    %v358 = vld [vmem:[%s1 + $0x530] sm:$0xf]
    %v359 = vld [vmem:[%s1 + $0x534] sm:$0xf]
    %v360 = vld [vmem:[%s1 + $0x538] sm:$0xf]
    %v361 = vld [vmem:[%s1 + $0x53c] sm:$0xf]
    %v362 = vld [vmem:[%s1 + $0x540] sm:$0xf]
    %v363 = vld [vmem:[%s1 + $0x544] sm:$0xf]
    %v364 = vld [vmem:[%s1 + $0x548] sm:$0xf]
    %v365 = vld [vmem:[%s1 + $0x54c] sm:$0xf]
    %v366 = vld [vmem:[%s1 + $0x550] sm:$0xf]
    %v367 = vld [vmem:[%s1 + $0x554] sm:$0xf]
    %v368 = vld [vmem:[%s1 + $0x558] sm:$0xf]
    %v369 = vld [vmem:[%s1 + $0x55c] sm:$0xf]
    %v370 = vld [vmem:[%s1 + $0x560] sm:$0xf]
    %v371 = vld [vmem:[%s1 + $0x564] sm:$0xf]
    %v372 = vld [vmem:[%s1 + $0x568] sm:$0xf]
    %v373 = vld [vmem:[%s1 + $0x56c] sm:$0xf]
    %v374 = vld [vmem:[%s1 + $0x570] sm:$0xf]
    %v375 = vld [vmem:[%s1 + $0x574] sm:$0xf]
    %v376 = vld [vmem:[%s1 + $0x578] sm:$0xf]
    %v377 = vld [vmem:[%s1 + $0x57c] sm:$0xf]
    %v378 = vld [vmem:[%s1 + $0x580] sm:$0xf]
    %v379 = vld [vmem:[%s1 + $0x584] sm:$0xf]
    %v380 = vld [vmem:[%s1 + $0x588] sm:$0xf]
    %v381 = vld [vmem:[%s1 + $0x58c] sm:$0xf]
    %v382 = vld [vmem:[%s1 + $0x590] sm:$0xf]
    %v383 = vld [vmem:[%s1 + $0x594] sm:$0xf]
    %v384 = vld [vmem:[%s1 + $0x598] sm:$0xf]
    %v385 = vld [vmem:[%s1 + $0x59c] sm:$0xf]
    %v386 = vld [vmem:[%s1 + $0x5a0] sm:$0xf]
    %v387 = vld [vmem:[%s1 + $0x5a4] sm:$0xf]
    %v388 = vld [vmem:[%s1 + $0x5a8] sm:$0xf]
    %v389 = vld [vmem:[%s1 + $0x5ac] sm:$0xf]
    %v390 = vld [vmem:[%s1 + $0x5b0] sm:$0xf]
    %v391 = vld [vmem:[%s1 + $0x5b4] sm:$0xf]
    %v392 = vld [vmem:[%s1 + $0x5b8] sm:$0xf]
    %v393 = vld [vmem:[%s1 + $0x5bc] sm:$0xf]
    %v394 = vld [vmem:[%s1 + $0x5c0] sm:$0xf]
    %v395 = vld [vmem:[%s1 + $0x5c4] sm:$0xf]
    %v396 = vld [vmem:[%s1 + $0x5c8] sm:$0xf]
    %v397 = vld [vmem:[%s1 + $0x5cc] sm:$0xf]
    %v398 = vld [vmem:[%s1 + $0x5d0] sm:$0xf]
    %v399 = vld [vmem:[%s1 + $0x5d4] sm:$0xf]
    %v400 = vld [vmem:[%s1 + $0x5d8] sm:$0xf]
    %v401 = vld [vmem:[%s1 + $0x5dc] sm:$0xf]
    %v402 = vld [vmem:[%s1 + $0x5e0] sm:$0xf]
    %v403 = vld [vmem:[%s1 + $0x5e4] sm:$0xf]
    %v404 = vld [vmem:[%s1 + $0x5e8] sm:$0xf]
    %v405 = vld [vmem:[%s1 + $0x5ec] sm:$0xf]
    %v406 = vld [vmem:[%s1 + $0x5f0] sm:$0xf]
    %v407 = vld [vmem:[%s1 + $0x5f4] sm:$0xf]
    %v408 = vld [vmem:[%s1 + $0x5f8] sm:$0xf]
    %v409 = vld [vmem:[%s1 + $0x5fc] sm:$0xf]
    %v410 = vld [vmem:[%s1 + $0x600] sm:$0xf]
    %v411 = vld [vmem:[%s1 + $0x604] sm:$0xf]
    %v412 = vld [vmem:[%s1 + $0x608] sm:$0xf]
    %v413 = vld [vmem:[%s1 + $0x60c] sm:$0xf]
    %v414 = vld [vmem:[%s1 + $0x610] sm:$0xf]
    %v415 = vld [vmem:[%s1 + $0x614] sm:$0xf]
    %v416 = vld [vmem:[%s1 + $0x618] sm:$0xf]
    %v417 = vld [vmem:[%s1 + $0x61c] sm:$0xf]
    %v418 = vld [vmem:[%s1 + $0x620] sm:$0xf]
    %v419 = vld [vmem:[%s1 + $0x624] sm:$0xf]
    %v420 = vld [vmem:[%s1 + $0x628] sm:$0xf]
    %v421 = vld [vmem:[%s1 + $0x62c] sm:$0xf]
    %v422 = vld [vmem:[%s1 + $0x630] sm:$0xf]
    %v423 = vld [vmem:[%s1 + $0x634] sm:$0xf]
    %v424 = vld [vmem:[%s1 + $0x638] sm:$0xf]
    %v425 = vld [vmem:[%s1 + $0x63c] sm:$0xf]
    %v426 = vld [vmem:[%s1 + $0x640] sm:$0xf]
    %v427 = vld [vmem:[%s1 + $0x644] sm:$0xf]
    %v428 = vld [vmem:[%s1 + $0x648] sm:$0xf]
    %v429 = vld [vmem:[%s1 + $0x64c] sm:$0xf]
    %v430 = vld [vmem:[%s1 + $0x650] sm:$0xf]
    %v431 = vld [vmem:[%s1 + $0x654] sm:$0xf]
    %v432 = vld [vmem:[%s1 + $0x658] sm:$0xf]
    %v433 = vld [vmem:[%s1 + $0x65c] sm:$0xf]
    %v434 = vld [vmem:[%s1 + $0x660] sm:$0xf]
    %v435 = vld [vmem:[%s1 + $0x664] sm:$0xf]
    %v436 = vld [vmem:[%s1 + $0x668] sm:$0xf]
    %v437 = vld [vmem:[%s1 + $0x66c] sm:$0xf]
    %v438 = vld [vmem:[%s1 + $0x670] sm:$0xf]
    %v439 = vld [vmem:[%s1 + $0x674] sm:$0xf]
    %v440 = vld [vmem:[%s1 + $0x678] sm:$0xf]
    %v441 = vld [vmem:[%s1 + $0x67c] sm:$0xf]
    %v442 = vld [vmem:[%s1 + $0x680] sm:$0xf]
    %v443 = vld [vmem:[%s1 + $0x684] sm:$0xf]
    %v444 = vld [vmem:[%s1 + $0x688] sm:$0xf]
    %v445 = vld [vmem:[%s1 + $0x68c] sm:$0xf]
    %v446 = vld [vmem:[%s1 + $0x690] sm:$0xf]
    %v447 = vld [vmem:[%s1 + $0x694] sm:$0xf]
    %v448 = vld [vmem:[%s1 + $0x698] sm:$0xf]
    %v449 = vld [vmem:[%s1 + $0x69c] sm:$0xf]
    %v450 = vld [vmem:[%s1 + $0x6a0] sm:$0xf]
    %v451 = vld [vmem:[%s1 + $0x6a4] sm:$0xf]
    %v452 = vld [vmem:[%s1 + $0x6a8] sm:$0xf]
    %v453 = vld [vmem:[%s1 + $0x6ac] sm:$0xf]
    %v454 = vld [vmem:[%s1 + $0x6b0] sm:$0xf]
    %v455 = vld [vmem:[%s1 + $0x6b4] sm:$0xf]
    %v456 = vld [vmem:[%s1 + $0x6b8] sm:$0xf]
    %v457 = vld [vmem:[%s1 + $0x6bc] sm:$0xf]
    %v458 = vld [vmem:[%s1 + $0x6c0] sm:$0xf]
    %v459 = vld [vmem:[%s1 + $0x6c4] sm:$0xf]
    %v460 = vld [vmem:[%s1 + $0x6c8] sm:$0xf]
    %v461 = vld [vmem:[%s1 + $0x6cc] sm:$0xf]
    %v462 = vld [vmem:[%s1 + $0x6d0] sm:$0xf]
    %v463 = vld [vmem:[%s1 + $0x6d4] sm:$0xf]
    %v464 = vld [vmem:[%s1 + $0x6d8] sm:$0xf]
    %v465 = vld [vmem:[%s1 + $0x6dc] sm:$0xf]
    %v466 = vld [vmem:[%s1 + $0x6e0] sm:$0xf]
    %v467 = vld [vmem:[%s1 + $0x6e4] sm:$0xf]
    %v468 = vld [vmem:[%s1 + $0x6e8] sm:$0xf]
    %v469 = vld [vmem:[%s1 + $0x6ec] sm:$0xf]
    %v470 = vld [vmem:[%s1 + $0x6f0] sm:$0xf]
    %v471 = vld [vmem:[%s1 + $0x6f4] sm:$0xf]
    %v472 = vld [vmem:[%s1 + $0x6f8] sm:$0xf]
    %v473 = vld [vmem:[%s1 + $0x6fc] sm:$0xf]
    %v474 = vld [vmem:[%s1 + $0x700] sm:$0xf]
    %v475 = vld [vmem:[%s1 + $0x704] sm:$0xf]
    %v476 = vld [vmem:[%s1 + $0x708] sm:$0xf]
    %v477 = vld [vmem:[%s1 + $0x70c] sm:$0xf]
    %v478 = vld [vmem:[%s1 + $0x710] sm:$0xf]
    %v479 = vld [vmem:[%s1 + $0x714] sm:$0xf]
    %v480 = vld [vmem:[%s1 + $0x718] sm:$0xf]
    %v481 = vld [vmem:[%s1 + $0x71c] sm:$0xf]
    %v482 = vld [vmem:[%s1 + $0x720] sm:$0xf]
    %v483 = vld [vmem:[%s1 + $0x724] sm:$0xf]
    %v484 = vld [vmem:[%s1 + $0x728] sm:$0xf]
    %v485 = vld [vmem:[%s1 + $0x72c] sm:$0xf]
    %v486 = vld [vmem:[%s1 + $0x730] sm:$0xf]
    %v487 = vld [vmem:[%s1 + $0x734] sm:$0xf]
    %v488 = vld [vmem:[%s1 + $0x738] sm:$0xf]
    %v489 = vld [vmem:[%s1 + $0x73c] sm:$0xf]
    %v490 = vld [vmem:[%s1 + $0x740] sm:$0xf]
    %v491 = vld [vmem:[%s1 + $0x744] sm:$0xf]
    %v492 = vld [vmem:[%s1 + $0x748] sm:$0xf]
    %v493 = vld [vmem:[%s1 + $0x74c] sm:$0xf]
    %v494 = vld [vmem:[%s1 + $0x750] sm:$0xf]
    %v495 = vld [vmem:[%s1 + $0x754] sm:$0xf]
    %v496 = vld [vmem:[%s1 + $0x758] sm:$0xf]
    %v497 = vld [vmem:[%s1 + $0x75c] sm:$0xf]
    %v498 = vld [vmem:[%s1 + $0x760] sm:$0xf]
    %v499 = vld [vmem:[%s1 + $0x764] sm:$0xf]
    %v500 = vld [vmem:[%s1 + $0x768] sm:$0xf]
    %v501 = vld [vmem:[%s1 + $0x76c] sm:$0xf]
    %v502 = vld [vmem:[%s1 + $0x770] sm:$0xf]
    %v503 = vld [vmem:[%s1 + $0x774] sm:$0xf]
    %v504 = vld [vmem:[%s1 + $0x778] sm:$0xf]
    %v505 = vld [vmem:[%s1 + $0x77c] sm:$0xf]
    %v506 = vld [vmem:[%s1 + $0x780] sm:$0xf]
    %v507 = vld [vmem:[%s1 + $0x784] sm:$0xf]
    %v508 = vld [vmem:[%s1 + $0x788] sm:$0xf]
    %v509 = vld [vmem:[%s1 + $0x78c] sm:$0xf]
    %v510 = vld [vmem:[%s1 + $0x790] sm:$0xf]
    %v511 = vld [vmem:[%s1 + $0x794] sm:$0xf]
    %v512 = vld [vmem:[%s1 + $0x798] sm:$0xf]
    %v513 = vld [vmem:[%s1 + $0x79c] sm:$0xf]
    %v514 = vld [vmem:[%s1 + $0x7a0] sm:$0xf]
    %v515 = vld [vmem:[%s1 + $0x7a4] sm:$0xf]
    %v516 = vld [vmem:[%s1 + $0x7a8] sm:$0xf]
    %v517 = vld [vmem:[%s1 + $0x7ac] sm:$0xf]
    %v518 = vld [vmem:[%s1 + $0x7b0] sm:$0xf]
    %v519 = vld [vmem:[%s1 + $0x7b4] sm:$0xf]
    %v520 = vld [vmem:[%s1 + $0x7b8] sm:$0xf]
    %v521 = vld [vmem:[%s1 + $0x7bc] sm:$0xf]
    %v522 = vld [vmem:[%s1 + $0x7c0] sm:$0xf]
    %v523 = vld [vmem:[%s1 + $0x7c4] sm:$0xf]
    %v524 = vld [vmem:[%s1 + $0x7c8] sm:$0xf]
    %v525 = vld [vmem:[%s1 + $0x7cc] sm:$0xf]
    %v526 = vld [vmem:[%s1 + $0x7d0] sm:$0xf]
    %v527 = vld [vmem:[%s1 + $0x7d4] sm:$0xf]
    %v528 = vld [vmem:[%s1 + $0x7d8] sm:$0xf]
    %v529 = vld [vmem:[%s1 + $0x7dc] sm:$0xf]
    %v530 = vld [vmem:[%s1 + $0x7e0] sm:$0xf]
    %v531 = vld [vmem:[%s1 + $0x7e4] sm:$0xf]
    %v532 = vld [vmem:[%s1 + $0x7e8] sm:$0xf]
    %v533 = vld [vmem:[%s1 + $0x7ec] sm:$0xf]
    %v534 = vld [vmem:[%s1 + $0x7f0] sm:$0xf]
    %v535 = vld [vmem:[%s1 + $0x7f4] sm:$0xf]
    %v536 = vld [vmem:[%s1 + $0x7f8] sm:$0xf]
    %v537 = vld [vmem:[%s1 + $0x7fc] sm:$0xf]
    %v538 = vld [vmem:[%s2] sm:$0x1]
    %v540 = vlaneseq
    %v541 = vshrl.u32 %v540, 7
    %v542 = vsub.s32 0, %v541
    %v543 = vrot.slane %v538, %v542
    %v549 = vcombine.high %v22, %v22
    %v551 = vunpack.c.l.s4 1966171168
    %v552 = vunpack.c.0.s8 %v551
    %v553 = vlaneseq
    %v554 = vshrl.u32 %v553, 7
    %v555 = vsub.s32 %v552, %v554
    %v556 = vrot.slane %v22, %v555
    %v558 = vunpack.c.l.s4 1966171168
    %v559 = vunpack.c.0.s8 %v558
    %v560 = vlaneseq
    %v561 = vshrl.u32 %v560, 7
    %v562 = vsub.s32 %v559, %v561
    %v563 = vrot.slane %v549, %v562
    %v564 = vcombine.high %v556, %v556
    %v565 = vcombine.high %v563, %v563
    %v567 = vunpack.c.l.s4 1966171168
    %v568 = vunpack.c.0.s8 %v567
    %v569 = vlaneseq
    %v570 = vshrl.u32 %v569, 7
    %v571 = vsub.s32 %v568, %v570
    %v572 = vrot.slane %v556, %v571
    %v574 = vunpack.c.l.s4 1966171168
    %v575 = vunpack.c.0.s8 %v574
    %v576 = vlaneseq
    %v577 = vshrl.u32 %v576, 7
    %v578 = vsub.s32 %v575, %v577
    %v579 = vrot.slane %v563, %v578
    %v581 = vunpack.c.l.s4 1966171168
    %v582 = vunpack.c.0.s8 %v581
    %v583 = vlaneseq
    %v584 = vshrl.u32 %v583, 7
    %v585 = vsub.s32 %v582, %v584
    %v586 = vrot.slane %v564, %v585
    %v588 = vunpack.c.l.s4 1966171168
    %v589 = vunpack.c.0.s8 %v588
    %v590 = vlaneseq
    %v591 = vshrl.u32 %v590, 7
    %v592 = vsub.s32 %v589, %v591
    %v593 = vrot.slane %v565, %v592
    %v594 = vcombine.high %v572, %v572
    %v595 = vcombine.high %v579, %v579
    %v596 = vcombine.high %v586, %v586
    %v597 = vcombine.high %v593, %v593
    %v598 = vcombine.high %v23, %v23
    %v600 = vunpack.c.l.s4 1966171168
    %v601 = vunpack.c.0.s8 %v600
    %v602 = vlaneseq
    %v603 = vshrl.u32 %v602, 7
    %v604 = vsub.s32 %v601, %v603
    %v605 = vrot.slane %v23, %v604
    %v607 = vunpack.c.l.s4 1966171168
    %v608 = vunpack.c.0.s8 %v607
    %v609 = vlaneseq
    %v610 = vshrl.u32 %v609, 7
    %v611 = vsub.s32 %v608, %v610
    %v612 = vrot.slane %v598, %v611
    %v613 = vcombine.high %v605, %v605
    %v614 = vcombine.high %v612, %v612
    %v616 = vunpack.c.l.s4 1966171168
    %v617 = vunpack.c.0.s8 %v616
    %v618 = vlaneseq
    %v619 = vshrl.u32 %v618, 7
    %v620 = vsub.s32 %v617, %v619
    %v621 = vrot.slane %v605, %v620
    %v623 = vunpack.c.l.s4 1966171168
    %v624 = vunpack.c.0.s8 %v623
    %v625 = vlaneseq
    %v626 = vshrl.u32 %v625, 7
    %v627 = vsub.s32 %v624, %v626
    %v628 = vrot.slane %v612, %v627
    %v630 = vunpack.c.l.s4 1966171168
    %v631 = vunpack.c.0.s8 %v630
    %v632 = vlaneseq
    %v633 = vshrl.u32 %v632, 7
    %v634 = vsub.s32 %v631, %v633
    %v635 = vrot.slane %v613, %v634
    %v637 = vunpack.c.l.s4 1966171168
    %v638 = vunpack.c.0.s8 %v637
    %v639 = vlaneseq
    %v640 = vshrl.u32 %v639, 7
    %v641 = vsub.s32 %v638, %v640
    %v642 = vrot.slane %v614, %v641
    %v643 = vcombine.high %v621, %v621
    %v644 = vcombine.high %v628, %v628
    %v645 = vcombine.high %v635, %v635
    %v646 = vcombine.high %v642, %v642
    %v647 = vcombine.high %v24, %v24
    %v649 = vunpack.c.l.s4 1966171168
    %v650 = vunpack.c.0.s8 %v649
    %v651 = vlaneseq
    %v652 = vshrl.u32 %v651, 7
    %v653 = vsub.s32 %v650, %v652
    %v654 = vrot.slane %v24, %v653
    %v656 = vunpack.c.l.s4 1966171168
    %v657 = vunpack.c.0.s8 %v656
    %v658 = vlaneseq
    %v659 = vshrl.u32 %v658, 7
    %v660 = vsub.s32 %v657, %v659
    %v661 = vrot.slane %v647, %v660
    %v662 = vcombine.high %v654, %v654
    %v663 = vcombine.high %v661, %v661
    %v665 = vunpack.c.l.s4 1966171168
    %v666 = vunpack.c.0.s8 %v665
    %v667 = vlaneseq
    %v668 = vshrl.u32 %v667, 7
    %v669 = vsub.s32 %v666, %v668
    %v670 = vrot.slane %v654, %v669
    %v672 = vunpack.c.l.s4 1966171168
    %v673 = vunpack.c.0.s8 %v672
    %v674 = vlaneseq
    %v675 = vshrl.u32 %v674, 7
    %v676 = vsub.s32 %v673, %v675
    %v677 = vrot.slane %v661, %v676
    %v679 = vunpack.c.l.s4 1966171168
    %v680 = vunpack.c.0.s8 %v679
    %v681 = vlaneseq
    %v682 = vshrl.u32 %v681, 7
    %v683 = vsub.s32 %v680, %v682
    %v684 = vrot.slane %v662, %v683
    %v686 = vunpack.c.l.s4 1966171168
    %v687 = vunpack.c.0.s8 %v686
    %v688 = vlaneseq
    %v689 = vshrl.u32 %v688, 7
    %v690 = vsub.s32 %v687, %v689
    %v691 = vrot.slane %v663, %v690
    %v692 = vcombine.high %v670, %v670
    %v693 = vcombine.high %v677, %v677
    %v694 = vcombine.high %v684, %v684
    %v695 = vcombine.high %v691, %v691
    %v696 = vcombine.high %v25, %v25
    %v698 = vunpack.c.l.s4 1966171168
    %v699 = vunpack.c.0.s8 %v698
    %v700 = vlaneseq
    %v701 = vshrl.u32 %v700, 7
    %v702 = vsub.s32 %v699, %v701
    %v703 = vrot.slane %v25, %v702
    %v705 = vunpack.c.l.s4 1966171168
    %v706 = vunpack.c.0.s8 %v705
    %v707 = vlaneseq
    %v708 = vshrl.u32 %v707, 7
    %v709 = vsub.s32 %v706, %v708
    %v710 = vrot.slane %v696, %v709
    %v711 = vcombine.high %v703, %v703
    %v712 = vcombine.high %v710, %v710
    %v714 = vunpack.c.l.s4 1966171168
    %v715 = vunpack.c.0.s8 %v714
    %v716 = vlaneseq
    %v717 = vshrl.u32 %v716, 7
    %v718 = vsub.s32 %v715, %v717
    %v719 = vrot.slane %v703, %v718
    %v721 = vunpack.c.l.s4 1966171168
    %v722 = vunpack.c.0.s8 %v721
    %v723 = vlaneseq
    %v724 = vshrl.u32 %v723, 7
    %v725 = vsub.s32 %v722, %v724
    %v726 = vrot.slane %v710, %v725
    %v728 = vunpack.c.l.s4 1966171168
    %v729 = vunpack.c.0.s8 %v728
    %v730 = vlaneseq
    %v731 = vshrl.u32 %v730, 7
    %v732 = vsub.s32 %v729, %v731
    %v733 = vrot.slane %v711, %v732
    %v735 = vunpack.c.l.s4 1966171168
    %v736 = vunpack.c.0.s8 %v735
    %v737 = vlaneseq
    %v738 = vshrl.u32 %v737, 7
    %v739 = vsub.s32 %v736, %v738
    %v740 = vrot.slane %v712, %v739
    %v741 = vcombine.high %v719, %v719
    %v742 = vcombine.high %v726, %v726
    %v743 = vcombine.high %v733, %v733
    %v744 = vcombine.high %v740, %v740
    %v1289 = vunpack.c.l.b16 %v26
    %v1290 = vunpack.c.l.b16 %v27
    %v1291 = vunpack.c.l.b16 %v28
    %v1292 = vunpack.c.l.b16 %v29
    %v1293 = vunpack.c.l.b16 %v30
    %v1294 = vunpack.c.l.b16 %v31
    %v1295 = vunpack.c.l.b16 %v32
    %v1296 = vunpack.c.l.b16 %v33
    %v1297 = vunpack.c.l.b16 %v34
    %v1298 = vunpack.c.l.b16 %v35
    %v1299 = vunpack.c.l.b16 %v36
    %v1300 = vunpack.c.l.b16 %v37
    %v1301 = vunpack.c.l.b16 %v38
    %v1302 = vunpack.c.l.b16 %v39
    %v1303 = vunpack.c.l.b16 %v40
    %v1304 = vunpack.c.l.b16 %v41
    %v1305 = vunpack.c.l.b16 %v42
    %v1306 = vunpack.c.l.b16 %v43
    %v1307 = vunpack.c.l.b16 %v44
    %v1308 = vunpack.c.l.b16 %v45
    %v1309 = vunpack.c.l.b16 %v46
    %v1310 = vunpack.c.l.b16 %v47
    %v1311 = vunpack.c.l.b16 %v48
    %v1312 = vunpack.c.l.b16 %v49
    %v1313 = vunpack.c.l.b16 %v50
    %v1314 = vunpack.c.l.b16 %v51
    %v1315 = vunpack.c.l.b16 %v52
    %v1316 = vunpack.c.l.b16 %v53
    %v1317 = vunpack.c.l.b16 %v54
    %v1318 = vunpack.c.l.b16 %v55
    %v1319 = vunpack.c.l.b16 %v56
    %v1320 = vunpack.c.l.b16 %v57
    %v1321 = vunpack.c.l.b16 %v58
    %v1322 = vunpack.c.l.b16 %v59
    %v1323 = vunpack.c.l.b16 %v60
    %v1324 = vunpack.c.l.b16 %v61
    %v1325 = vunpack.c.l.b16 %v62
    %v1326 = vunpack.c.l.b16 %v63
    %v1327 = vunpack.c.l.b16 %v64
    %v1328 = vunpack.c.l.b16 %v65
    %v1329 = vunpack.c.l.b16 %v66
    %v1330 = vunpack.c.l.b16 %v67
    %v1331 = vunpack.c.l.b16 %v68
    %v1332 = vunpack.c.l.b16 %v69
    %v1333 = vunpack.c.l.b16 %v70
    %v1334 = vunpack.c.l.b16 %v71
    %v1335 = vunpack.c.l.b16 %v72
    %v1336 = vunpack.c.l.b16 %v73
    %v1337 = vunpack.c.l.b16 %v74
    %v1338 = vunpack.c.l.b16 %v75
    %v1339 = vunpack.c.l.b16 %v76
    %v1340 = vunpack.c.l.b16 %v77
    %v1341 = vunpack.c.l.b16 %v78
    %v1342 = vunpack.c.l.b16 %v79
    %v1343 = vunpack.c.l.b16 %v80
    %v1344 = vunpack.c.l.b16 %v81
    %v1345 = vunpack.c.l.b16 %v82
    %v1346 = vunpack.c.l.b16 %v83
    %v1347 = vunpack.c.l.b16 %v84
    %v1348 = vunpack.c.l.b16 %v85
    %v1349 = vunpack.c.l.b16 %v86
    %v1350 = vunpack.c.l.b16 %v87
    %v1351 = vunpack.c.l.b16 %v88
    %v1352 = vunpack.c.l.b16 %v89
    %v1353 = vunpack.c.l.b16 %v90
    %v1354 = vunpack.c.l.b16 %v91
    %v1355 = vunpack.c.l.b16 %v92
    %v1356 = vunpack.c.l.b16 %v93
    %v1357 = vunpack.c.l.b16 %v94
    %v1358 = vunpack.c.l.b16 %v95
    %v1359 = vunpack.c.l.b16 %v96
    %v1360 = vunpack.c.l.b16 %v97
    %v1361 = vunpack.c.l.b16 %v98
    %v1362 = vunpack.c.l.b16 %v99
    %v1363 = vunpack.c.l.b16 %v100
    %v1364 = vunpack.c.l.b16 %v101
    %v1365 = vunpack.c.l.b16 %v102
    %v1366 = vunpack.c.l.b16 %v103
    %v1367 = vunpack.c.l.b16 %v104
    %v1368 = vunpack.c.l.b16 %v105
    %v1369 = vunpack.c.l.b16 %v106
    %v1370 = vunpack.c.l.b16 %v107
    %v1371 = vunpack.c.l.b16 %v108
    %v1372 = vunpack.c.l.b16 %v109
    %v1373 = vunpack.c.l.b16 %v110
    %v1374 = vunpack.c.l.b16 %v111
    %v1375 = vunpack.c.l.b16 %v112
    %v1376 = vunpack.c.l.b16 %v113
    %v1377 = vunpack.c.l.b16 %v114
    %v1378 = vunpack.c.l.b16 %v115
    %v1379 = vunpack.c.l.b16 %v116
    %v1380 = vunpack.c.l.b16 %v117
    %v1381 = vunpack.c.l.b16 %v118
    %v1382 = vunpack.c.l.b16 %v119
    %v1383 = vunpack.c.l.b16 %v120
    %v1384 = vunpack.c.l.b16 %v121
    %v1385 = vunpack.c.l.b16 %v122
    %v1386 = vunpack.c.l.b16 %v123
    %v1387 = vunpack.c.l.b16 %v124
    %v1388 = vunpack.c.l.b16 %v125
    %v1389 = vunpack.c.l.b16 %v126
    %v1390 = vunpack.c.l.b16 %v127
    %v1391 = vunpack.c.l.b16 %v128
    %v1392 = vunpack.c.l.b16 %v129
    %v1393 = vunpack.c.l.b16 %v130
    %v1394 = vunpack.c.l.b16 %v131
    %v1395 = vunpack.c.l.b16 %v132
    %v1396 = vunpack.c.l.b16 %v133
    %v1397 = vunpack.c.l.b16 %v134
    %v1398 = vunpack.c.l.b16 %v135
    %v1399 = vunpack.c.l.b16 %v136
    %v1400 = vunpack.c.l.b16 %v137
    %v1401 = vunpack.c.l.b16 %v138
    %v1402 = vunpack.c.l.b16 %v139
    %v1403 = vunpack.c.l.b16 %v140
    %v1404 = vunpack.c.l.b16 %v141
    %v1405 = vunpack.c.l.b16 %v142
    %v1406 = vunpack.c.l.b16 %v143
    %v1407 = vunpack.c.l.b16 %v144
    %v1408 = vunpack.c.l.b16 %v145
    %v1409 = vunpack.c.l.b16 %v146
    %v1410 = vunpack.c.l.b16 %v147
    %v1411 = vunpack.c.l.b16 %v148
    %v1412 = vunpack.c.l.b16 %v149
    %v1413 = vunpack.c.l.b16 %v150
    %v1414 = vunpack.c.l.b16 %v151
    %v1415 = vunpack.c.l.b16 %v152
    %v1416 = vunpack.c.l.b16 %v153
    %v1417 = vunpack.c.l.b16 %v154
    %v1418 = vunpack.c.l.b16 %v155
    %v1419 = vunpack.c.l.b16 %v156
    %v1420 = vunpack.c.l.b16 %v157
    %v1421 = vunpack.c.l.b16 %v158
    %v1422 = vunpack.c.l.b16 %v159
    %v1423 = vunpack.c.l.b16 %v160
    %v1424 = vunpack.c.l.b16 %v161
    %v1425 = vunpack.c.l.b16 %v162
    %v1426 = vunpack.c.l.b16 %v163
    %v1427 = vunpack.c.l.b16 %v164
    %v1428 = vunpack.c.l.b16 %v165
    %v1429 = vunpack.c.l.b16 %v166
    %v1430 = vunpack.c.l.b16 %v167
    %v1431 = vunpack.c.l.b16 %v168
    %v1432 = vunpack.c.l.b16 %v169
    %v1433 = vunpack.c.l.b16 %v170
    %v1434 = vunpack.c.l.b16 %v171
    %v1435 = vunpack.c.l.b16 %v172
    %v1436 = vunpack.c.l.b16 %v173
    %v1437 = vunpack.c.l.b16 %v174
    %v1438 = vunpack.c.l.b16 %v175
    %v1439 = vunpack.c.l.b16 %v176
    %v1440 = vunpack.c.l.b16 %v177
    %v1441 = vunpack.c.l.b16 %v178
    %v1442 = vunpack.c.l.b16 %v179
    %v1443 = vunpack.c.l.b16 %v180
    %v1444 = vunpack.c.l.b16 %v181
    %v1445 = vunpack.c.l.b16 %v182
    %v1446 = vunpack.c.l.b16 %v183
    %v1447 = vunpack.c.l.b16 %v184
    %v1448 = vunpack.c.l.b16 %v185
    %v1449 = vunpack.c.l.b16 %v186
    %v1450 = vunpack.c.l.b16 %v187
    %v1451 = vunpack.c.l.b16 %v188
    %v1452 = vunpack.c.l.b16 %v189
    %v1453 = vunpack.c.l.b16 %v190
    %v1454 = vunpack.c.l.b16 %v191
    %v1455 = vunpack.c.l.b16 %v192
    %v1456 = vunpack.c.l.b16 %v193
    %v1457 = vunpack.c.l.b16 %v194
    %v1458 = vunpack.c.l.b16 %v195
    %v1459 = vunpack.c.l.b16 %v196
    %v1460 = vunpack.c.l.b16 %v197
    %v1461 = vunpack.c.l.b16 %v198
    %v1462 = vunpack.c.l.b16 %v199
    %v1463 = vunpack.c.l.b16 %v200
    %v1464 = vunpack.c.l.b16 %v201
    %v1465 = vunpack.c.l.b16 %v202
    %v1466 = vunpack.c.l.b16 %v203
    %v1467 = vunpack.c.l.b16 %v204
    %v1468 = vunpack.c.l.b16 %v205
    %v1469 = vunpack.c.l.b16 %v206
    %v1470 = vunpack.c.l.b16 %v207
    %v1471 = vunpack.c.l.b16 %v208
    %v1472 = vunpack.c.l.b16 %v209
    %v1473 = vunpack.c.l.b16 %v210
    %v1474 = vunpack.c.l.b16 %v211
    %v1475 = vunpack.c.l.b16 %v212
    %v1476 = vunpack.c.l.b16 %v213
    %v1477 = vunpack.c.l.b16 %v214
    %v1478 = vunpack.c.l.b16 %v215
    %v1479 = vunpack.c.l.b16 %v216
    %v1480 = vunpack.c.l.b16 %v217
    %v1481 = vunpack.c.l.b16 %v218
    %v1482 = vunpack.c.l.b16 %v219
    %v1483 = vunpack.c.l.b16 %v220
    %v1484 = vunpack.c.l.b16 %v221
    %v1485 = vunpack.c.l.b16 %v222
    %v1486 = vunpack.c.l.b16 %v223
    %v1487 = vunpack.c.l.b16 %v224
    %v1488 = vunpack.c.l.b16 %v225
    %v1489 = vunpack.c.l.b16 %v226
    %v1490 = vunpack.c.l.b16 %v227
    %v1491 = vunpack.c.l.b16 %v228
    %v1492 = vunpack.c.l.b16 %v229
    %v1493 = vunpack.c.l.b16 %v230
    %v1494 = vunpack.c.l.b16 %v231
    %v1495 = vunpack.c.l.b16 %v232
    %v1496 = vunpack.c.l.b16 %v233
    %v1497 = vunpack.c.l.b16 %v234
    %v1498 = vunpack.c.l.b16 %v235
    %v1499 = vunpack.c.l.b16 %v236
    %v1500 = vunpack.c.l.b16 %v237
    %v1501 = vunpack.c.l.b16 %v238
    %v1502 = vunpack.c.l.b16 %v239
    %v1503 = vunpack.c.l.b16 %v240
    %v1504 = vunpack.c.l.b16 %v241
    %v1505 = vunpack.c.l.b16 %v242
    %v1506 = vunpack.c.l.b16 %v243
    %v1507 = vunpack.c.l.b16 %v244
    %v1508 = vunpack.c.l.b16 %v245
    %v1509 = vunpack.c.l.b16 %v246
    %v1510 = vunpack.c.l.b16 %v247
    %v1511 = vunpack.c.l.b16 %v248
    %v1512 = vunpack.c.l.b16 %v249
    %v1513 = vunpack.c.l.b16 %v250
    %v1514 = vunpack.c.l.b16 %v251
    %v1515 = vunpack.c.l.b16 %v252
    %v1516 = vunpack.c.l.b16 %v253
    %v1517 = vunpack.c.l.b16 %v254
    %v1518 = vunpack.c.l.b16 %v255
    %v1519 = vunpack.c.l.b16 %v256
    %v1520 = vunpack.c.l.b16 %v257
    %v1521 = vunpack.c.l.b16 %v258
    %v1522 = vunpack.c.l.b16 %v259
    %v1523 = vunpack.c.l.b16 %v260
    %v1524 = vunpack.c.l.b16 %v261
    %v1525 = vunpack.c.l.b16 %v262
    %v1526 = vunpack.c.l.b16 %v263
    %v1527 = vunpack.c.l.b16 %v264
    %v1528 = vunpack.c.l.b16 %v265
    %v1529 = vunpack.c.l.b16 %v266
    %v1530 = vunpack.c.l.b16 %v267
    %v1531 = vunpack.c.l.b16 %v268
    %v1532 = vunpack.c.l.b16 %v269
    %v1533 = vunpack.c.l.b16 %v270
    %v1534 = vunpack.c.l.b16 %v271
    %v1535 = vunpack.c.l.b16 %v272
    %v1536 = vunpack.c.l.b16 %v273
    %v1537 = vunpack.c.l.b16 %v274
    %v1538 = vunpack.c.l.b16 %v275
    %v1539 = vunpack.c.l.b16 %v276
    %v1540 = vunpack.c.l.b16 %v277
    %v1541 = vunpack.c.l.b16 %v278
    %v1542 = vunpack.c.l.b16 %v279
    %v1543 = vunpack.c.l.b16 %v280
    %v1544 = vunpack.c.l.b16 %v281
    %v1545 = vunpack.c.l.b16 %v282
    %v1546 = vunpack.c.l.b16 %v283
    %v1547 = vunpack.c.l.b16 %v284
    %v1548 = vunpack.c.l.b16 %v285
    %v1549 = vunpack.c.l.b16 %v286
    %v1550 = vunpack.c.l.b16 %v287
    %v1551 = vunpack.c.l.b16 %v288
    %v1552 = vunpack.c.l.b16 %v289
    %v1553 = vunpack.c.l.b16 %v290
    %v1554 = vunpack.c.l.b16 %v291
    %v1555 = vunpack.c.l.b16 %v292
    %v1556 = vunpack.c.l.b16 %v293
    %v1557 = vunpack.c.l.b16 %v294
    %v1558 = vunpack.c.l.b16 %v295
    %v1559 = vunpack.c.l.b16 %v296
    %v1560 = vunpack.c.l.b16 %v297
    %v1561 = vunpack.c.l.b16 %v298
    %v1562 = vunpack.c.l.b16 %v299
    %v1563 = vunpack.c.l.b16 %v300
    %v1564 = vunpack.c.l.b16 %v301
    %v1565 = vunpack.c.l.b16 %v302
    %v1566 = vunpack.c.l.b16 %v303
    %v1567 = vunpack.c.l.b16 %v304
    %v1568 = vunpack.c.l.b16 %v305
    %v1569 = vunpack.c.l.b16 %v306
    %v1570 = vunpack.c.l.b16 %v307
    %v1571 = vunpack.c.l.b16 %v308
    %v1572 = vunpack.c.l.b16 %v309
    %v1573 = vunpack.c.l.b16 %v310
    %v1574 = vunpack.c.l.b16 %v311
    %v1575 = vunpack.c.l.b16 %v312
    %v1576 = vunpack.c.l.b16 %v313
    %v1577 = vunpack.c.l.b16 %v314
    %v1578 = vunpack.c.l.b16 %v315
    %v1579 = vunpack.c.l.b16 %v316
    %v1580 = vunpack.c.l.b16 %v317
    %v1581 = vunpack.c.l.b16 %v318
    %v1582 = vunpack.c.l.b16 %v319
    %v1583 = vunpack.c.l.b16 %v320
    %v1584 = vunpack.c.l.b16 %v321
    %v1585 = vunpack.c.l.b16 %v322
    %v1586 = vunpack.c.l.b16 %v323
    %v1587 = vunpack.c.l.b16 %v324
    %v1588 = vunpack.c.l.b16 %v325
    %v1589 = vunpack.c.l.b16 %v326
    %v1590 = vunpack.c.l.b16 %v327
    %v1591 = vunpack.c.l.b16 %v328
    %v1592 = vunpack.c.l.b16 %v329
    %v1593 = vunpack.c.l.b16 %v330
    %v1594 = vunpack.c.l.b16 %v331
    %v1595 = vunpack.c.l.b16 %v332
    %v1596 = vunpack.c.l.b16 %v333
    %v1597 = vunpack.c.l.b16 %v334
    %v1598 = vunpack.c.l.b16 %v335
    %v1599 = vunpack.c.l.b16 %v336
    %v1600 = vunpack.c.l.b16 %v337
    %v1601 = vunpack.c.l.b16 %v338
    %v1602 = vunpack.c.l.b16 %v339
    %v1603 = vunpack.c.l.b16 %v340
    %v1604 = vunpack.c.l.b16 %v341
    %v1605 = vunpack.c.l.b16 %v342
    %v1606 = vunpack.c.l.b16 %v343
    %v1607 = vunpack.c.l.b16 %v344
    %v1608 = vunpack.c.l.b16 %v345
    %v1609 = vunpack.c.l.b16 %v346
    %v1610 = vunpack.c.l.b16 %v347
    %v1611 = vunpack.c.l.b16 %v348
    %v1612 = vunpack.c.l.b16 %v349
    %v1613 = vunpack.c.l.b16 %v350
    %v1614 = vunpack.c.l.b16 %v351
    %v1615 = vunpack.c.l.b16 %v352
    %v1616 = vunpack.c.l.b16 %v353
    %v1617 = vunpack.c.l.b16 %v354
    %v1618 = vunpack.c.l.b16 %v355
    %v1619 = vunpack.c.l.b16 %v356
    %v1620 = vunpack.c.l.b16 %v357
    %v1621 = vunpack.c.l.b16 %v358
    %v1622 = vunpack.c.l.b16 %v359
    %v1623 = vunpack.c.l.b16 %v360
    %v1624 = vunpack.c.l.b16 %v361
    %v1625 = vunpack.c.l.b16 %v362
    %v1626 = vunpack.c.l.b16 %v363
    %v1627 = vunpack.c.l.b16 %v364
    %v1628 = vunpack.c.l.b16 %v365
    %v1629 = vunpack.c.l.b16 %v366
    %v1630 = vunpack.c.l.b16 %v367
    %v1631 = vunpack.c.l.b16 %v368
    %v1632 = vunpack.c.l.b16 %v369
    %v1633 = vunpack.c.l.b16 %v370
    %v1634 = vunpack.c.l.b16 %v371
    %v1635 = vunpack.c.l.b16 %v372
    %v1636 = vunpack.c.l.b16 %v373
    %v1637 = vunpack.c.l.b16 %v374
    %v1638 = vunpack.c.l.b16 %v375
    %v1639 = vunpack.c.l.b16 %v376
    %v1640 = vunpack.c.l.b16 %v377
    %v1641 = vunpack.c.l.b16 %v378
    %v1642 = vunpack.c.l.b16 %v379
    %v1643 = vunpack.c.l.b16 %v380
    %v1644 = vunpack.c.l.b16 %v381
    %v1645 = vunpack.c.l.b16 %v382
    %v1646 = vunpack.c.l.b16 %v383
    %v1647 = vunpack.c.l.b16 %v384
    %v1648 = vunpack.c.l.b16 %v385
    %v1649 = vunpack.c.l.b16 %v386
    %v1650 = vunpack.c.l.b16 %v387
    %v1651 = vunpack.c.l.b16 %v388
    %v1652 = vunpack.c.l.b16 %v389
    %v1653 = vunpack.c.l.b16 %v390
    %v1654 = vunpack.c.l.b16 %v391
    %v1655 = vunpack.c.l.b16 %v392
    %v1656 = vunpack.c.l.b16 %v393
    %v1657 = vunpack.c.l.b16 %v394
    %v1658 = vunpack.c.l.b16 %v395
    %v1659 = vunpack.c.l.b16 %v396
    %v1660 = vunpack.c.l.b16 %v397
    %v1661 = vunpack.c.l.b16 %v398
    %v1662 = vunpack.c.l.b16 %v399
    %v1663 = vunpack.c.l.b16 %v400
    %v1664 = vunpack.c.l.b16 %v401
    %v1665 = vunpack.c.l.b16 %v402
    %v1666 = vunpack.c.l.b16 %v403
    %v1667 = vunpack.c.l.b16 %v404
    %v1668 = vunpack.c.l.b16 %v405
    %v1669 = vunpack.c.l.b16 %v406
    %v1670 = vunpack.c.l.b16 %v407
    %v1671 = vunpack.c.l.b16 %v408
    %v1672 = vunpack.c.l.b16 %v409
    %v1673 = vunpack.c.l.b16 %v410
    %v1674 = vunpack.c.l.b16 %v411
    %v1675 = vunpack.c.l.b16 %v412
    %v1676 = vunpack.c.l.b16 %v413
    %v1677 = vunpack.c.l.b16 %v414
    %v1678 = vunpack.c.l.b16 %v415
    %v1679 = vunpack.c.l.b16 %v416
    %v1680 = vunpack.c.l.b16 %v417
    %v1681 = vunpack.c.l.b16 %v418
    %v1682 = vunpack.c.l.b16 %v419
    %v1683 = vunpack.c.l.b16 %v420
    %v1684 = vunpack.c.l.b16 %v421
    %v1685 = vunpack.c.l.b16 %v422
    %v1686 = vunpack.c.l.b16 %v423
    %v1687 = vunpack.c.l.b16 %v424
    %v1688 = vunpack.c.l.b16 %v425
    %v1689 = vunpack.c.l.b16 %v426
    %v1690 = vunpack.c.l.b16 %v427
    %v1691 = vunpack.c.l.b16 %v428
    %v1692 = vunpack.c.l.b16 %v429
    %v1693 = vunpack.c.l.b16 %v430
    %v1694 = vunpack.c.l.b16 %v431
    %v1695 = vunpack.c.l.b16 %v432
    %v1696 = vunpack.c.l.b16 %v433
    %v1697 = vunpack.c.l.b16 %v434
    %v1698 = vunpack.c.l.b16 %v435
    %v1699 = vunpack.c.l.b16 %v436
    %v1700 = vunpack.c.l.b16 %v437
    %v1701 = vunpack.c.l.b16 %v438
    %v1702 = vunpack.c.l.b16 %v439
    %v1703 = vunpack.c.l.b16 %v440
    %v1704 = vunpack.c.l.b16 %v441
    %v1705 = vunpack.c.l.b16 %v442
    %v1706 = vunpack.c.l.b16 %v443
    %v1707 = vunpack.c.l.b16 %v444
    %v1708 = vunpack.c.l.b16 %v445
    %v1709 = vunpack.c.l.b16 %v446
    %v1710 = vunpack.c.l.b16 %v447
    %v1711 = vunpack.c.l.b16 %v448
    %v1712 = vunpack.c.l.b16 %v449
    %v1713 = vunpack.c.l.b16 %v450
    %v1714 = vunpack.c.l.b16 %v451
    %v1715 = vunpack.c.l.b16 %v452
    %v1716 = vunpack.c.l.b16 %v453
    %v1717 = vunpack.c.l.b16 %v454
    %v1718 = vunpack.c.l.b16 %v455
    %v1719 = vunpack.c.l.b16 %v456
    %v1720 = vunpack.c.l.b16 %v457
    %v1721 = vunpack.c.l.b16 %v458
    %v1722 = vunpack.c.l.b16 %v459
    %v1723 = vunpack.c.l.b16 %v460
    %v1724 = vunpack.c.l.b16 %v461
    %v1725 = vunpack.c.l.b16 %v462
    %v1726 = vunpack.c.l.b16 %v463
    %v1727 = vunpack.c.l.b16 %v464
    %v1728 = vunpack.c.l.b16 %v465
    %v1729 = vunpack.c.l.b16 %v466
    %v1730 = vunpack.c.l.b16 %v467
    %v1731 = vunpack.c.l.b16 %v468
    %v1732 = vunpack.c.l.b16 %v469
    %v1733 = vunpack.c.l.b16 %v470
    %v1734 = vunpack.c.l.b16 %v471
    %v1735 = vunpack.c.l.b16 %v472
    %v1736 = vunpack.c.l.b16 %v473
    %v1737 = vunpack.c.l.b16 %v474
    %v1738 = vunpack.c.l.b16 %v475
    %v1739 = vunpack.c.l.b16 %v476
    %v1740 = vunpack.c.l.b16 %v477
    %v1741 = vunpack.c.l.b16 %v478
    %v1742 = vunpack.c.l.b16 %v479
    %v1743 = vunpack.c.l.b16 %v480
    %v1744 = vunpack.c.l.b16 %v481
    %v1745 = vunpack.c.l.b16 %v482
    %v1746 = vunpack.c.l.b16 %v483
    %v1747 = vunpack.c.l.b16 %v484
    %v1748 = vunpack.c.l.b16 %v485
    %v1749 = vunpack.c.l.b16 %v486
    %v1750 = vunpack.c.l.b16 %v487
    %v1751 = vunpack.c.l.b16 %v488
    %v1752 = vunpack.c.l.b16 %v489
    %v1753 = vunpack.c.l.b16 %v490
    %v1754 = vunpack.c.l.b16 %v491
    %v1755 = vunpack.c.l.b16 %v492
    %v1756 = vunpack.c.l.b16 %v493
    %v1757 = vunpack.c.l.b16 %v494
    %v1758 = vunpack.c.l.b16 %v495
    %v1759 = vunpack.c.l.b16 %v496
    %v1760 = vunpack.c.l.b16 %v497
    %v1761 = vunpack.c.l.b16 %v498
    %v1762 = vunpack.c.l.b16 %v499
    %v1763 = vunpack.c.l.b16 %v500
    %v1764 = vunpack.c.l.b16 %v501
    %v1765 = vunpack.c.l.b16 %v502
    %v1766 = vunpack.c.l.b16 %v503
    %v1767 = vunpack.c.l.b16 %v504
    %v1768 = vunpack.c.l.b16 %v505
    %v1769 = vunpack.c.l.b16 %v506
    %v1770 = vunpack.c.l.b16 %v507
    %v1771 = vunpack.c.l.b16 %v508
    %v1772 = vunpack.c.l.b16 %v509
    %v1773 = vunpack.c.l.b16 %v510
    %v1774 = vunpack.c.l.b16 %v511
    %v1775 = vunpack.c.l.b16 %v512
    %v1776 = vunpack.c.l.b16 %v513
    %v1777 = vunpack.c.l.b16 %v514
    %v1778 = vunpack.c.l.b16 %v515
    %v1779 = vunpack.c.l.b16 %v516
    %v1780 = vunpack.c.l.b16 %v517
    %v1781 = vunpack.c.l.b16 %v518
    %v1782 = vunpack.c.l.b16 %v519
    %v1783 = vunpack.c.l.b16 %v520
    %v1784 = vunpack.c.l.b16 %v521
    %v1785 = vunpack.c.l.b16 %v522
    %v1786 = vunpack.c.l.b16 %v523
    %v1787 = vunpack.c.l.b16 %v524
    %v1788 = vunpack.c.l.b16 %v525
    %v1789 = vunpack.c.l.b16 %v526
    %v1790 = vunpack.c.l.b16 %v527
    %v1791 = vunpack.c.l.b16 %v528
    %v1792 = vunpack.c.l.b16 %v529
    %v1793 = vunpack.c.l.b16 %v530
    %v1794 = vunpack.c.l.b16 %v531
    %v1795 = vunpack.c.l.b16 %v532
    %v1796 = vunpack.c.l.b16 %v533
    %v1797 = vunpack.c.l.b16 %v534
    %v1798 = vunpack.c.l.b16 %v535
    %v1799 = vunpack.c.l.b16 %v536
    %v1800 = vunpack.c.l.b16 %v537
    %v1801 = vpack.c.b16 %v1290, %v1289
    %v1802 = vpack.c.b16 %v1292, %v1291
    %v1803 = vpack.c.b16 %v1294, %v1293
    %v1804 = vpack.c.b16 %v1296, %v1295
    %v1805 = vpack.c.b16 %v1298, %v1297
    %v1806 = vpack.c.b16 %v1300, %v1299
    %v1807 = vpack.c.b16 %v1302, %v1301
    %v1808 = vpack.c.b16 %v1304, %v1303
    %v1809 = vpack.c.b16 %v1306, %v1305
    %v1810 = vpack.c.b16 %v1308, %v1307
    %v1811 = vpack.c.b16 %v1310, %v1309
    %v1812 = vpack.c.b16 %v1312, %v1311
    %v1813 = vpack.c.b16 %v1314, %v1313
    %v1814 = vpack.c.b16 %v1316, %v1315
    %v1815 = vpack.c.b16 %v1318, %v1317
    %v1816 = vpack.c.b16 %v1320, %v1319
    %v1817 = vpack.c.b16 %v1322, %v1321
    %v1818 = vpack.c.b16 %v1324, %v1323
    %v1819 = vpack.c.b16 %v1326, %v1325
    %v1820 = vpack.c.b16 %v1328, %v1327
    %v1821 = vpack.c.b16 %v1330, %v1329
    %v1822 = vpack.c.b16 %v1332, %v1331
    %v1823 = vpack.c.b16 %v1334, %v1333
    %v1824 = vpack.c.b16 %v1336, %v1335
    %v1825 = vpack.c.b16 %v1338, %v1337
    %v1826 = vpack.c.b16 %v1340, %v1339
    %v1827 = vpack.c.b16 %v1342, %v1341
    %v1828 = vpack.c.b16 %v1344, %v1343
    %v1829 = vpack.c.b16 %v1346, %v1345
    %v1830 = vpack.c.b16 %v1348, %v1347
    %v1831 = vpack.c.b16 %v1350, %v1349
    %v1832 = vpack.c.b16 %v1352, %v1351
    %v1833 = vpack.c.b16 %v1354, %v1353
    %v1834 = vpack.c.b16 %v1356, %v1355
    %v1835 = vpack.c.b16 %v1358, %v1357
    %v1836 = vpack.c.b16 %v1360, %v1359
    %v1837 = vpack.c.b16 %v1362, %v1361
    %v1838 = vpack.c.b16 %v1364, %v1363
    %v1839 = vpack.c.b16 %v1366, %v1365
    %v1840 = vpack.c.b16 %v1368, %v1367
    %v1841 = vpack.c.b16 %v1370, %v1369
    %v1842 = vpack.c.b16 %v1372, %v1371
    %v1843 = vpack.c.b16 %v1374, %v1373
    %v1844 = vpack.c.b16 %v1376, %v1375
    %v1845 = vpack.c.b16 %v1378, %v1377
    %v1846 = vpack.c.b16 %v1380, %v1379
    %v1847 = vpack.c.b16 %v1382, %v1381
    %v1848 = vpack.c.b16 %v1384, %v1383
    %v1849 = vpack.c.b16 %v1386, %v1385
    %v1850 = vpack.c.b16 %v1388, %v1387
    %v1851 = vpack.c.b16 %v1390, %v1389
    %v1852 = vpack.c.b16 %v1392, %v1391
    %v1853 = vpack.c.b16 %v1394, %v1393
    %v1854 = vpack.c.b16 %v1396, %v1395
    %v1855 = vpack.c.b16 %v1398, %v1397
    %v1856 = vpack.c.b16 %v1400, %v1399
    %v1857 = vpack.c.b16 %v1402, %v1401
    %v1858 = vpack.c.b16 %v1404, %v1403
    %v1859 = vpack.c.b16 %v1406, %v1405
    %v1860 = vpack.c.b16 %v1408, %v1407
    %v1861 = vpack.c.b16 %v1410, %v1409
    %v1862 = vpack.c.b16 %v1412, %v1411
    %v1863 = vpack.c.b16 %v1414, %v1413
    %v1864 = vpack.c.b16 %v1416, %v1415
    %v1865 = vpack.c.b16 %v1418, %v1417
    %v1866 = vpack.c.b16 %v1420, %v1419
    %v1867 = vpack.c.b16 %v1422, %v1421
    %v1868 = vpack.c.b16 %v1424, %v1423
    %v1869 = vpack.c.b16 %v1426, %v1425
    %v1870 = vpack.c.b16 %v1428, %v1427
    %v1871 = vpack.c.b16 %v1430, %v1429
    %v1872 = vpack.c.b16 %v1432, %v1431
    %v1873 = vpack.c.b16 %v1434, %v1433
    %v1874 = vpack.c.b16 %v1436, %v1435
    %v1875 = vpack.c.b16 %v1438, %v1437
    %v1876 = vpack.c.b16 %v1440, %v1439
    %v1877 = vpack.c.b16 %v1442, %v1441
    %v1878 = vpack.c.b16 %v1444, %v1443
    %v1879 = vpack.c.b16 %v1446, %v1445
    %v1880 = vpack.c.b16 %v1448, %v1447
    %v1881 = vpack.c.b16 %v1450, %v1449
    %v1882 = vpack.c.b16 %v1452, %v1451
    %v1883 = vpack.c.b16 %v1454, %v1453
    %v1884 = vpack.c.b16 %v1456, %v1455
    %v1885 = vpack.c.b16 %v1458, %v1457
    %v1886 = vpack.c.b16 %v1460, %v1459
    %v1887 = vpack.c.b16 %v1462, %v1461
    %v1888 = vpack.c.b16 %v1464, %v1463
    %v1889 = vpack.c.b16 %v1466, %v1465
    %v1890 = vpack.c.b16 %v1468, %v1467
    %v1891 = vpack.c.b16 %v1470, %v1469
    %v1892 = vpack.c.b16 %v1472, %v1471
    %v1893 = vpack.c.b16 %v1474, %v1473
    %v1894 = vpack.c.b16 %v1476, %v1475
    %v1895 = vpack.c.b16 %v1478, %v1477
    %v1896 = vpack.c.b16 %v1480, %v1479
    %v1897 = vpack.c.b16 %v1482, %v1481
    %v1898 = vpack.c.b16 %v1484, %v1483
    %v1899 = vpack.c.b16 %v1486, %v1485
    %v1900 = vpack.c.b16 %v1488, %v1487
    %v1901 = vpack.c.b16 %v1490, %v1489
    %v1902 = vpack.c.b16 %v1492, %v1491
    %v1903 = vpack.c.b16 %v1494, %v1493
    %v1904 = vpack.c.b16 %v1496, %v1495
    %v1905 = vpack.c.b16 %v1498, %v1497
    %v1906 = vpack.c.b16 %v1500, %v1499
    %v1907 = vpack.c.b16 %v1502, %v1501
    %v1908 = vpack.c.b16 %v1504, %v1503
    %v1909 = vpack.c.b16 %v1506, %v1505
    %v1910 = vpack.c.b16 %v1508, %v1507
    %v1911 = vpack.c.b16 %v1510, %v1509
    %v1912 = vpack.c.b16 %v1512, %v1511
    %v1913 = vpack.c.b16 %v1514, %v1513
    %v1914 = vpack.c.b16 %v1516, %v1515
    %v1915 = vpack.c.b16 %v1518, %v1517
    %v1916 = vpack.c.b16 %v1520, %v1519
    %v1917 = vpack.c.b16 %v1522, %v1521
    %v1918 = vpack.c.b16 %v1524, %v1523
    %v1919 = vpack.c.b16 %v1526, %v1525
    %v1920 = vpack.c.b16 %v1528, %v1527
    %v1921 = vpack.c.b16 %v1530, %v1529
    %v1922 = vpack.c.b16 %v1532, %v1531
    %v1923 = vpack.c.b16 %v1534, %v1533
    %v1924 = vpack.c.b16 %v1536, %v1535
    %v1925 = vpack.c.b16 %v1538, %v1537
    %v1926 = vpack.c.b16 %v1540, %v1539
    %v1927 = vpack.c.b16 %v1542, %v1541
    %v1928 = vpack.c.b16 %v1544, %v1543
    %v1929 = vpack.c.b16 %v1546, %v1545
    %v1930 = vpack.c.b16 %v1548, %v1547
    %v1931 = vpack.c.b16 %v1550, %v1549
    %v1932 = vpack.c.b16 %v1552, %v1551
    %v1933 = vpack.c.b16 %v1554, %v1553
    %v1934 = vpack.c.b16 %v1556, %v1555
    %v1935 = vpack.c.b16 %v1558, %v1557
    %v1936 = vpack.c.b16 %v1560, %v1559
    %v1937 = vpack.c.b16 %v1562, %v1561
    %v1938 = vpack.c.b16 %v1564, %v1563
    %v1939 = vpack.c.b16 %v1566, %v1565
    %v1940 = vpack.c.b16 %v1568, %v1567
    %v1941 = vpack.c.b16 %v1570, %v1569
    %v1942 = vpack.c.b16 %v1572, %v1571
    %v1943 = vpack.c.b16 %v1574, %v1573
    %v1944 = vpack.c.b16 %v1576, %v1575
    %v1945 = vpack.c.b16 %v1578, %v1577
    %v1946 = vpack.c.b16 %v1580, %v1579
    %v1947 = vpack.c.b16 %v1582, %v1581
    %v1948 = vpack.c.b16 %v1584, %v1583
    %v1949 = vpack.c.b16 %v1586, %v1585
    %v1950 = vpack.c.b16 %v1588, %v1587
    %v1951 = vpack.c.b16 %v1590, %v1589
    %v1952 = vpack.c.b16 %v1592, %v1591
    %v1953 = vpack.c.b16 %v1594, %v1593
    %v1954 = vpack.c.b16 %v1596, %v1595
    %v1955 = vpack.c.b16 %v1598, %v1597
    %v1956 = vpack.c.b16 %v1600, %v1599
    %v1957 = vpack.c.b16 %v1602, %v1601
    %v1958 = vpack.c.b16 %v1604, %v1603
    %v1959 = vpack.c.b16 %v1606, %v1605
    %v1960 = vpack.c.b16 %v1608, %v1607
    %v1961 = vpack.c.b16 %v1610, %v1609
    %v1962 = vpack.c.b16 %v1612, %v1611
    %v1963 = vpack.c.b16 %v1614, %v1613
    %v1964 = vpack.c.b16 %v1616, %v1615
    %v1965 = vpack.c.b16 %v1618, %v1617
    %v1966 = vpack.c.b16 %v1620, %v1619
    %v1967 = vpack.c.b16 %v1622, %v1621
    %v1968 = vpack.c.b16 %v1624, %v1623
    %v1969 = vpack.c.b16 %v1626, %v1625
    %v1970 = vpack.c.b16 %v1628, %v1627
    %v1971 = vpack.c.b16 %v1630, %v1629
    %v1972 = vpack.c.b16 %v1632, %v1631
    %v1973 = vpack.c.b16 %v1634, %v1633
    %v1974 = vpack.c.b16 %v1636, %v1635
    %v1975 = vpack.c.b16 %v1638, %v1637
    %v1976 = vpack.c.b16 %v1640, %v1639
    %v1977 = vpack.c.b16 %v1642, %v1641
    %v1978 = vpack.c.b16 %v1644, %v1643
    %v1979 = vpack.c.b16 %v1646, %v1645
    %v1980 = vpack.c.b16 %v1648, %v1647
    %v1981 = vpack.c.b16 %v1650, %v1649
    %v1982 = vpack.c.b16 %v1652, %v1651
    %v1983 = vpack.c.b16 %v1654, %v1653
    %v1984 = vpack.c.b16 %v1656, %v1655
    %v1985 = vpack.c.b16 %v1658, %v1657
    %v1986 = vpack.c.b16 %v1660, %v1659
    %v1987 = vpack.c.b16 %v1662, %v1661
    %v1988 = vpack.c.b16 %v1664, %v1663
    %v1989 = vpack.c.b16 %v1666, %v1665
    %v1990 = vpack.c.b16 %v1668, %v1667
    %v1991 = vpack.c.b16 %v1670, %v1669
    %v1992 = vpack.c.b16 %v1672, %v1671
    %v1993 = vpack.c.b16 %v1674, %v1673
    %v1994 = vpack.c.b16 %v1676, %v1675
    %v1995 = vpack.c.b16 %v1678, %v1677
    %v1996 = vpack.c.b16 %v1680, %v1679
    %v1997 = vpack.c.b16 %v1682, %v1681
    %v1998 = vpack.c.b16 %v1684, %v1683
    %v1999 = vpack.c.b16 %v1686, %v1685
    %v2000 = vpack.c.b16 %v1688, %v1687
    %v2001 = vpack.c.b16 %v1690, %v1689
    %v2002 = vpack.c.b16 %v1692, %v1691
    %v2003 = vpack.c.b16 %v1694, %v1693
    %v2004 = vpack.c.b16 %v1696, %v1695
    %v2005 = vpack.c.b16 %v1698, %v1697
    %v2006 = vpack.c.b16 %v1700, %v1699
    %v2007 = vpack.c.b16 %v1702, %v1701
    %v2008 = vpack.c.b16 %v1704, %v1703
    %v2009 = vpack.c.b16 %v1706, %v1705
    %v2010 = vpack.c.b16 %v1708, %v1707
    %v2011 = vpack.c.b16 %v1710, %v1709
    %v2012 = vpack.c.b16 %v1712, %v1711
    %v2013 = vpack.c.b16 %v1714, %v1713
    %v2014 = vpack.c.b16 %v1716, %v1715
    %v2015 = vpack.c.b16 %v1718, %v1717
    %v2016 = vpack.c.b16 %v1720, %v1719
    %v2017 = vpack.c.b16 %v1722, %v1721
    %v2018 = vpack.c.b16 %v1724, %v1723
    %v2019 = vpack.c.b16 %v1726, %v1725
    %v2020 = vpack.c.b16 %v1728, %v1727
    %v2021 = vpack.c.b16 %v1730, %v1729
    %v2022 = vpack.c.b16 %v1732, %v1731
    %v2023 = vpack.c.b16 %v1734, %v1733
    %v2024 = vpack.c.b16 %v1736, %v1735
    %v2025 = vpack.c.b16 %v1738, %v1737
    %v2026 = vpack.c.b16 %v1740, %v1739
    %v2027 = vpack.c.b16 %v1742, %v1741
    %v2028 = vpack.c.b16 %v1744, %v1743
    %v2029 = vpack.c.b16 %v1746, %v1745
    %v2030 = vpack.c.b16 %v1748, %v1747
    %v2031 = vpack.c.b16 %v1750, %v1749
    %v2032 = vpack.c.b16 %v1752, %v1751
    %v2033 = vpack.c.b16 %v1754, %v1753
    %v2034 = vpack.c.b16 %v1756, %v1755
    %v2035 = vpack.c.b16 %v1758, %v1757
    %v2036 = vpack.c.b16 %v1760, %v1759
    %v2037 = vpack.c.b16 %v1762, %v1761
    %v2038 = vpack.c.b16 %v1764, %v1763
    %v2039 = vpack.c.b16 %v1766, %v1765
    %v2040 = vpack.c.b16 %v1768, %v1767
    %v2041 = vpack.c.b16 %v1770, %v1769
    %v2042 = vpack.c.b16 %v1772, %v1771
    %v2043 = vpack.c.b16 %v1774, %v1773
    %v2044 = vpack.c.b16 %v1776, %v1775
    %v2045 = vpack.c.b16 %v1778, %v1777
    %v2046 = vpack.c.b16 %v1780, %v1779
    %v2047 = vpack.c.b16 %v1782, %v1781
    %v2048 = vpack.c.b16 %v1784, %v1783
    %v2049 = vpack.c.b16 %v1786, %v1785
    %v2050 = vpack.c.b16 %v1788, %v1787
    %v2051 = vpack.c.b16 %v1790, %v1789
    %v2052 = vpack.c.b16 %v1792, %v1791
    %v2053 = vpack.c.b16 %v1794, %v1793
    %v2054 = vpack.c.b16 %v1796, %v1795
    %v2055 = vpack.c.b16 %v1798, %v1797
    %v2056 = vpack.c.b16 %v1800, %v1799
    %2313 = vmatprep.subr.bf16.mxu0 0
    %2314 = vmatpush1.bf16.msra.mxu0 %v1808
    %2315 = vmatprep.subr.bf16.mxu0 0
    %2316 = vmatpush1.bf16.msra.mxu0 %v1807
    %2317 = vmatprep.subr.bf16.mxu0 0
    %2318 = vmatpush1.bf16.msra.mxu0 %v1806
    %2319 = vmatprep.subr.bf16.mxu0 0
    %2320 = vmatpush1.bf16.msra.mxu0 %v1805
    %2321 = vmatprep.subr.bf16.mxu0 0
    %2322 = vmatpush1.bf16.msra.mxu0 %v1804
    %2323 = vmatprep.subr.bf16.mxu0 0
    %2324 = vmatpush1.bf16.msra.mxu0 %v1803
    %2325 = vmatprep.subr.bf16.mxu0 0
    %2326 = vmatpush1.bf16.msra.mxu0 %v1802
    %2327 = vmatprep.subr.bf16.mxu0 0
    %2328 = vmatpush1.bf16.msra.mxu0 %v1801
    %2329 = vmatprep.subr.bf16.mxu0 0
    %2330 = vmatpush2.bf16.msra.mxu0 %v1816
    %2331 = vmatprep.subr.bf16.mxu0 0
    %2332 = vmatpush2.bf16.msra.mxu0 %v1815
    %2333 = vmatprep.subr.bf16.mxu0 0
    %2334 = vmatpush2.bf16.msra.mxu0 %v1814
    %2335 = vmatprep.subr.bf16.mxu0 0
    %2336 = vmatpush2.bf16.msra.mxu0 %v1813
    %2337 = vmatprep.subr.bf16.mxu0 0
    %2338 = vmatpush2.bf16.msra.mxu0 %v1812
    %2339 = vmatprep.subr.bf16.mxu0 0
    %2340 = vmatpush2.bf16.msra.mxu0 %v1811
    %2341 = vmatprep.subr.bf16.mxu0 0
    %2342 = vmatpush2.bf16.msra.mxu0 %v1810
    %2343 = vmatprep.subr.bf16.mxu0 0
    %2344 = vmatpush2.bf16.msra.mxu0 %v1809
    %2345 = vmatprep.mubr.bf16.mxu0 %v586
    %2346 = vmatmul.mubr.bf16.gmra.mxu0 %v572
    %v2347 = vpop.f32.mrf.mxu0
    %v2348 = vadd.f32 %v543, %v2347
    %v2349 = vpop.f32.mrf.mxu0
    %v2350 = vpop.f32.mrf.mxu0
    %v2351 = vpop.f32.mrf.mxu0
    %2352 = vdwg.mxu0
    %2353 = vmatprep.subr.bf16.mxu0 0
    %2354 = vmatpush1.bf16.msra.mxu0 %v1824
    %2355 = vmatprep.subr.bf16.mxu0 0
    %2356 = vmatpush1.bf16.msra.mxu0 %v1823
    %2357 = vmatprep.subr.bf16.mxu0 0
    %2358 = vmatpush1.bf16.msra.mxu0 %v1822
    %2359 = vmatprep.subr.bf16.mxu0 0
    %2360 = vmatpush1.bf16.msra.mxu0 %v1821
    %2361 = vmatprep.subr.bf16.mxu0 0
    %2362 = vmatpush1.bf16.msra.mxu0 %v1820
    %2363 = vmatprep.subr.bf16.mxu0 0
    %2364 = vmatpush1.bf16.msra.mxu0 %v1819
    %2365 = vmatprep.subr.bf16.mxu0 0
    %2366 = vmatpush1.bf16.msra.mxu0 %v1818
    %2367 = vmatprep.subr.bf16.mxu0 0
    %2368 = vmatpush1.bf16.msra.mxu0 %v1817
    %2369 = vmatprep.subr.bf16.mxu0 0
    %2370 = vmatpush2.bf16.msra.mxu0 %v1832
    %2371 = vmatprep.subr.bf16.mxu0 0
    %2372 = vmatpush2.bf16.msra.mxu0 %v1831
    %2373 = vmatprep.subr.bf16.mxu0 0
    %2374 = vmatpush2.bf16.msra.mxu0 %v1830
    %2375 = vmatprep.subr.bf16.mxu0 0
    %2376 = vmatpush2.bf16.msra.mxu0 %v1829
    %2377 = vmatprep.subr.bf16.mxu0 0
    %2378 = vmatpush2.bf16.msra.mxu0 %v1828
    %2379 = vmatprep.subr.bf16.mxu0 0
    %2380 = vmatpush2.bf16.msra.mxu0 %v1827
    %2381 = vmatprep.subr.bf16.mxu0 0
    %2382 = vmatpush2.bf16.msra.mxu0 %v1826
    %2383 = vmatprep.subr.bf16.mxu0 0
    %2384 = vmatpush2.bf16.msra.mxu0 %v1825
    %2385 = vmatprep.mubr.bf16.mxu0 %v596
    %2386 = vmatmul.mubr.bf16.gmra.mxu0 %v594
    %v2387 = vpop.f32.mrf.mxu0
    %v2388 = vadd.f32 %v2348, %v2387
    %v2389 = vpop.f32.mrf.mxu0
    %v2390 = vpop.f32.mrf.mxu0
    %v2391 = vpop.f32.mrf.mxu0
    %2392 = vdwg.mxu0
    %2393 = vmatprep.subr.bf16.mxu0 0
    %2394 = vmatpush1.bf16.msra.mxu0 %v1840
    %2395 = vmatprep.subr.bf16.mxu0 0
    %2396 = vmatpush1.bf16.msra.mxu0 %v1839
    %2397 = vmatprep.subr.bf16.mxu0 0
    %2398 = vmatpush1.bf16.msra.mxu0 %v1838
    %2399 = vmatprep.subr.bf16.mxu0 0
    %2400 = vmatpush1.bf16.msra.mxu0 %v1837
    %2401 = vmatprep.subr.bf16.mxu0 0
    %2402 = vmatpush1.bf16.msra.mxu0 %v1836
    %2403 = vmatprep.subr.bf16.mxu0 0
    %2404 = vmatpush1.bf16.msra.mxu0 %v1835
    %2405 = vmatprep.subr.bf16.mxu0 0
    %2406 = vmatpush1.bf16.msra.mxu0 %v1834
    %2407 = vmatprep.subr.bf16.mxu0 0
    %2408 = vmatpush1.bf16.msra.mxu0 %v1833
    %2409 = vmatprep.subr.bf16.mxu0 0
    %2410 = vmatpush2.bf16.msra.mxu0 %v1848
    %2411 = vmatprep.subr.bf16.mxu0 0
    %2412 = vmatpush2.bf16.msra.mxu0 %v1847
    %2413 = vmatprep.subr.bf16.mxu0 0
    %2414 = vmatpush2.bf16.msra.mxu0 %v1846
    %2415 = vmatprep.subr.bf16.mxu0 0
    %2416 = vmatpush2.bf16.msra.mxu0 %v1845
    %2417 = vmatprep.subr.bf16.mxu0 0
    %2418 = vmatpush2.bf16.msra.mxu0 %v1844
    %2419 = vmatprep.subr.bf16.mxu0 0
    %2420 = vmatpush2.bf16.msra.mxu0 %v1843
    %2421 = vmatprep.subr.bf16.mxu0 0
    %2422 = vmatpush2.bf16.msra.mxu0 %v1842
    %2423 = vmatprep.subr.bf16.mxu0 0
    %2424 = vmatpush2.bf16.msra.mxu0 %v1841
    %2425 = vmatprep.mubr.bf16.mxu0 %v593
    %2426 = vmatmul.mubr.bf16.gmra.mxu0 %v579
    %v2427 = vpop.f32.mrf.mxu0
    %v2428 = vadd.f32 %v2388, %v2427
    %v2429 = vpop.f32.mrf.mxu0
    %v2430 = vpop.f32.mrf.mxu0
    %v2431 = vpop.f32.mrf.mxu0
    %2432 = vdwg.mxu0
    %2433 = vmatprep.subr.bf16.mxu0 0
    %2434 = vmatpush1.bf16.msra.mxu0 %v1856
    %2435 = vmatprep.subr.bf16.mxu0 0
    %2436 = vmatpush1.bf16.msra.mxu0 %v1855
    %2437 = vmatprep.subr.bf16.mxu0 0
    %2438 = vmatpush1.bf16.msra.mxu0 %v1854
    %2439 = vmatprep.subr.bf16.mxu0 0
    %2440 = vmatpush1.bf16.msra.mxu0 %v1853
    %2441 = vmatprep.subr.bf16.mxu0 0
    %2442 = vmatpush1.bf16.msra.mxu0 %v1852
    %2443 = vmatprep.subr.bf16.mxu0 0
    %2444 = vmatpush1.bf16.msra.mxu0 %v1851
    %2445 = vmatprep.subr.bf16.mxu0 0
    %2446 = vmatpush1.bf16.msra.mxu0 %v1850
    %2447 = vmatprep.subr.bf16.mxu0 0
    %2448 = vmatpush1.bf16.msra.mxu0 %v1849
    %2449 = vmatprep.subr.bf16.mxu0 0
    %2450 = vmatpush2.bf16.msra.mxu0 %v1864
    %2451 = vmatprep.subr.bf16.mxu0 0
    %2452 = vmatpush2.bf16.msra.mxu0 %v1863
    %2453 = vmatprep.subr.bf16.mxu0 0
    %2454 = vmatpush2.bf16.msra.mxu0 %v1862
    %2455 = vmatprep.subr.bf16.mxu0 0
    %2456 = vmatpush2.bf16.msra.mxu0 %v1861
    %2457 = vmatprep.subr.bf16.mxu0 0
    %2458 = vmatpush2.bf16.msra.mxu0 %v1860
    %2459 = vmatprep.subr.bf16.mxu0 0
    %2460 = vmatpush2.bf16.msra.mxu0 %v1859
    %2461 = vmatprep.subr.bf16.mxu0 0
    %2462 = vmatpush2.bf16.msra.mxu0 %v1858
    %2463 = vmatprep.subr.bf16.mxu0 0
    %2464 = vmatpush2.bf16.msra.mxu0 %v1857
    %2465 = vmatprep.mubr.bf16.mxu0 %v597
    %2466 = vmatmul.mubr.bf16.gmra.mxu0 %v595
    %v2467 = vpop.f32.mrf.mxu0
    %v2468 = vadd.f32 %v2428, %v2467
    %v2469 = vpop.f32.mrf.mxu0
    %v2470 = vpop.f32.mrf.mxu0
    %v2471 = vpop.f32.mrf.mxu0
    %2472 = vdwg.mxu0
    %2473 = vmatprep.subr.bf16.mxu0 0
    %2474 = vmatpush1.bf16.msra.mxu0 %v1872
    %2475 = vmatprep.subr.bf16.mxu0 0
    %2476 = vmatpush1.bf16.msra.mxu0 %v1871
    %2477 = vmatprep.subr.bf16.mxu0 0
    %2478 = vmatpush1.bf16.msra.mxu0 %v1870
    %2479 = vmatprep.subr.bf16.mxu0 0
    %2480 = vmatpush1.bf16.msra.mxu0 %v1869
    %2481 = vmatprep.subr.bf16.mxu0 0
    %2482 = vmatpush1.bf16.msra.mxu0 %v1868
    %2483 = vmatprep.subr.bf16.mxu0 0
    %2484 = vmatpush1.bf16.msra.mxu0 %v1867
    %2485 = vmatprep.subr.bf16.mxu0 0
    %2486 = vmatpush1.bf16.msra.mxu0 %v1866
    %2487 = vmatprep.subr.bf16.mxu0 0
    %2488 = vmatpush1.bf16.msra.mxu0 %v1865
    %2489 = vmatprep.subr.bf16.mxu0 0
    %2490 = vmatpush2.bf16.msra.mxu0 %v1880
    %2491 = vmatprep.subr.bf16.mxu0 0
    %2492 = vmatpush2.bf16.msra.mxu0 %v1879
    %2493 = vmatprep.subr.bf16.mxu0 0
    %2494 = vmatpush2.bf16.msra.mxu0 %v1878
    %2495 = vmatprep.subr.bf16.mxu0 0
    %2496 = vmatpush2.bf16.msra.mxu0 %v1877
    %2497 = vmatprep.subr.bf16.mxu0 0
    %2498 = vmatpush2.bf16.msra.mxu0 %v1876
    %2499 = vmatprep.subr.bf16.mxu0 0
    %2500 = vmatpush2.bf16.msra.mxu0 %v1875
    %2501 = vmatprep.subr.bf16.mxu0 0
    %2502 = vmatpush2.bf16.msra.mxu0 %v1874
    %2503 = vmatprep.subr.bf16.mxu0 0
    %2504 = vmatpush2.bf16.msra.mxu0 %v1873
    %2505 = vmatprep.mubr.bf16.mxu0 %v635
    %2506 = vmatmul.mubr.bf16.gmra.mxu0 %v621
    %v2507 = vpop.f32.mrf.mxu0
    %v2508 = vadd.f32 %v2468, %v2507
    %v2509 = vpop.f32.mrf.mxu0
    %v2510 = vpop.f32.mrf.mxu0
    %v2511 = vpop.f32.mrf.mxu0
    %2512 = vdwg.mxu0
    %2513 = vmatprep.subr.bf16.mxu0 0
    %2514 = vmatpush1.bf16.msra.mxu0 %v1888
    %2515 = vmatprep.subr.bf16.mxu0 0
    %2516 = vmatpush1.bf16.msra.mxu0 %v1887
    %2517 = vmatprep.subr.bf16.mxu0 0
    %2518 = vmatpush1.bf16.msra.mxu0 %v1886
    %2519 = vmatprep.subr.bf16.mxu0 0
    %2520 = vmatpush1.bf16.msra.mxu0 %v1885
    %2521 = vmatprep.subr.bf16.mxu0 0
    %2522 = vmatpush1.bf16.msra.mxu0 %v1884
    %2523 = vmatprep.subr.bf16.mxu0 0
    %2524 = vmatpush1.bf16.msra.mxu0 %v1883
    %2525 = vmatprep.subr.bf16.mxu0 0
    %2526 = vmatpush1.bf16.msra.mxu0 %v1882
    %2527 = vmatprep.subr.bf16.mxu0 0
    %2528 = vmatpush1.bf16.msra.mxu0 %v1881
    %2529 = vmatprep.subr.bf16.mxu0 0
    %2530 = vmatpush2.bf16.msra.mxu0 %v1896
    %2531 = vmatprep.subr.bf16.mxu0 0
    %2532 = vmatpush2.bf16.msra.mxu0 %v1895
    %2533 = vmatprep.subr.bf16.mxu0 0
    %2534 = vmatpush2.bf16.msra.mxu0 %v1894
    %2535 = vmatprep.subr.bf16.mxu0 0
    %2536 = vmatpush2.bf16.msra.mxu0 %v1893
    %2537 = vmatprep.subr.bf16.mxu0 0
    %2538 = vmatpush2.bf16.msra.mxu0 %v1892
    %2539 = vmatprep.subr.bf16.mxu0 0
    %2540 = vmatpush2.bf16.msra.mxu0 %v1891
    %2541 = vmatprep.subr.bf16.mxu0 0
    %2542 = vmatpush2.bf16.msra.mxu0 %v1890
    %2543 = vmatprep.subr.bf16.mxu0 0
    %2544 = vmatpush2.bf16.msra.mxu0 %v1889
    %2545 = vmatprep.mubr.bf16.mxu0 %v645
    %2546 = vmatmul.mubr.bf16.gmra.mxu0 %v643
    %v2547 = vpop.f32.mrf.mxu0
    %v2548 = vadd.f32 %v2508, %v2547
    %v2549 = vpop.f32.mrf.mxu0
    %v2550 = vpop.f32.mrf.mxu0
    %v2551 = vpop.f32.mrf.mxu0
    %2552 = vdwg.mxu0
    %2553 = vmatprep.subr.bf16.mxu0 0
    %2554 = vmatpush1.bf16.msra.mxu0 %v1904
    %2555 = vmatprep.subr.bf16.mxu0 0
    %2556 = vmatpush1.bf16.msra.mxu0 %v1903
    %2557 = vmatprep.subr.bf16.mxu0 0
    %2558 = vmatpush1.bf16.msra.mxu0 %v1902
    %2559 = vmatprep.subr.bf16.mxu0 0
    %2560 = vmatpush1.bf16.msra.mxu0 %v1901
    %2561 = vmatprep.subr.bf16.mxu0 0
    %2562 = vmatpush1.bf16.msra.mxu0 %v1900
    %2563 = vmatprep.subr.bf16.mxu0 0
    %2564 = vmatpush1.bf16.msra.mxu0 %v1899
    %2565 = vmatprep.subr.bf16.mxu0 0
    %2566 = vmatpush1.bf16.msra.mxu0 %v1898
    %2567 = vmatprep.subr.bf16.mxu0 0
    %2568 = vmatpush1.bf16.msra.mxu0 %v1897
    %2569 = vmatprep.subr.bf16.mxu0 0
    %2570 = vmatpush2.bf16.msra.mxu0 %v1912
    %2571 = vmatprep.subr.bf16.mxu0 0
    %2572 = vmatpush2.bf16.msra.mxu0 %v1911
    %2573 = vmatprep.subr.bf16.mxu0 0
    %2574 = vmatpush2.bf16.msra.mxu0 %v1910
    %2575 = vmatprep.subr.bf16.mxu0 0
    %2576 = vmatpush2.bf16.msra.mxu0 %v1909
    %2577 = vmatprep.subr.bf16.mxu0 0
    %2578 = vmatpush2.bf16.msra.mxu0 %v1908
    %2579 = vmatprep.subr.bf16.mxu0 0
    %2580 = vmatpush2.bf16.msra.mxu0 %v1907
    %2581 = vmatprep.subr.bf16.mxu0 0
    %2582 = vmatpush2.bf16.msra.mxu0 %v1906
    %2583 = vmatprep.subr.bf16.mxu0 0
    %2584 = vmatpush2.bf16.msra.mxu0 %v1905
    %2585 = vmatprep.mubr.bf16.mxu0 %v642
    %2586 = vmatmul.mubr.bf16.gmra.mxu0 %v628
    %v2587 = vpop.f32.mrf.mxu0
    %v2588 = vadd.f32 %v2548, %v2587
    %v2589 = vpop.f32.mrf.mxu0
    %v2590 = vpop.f32.mrf.mxu0
    %v2591 = vpop.f32.mrf.mxu0
    %2592 = vdwg.mxu0
    %2593 = vmatprep.subr.bf16.mxu0 0
    %2594 = vmatpush1.bf16.msra.mxu0 %v1920
    %2595 = vmatprep.subr.bf16.mxu0 0
    %2596 = vmatpush1.bf16.msra.mxu0 %v1919
    %2597 = vmatprep.subr.bf16.mxu0 0
    %2598 = vmatpush1.bf16.msra.mxu0 %v1918
    %2599 = vmatprep.subr.bf16.mxu0 0
    %2600 = vmatpush1.bf16.msra.mxu0 %v1917
    %2601 = vmatprep.subr.bf16.mxu0 0
    %2602 = vmatpush1.bf16.msra.mxu0 %v1916
    %2603 = vmatprep.subr.bf16.mxu0 0
    %2604 = vmatpush1.bf16.msra.mxu0 %v1915
    %2605 = vmatprep.subr.bf16.mxu0 0
    %2606 = vmatpush1.bf16.msra.mxu0 %v1914
    %2607 = vmatprep.subr.bf16.mxu0 0
    %2608 = vmatpush1.bf16.msra.mxu0 %v1913
    %2609 = vmatprep.subr.bf16.mxu0 0
    %2610 = vmatpush2.bf16.msra.mxu0 %v1928
    %2611 = vmatprep.subr.bf16.mxu0 0
    %2612 = vmatpush2.bf16.msra.mxu0 %v1927
    %2613 = vmatprep.subr.bf16.mxu0 0
    %2614 = vmatpush2.bf16.msra.mxu0 %v1926
    %2615 = vmatprep.subr.bf16.mxu0 0
    %2616 = vmatpush2.bf16.msra.mxu0 %v1925
    %2617 = vmatprep.subr.bf16.mxu0 0
    %2618 = vmatpush2.bf16.msra.mxu0 %v1924
    %2619 = vmatprep.subr.bf16.mxu0 0
    %2620 = vmatpush2.bf16.msra.mxu0 %v1923
    %2621 = vmatprep.subr.bf16.mxu0 0
    %2622 = vmatpush2.bf16.msra.mxu0 %v1922
    %2623 = vmatprep.subr.bf16.mxu0 0
    %2624 = vmatpush2.bf16.msra.mxu0 %v1921
    %2625 = vmatprep.mubr.bf16.mxu0 %v646
    %2626 = vmatmul.mubr.bf16.gmra.mxu0 %v644
    %v2627 = vpop.f32.mrf.mxu0
    %v2628 = vadd.f32 %v2588, %v2627
    %v2629 = vpop.f32.mrf.mxu0
    %v2630 = vpop.f32.mrf.mxu0
    %v2631 = vpop.f32.mrf.mxu0
    %2632 = vdwg.mxu0
    %2633 = vmatprep.subr.bf16.mxu0 0
    %2634 = vmatpush1.bf16.msra.mxu0 %v1936
    %2635 = vmatprep.subr.bf16.mxu0 0
    %2636 = vmatpush1.bf16.msra.mxu0 %v1935
    %2637 = vmatprep.subr.bf16.mxu0 0
    %2638 = vmatpush1.bf16.msra.mxu0 %v1934
    %2639 = vmatprep.subr.bf16.mxu0 0
    %2640 = vmatpush1.bf16.msra.mxu0 %v1933
    %2641 = vmatprep.subr.bf16.mxu0 0
    %2642 = vmatpush1.bf16.msra.mxu0 %v1932
    %2643 = vmatprep.subr.bf16.mxu0 0
    %2644 = vmatpush1.bf16.msra.mxu0 %v1931
    %2645 = vmatprep.subr.bf16.mxu0 0
    %2646 = vmatpush1.bf16.msra.mxu0 %v1930
    %2647 = vmatprep.subr.bf16.mxu0 0
    %2648 = vmatpush1.bf16.msra.mxu0 %v1929
    %2649 = vmatprep.subr.bf16.mxu0 0
    %2650 = vmatpush2.bf16.msra.mxu0 %v1944
    %2651 = vmatprep.subr.bf16.mxu0 0
    %2652 = vmatpush2.bf16.msra.mxu0 %v1943
    %2653 = vmatprep.subr.bf16.mxu0 0
    %2654 = vmatpush2.bf16.msra.mxu0 %v1942
    %2655 = vmatprep.subr.bf16.mxu0 0
    %2656 = vmatpush2.bf16.msra.mxu0 %v1941
    %2657 = vmatprep.subr.bf16.mxu0 0
    %2658 = vmatpush2.bf16.msra.mxu0 %v1940
    %2659 = vmatprep.subr.bf16.mxu0 0
    %2660 = vmatpush2.bf16.msra.mxu0 %v1939
    %2661 = vmatprep.subr.bf16.mxu0 0
    %2662 = vmatpush2.bf16.msra.mxu0 %v1938
    %2663 = vmatprep.subr.bf16.mxu0 0
    %2664 = vmatpush2.bf16.msra.mxu0 %v1937
    %2665 = vmatprep.mubr.bf16.mxu0 %v684
    %2666 = vmatmul.mubr.bf16.gmra.mxu0 %v670
    %v2667 = vpop.f32.mrf.mxu0
    %v2668 = vadd.f32 %v2628, %v2667
    %v2669 = vpop.f32.mrf.mxu0
    %v2670 = vpop.f32.mrf.mxu0
    %v2671 = vpop.f32.mrf.mxu0
    %2672 = vdwg.mxu0
    %2673 = vmatprep.subr.bf16.mxu0 0
    %2674 = vmatpush1.bf16.msra.mxu0 %v1952
    %2675 = vmatprep.subr.bf16.mxu0 0
    %2676 = vmatpush1.bf16.msra.mxu0 %v1951
    %2677 = vmatprep.subr.bf16.mxu0 0
    %2678 = vmatpush1.bf16.msra.mxu0 %v1950
    %2679 = vmatprep.subr.bf16.mxu0 0
    %2680 = vmatpush1.bf16.msra.mxu0 %v1949
    %2681 = vmatprep.subr.bf16.mxu0 0
    %2682 = vmatpush1.bf16.msra.mxu0 %v1948
    %2683 = vmatprep.subr.bf16.mxu0 0
    %2684 = vmatpush1.bf16.msra.mxu0 %v1947
    %2685 = vmatprep.subr.bf16.mxu0 0
    %2686 = vmatpush1.bf16.msra.mxu0 %v1946
    %2687 = vmatprep.subr.bf16.mxu0 0
    %2688 = vmatpush1.bf16.msra.mxu0 %v1945
    %2689 = vmatprep.subr.bf16.mxu0 0
    %2690 = vmatpush2.bf16.msra.mxu0 %v1960
    %2691 = vmatprep.subr.bf16.mxu0 0
    %2692 = vmatpush2.bf16.msra.mxu0 %v1959
    %2693 = vmatprep.subr.bf16.mxu0 0
    %2694 = vmatpush2.bf16.msra.mxu0 %v1958
    %2695 = vmatprep.subr.bf16.mxu0 0
    %2696 = vmatpush2.bf16.msra.mxu0 %v1957
    %2697 = vmatprep.subr.bf16.mxu0 0
    %2698 = vmatpush2.bf16.msra.mxu0 %v1956
    %2699 = vmatprep.subr.bf16.mxu0 0
    %2700 = vmatpush2.bf16.msra.mxu0 %v1955
    %2701 = vmatprep.subr.bf16.mxu0 0
    %2702 = vmatpush2.bf16.msra.mxu0 %v1954
    %2703 = vmatprep.subr.bf16.mxu0 0
    %2704 = vmatpush2.bf16.msra.mxu0 %v1953
    %2705 = vmatprep.mubr.bf16.mxu0 %v694
    %2706 = vmatmul.mubr.bf16.gmra.mxu0 %v692
    %v2707 = vpop.f32.mrf.mxu0
    %v2708 = vadd.f32 %v2668, %v2707
    %v2709 = vpop.f32.mrf.mxu0
    %v2710 = vpop.f32.mrf.mxu0
    %v2711 = vpop.f32.mrf.mxu0
    %2712 = vdwg.mxu0
    %2713 = vmatprep.subr.bf16.mxu0 0
    %2714 = vmatpush1.bf16.msra.mxu0 %v1968
    %2715 = vmatprep.subr.bf16.mxu0 0
    %2716 = vmatpush1.bf16.msra.mxu0 %v1967
    %2717 = vmatprep.subr.bf16.mxu0 0
    %2718 = vmatpush1.bf16.msra.mxu0 %v1966
    %2719 = vmatprep.subr.bf16.mxu0 0
    %2720 = vmatpush1.bf16.msra.mxu0 %v1965
    %2721 = vmatprep.subr.bf16.mxu0 0
    %2722 = vmatpush1.bf16.msra.mxu0 %v1964
    %2723 = vmatprep.subr.bf16.mxu0 0
    %2724 = vmatpush1.bf16.msra.mxu0 %v1963
    %2725 = vmatprep.subr.bf16.mxu0 0
    %2726 = vmatpush1.bf16.msra.mxu0 %v1962
    %2727 = vmatprep.subr.bf16.mxu0 0
    %2728 = vmatpush1.bf16.msra.mxu0 %v1961
    %2729 = vmatprep.subr.bf16.mxu0 0
    %2730 = vmatpush2.bf16.msra.mxu0 %v1976
    %2731 = vmatprep.subr.bf16.mxu0 0
    %2732 = vmatpush2.bf16.msra.mxu0 %v1975
    %2733 = vmatprep.subr.bf16.mxu0 0
    %2734 = vmatpush2.bf16.msra.mxu0 %v1974
    %2735 = vmatprep.subr.bf16.mxu0 0
    %2736 = vmatpush2.bf16.msra.mxu0 %v1973
    %2737 = vmatprep.subr.bf16.mxu0 0
    %2738 = vmatpush2.bf16.msra.mxu0 %v1972
    %2739 = vmatprep.subr.bf16.mxu0 0
    %2740 = vmatpush2.bf16.msra.mxu0 %v1971
    %2741 = vmatprep.subr.bf16.mxu0 0
    %2742 = vmatpush2.bf16.msra.mxu0 %v1970
    %2743 = vmatprep.subr.bf16.mxu0 0
    %2744 = vmatpush2.bf16.msra.mxu0 %v1969
    %2745 = vmatprep.mubr.bf16.mxu0 %v691
    %2746 = vmatmul.mubr.bf16.gmra.mxu0 %v677
    %v2747 = vpop.f32.mrf.mxu0
    %v2748 = vadd.f32 %v2708, %v2747
    %v2749 = vpop.f32.mrf.mxu0
    %v2750 = vpop.f32.mrf.mxu0
    %v2751 = vpop.f32.mrf.mxu0
    %2752 = vdwg.mxu0
    %2753 = vmatprep.subr.bf16.mxu0 0
    %2754 = vmatpush1.bf16.msra.mxu0 %v1984
    %2755 = vmatprep.subr.bf16.mxu0 0
    %2756 = vmatpush1.bf16.msra.mxu0 %v1983
    %2757 = vmatprep.subr.bf16.mxu0 0
    %2758 = vmatpush1.bf16.msra.mxu0 %v1982
    %2759 = vmatprep.subr.bf16.mxu0 0
    %2760 = vmatpush1.bf16.msra.mxu0 %v1981
    %2761 = vmatprep.subr.bf16.mxu0 0
    %2762 = vmatpush1.bf16.msra.mxu0 %v1980
    %2763 = vmatprep.subr.bf16.mxu0 0
    %2764 = vmatpush1.bf16.msra.mxu0 %v1979
    %2765 = vmatprep.subr.bf16.mxu0 0
    %2766 = vmatpush1.bf16.msra.mxu0 %v1978
    %2767 = vmatprep.subr.bf16.mxu0 0
    %2768 = vmatpush1.bf16.msra.mxu0 %v1977
    %2769 = vmatprep.subr.bf16.mxu0 0
    %2770 = vmatpush2.bf16.msra.mxu0 %v1992
    %2771 = vmatprep.subr.bf16.mxu0 0
    %2772 = vmatpush2.bf16.msra.mxu0 %v1991
    %2773 = vmatprep.subr.bf16.mxu0 0
    %2774 = vmatpush2.bf16.msra.mxu0 %v1990
    %2775 = vmatprep.subr.bf16.mxu0 0
    %2776 = vmatpush2.bf16.msra.mxu0 %v1989
    %2777 = vmatprep.subr.bf16.mxu0 0
    %2778 = vmatpush2.bf16.msra.mxu0 %v1988
    %2779 = vmatprep.subr.bf16.mxu0 0
    %2780 = vmatpush2.bf16.msra.mxu0 %v1987
    %2781 = vmatprep.subr.bf16.mxu0 0
    %2782 = vmatpush2.bf16.msra.mxu0 %v1986
    %2783 = vmatprep.subr.bf16.mxu0 0
    %2784 = vmatpush2.bf16.msra.mxu0 %v1985
    %2785 = vmatprep.mubr.bf16.mxu0 %v695
    %2786 = vmatmul.mubr.bf16.gmra.mxu0 %v693
    %v2787 = vpop.f32.mrf.mxu0
    %v2788 = vadd.f32 %v2748, %v2787
    %v2789 = vpop.f32.mrf.mxu0
    %v2790 = vpop.f32.mrf.mxu0
    %v2791 = vpop.f32.mrf.mxu0
    %2792 = vdwg.mxu0
    %2793 = vmatprep.subr.bf16.mxu0 0
    %2794 = vmatpush1.bf16.msra.mxu0 %v2000
    %2795 = vmatprep.subr.bf16.mxu0 0
    %2796 = vmatpush1.bf16.msra.mxu0 %v1999
    %2797 = vmatprep.subr.bf16.mxu0 0
    %2798 = vmatpush1.bf16.msra.mxu0 %v1998
    %2799 = vmatprep.subr.bf16.mxu0 0
    %2800 = vmatpush1.bf16.msra.mxu0 %v1997
    %2801 = vmatprep.subr.bf16.mxu0 0
    %2802 = vmatpush1.bf16.msra.mxu0 %v1996
    %2803 = vmatprep.subr.bf16.mxu0 0
    %2804 = vmatpush1.bf16.msra.mxu0 %v1995
    %2805 = vmatprep.subr.bf16.mxu0 0
    %2806 = vmatpush1.bf16.msra.mxu0 %v1994
    %2807 = vmatprep.subr.bf16.mxu0 0
    %2808 = vmatpush1.bf16.msra.mxu0 %v1993
    %2809 = vmatprep.subr.bf16.mxu0 0
    %2810 = vmatpush2.bf16.msra.mxu0 %v2008
    %2811 = vmatprep.subr.bf16.mxu0 0
    %2812 = vmatpush2.bf16.msra.mxu0 %v2007
    %2813 = vmatprep.subr.bf16.mxu0 0
    %2814 = vmatpush2.bf16.msra.mxu0 %v2006
    %2815 = vmatprep.subr.bf16.mxu0 0
    %2816 = vmatpush2.bf16.msra.mxu0 %v2005
    %2817 = vmatprep.subr.bf16.mxu0 0
    %2818 = vmatpush2.bf16.msra.mxu0 %v2004
    %2819 = vmatprep.subr.bf16.mxu0 0
    %2820 = vmatpush2.bf16.msra.mxu0 %v2003
    %2821 = vmatprep.subr.bf16.mxu0 0
    %2822 = vmatpush2.bf16.msra.mxu0 %v2002
    %2823 = vmatprep.subr.bf16.mxu0 0
    %2824 = vmatpush2.bf16.msra.mxu0 %v2001
    %2825 = vmatprep.mubr.bf16.mxu0 %v733
    %2826 = vmatmul.mubr.bf16.gmra.mxu0 %v719
    %v2827 = vpop.f32.mrf.mxu0
    %v2828 = vadd.f32 %v2788, %v2827
    %v2829 = vpop.f32.mrf.mxu0
    %v2830 = vpop.f32.mrf.mxu0
    %v2831 = vpop.f32.mrf.mxu0
    %2832 = vdwg.mxu0
    %2833 = vmatprep.subr.bf16.mxu0 0
    %2834 = vmatpush1.bf16.msra.mxu0 %v2016
    %2835 = vmatprep.subr.bf16.mxu0 0
    %2836 = vmatpush1.bf16.msra.mxu0 %v2015
    %2837 = vmatprep.subr.bf16.mxu0 0
    %2838 = vmatpush1.bf16.msra.mxu0 %v2014
    %2839 = vmatprep.subr.bf16.mxu0 0
    %2840 = vmatpush1.bf16.msra.mxu0 %v2013
    %2841 = vmatprep.subr.bf16.mxu0 0
    %2842 = vmatpush1.bf16.msra.mxu0 %v2012
    %2843 = vmatprep.subr.bf16.mxu0 0
    %2844 = vmatpush1.bf16.msra.mxu0 %v2011
    %2845 = vmatprep.subr.bf16.mxu0 0
    %2846 = vmatpush1.bf16.msra.mxu0 %v2010
    %2847 = vmatprep.subr.bf16.mxu0 0
    %2848 = vmatpush1.bf16.msra.mxu0 %v2009
    %2849 = vmatprep.subr.bf16.mxu0 0
    %2850 = vmatpush2.bf16.msra.mxu0 %v2024
    %2851 = vmatprep.subr.bf16.mxu0 0
    %2852 = vmatpush2.bf16.msra.mxu0 %v2023
    %2853 = vmatprep.subr.bf16.mxu0 0
    %2854 = vmatpush2.bf16.msra.mxu0 %v2022
    %2855 = vmatprep.subr.bf16.mxu0 0
    %2856 = vmatpush2.bf16.msra.mxu0 %v2021
    %2857 = vmatprep.subr.bf16.mxu0 0
    %2858 = vmatpush2.bf16.msra.mxu0 %v2020
    %2859 = vmatprep.subr.bf16.mxu0 0
    %2860 = vmatpush2.bf16.msra.mxu0 %v2019
    %2861 = vmatprep.subr.bf16.mxu0 0
    %2862 = vmatpush2.bf16.msra.mxu0 %v2018
    %2863 = vmatprep.subr.bf16.mxu0 0
    %2864 = vmatpush2.bf16.msra.mxu0 %v2017
    %2865 = vmatprep.mubr.bf16.mxu0 %v743
    %2866 = vmatmul.mubr.bf16.gmra.mxu0 %v741
    %v2867 = vpop.f32.mrf.mxu0
    %v2868 = vadd.f32 %v2828, %v2867
    %v2869 = vpop.f32.mrf.mxu0
    %v2870 = vpop.f32.mrf.mxu0
    %v2871 = vpop.f32.mrf.mxu0
    %2872 = vdwg.mxu0
    %2873 = vmatprep.subr.bf16.mxu0 0
    %2874 = vmatpush1.bf16.msra.mxu0 %v2032
    %2875 = vmatprep.subr.bf16.mxu0 0
    %2876 = vmatpush1.bf16.msra.mxu0 %v2031
    %2877 = vmatprep.subr.bf16.mxu0 0
    %2878 = vmatpush1.bf16.msra.mxu0 %v2030
    %2879 = vmatprep.subr.bf16.mxu0 0
    %2880 = vmatpush1.bf16.msra.mxu0 %v2029
    %2881 = vmatprep.subr.bf16.mxu0 0
    %2882 = vmatpush1.bf16.msra.mxu0 %v2028
    %2883 = vmatprep.subr.bf16.mxu0 0
    %2884 = vmatpush1.bf16.msra.mxu0 %v2027
    %2885 = vmatprep.subr.bf16.mxu0 0
    %2886 = vmatpush1.bf16.msra.mxu0 %v2026
    %2887 = vmatprep.subr.bf16.mxu0 0
    %2888 = vmatpush1.bf16.msra.mxu0 %v2025
    %2889 = vmatprep.subr.bf16.mxu0 0
    %2890 = vmatpush2.bf16.msra.mxu0 %v2040
    %2891 = vmatprep.subr.bf16.mxu0 0
    %2892 = vmatpush2.bf16.msra.mxu0 %v2039
    %2893 = vmatprep.subr.bf16.mxu0 0
    %2894 = vmatpush2.bf16.msra.mxu0 %v2038
    %2895 = vmatprep.subr.bf16.mxu0 0
    %2896 = vmatpush2.bf16.msra.mxu0 %v2037
    %2897 = vmatprep.subr.bf16.mxu0 0
    %2898 = vmatpush2.bf16.msra.mxu0 %v2036
    %2899 = vmatprep.subr.bf16.mxu0 0
    %2900 = vmatpush2.bf16.msra.mxu0 %v2035
    %2901 = vmatprep.subr.bf16.mxu0 0
    %2902 = vmatpush2.bf16.msra.mxu0 %v2034
    %2903 = vmatprep.subr.bf16.mxu0 0
    %2904 = vmatpush2.bf16.msra.mxu0 %v2033
    %2905 = vmatprep.mubr.bf16.mxu0 %v740
    %2906 = vmatmul.mubr.bf16.gmra.mxu0 %v726
    %v2907 = vpop.f32.mrf.mxu0
    %v2908 = vadd.f32 %v2868, %v2907
    %v2909 = vpop.f32.mrf.mxu0
    %v2910 = vpop.f32.mrf.mxu0
    %v2911 = vpop.f32.mrf.mxu0
    %2912 = vdwg.mxu0
    %2913 = vmatprep.subr.bf16.mxu0 0
    %2914 = vmatpush1.bf16.msra.mxu0 %v2048
    %2915 = vmatprep.subr.bf16.mxu0 0
    %2916 = vmatpush1.bf16.msra.mxu0 %v2047
    %2917 = vmatprep.subr.bf16.mxu0 0
    %2918 = vmatpush1.bf16.msra.mxu0 %v2046
    %2919 = vmatprep.subr.bf16.mxu0 0
    %2920 = vmatpush1.bf16.msra.mxu0 %v2045
    %2921 = vmatprep.subr.bf16.mxu0 0
    %2922 = vmatpush1.bf16.msra.mxu0 %v2044
    %2923 = vmatprep.subr.bf16.mxu0 0
    %2924 = vmatpush1.bf16.msra.mxu0 %v2043
    %2925 = vmatprep.subr.bf16.mxu0 0
    %2926 = vmatpush1.bf16.msra.mxu0 %v2042
    %2927 = vmatprep.subr.bf16.mxu0 0
    %2928 = vmatpush1.bf16.msra.mxu0 %v2041
    %2929 = vmatprep.subr.bf16.mxu0 0
    %2930 = vmatpush2.bf16.msra.mxu0 %v2056
    %2931 = vmatprep.subr.bf16.mxu0 0
    %2932 = vmatpush2.bf16.msra.mxu0 %v2055
    %2933 = vmatprep.subr.bf16.mxu0 0
    %2934 = vmatpush2.bf16.msra.mxu0 %v2054
    %2935 = vmatprep.subr.bf16.mxu0 0
    %2936 = vmatpush2.bf16.msra.mxu0 %v2053
    %2937 = vmatprep.subr.bf16.mxu0 0
    %2938 = vmatpush2.bf16.msra.mxu0 %v2052
    %2939 = vmatprep.subr.bf16.mxu0 0
    %2940 = vmatpush2.bf16.msra.mxu0 %v2051
    %2941 = vmatprep.subr.bf16.mxu0 0
    %2942 = vmatpush2.bf16.msra.mxu0 %v2050
    %2943 = vmatprep.subr.bf16.mxu0 0
    %2944 = vmatpush2.bf16.msra.mxu0 %v2049
    %2945 = vmatprep.mubr.bf16.mxu0 %v744
    %2946 = vmatmul.mubr.bf16.gmra.mxu0 %v742
    %v2947 = vpop.f32.mrf.mxu0
    %v2948 = vadd.f32 %v2908, %v2947
    %v2949 = vpop.f32.mrf.mxu0
    %v2950 = vpop.f32.mrf.mxu0
    %v2951 = vpop.f32.mrf.mxu0
    %2952 = vdwg.mxu0
    %v2953 = vmax.f32 %v2948, 0.0
    %v2954 = vpack.c.bf16 %v2953, %v2953
    %v2955 = vld [vmem:[%s3] sm:$0xf]
    %v2956 = vld [vmem:[%s3 + $0x4] sm:$0xf]
    %v2957 = vld [vmem:[%s3 + $0x8] sm:$0xf]
    %v2958 = vld [vmem:[%s3 + $0xc] sm:$0xf]
    %v2959 = vld [vmem:[%s3 + $0x10] sm:$0xf]
    %v2960 = vld [vmem:[%s3 + $0x14] sm:$0xf]
    %v2961 = vld [vmem:[%s3 + $0x18] sm:$0xf]
    %v2962 = vld [vmem:[%s3 + $0x1c] sm:$0xf]
    %v2963 = vld [vmem:[%s3 + $0x20] sm:$0xf]
    %v2964 = vld [vmem:[%s3 + $0x24] sm:$0xf]
    %v2965 = vld [vmem:[%s3 + $0x28] sm:$0xf]
    %v2966 = vld [vmem:[%s3 + $0x2c] sm:$0xf]
    %v2967 = vld [vmem:[%s3 + $0x30] sm:$0xf]
    %v2968 = vld [vmem:[%s3 + $0x34] sm:$0xf]
    %v2969 = vld [vmem:[%s3 + $0x38] sm:$0xf]
    %v2970 = vld [vmem:[%s3 + $0x3c] sm:$0xf]
    %v2971 = vld [vmem:[%s4] sm:$0x1]
    %v2973 = vlaneseq
    %v2974 = vshrl.u32 %v2973, 7
    %v2975 = vsub.s32 0, %v2974
    %v2976 = vrot.slane %v2971, %v2975
    %v2994 = vunpack.c.l.b16 %v2955
    %v2995 = vunpack.c.l.b16 %v2956
    %v2996 = vunpack.c.l.b16 %v2957
    %v2997 = vunpack.c.l.b16 %v2958
    %v2998 = vunpack.c.l.b16 %v2959
    %v2999 = vunpack.c.l.b16 %v2960
    %v3000 = vunpack.c.l.b16 %v2961
    %v3001 = vunpack.c.l.b16 %v2962
    %v3002 = vunpack.c.l.b16 %v2963
    %v3003 = vunpack.c.l.b16 %v2964
    %v3004 = vunpack.c.l.b16 %v2965
    %v3005 = vunpack.c.l.b16 %v2966
    %v3006 = vunpack.c.l.b16 %v2967
    %v3007 = vunpack.c.l.b16 %v2968
    %v3008 = vunpack.c.l.b16 %v2969
    %v3009 = vunpack.c.l.b16 %v2970
    %v3010 = vpack.c.b16 %v2995, %v2994
    %v3011 = vpack.c.b16 %v2997, %v2996
    %v3012 = vpack.c.b16 %v2999, %v2998
    %v3013 = vpack.c.b16 %v3001, %v3000
    %v3014 = vpack.c.b16 %v3003, %v3002
    %v3015 = vpack.c.b16 %v3005, %v3004
    %v3016 = vpack.c.b16 %v3007, %v3006
    %v3017 = vpack.c.b16 %v3009, %v3008
    %3026 = vmatprep.subr.bf16.mxu0 0
    %3027 = vmatpush1.bf16.msra.mxu0 %v3017
    %3028 = vmatprep.subr.bf16.mxu0 0
    %3029 = vmatpush1.bf16.msra.mxu0 %v3016
    %3030 = vmatprep.subr.bf16.mxu0 0
    %3031 = vmatpush1.bf16.msra.mxu0 %v3015
    %3032 = vmatprep.subr.bf16.mxu0 0
    %3033 = vmatpush1.bf16.msra.mxu0 %v3014
    %3034 = vmatprep.subr.bf16.mxu0 0
    %3035 = vmatpush1.bf16.msra.mxu0 %v3013
    %3036 = vmatprep.subr.bf16.mxu0 0
    %3037 = vmatpush1.bf16.msra.mxu0 %v3012
    %3038 = vmatprep.subr.bf16.mxu0 0
    %3039 = vmatpush1.bf16.msra.mxu0 %v3011
    %3040 = vmatprep.subr.bf16.mxu0 0
    %3041 = vmatpush1.bf16.msra.mxu0 %v3010
    %3042 = vmatprep.subr.bf16.mxu0 0
    %3043 = vmatpush2.bf16.msra.mxu0 0
    %3044 = vmatprep.subr.bf16.mxu0 0
    %3045 = vmatpush2.bf16.msra.mxu0 0
    %3046 = vmatprep.subr.bf16.mxu0 0
    %3047 = vmatpush2.bf16.msra.mxu0 0
    %3048 = vmatprep.subr.bf16.mxu0 0
    %3049 = vmatpush2.bf16.msra.mxu0 0
    %3050 = vmatprep.subr.bf16.mxu0 0
    %3051 = vmatpush2.bf16.msra.mxu0 0
    %3052 = vmatprep.subr.bf16.mxu0 0
    %3053 = vmatpush2.bf16.msra.mxu0 0
    %3054 = vmatprep.subr.bf16.mxu0 0
    %3055 = vmatpush2.bf16.msra.mxu0 0
    %3056 = vmatprep.subr.bf16.mxu0 0
    %3057 = vmatpush2.bf16.msra.mxu0 0
    %3058 = vmatprep.mubr.bf16.mxu0 0
    %3059 = vmatmul.mubr.bf16.gmra.mxu0 %v2954
    %v3060 = vpop.f32.mrf.mxu0
    %v3061 = vadd.f32 %v2976, %v3060
    %v3062 = vpop.f32.mrf.mxu0
    %v3063 = vpop.f32.mrf.mxu0
    %v3064 = vpop.f32.mrf.mxu0
    %3065 = vdwg.mxu0
    %vm3066 = vcmask 74752
    %3067 = vst.msk [vmem:[#allocation2] sm:$0x3] %vm3066, %v3061
    // Predicated region
    $region22: #{forward.3} parent=1 // pred_check
      _
    $region23: #{forward.3} parent=1 // pred_check_branch
      %3069 = sbr.rel (0) target = $region25
    $region24: #{forward.3} parent=1 // pred_region
      %s3071 = ssub.s32 32, 32
      %3072 = vsyncadd [#allocation3], %s3071
      %s3074 = sshll.u32 [#allocation2], 4
      %s3075 = int_to_ptr.vmem [resolvable:$true] %s3074
      %3077 = dma.vmem_to_hbm [thread:$0]  %s3075, 32, %s5, [#allocation3]
    $region25: #{forward.3} parent=1 // pred_fallthru
      _
    // Predicated region
    $region26: #{forward.3} parent=1 // pred_check
      _
    $region27: #{forward.3} parent=1 // pred_check_branch
      %3079 = sbr.rel (0) target = $region29
    $region28: #{forward.3} parent=1 // pred_region
      %3080 = dma.done [#allocation3], 32
    $region29: #{forward.3} parent=1 // pred_fallthru
      _
    %3081 = vsyncpa [#allocation3], 1

// kernel: forward.2
$region0: #{forward.2}
  #allocation0 [shape = 'u32[]', space=smem, size = 0x4, offset = 0x4, fixed_abs, tag = 'smem constant byte address 0x4 - core index']
  #allocation1 [shape = 'u32[144,128]{1,0:T(1,128)}', space=vmem, size = 0x12000, scoped, tag = 'internal scratch']
  %s0 = inlined_call_operand.vmem [shape: bf16[16,128], index: 0, kind: input, shape index: {}]
  %s1 = inlined_call_operand.vmem [shape: bf16[16,128], index: 1, kind: input, shape index: {}]
  %s2 = inlined_call_operand.hbm [shape: bf16[128,1024], index: 2, kind: input, shape index: {}]
  %s3 = inlined_call_operand.hbm [shape: bf16[128,1024], index: 3, kind: input, shape index: {}]
  %s4 = inlined_call_operand.vmem [shape: f32[1,512], index: 4, kind: input, shape index: {}]
  %s5 = inlined_call_operand.hbm [shape: bf16[512,1024], index: 5, kind: input, shape index: {}]
  %s6 = inlined_call_operand.hbm [shape: bf16[512,1024], index: 6, kind: input, shape index: {}]
  %s7 = inlined_call_operand.hbm [shape: bf16[512,1024], index: 7, kind: input, shape index: {}]
  %s8 = inlined_call_operand.vmem [shape: f32[1,512], index: 8, kind: input, shape index: {}]
  %s9 = inlined_call_operand.vmem [shape: bf16[16,512], index: 9, kind: output, shape index: {}]
  %s10 = sld [smem:[#allocation0]]
  $region66: #{forward.2} parent=0
    _
  %s12 = ssub.s32 1, %s10
  %s13 = scalar_select 0, %s12, %s10
  $region1: #{forward.2} parent=0
    #allocation2 [shape = 'u8[262144]{0}', space=vmem, size = 0x40000, scoped, tag = 'input window, operand 2, single buffered']
    #allocation3 [shape = 's32[1]{0}', space=sflag, size = 0x4, scoped, tag = 'scoped memory for forward.2']
    #allocation4 [shape = 'u8[262144]{0}', space=vmem, size = 0x40000, scoped, tag = 'input window, operand 3, single buffered']
    #allocation5 [shape = 's32[1]{0}', space=sflag, size = 0x4, scoped, tag = 'scoped memory for forward.2']
    #allocation6 [shape = 'u8[1048576]{0}', space=vmem, size = 0x100000, scoped, tag = 'input window, operand 5, single buffered']
    #allocation7 [shape = 'u8[1048576]{0}', space=vmem, size = 0x100000, scoped, tag = 'input window, operand 6, single buffered']
    #allocation8 [shape = 's32[1]{0}', space=sflag, size = 0x4, scoped, tag = 'scoped memory for forward.2']
    #allocation9 [shape = 'u8[1048576]{0}', space=vmem, size = 0x100000, scoped, tag = 'input window, operand 7, single buffered']
    %14 = vsyncpa [#allocation3], 0
    %15 = vsyncpa [#allocation5], 0
    %16 = vsyncpa [#allocation8], 0
    // Predicated region
    $region2: #{forward.2} parent=1 // pred_check
      _
    $region3: #{forward.2} parent=1 // pred_check_branch
      %18 = sbr.rel (0) target = $region5
    $region4: #{forward.2} parent=1 // pred_region
      _
    $region5: #{forward.2} parent=1 // pred_fallthru
      _
    // Predicated region
    $region6: #{forward.2} parent=1 // pred_check
      _
    $region7: #{forward.2} parent=1 // pred_check_branch
      %20 = sbr.rel (0) target = $region9
    $region8: #{forward.2} parent=1 // pred_region
      _
    $region9: #{forward.2} parent=1 // pred_fallthru
      _
    // Predicated region
    $region10: #{forward.2} parent=1 // pred_check
      _
    $region11: #{forward.2} parent=1 // pred_check_branch
      %22 = sbr.rel (0) target = $region13
    $region12: #{forward.2} parent=1 // pred_region
      %s24 = ssub.s32 8192, 8192
      %25 = vsyncadd [#allocation3], %s24
      %s26 = sshll.u32 [#allocation2], 4
      %s27 = int_to_ptr.vmem [resolvable:$true] %s26
      %32 = dma.hbm_to_vmem [thread:$0]  %s2, 8192, %s27, [#allocation3], 512, 512, 32
    $region13: #{forward.2} parent=1 // pred_fallthru
      _
    // Predicated region
    $region14: #{forward.2} parent=1 // pred_check
      _
    $region15: #{forward.2} parent=1 // pred_check_branch
      %34 = sbr.rel (0) target = $region17
    $region16: #{forward.2} parent=1 // pred_region
      %s36 = ssub.s32 8192, 8192
      %37 = vsyncadd [#allocation5], %s36
      %s38 = sshll.u32 [#allocation4], 4
      %s39 = int_to_ptr.vmem [resolvable:$true] %s38
      %44 = dma.hbm_to_vmem [thread:$0]  %s3, 8192, %s39, [#allocation5], 512, 512, 32
    $region17: #{forward.2} parent=1 // pred_fallthru
      _
    // Predicated region
    $region18: #{forward.2} parent=1 // pred_check
      _
    $region19: #{forward.2} parent=1 // pred_check_branch
      %46 = sbr.rel (0) target = $region21
    $region20: #{forward.2} parent=1 // pred_region
      _
    $region21: #{forward.2} parent=1 // pred_fallthru
      _
    // Predicated region
    $region22: #{forward.2} parent=1 // pred_check
      _
    $region23: #{forward.2} parent=1 // pred_check_branch
      %48 = sbr.rel (0) target = $region25
    $region24: #{forward.2} parent=1 // pred_region
      %s50 = ssub.s32 32768, 32768
      %51 = vsyncadd [#allocation5], %s50
      %s52 = sshll.u32 [#allocation6], 4
      %s53 = int_to_ptr.vmem [resolvable:$true] %s52
      %58 = dma.hbm_to_vmem [thread:$0]  %s5, 32768, %s53, [#allocation5], 512, 512, 32
    $region25: #{forward.2} parent=1 // pred_fallthru
      _
    // Predicated region
    $region26: #{forward.2} parent=1 // pred_check
      _
    $region27: #{forward.2} parent=1 // pred_check_branch
      %60 = sbr.rel (0) target = $region29
    $region28: #{forward.2} parent=1 // pred_region
      %s62 = ssub.s32 32768, 32768
      %63 = vsyncadd [#allocation8], %s62
      %s64 = sshll.u32 [#allocation7], 4
      %s65 = int_to_ptr.vmem [resolvable:$true] %s64
      %70 = dma.hbm_to_vmem [thread:$0]  %s6, 32768, %s65, [#allocation8], 512, 512, 32
    $region29: #{forward.2} parent=1 // pred_fallthru
      _
    // Predicated region
    $region30: #{forward.2} parent=1 // pred_check
      _
    $region31: #{forward.2} parent=1 // pred_check_branch
      %72 = sbr.rel (0) target = $region33
    $region32: #{forward.2} parent=1 // pred_region
      %s74 = ssub.s32 32768, 32768
      %75 = vsyncadd [#allocation8], %s74
      %s76 = sshll.u32 [#allocation9], 4
      %s77 = int_to_ptr.vmem [resolvable:$true] %s76
      %82 = dma.hbm_to_vmem [thread:$0]  %s7, 32768, %s77, [#allocation8], 512, 512, 32
    $region33: #{forward.2} parent=1 // pred_fallthru
      _
    // Predicated region
    $region34: #{forward.2} parent=1 // pred_check
      _
    $region35: #{forward.2} parent=1 // pred_check_branch
      %84 = sbr.rel (0) target = $region37
    $region36: #{forward.2} parent=1 // pred_region
      _
    $region37: #{forward.2} parent=1 // pred_fallthru
      _
    // Predicated region
    $region38: #{forward.2} parent=1 // pred_check
      _
    $region39: #{forward.2} parent=1 // pred_check_branch
      %86 = sbr.rel (0) target = $region41
    $region40: #{forward.2} parent=1 // pred_region
      %87 = dma.done [#allocation3], 8192
    $region41: #{forward.2} parent=1 // pred_fallthru
      _
    // Predicated region
    $region42: #{forward.2} parent=1 // pred_check
      _
    $region43: #{forward.2} parent=1 // pred_check_branch
      %89 = sbr.rel (0) target = $region45
    $region44: #{forward.2} parent=1 // pred_region
      %90 = dma.done [#allocation5], 8192
    $region45: #{forward.2} parent=1 // pred_fallthru
      _
    // Predicated region
    $region46: #{forward.2} parent=1 // pred_check
      _
    $region47: #{forward.2} parent=1 // pred_check_branch
      %92 = sbr.rel (0) target = $region49
    $region48: #{forward.2} parent=1 // pred_region
      %93 = dma.done [#allocation5], 32768
    $region49: #{forward.2} parent=1 // pred_fallthru
      _
    // Predicated region
    $region50: #{forward.2} parent=1 // pred_check
      _
    $region51: #{forward.2} parent=1 // pred_check_branch
      %95 = sbr.rel (0) target = $region53
    $region52: #{forward.2} parent=1 // pred_region
      %96 = dma.done [#allocation8], 32768
    $region53: #{forward.2} parent=1 // pred_fallthru
      _
    // Predicated region
    $region54: #{forward.2} parent=1 // pred_check
      _
    $region55: #{forward.2} parent=1 // pred_check_branch
      %98 = sbr.rel (0) target = $region57
    $region56: #{forward.2} parent=1 // pred_region
      %99 = dma.done [#allocation8], 32768
    $region57: #{forward.2} parent=1 // pred_fallthru
      _
    %v101 = vld [vmem:[%s0] sm:$0xf]
    %v102 = vld [vmem:[%s0 + $0x4] sm:$0xf]
    %v103 = vld [vmem:[%s1] sm:$0xf]
    %v104 = vld [vmem:[%s1 + $0x4] sm:$0xf]
    %v105 = vld [vmem:[#allocation2] sm:$0xff]
    %v106 = vld [vmem:[#allocation2 + $0x8] sm:$0xff]
    %v107 = vld [vmem:[#allocation2 + $0x10] sm:$0xff]
    %v108 = vld [vmem:[#allocation2 + $0x18] sm:$0xff]
    %v109 = vld [vmem:[#allocation2 + $0x20] sm:$0xff]
    %v110 = vld [vmem:[#allocation2 + $0x28] sm:$0xff]
    %v111 = vld [vmem:[#allocation2 + $0x30] sm:$0xff]
    %v112 = vld [vmem:[#allocation2 + $0x38] sm:$0xff]
    %v113 = vld [vmem:[#allocation2 + $0x40] sm:$0xff]
    %v114 = vld [vmem:[#allocation2 + $0x48] sm:$0xff]
    %v115 = vld [vmem:[#allocation2 + $0x50] sm:$0xff]
    %v116 = vld [vmem:[#allocation2 + $0x58] sm:$0xff]
    %v117 = vld [vmem:[#allocation2 + $0x60] sm:$0xff]
    %v118 = vld [vmem:[#allocation2 + $0x68] sm:$0xff]
    %v119 = vld [vmem:[#allocation2 + $0x70] sm:$0xff]
    %v120 = vld [vmem:[#allocation2 + $0x78] sm:$0xff]
    %v121 = vld [vmem:[#allocation2 + $0x80] sm:$0xff]
    %v122 = vld [vmem:[#allocation2 + $0x88] sm:$0xff]
    %v123 = vld [vmem:[#allocation2 + $0x90] sm:$0xff]
    %v124 = vld [vmem:[#allocation2 + $0x98] sm:$0xff]
    %v125 = vld [vmem:[#allocation2 + $0xa0] sm:$0xff]
    %v126 = vld [vmem:[#allocation2 + $0xa8] sm:$0xff]
    %v127 = vld [vmem:[#allocation2 + $0xb0] sm:$0xff]
    %v128 = vld [vmem:[#allocation2 + $0xb8] sm:$0xff]
    %v129 = vld [vmem:[#allocation2 + $0xc0] sm:$0xff]
    %v130 = vld [vmem:[#allocation2 + $0xc8] sm:$0xff]
    %v131 = vld [vmem:[#allocation2 + $0xd0] sm:$0xff]
    %v132 = vld [vmem:[#allocation2 + $0xd8] sm:$0xff]
    %v133 = vld [vmem:[#allocation2 + $0xe0] sm:$0xff]
    %v134 = vld [vmem:[#allocation2 + $0xe8] sm:$0xff]
    %v135 = vld [vmem:[#allocation2 + $0xf0] sm:$0xff]
    %v136 = vld [vmem:[#allocation2 + $0xf8] sm:$0xff]
    %v137 = vld [vmem:[#allocation2 + $0x100] sm:$0xff]
    %v138 = vld [vmem:[#allocation2 + $0x108] sm:$0xff]
    %v139 = vld [vmem:[#allocation2 + $0x110] sm:$0xff]
    %v140 = vld [vmem:[#allocation2 + $0x118] sm:$0xff]
    %v141 = vld [vmem:[#allocation2 + $0x120] sm:$0xff]
    %v142 = vld [vmem:[#allocation2 + $0x128] sm:$0xff]
    %v143 = vld [vmem:[#allocation2 + $0x130] sm:$0xff]
    %v144 = vld [vmem:[#allocation2 + $0x138] sm:$0xff]
    %v145 = vld [vmem:[#allocation2 + $0x140] sm:$0xff]
    %v146 = vld [vmem:[#allocation2 + $0x148] sm:$0xff]
    %v147 = vld [vmem:[#allocation2 + $0x150] sm:$0xff]
    %v148 = vld [vmem:[#allocation2 + $0x158] sm:$0xff]
    %v149 = vld [vmem:[#allocation2 + $0x160] sm:$0xff]
    %v150 = vld [vmem:[#allocation2 + $0x168] sm:$0xff]
    %v151 = vld [vmem:[#allocation2 + $0x170] sm:$0xff]
    %v152 = vld [vmem:[#allocation2 + $0x178] sm:$0xff]
    %v153 = vld [vmem:[#allocation2 + $0x180] sm:$0xff]
    %v154 = vld [vmem:[#allocation2 + $0x188] sm:$0xff]
    %v155 = vld [vmem:[#allocation2 + $0x190] sm:$0xff]
    %v156 = vld [vmem:[#allocation2 + $0x198] sm:$0xff]
    %v157 = vld [vmem:[#allocation2 + $0x1a0] sm:$0xff]
    %v158 = vld [vmem:[#allocation2 + $0x1a8] sm:$0xff]
    %v159 = vld [vmem:[#allocation2 + $0x1b0] sm:$0xff]
    %v160 = vld [vmem:[#allocation2 + $0x1b8] sm:$0xff]
    %v161 = vld [vmem:[#allocation2 + $0x1c0] sm:$0xff]
    %v162 = vld [vmem:[#allocation2 + $0x1c8] sm:$0xff]
    %v163 = vld [vmem:[#allocation2 + $0x1d0] sm:$0xff]
    %v164 = vld [vmem:[#allocation2 + $0x1d8] sm:$0xff]
    %v165 = vld [vmem:[#allocation2 + $0x1e0] sm:$0xff]
    %v166 = vld [vmem:[#allocation2 + $0x1e8] sm:$0xff]
    %v167 = vld [vmem:[#allocation2 + $0x1f0] sm:$0xff]
    %v168 = vld [vmem:[#allocation2 + $0x1f8] sm:$0xff]
    %v171 = vunpack.c.l.b16 %v101
    %v172 = vunpack.c.l.b16 %v102
    %v173 = vpack.c.b16 %v172, %v171
    %v239 = vunpack.c.l.b16 %v105
    %v240 = vunpack.c.h.b16 %v105
    %v241 = vunpack.c.l.b16 %v106
    %v242 = vunpack.c.h.b16 %v106
    %v243 = vunpack.c.l.b16 %v107
    %v244 = vunpack.c.h.b16 %v107
    %v245 = vunpack.c.l.b16 %v108
    %v246 = vunpack.c.h.b16 %v108
    %v247 = vunpack.c.l.b16 %v109
    %v248 = vunpack.c.h.b16 %v109
    %v249 = vunpack.c.l.b16 %v110
    %v250 = vunpack.c.h.b16 %v110
    %v251 = vunpack.c.l.b16 %v111
    %v252 = vunpack.c.h.b16 %v111
    %v253 = vunpack.c.l.b16 %v112
    %v254 = vunpack.c.h.b16 %v112
    %v255 = vunpack.c.l.b16 %v113
    %v256 = vunpack.c.h.b16 %v113
    %v257 = vunpack.c.l.b16 %v114
    %v258 = vunpack.c.h.b16 %v114
    %v259 = vunpack.c.l.b16 %v115
    %v260 = vunpack.c.h.b16 %v115
    %v261 = vunpack.c.l.b16 %v116
    %v262 = vunpack.c.h.b16 %v116
    %v263 = vunpack.c.l.b16 %v117
    %v264 = vunpack.c.h.b16 %v117
    %v265 = vunpack.c.l.b16 %v118
    %v266 = vunpack.c.h.b16 %v118
    %v267 = vunpack.c.l.b16 %v119
    %v268 = vunpack.c.h.b16 %v119
    %v269 = vunpack.c.l.b16 %v120
    %v270 = vunpack.c.h.b16 %v120
    %v271 = vunpack.c.l.b16 %v121
    %v272 = vunpack.c.h.b16 %v121
    %v273 = vunpack.c.l.b16 %v122
    %v274 = vunpack.c.h.b16 %v122
    %v275 = vunpack.c.l.b16 %v123
    %v276 = vunpack.c.h.b16 %v123
    %v277 = vunpack.c.l.b16 %v124
    %v278 = vunpack.c.h.b16 %v124
    %v279 = vunpack.c.l.b16 %v125
    %v280 = vunpack.c.h.b16 %v125
    %v281 = vunpack.c.l.b16 %v126
    %v282 = vunpack.c.h.b16 %v126
    %v283 = vunpack.c.l.b16 %v127
    %v284 = vunpack.c.h.b16 %v127
    %v285 = vunpack.c.l.b16 %v128
    %v286 = vunpack.c.h.b16 %v128
    %v287 = vunpack.c.l.b16 %v129
    %v288 = vunpack.c.h.b16 %v129
    %v289 = vunpack.c.l.b16 %v130
    %v290 = vunpack.c.h.b16 %v130
    %v291 = vunpack.c.l.b16 %v131
    %v292 = vunpack.c.h.b16 %v131
    %v293 = vunpack.c.l.b16 %v132
    %v294 = vunpack.c.h.b16 %v132
    %v295 = vunpack.c.l.b16 %v133
    %v296 = vunpack.c.h.b16 %v133
    %v297 = vunpack.c.l.b16 %v134
    %v298 = vunpack.c.h.b16 %v134
    %v299 = vunpack.c.l.b16 %v135
    %v300 = vunpack.c.h.b16 %v135
    %v301 = vunpack.c.l.b16 %v136
    %v302 = vunpack.c.h.b16 %v136
    %v303 = vunpack.c.l.b16 %v137
    %v304 = vunpack.c.h.b16 %v137
    %v305 = vunpack.c.l.b16 %v138
    %v306 = vunpack.c.h.b16 %v138
    %v307 = vunpack.c.l.b16 %v139
    %v308 = vunpack.c.h.b16 %v139
    %v309 = vunpack.c.l.b16 %v140
    %v310 = vunpack.c.h.b16 %v140
    %v311 = vunpack.c.l.b16 %v141
    %v312 = vunpack.c.h.b16 %v141
    %v313 = vunpack.c.l.b16 %v142
    %v314 = vunpack.c.h.b16 %v142
    %v315 = vunpack.c.l.b16 %v143
    %v316 = vunpack.c.h.b16 %v143
    %v317 = vunpack.c.l.b16 %v144
    %v318 = vunpack.c.h.b16 %v144
    %v319 = vunpack.c.l.b16 %v145
    %v320 = vunpack.c.h.b16 %v145
    %v321 = vunpack.c.l.b16 %v146
    %v322 = vunpack.c.h.b16 %v146
    %v323 = vunpack.c.l.b16 %v147
    %v324 = vunpack.c.h.b16 %v147
    %v325 = vunpack.c.l.b16 %v148
    %v326 = vunpack.c.h.b16 %v148
    %v327 = vunpack.c.l.b16 %v149
    %v328 = vunpack.c.h.b16 %v149
    %v329 = vunpack.c.l.b16 %v150
    %v330 = vunpack.c.h.b16 %v150
    %v331 = vunpack.c.l.b16 %v151
    %v332 = vunpack.c.h.b16 %v151
    %v333 = vunpack.c.l.b16 %v152
    %v334 = vunpack.c.h.b16 %v152
    %v335 = vunpack.c.l.b16 %v153
    %v336 = vunpack.c.h.b16 %v153
    %v337 = vunpack.c.l.b16 %v154
    %v338 = vunpack.c.h.b16 %v154
    %v339 = vunpack.c.l.b16 %v155
    %v340 = vunpack.c.h.b16 %v155
    %v341 = vunpack.c.l.b16 %v156
    %v342 = vunpack.c.h.b16 %v156
    %v343 = vunpack.c.l.b16 %v157
    %v344 = vunpack.c.h.b16 %v157
    %v345 = vunpack.c.l.b16 %v158
    %v346 = vunpack.c.h.b16 %v158
    %v347 = vunpack.c.l.b16 %v159
    %v348 = vunpack.c.h.b16 %v159
    %v349 = vunpack.c.l.b16 %v160
    %v350 = vunpack.c.h.b16 %v160
    %v351 = vunpack.c.l.b16 %v161
    %v352 = vunpack.c.h.b16 %v161
    %v353 = vunpack.c.l.b16 %v162
    %v354 = vunpack.c.h.b16 %v162
    %v355 = vunpack.c.l.b16 %v163
    %v356 = vunpack.c.h.b16 %v163
    %v357 = vunpack.c.l.b16 %v164
    %v358 = vunpack.c.h.b16 %v164
    %v359 = vunpack.c.l.b16 %v165
    %v360 = vunpack.c.h.b16 %v165
    %v361 = vunpack.c.l.b16 %v166
    %v362 = vunpack.c.h.b16 %v166
    %v363 = vunpack.c.l.b16 %v167
    %v364 = vunpack.c.h.b16 %v167
    %v365 = vunpack.c.l.b16 %v168
    %v366 = vunpack.c.h.b16 %v168
    %v367 = vpack.c.b16 %v247, %v239
    %v368 = vpack.c.b16 %v248, %v240
    %v369 = vpack.c.b16 %v249, %v241
    %v370 = vpack.c.b16 %v250, %v242
    %v371 = vpack.c.b16 %v251, %v243
    %v372 = vpack.c.b16 %v252, %v244
    %v373 = vpack.c.b16 %v253, %v245
    %v374 = vpack.c.b16 %v254, %v246
    %v375 = vpack.c.b16 %v263, %v255
    %v376 = vpack.c.b16 %v264, %v256
    %v377 = vpack.c.b16 %v265, %v257
    %v378 = vpack.c.b16 %v266, %v258
    %v379 = vpack.c.b16 %v267, %v259
    %v380 = vpack.c.b16 %v268, %v260
    %v381 = vpack.c.b16 %v269, %v261
    %v382 = vpack.c.b16 %v270, %v262
    %v383 = vpack.c.b16 %v279, %v271
    %v384 = vpack.c.b16 %v280, %v272
    %v385 = vpack.c.b16 %v281, %v273
    %v386 = vpack.c.b16 %v282, %v274
    %v387 = vpack.c.b16 %v283, %v275
    %v388 = vpack.c.b16 %v284, %v276
    %v389 = vpack.c.b16 %v285, %v277
    %v390 = vpack.c.b16 %v286, %v278
    %v391 = vpack.c.b16 %v295, %v287
    %v392 = vpack.c.b16 %v296, %v288
    %v393 = vpack.c.b16 %v297, %v289
    %v394 = vpack.c.b16 %v298, %v290
    %v395 = vpack.c.b16 %v299, %v291
    %v396 = vpack.c.b16 %v300, %v292
    %v397 = vpack.c.b16 %v301, %v293
    %v398 = vpack.c.b16 %v302, %v294
    %v399 = vpack.c.b16 %v311, %v303
    %v400 = vpack.c.b16 %v312, %v304
    %v401 = vpack.c.b16 %v313, %v305
    %v402 = vpack.c.b16 %v314, %v306
    %v403 = vpack.c.b16 %v315, %v307
    %v404 = vpack.c.b16 %v316, %v308
    %v405 = vpack.c.b16 %v317, %v309
    %v406 = vpack.c.b16 %v318, %v310
    %v407 = vpack.c.b16 %v327, %v319
    %v408 = vpack.c.b16 %v328, %v320
    %v409 = vpack.c.b16 %v329, %v321
    %v410 = vpack.c.b16 %v330, %v322
    %v411 = vpack.c.b16 %v331, %v323
    %v412 = vpack.c.b16 %v332, %v324
    %v413 = vpack.c.b16 %v333, %v325
    %v414 = vpack.c.b16 %v334, %v326
    %v415 = vpack.c.b16 %v343, %v335
    %v416 = vpack.c.b16 %v344, %v336
    %v417 = vpack.c.b16 %v345, %v337
    %v418 = vpack.c.b16 %v346, %v338
    %v419 = vpack.c.b16 %v347, %v339
    %v420 = vpack.c.b16 %v348, %v340
    %v421 = vpack.c.b16 %v349, %v341
    %v422 = vpack.c.b16 %v350, %v342
    %v423 = vpack.c.b16 %v359, %v351
    %v424 = vpack.c.b16 %v360, %v352
    %v425 = vpack.c.b16 %v361, %v353
    %v426 = vpack.c.b16 %v362, %v354
    %v427 = vpack.c.b16 %v363, %v355
    %v428 = vpack.c.b16 %v364, %v356
    %v429 = vpack.c.b16 %v365, %v357
    %v430 = vpack.c.b16 %v366, %v358
    %495 = vmatprep.subr.bf16.mxu0 %v424
    %496 = vmatpush1.bf16.msra.mxu0 %v423
    %497 = vmatprep.subr.bf16.mxu0 %v416
    %498 = vmatpush1.bf16.msra.mxu0 %v415
    %499 = vmatprep.subr.bf16.mxu0 %v408
    %500 = vmatpush1.bf16.msra.mxu0 %v407
    %501 = vmatprep.subr.bf16.mxu0 %v400
    %502 = vmatpush1.bf16.msra.mxu0 %v399
    %503 = vmatprep.subr.bf16.mxu0 %v392
    %504 = vmatpush1.bf16.msra.mxu0 %v391
    %505 = vmatprep.subr.bf16.mxu0 %v384
    %506 = vmatpush1.bf16.msra.mxu0 %v383
    %507 = vmatprep.subr.bf16.mxu0 %v376
    %508 = vmatpush1.bf16.msra.mxu0 %v375
    %509 = vmatprep.subr.bf16.mxu0 %v368
    %510 = vmatpush1.bf16.msra.mxu0 %v367
    %511 = vmatprep.subr.bf16.mxu0 0
    %512 = vmatpush2.bf16.msra.mxu0 0
    %513 = vmatprep.subr.bf16.mxu0 0
    %514 = vmatpush2.bf16.msra.mxu0 0
    %515 = vmatprep.subr.bf16.mxu0 0
    %516 = vmatpush2.bf16.msra.mxu0 0
    %517 = vmatprep.subr.bf16.mxu0 0
    %518 = vmatpush2.bf16.msra.mxu0 0
    %519 = vmatprep.subr.bf16.mxu0 0
    %520 = vmatpush2.bf16.msra.mxu0 0
    %521 = vmatprep.subr.bf16.mxu0 0
    %522 = vmatpush2.bf16.msra.mxu0 0
    %523 = vmatprep.subr.bf16.mxu0 0
    %524 = vmatpush2.bf16.msra.mxu0 0
    %525 = vmatprep.subr.bf16.mxu0 0
    %526 = vmatpush2.bf16.msra.mxu0 0
    %527 = vmatprep.mubr.bf16.mxu0 0
    %528 = vmatmul.mubr.bf16.gmra.mxu0 %v173
    %v529 = vpop.f32.mrf.mxu0
    %v530 = vadd.f32 0.0, %v529
    %v531 = vpop.f32.mrf.mxu0
    %v532 = vadd.f32 0.0, %v531
    %v533 = vpop.f32.mrf.mxu0
    %v534 = vadd.f32 0.0, %v533
    %v535 = vpop.f32.mrf.mxu0
    %v536 = vadd.f32 0.0, %v535
    %537 = vdwg.mxu0
    %538 = vmatprep.subr.bf16.mxu0 %v426
    %539 = vmatpush1.bf16.msra.mxu0 %v425
    %540 = vmatprep.subr.bf16.mxu0 %v418
    %541 = vmatpush1.bf16.msra.mxu0 %v417
    %542 = vmatprep.subr.bf16.mxu0 %v410
    %543 = vmatpush1.bf16.msra.mxu0 %v409
    %544 = vmatprep.subr.bf16.mxu0 %v402
    %545 = vmatpush1.bf16.msra.mxu0 %v401
    %546 = vmatprep.subr.bf16.mxu0 %v394
    %547 = vmatpush1.bf16.msra.mxu0 %v393
    %548 = vmatprep.subr.bf16.mxu0 %v386
    %549 = vmatpush1.bf16.msra.mxu0 %v385
    %550 = vmatprep.subr.bf16.mxu0 %v378
    %551 = vmatpush1.bf16.msra.mxu0 %v377
    %552 = vmatprep.subr.bf16.mxu0 %v370
    %553 = vmatpush1.bf16.msra.mxu0 %v369
    %554 = vmatprep.subr.bf16.mxu0 0
    %555 = vmatpush2.bf16.msra.mxu0 0
    %556 = vmatprep.subr.bf16.mxu0 0
    %557 = vmatpush2.bf16.msra.mxu0 0
    %558 = vmatprep.subr.bf16.mxu0 0
    %559 = vmatpush2.bf16.msra.mxu0 0
    %560 = vmatprep.subr.bf16.mxu0 0
    %561 = vmatpush2.bf16.msra.mxu0 0
    %562 = vmatprep.subr.bf16.mxu0 0
    %563 = vmatpush2.bf16.msra.mxu0 0
    %564 = vmatprep.subr.bf16.mxu0 0
    %565 = vmatpush2.bf16.msra.mxu0 0
    %566 = vmatprep.subr.bf16.mxu0 0
    %567 = vmatpush2.bf16.msra.mxu0 0
    %568 = vmatprep.subr.bf16.mxu0 0
    %569 = vmatpush2.bf16.msra.mxu0 0
    %570 = vmatprep.mubr.bf16.mxu0 0
    %571 = vmatmul.mubr.bf16.gmra.mxu0 %v173
    %v572 = vpop.f32.mrf.mxu0
    %v573 = vadd.f32 0.0, %v572
    %v574 = vpop.f32.mrf.mxu0
    %v575 = vadd.f32 0.0, %v574
    %v576 = vpop.f32.mrf.mxu0
    %v577 = vadd.f32 0.0, %v576
    %v578 = vpop.f32.mrf.mxu0
    %v579 = vadd.f32 0.0, %v578
    %580 = vdwg.mxu0
    %581 = vmatprep.subr.bf16.mxu0 %v428
    %582 = vmatpush1.bf16.msra.mxu0 %v427
    %583 = vmatprep.subr.bf16.mxu0 %v420
    %584 = vmatpush1.bf16.msra.mxu0 %v419
    %585 = vmatprep.subr.bf16.mxu0 %v412
    %586 = vmatpush1.bf16.msra.mxu0 %v411
    %587 = vmatprep.subr.bf16.mxu0 %v404
    %588 = vmatpush1.bf16.msra.mxu0 %v403
    %589 = vmatprep.subr.bf16.mxu0 %v396
    %590 = vmatpush1.bf16.msra.mxu0 %v395
    %591 = vmatprep.subr.bf16.mxu0 %v388
    %592 = vmatpush1.bf16.msra.mxu0 %v387
    %593 = vmatprep.subr.bf16.mxu0 %v380
    %594 = vmatpush1.bf16.msra.mxu0 %v379
    %595 = vmatprep.subr.bf16.mxu0 %v372
    %596 = vmatpush1.bf16.msra.mxu0 %v371
    %597 = vmatprep.subr.bf16.mxu0 0
    %598 = vmatpush2.bf16.msra.mxu0 0
    %599 = vmatprep.subr.bf16.mxu0 0
    %600 = vmatpush2.bf16.msra.mxu0 0
    %601 = vmatprep.subr.bf16.mxu0 0
    %602 = vmatpush2.bf16.msra.mxu0 0
    %603 = vmatprep.subr.bf16.mxu0 0
    %604 = vmatpush2.bf16.msra.mxu0 0
    %605 = vmatprep.subr.bf16.mxu0 0
    %606 = vmatpush2.bf16.msra.mxu0 0
    %607 = vmatprep.subr.bf16.mxu0 0
    %608 = vmatpush2.bf16.msra.mxu0 0
    %609 = vmatprep.subr.bf16.mxu0 0
    %610 = vmatpush2.bf16.msra.mxu0 0
    %611 = vmatprep.subr.bf16.mxu0 0
    %612 = vmatpush2.bf16.msra.mxu0 0
    %613 = vmatprep.mubr.bf16.mxu0 0
    %614 = vmatmul.mubr.bf16.gmra.mxu0 %v173
    %v615 = vpop.f32.mrf.mxu0
    %v616 = vadd.f32 0.0, %v615
    %v617 = vpop.f32.mrf.mxu0
    %v618 = vadd.f32 0.0, %v617
    %v619 = vpop.f32.mrf.mxu0
    %v620 = vadd.f32 0.0, %v619
    %v621 = vpop.f32.mrf.mxu0
    %v622 = vadd.f32 0.0, %v621
    %623 = vdwg.mxu0
    %624 = vmatprep.subr.bf16.mxu0 %v430
    %625 = vmatpush1.bf16.msra.mxu0 %v429
    %626 = vmatprep.subr.bf16.mxu0 %v422
    %627 = vmatpush1.bf16.msra.mxu0 %v421
    %628 = vmatprep.subr.bf16.mxu0 %v414
    %629 = vmatpush1.bf16.msra.mxu0 %v413
    %630 = vmatprep.subr.bf16.mxu0 %v406
    %631 = vmatpush1.bf16.msra.mxu0 %v405
    %632 = vmatprep.subr.bf16.mxu0 %v398
    %633 = vmatpush1.bf16.msra.mxu0 %v397
    %634 = vmatprep.subr.bf16.mxu0 %v390
    %635 = vmatpush1.bf16.msra.mxu0 %v389
    %636 = vmatprep.subr.bf16.mxu0 %v382
    %637 = vmatpush1.bf16.msra.mxu0 %v381
    %638 = vmatprep.subr.bf16.mxu0 %v374
    %639 = vmatpush1.bf16.msra.mxu0 %v373
    %640 = vmatprep.subr.bf16.mxu0 0
    %641 = vmatpush2.bf16.msra.mxu0 0
    %642 = vmatprep.subr.bf16.mxu0 0
    %643 = vmatpush2.bf16.msra.mxu0 0
    %644 = vmatprep.subr.bf16.mxu0 0
    %645 = vmatpush2.bf16.msra.mxu0 0
    %646 = vmatprep.subr.bf16.mxu0 0
    %647 = vmatpush2.bf16.msra.mxu0 0
    %648 = vmatprep.subr.bf16.mxu0 0
    %649 = vmatpush2.bf16.msra.mxu0 0
    %650 = vmatprep.subr.bf16.mxu0 0
    %651 = vmatpush2.bf16.msra.mxu0 0
    %652 = vmatprep.subr.bf16.mxu0 0
    %653 = vmatpush2.bf16.msra.mxu0 0
    %654 = vmatprep.subr.bf16.mxu0 0
    %655 = vmatpush2.bf16.msra.mxu0 0
    %656 = vmatprep.mubr.bf16.mxu0 0
    %657 = vmatmul.mubr.bf16.gmra.mxu0 %v173
    %v658 = vpop.f32.mrf.mxu0
    %v659 = vadd.f32 0.0, %v658
    %v660 = vpop.f32.mrf.mxu0
    %v661 = vadd.f32 0.0, %v660
    %v662 = vpop.f32.mrf.mxu0
    %v663 = vadd.f32 0.0, %v662
    %v664 = vpop.f32.mrf.mxu0
    %v665 = vadd.f32 0.0, %v664
    %666 = vdwg.mxu0
    %v667 = vld [vmem:[#allocation4] sm:$0xff]
    %v668 = vld [vmem:[#allocation4 + $0x8] sm:$0xff]
    %v669 = vld [vmem:[#allocation4 + $0x10] sm:$0xff]
    %v670 = vld [vmem:[#allocation4 + $0x18] sm:$0xff]
    %v671 = vld [vmem:[#allocation4 + $0x20] sm:$0xff]
    %v672 = vld [vmem:[#allocation4 + $0x28] sm:$0xff]
    %v673 = vld [vmem:[#allocation4 + $0x30] sm:$0xff]
    %v674 = vld [vmem:[#allocation4 + $0x38] sm:$0xff]
    %v675 = vld [vmem:[#allocation4 + $0x40] sm:$0xff]
    %v676 = vld [vmem:[#allocation4 + $0x48] sm:$0xff]
    %v677 = vld [vmem:[#allocation4 + $0x50] sm:$0xff]
    %v678 = vld [vmem:[#allocation4 + $0x58] sm:$0xff]
    %v679 = vld [vmem:[#allocation4 + $0x60] sm:$0xff]
    %v680 = vld [vmem:[#allocation4 + $0x68] sm:$0xff]
    %v681 = vld [vmem:[#allocation4 + $0x70] sm:$0xff]
    %v682 = vld [vmem:[#allocation4 + $0x78] sm:$0xff]
    %v683 = vld [vmem:[#allocation4 + $0x80] sm:$0xff]
    %v684 = vld [vmem:[#allocation4 + $0x88] sm:$0xff]
    %v685 = vld [vmem:[#allocation4 + $0x90] sm:$0xff]
    %v686 = vld [vmem:[#allocation4 + $0x98] sm:$0xff]
    %v687 = vld [vmem:[#allocation4 + $0xa0] sm:$0xff]
    %v688 = vld [vmem:[#allocation4 + $0xa8] sm:$0xff]
    %v689 = vld [vmem:[#allocation4 + $0xb0] sm:$0xff]
    %v690 = vld [vmem:[#allocation4 + $0xb8] sm:$0xff]
    %v691 = vld [vmem:[#allocation4 + $0xc0] sm:$0xff]
    %v692 = vld [vmem:[#allocation4 + $0xc8] sm:$0xff]
    %v693 = vld [vmem:[#allocation4 + $0xd0] sm:$0xff]
    %v694 = vld [vmem:[#allocation4 + $0xd8] sm:$0xff]
    %v695 = vld [vmem:[#allocation4 + $0xe0] sm:$0xff]
    %v696 = vld [vmem:[#allocation4 + $0xe8] sm:$0xff]
    %v697 = vld [vmem:[#allocation4 + $0xf0] sm:$0xff]
    %v698 = vld [vmem:[#allocation4 + $0xf8] sm:$0xff]
    %v699 = vld [vmem:[#allocation4 + $0x100] sm:$0xff]
    %v700 = vld [vmem:[#allocation4 + $0x108] sm:$0xff]
    %v701 = vld [vmem:[#allocation4 + $0x110] sm:$0xff]
    %v702 = vld [vmem:[#allocation4 + $0x118] sm:$0xff]
    %v703 = vld [vmem:[#allocation4 + $0x120] sm:$0xff]
    %v704 = vld [vmem:[#allocation4 + $0x128] sm:$0xff]
    %v705 = vld [vmem:[#allocation4 + $0x130] sm:$0xff]
    %v706 = vld [vmem:[#allocation4 + $0x138] sm:$0xff]
    %v707 = vld [vmem:[#allocation4 + $0x140] sm:$0xff]
    %v708 = vld [vmem:[#allocation4 + $0x148] sm:$0xff]
    %v709 = vld [vmem:[#allocation4 + $0x150] sm:$0xff]
    %v710 = vld [vmem:[#allocation4 + $0x158] sm:$0xff]
    %v711 = vld [vmem:[#allocation4 + $0x160] sm:$0xff]
    %v712 = vld [vmem:[#allocation4 + $0x168] sm:$0xff]
    %v713 = vld [vmem:[#allocation4 + $0x170] sm:$0xff]
    %v714 = vld [vmem:[#allocation4 + $0x178] sm:$0xff]
    %v715 = vld [vmem:[#allocation4 + $0x180] sm:$0xff]
    %v716 = vld [vmem:[#allocation4 + $0x188] sm:$0xff]
    %v717 = vld [vmem:[#allocation4 + $0x190] sm:$0xff]
    %v718 = vld [vmem:[#allocation4 + $0x198] sm:$0xff]
    %v719 = vld [vmem:[#allocation4 + $0x1a0] sm:$0xff]
    %v720 = vld [vmem:[#allocation4 + $0x1a8] sm:$0xff]
    %v721 = vld [vmem:[#allocation4 + $0x1b0] sm:$0xff]
    %v722 = vld [vmem:[#allocation4 + $0x1b8] sm:$0xff]
    %v723 = vld [vmem:[#allocation4 + $0x1c0] sm:$0xff]
    %v724 = vld [vmem:[#allocation4 + $0x1c8] sm:$0xff]
    %v725 = vld [vmem:[#allocation4 + $0x1d0] sm:$0xff]
    %v726 = vld [vmem:[#allocation4 + $0x1d8] sm:$0xff]
    %v727 = vld [vmem:[#allocation4 + $0x1e0] sm:$0xff]
    %v728 = vld [vmem:[#allocation4 + $0x1e8] sm:$0xff]
    %v729 = vld [vmem:[#allocation4 + $0x1f0] sm:$0xff]
    %v730 = vld [vmem:[#allocation4 + $0x1f8] sm:$0xff]
    %v795 = vunpack.c.l.b16 %v667
    %v796 = vunpack.c.h.b16 %v667
    %v797 = vunpack.c.l.b16 %v668
    %v798 = vunpack.c.h.b16 %v668
    %v799 = vunpack.c.l.b16 %v669
    %v800 = vunpack.c.h.b16 %v669
    %v801 = vunpack.c.l.b16 %v670
    %v802 = vunpack.c.h.b16 %v670
    %v803 = vunpack.c.l.b16 %v671
    %v804 = vunpack.c.h.b16 %v671
    %v805 = vunpack.c.l.b16 %v672
    %v806 = vunpack.c.h.b16 %v672
    %v807 = vunpack.c.l.b16 %v673
    %v808 = vunpack.c.h.b16 %v673
    %v809 = vunpack.c.l.b16 %v674
    %v810 = vunpack.c.h.b16 %v674
    %v811 = vunpack.c.l.b16 %v675
    %v812 = vunpack.c.h.b16 %v675
    %v813 = vunpack.c.l.b16 %v676
    %v814 = vunpack.c.h.b16 %v676
    %v815 = vunpack.c.l.b16 %v677
    %v816 = vunpack.c.h.b16 %v677
    %v817 = vunpack.c.l.b16 %v678
    %v818 = vunpack.c.h.b16 %v678
    %v819 = vunpack.c.l.b16 %v679
    %v820 = vunpack.c.h.b16 %v679
    %v821 = vunpack.c.l.b16 %v680
    %v822 = vunpack.c.h.b16 %v680
    %v823 = vunpack.c.l.b16 %v681
    %v824 = vunpack.c.h.b16 %v681
    %v825 = vunpack.c.l.b16 %v682
    %v826 = vunpack.c.h.b16 %v682
    %v827 = vunpack.c.l.b16 %v683
    %v828 = vunpack.c.h.b16 %v683
    %v829 = vunpack.c.l.b16 %v684
    %v830 = vunpack.c.h.b16 %v684
    %v831 = vunpack.c.l.b16 %v685
    %v832 = vunpack.c.h.b16 %v685
    %v833 = vunpack.c.l.b16 %v686
    %v834 = vunpack.c.h.b16 %v686
    %v835 = vunpack.c.l.b16 %v687
    %v836 = vunpack.c.h.b16 %v687
    %v837 = vunpack.c.l.b16 %v688
    %v838 = vunpack.c.h.b16 %v688
    %v839 = vunpack.c.l.b16 %v689
    %v840 = vunpack.c.h.b16 %v689
    %v841 = vunpack.c.l.b16 %v690
    %v842 = vunpack.c.h.b16 %v690
    %v843 = vunpack.c.l.b16 %v691
    %v844 = vunpack.c.h.b16 %v691
    %v845 = vunpack.c.l.b16 %v692
    %v846 = vunpack.c.h.b16 %v692
    %v847 = vunpack.c.l.b16 %v693
    %v848 = vunpack.c.h.b16 %v693
    %v849 = vunpack.c.l.b16 %v694
    %v850 = vunpack.c.h.b16 %v694
    %v851 = vunpack.c.l.b16 %v695
    %v852 = vunpack.c.h.b16 %v695
    %v853 = vunpack.c.l.b16 %v696
    %v854 = vunpack.c.h.b16 %v696
    %v855 = vunpack.c.l.b16 %v697
    %v856 = vunpack.c.h.b16 %v697
    %v857 = vunpack.c.l.b16 %v698
    %v858 = vunpack.c.h.b16 %v698
    %v859 = vunpack.c.l.b16 %v699
    %v860 = vunpack.c.h.b16 %v699
    %v861 = vunpack.c.l.b16 %v700
    %v862 = vunpack.c.h.b16 %v700
    %v863 = vunpack.c.l.b16 %v701
    %v864 = vunpack.c.h.b16 %v701
    %v865 = vunpack.c.l.b16 %v702
    %v866 = vunpack.c.h.b16 %v702
    %v867 = vunpack.c.l.b16 %v703
    %v868 = vunpack.c.h.b16 %v703
    %v869 = vunpack.c.l.b16 %v704
    %v870 = vunpack.c.h.b16 %v704
    %v871 = vunpack.c.l.b16 %v705
    %v872 = vunpack.c.h.b16 %v705
    %v873 = vunpack.c.l.b16 %v706
    %v874 = vunpack.c.h.b16 %v706
    %v875 = vunpack.c.l.b16 %v707
    %v876 = vunpack.c.h.b16 %v707
    %v877 = vunpack.c.l.b16 %v708
    %v878 = vunpack.c.h.b16 %v708
    %v879 = vunpack.c.l.b16 %v709
    %v880 = vunpack.c.h.b16 %v709
    %v881 = vunpack.c.l.b16 %v710
    %v882 = vunpack.c.h.b16 %v710
    %v883 = vunpack.c.l.b16 %v711
    %v884 = vunpack.c.h.b16 %v711
    %v885 = vunpack.c.l.b16 %v712
    %v886 = vunpack.c.h.b16 %v712
    %v887 = vunpack.c.l.b16 %v713
    %v888 = vunpack.c.h.b16 %v713
    %v889 = vunpack.c.l.b16 %v714
    %v890 = vunpack.c.h.b16 %v714
    %v891 = vunpack.c.l.b16 %v715
    %v892 = vunpack.c.h.b16 %v715
    %v893 = vunpack.c.l.b16 %v716
    %v894 = vunpack.c.h.b16 %v716
    %v895 = vunpack.c.l.b16 %v717
    %v896 = vunpack.c.h.b16 %v717
    %v897 = vunpack.c.l.b16 %v718
    %v898 = vunpack.c.h.b16 %v718
    %v899 = vunpack.c.l.b16 %v719
    %v900 = vunpack.c.h.b16 %v719
    %v901 = vunpack.c.l.b16 %v720
    %v902 = vunpack.c.h.b16 %v720
    %v903 = vunpack.c.l.b16 %v721
    %v904 = vunpack.c.h.b16 %v721
    %v905 = vunpack.c.l.b16 %v722
    %v906 = vunpack.c.h.b16 %v722
    %v907 = vunpack.c.l.b16 %v723
    %v908 = vunpack.c.h.b16 %v723
    %v909 = vunpack.c.l.b16 %v724
    %v910 = vunpack.c.h.b16 %v724
    %v911 = vunpack.c.l.b16 %v725
    %v912 = vunpack.c.h.b16 %v725
    %v913 = vunpack.c.l.b16 %v726
    %v914 = vunpack.c.h.b16 %v726
    %v915 = vunpack.c.l.b16 %v727
    %v916 = vunpack.c.h.b16 %v727
    %v917 = vunpack.c.l.b16 %v728
    %v918 = vunpack.c.h.b16 %v728
    %v919 = vunpack.c.l.b16 %v729
    %v920 = vunpack.c.h.b16 %v729
    %v921 = vunpack.c.l.b16 %v730
    %v922 = vunpack.c.h.b16 %v730
    %v923 = vpack.c.b16 %v803, %v795
    %v924 = vpack.c.b16 %v804, %v796
    %v925 = vpack.c.b16 %v805, %v797
    %v926 = vpack.c.b16 %v806, %v798
    %v927 = vpack.c.b16 %v807, %v799
    %v928 = vpack.c.b16 %v808, %v800
    %v929 = vpack.c.b16 %v809, %v801
    %v930 = vpack.c.b16 %v810, %v802
    %v931 = vpack.c.b16 %v819, %v811
    %v932 = vpack.c.b16 %v820, %v812
    %v933 = vpack.c.b16 %v821, %v813
    %v934 = vpack.c.b16 %v822, %v814
    %v935 = vpack.c.b16 %v823, %v815
    %v936 = vpack.c.b16 %v824, %v816
    %v937 = vpack.c.b16 %v825, %v817
    %v938 = vpack.c.b16 %v826, %v818
    %v939 = vpack.c.b16 %v835, %v827
    %v940 = vpack.c.b16 %v836, %v828
    %v941 = vpack.c.b16 %v837, %v829
    %v942 = vpack.c.b16 %v838, %v830
    %v943 = vpack.c.b16 %v839, %v831
    %v944 = vpack.c.b16 %v840, %v832
    %v945 = vpack.c.b16 %v841, %v833
    %v946 = vpack.c.b16 %v842, %v834
    %v947 = vpack.c.b16 %v851, %v843
    %v948 = vpack.c.b16 %v852, %v844
    %v949 = vpack.c.b16 %v853, %v845
    %v950 = vpack.c.b16 %v854, %v846
    %v951 = vpack.c.b16 %v855, %v847
    %v952 = vpack.c.b16 %v856, %v848
    %v953 = vpack.c.b16 %v857, %v849
    %v954 = vpack.c.b16 %v858, %v850
    %v955 = vpack.c.b16 %v867, %v859
    %v956 = vpack.c.b16 %v868, %v860
    %v957 = vpack.c.b16 %v869, %v861
    %v958 = vpack.c.b16 %v870, %v862
    %v959 = vpack.c.b16 %v871, %v863
    %v960 = vpack.c.b16 %v872, %v864
    %v961 = vpack.c.b16 %v873, %v865
    %v962 = vpack.c.b16 %v874, %v866
    %v963 = vpack.c.b16 %v883, %v875
    %v964 = vpack.c.b16 %v884, %v876
    %v965 = vpack.c.b16 %v885, %v877
    %v966 = vpack.c.b16 %v886, %v878
    %v967 = vpack.c.b16 %v887, %v879
    %v968 = vpack.c.b16 %v888, %v880
    %v969 = vpack.c.b16 %v889, %v881
    %v970 = vpack.c.b16 %v890, %v882
    %v971 = vpack.c.b16 %v899, %v891
    %v972 = vpack.c.b16 %v900, %v892
    %v973 = vpack.c.b16 %v901, %v893
    %v974 = vpack.c.b16 %v902, %v894
    %v975 = vpack.c.b16 %v903, %v895
    %v976 = vpack.c.b16 %v904, %v896
    %v977 = vpack.c.b16 %v905, %v897
    %v978 = vpack.c.b16 %v906, %v898
    %v979 = vpack.c.b16 %v915, %v907
    %v980 = vpack.c.b16 %v916, %v908
    %v981 = vpack.c.b16 %v917, %v909
    %v982 = vpack.c.b16 %v918, %v910
    %v983 = vpack.c.b16 %v919, %v911
    %v984 = vpack.c.b16 %v920, %v912
    %v985 = vpack.c.b16 %v921, %v913
    %v986 = vpack.c.b16 %v922, %v914
    %1051 = vmatprep.subr.bf16.mxu0 %v980
    %1052 = vmatpush1.bf16.msra.mxu0 %v979
    %1053 = vmatprep.subr.bf16.mxu0 %v972
    %1054 = vmatpush1.bf16.msra.mxu0 %v971
    %1055 = vmatprep.subr.bf16.mxu0 %v964
    %1056 = vmatpush1.bf16.msra.mxu0 %v963
    %1057 = vmatprep.subr.bf16.mxu0 %v956
    %1058 = vmatpush1.bf16.msra.mxu0 %v955
    %1059 = vmatprep.subr.bf16.mxu0 %v948
    %1060 = vmatpush1.bf16.msra.mxu0 %v947
    %1061 = vmatprep.subr.bf16.mxu0 %v940
    %1062 = vmatpush1.bf16.msra.mxu0 %v939
    %1063 = vmatprep.subr.bf16.mxu0 %v932
    %1064 = vmatpush1.bf16.msra.mxu0 %v931
    %1065 = vmatprep.subr.bf16.mxu0 %v924
    %1066 = vmatpush1.bf16.msra.mxu0 %v923
    %1067 = vmatprep.subr.bf16.mxu0 0
    %1068 = vmatpush2.bf16.msra.mxu0 0
    %1069 = vmatprep.subr.bf16.mxu0 0
    %1070 = vmatpush2.bf16.msra.mxu0 0
    %1071 = vmatprep.subr.bf16.mxu0 0
    %1072 = vmatpush2.bf16.msra.mxu0 0
    %1073 = vmatprep.subr.bf16.mxu0 0
    %1074 = vmatpush2.bf16.msra.mxu0 0
    %1075 = vmatprep.subr.bf16.mxu0 0
    %1076 = vmatpush2.bf16.msra.mxu0 0
    %1077 = vmatprep.subr.bf16.mxu0 0
    %1078 = vmatpush2.bf16.msra.mxu0 0
    %1079 = vmatprep.subr.bf16.mxu0 0
    %1080 = vmatpush2.bf16.msra.mxu0 0
    %1081 = vmatprep.subr.bf16.mxu0 0
    %1082 = vmatpush2.bf16.msra.mxu0 0
    %1083 = vmatprep.mubr.bf16.mxu0 0
    %1084 = vmatmul.mubr.bf16.gmra.mxu0 %v173
    %v1085 = vpop.f32.mrf.mxu0
    %v1086 = vadd.f32 0.0, %v1085
    %v1087 = vpop.f32.mrf.mxu0
    %v1088 = vadd.f32 0.0, %v1087
    %v1089 = vpop.f32.mrf.mxu0
    %v1090 = vadd.f32 0.0, %v1089
    %v1091 = vpop.f32.mrf.mxu0
    %v1092 = vadd.f32 0.0, %v1091
    %1093 = vdwg.mxu0
    %1094 = vmatprep.subr.bf16.mxu0 %v982
    %1095 = vmatpush1.bf16.msra.mxu0 %v981
    %1096 = vmatprep.subr.bf16.mxu0 %v974
    %1097 = vmatpush1.bf16.msra.mxu0 %v973
    %1098 = vmatprep.subr.bf16.mxu0 %v966
    %1099 = vmatpush1.bf16.msra.mxu0 %v965
    %1100 = vmatprep.subr.bf16.mxu0 %v958
    %1101 = vmatpush1.bf16.msra.mxu0 %v957
    %1102 = vmatprep.subr.bf16.mxu0 %v950
    %1103 = vmatpush1.bf16.msra.mxu0 %v949
    %1104 = vmatprep.subr.bf16.mxu0 %v942
    %1105 = vmatpush1.bf16.msra.mxu0 %v941
    %1106 = vmatprep.subr.bf16.mxu0 %v934
    %1107 = vmatpush1.bf16.msra.mxu0 %v933
    %1108 = vmatprep.subr.bf16.mxu0 %v926
    %1109 = vmatpush1.bf16.msra.mxu0 %v925
    %1110 = vmatprep.subr.bf16.mxu0 0
    %1111 = vmatpush2.bf16.msra.mxu0 0
    %1112 = vmatprep.subr.bf16.mxu0 0
    %1113 = vmatpush2.bf16.msra.mxu0 0
    %1114 = vmatprep.subr.bf16.mxu0 0
    %1115 = vmatpush2.bf16.msra.mxu0 0
    %1116 = vmatprep.subr.bf16.mxu0 0
    %1117 = vmatpush2.bf16.msra.mxu0 0
    %1118 = vmatprep.subr.bf16.mxu0 0
    %1119 = vmatpush2.bf16.msra.mxu0 0
    %1120 = vmatprep.subr.bf16.mxu0 0
    %1121 = vmatpush2.bf16.msra.mxu0 0
    %1122 = vmatprep.subr.bf16.mxu0 0
    %1123 = vmatpush2.bf16.msra.mxu0 0
    %1124 = vmatprep.subr.bf16.mxu0 0
    %1125 = vmatpush2.bf16.msra.mxu0 0
    %1126 = vmatprep.mubr.bf16.mxu0 0
    %1127 = vmatmul.mubr.bf16.gmra.mxu0 %v173
    %v1128 = vpop.f32.mrf.mxu0
    %v1129 = vadd.f32 0.0, %v1128
    %v1130 = vpop.f32.mrf.mxu0
    %v1131 = vadd.f32 0.0, %v1130
    %v1132 = vpop.f32.mrf.mxu0
    %v1133 = vadd.f32 0.0, %v1132
    %v1134 = vpop.f32.mrf.mxu0
    %v1135 = vadd.f32 0.0, %v1134
    %1136 = vdwg.mxu0
    %1137 = vmatprep.subr.bf16.mxu0 %v984
    %1138 = vmatpush1.bf16.msra.mxu0 %v983
    %1139 = vmatprep.subr.bf16.mxu0 %v976
    %1140 = vmatpush1.bf16.msra.mxu0 %v975
    %1141 = vmatprep.subr.bf16.mxu0 %v968
    %1142 = vmatpush1.bf16.msra.mxu0 %v967
    %1143 = vmatprep.subr.bf16.mxu0 %v960
    %1144 = vmatpush1.bf16.msra.mxu0 %v959
    %1145 = vmatprep.subr.bf16.mxu0 %v952
    %1146 = vmatpush1.bf16.msra.mxu0 %v951
    %1147 = vmatprep.subr.bf16.mxu0 %v944
    %1148 = vmatpush1.bf16.msra.mxu0 %v943
    %1149 = vmatprep.subr.bf16.mxu0 %v936
    %1150 = vmatpush1.bf16.msra.mxu0 %v935
    %1151 = vmatprep.subr.bf16.mxu0 %v928
    %1152 = vmatpush1.bf16.msra.mxu0 %v927
    %1153 = vmatprep.subr.bf16.mxu0 0
    %1154 = vmatpush2.bf16.msra.mxu0 0
    %1155 = vmatprep.subr.bf16.mxu0 0
    %1156 = vmatpush2.bf16.msra.mxu0 0
    %1157 = vmatprep.subr.bf16.mxu0 0
    %1158 = vmatpush2.bf16.msra.mxu0 0
    %1159 = vmatprep.subr.bf16.mxu0 0
    %1160 = vmatpush2.bf16.msra.mxu0 0
    %1161 = vmatprep.subr.bf16.mxu0 0
    %1162 = vmatpush2.bf16.msra.mxu0 0
    %1163 = vmatprep.subr.bf16.mxu0 0
    %1164 = vmatpush2.bf16.msra.mxu0 0
    %1165 = vmatprep.subr.bf16.mxu0 0
    %1166 = vmatpush2.bf16.msra.mxu0 0
    %1167 = vmatprep.subr.bf16.mxu0 0
    %1168 = vmatpush2.bf16.msra.mxu0 0
    %1169 = vmatprep.mubr.bf16.mxu0 0
    %1170 = vmatmul.mubr.bf16.gmra.mxu0 %v173
    %v1171 = vpop.f32.mrf.mxu0
    %v1172 = vadd.f32 0.0, %v1171
    %v1173 = vpop.f32.mrf.mxu0
    %v1174 = vadd.f32 0.0, %v1173
    %v1175 = vpop.f32.mrf.mxu0
    %v1176 = vadd.f32 0.0, %v1175
    %v1177 = vpop.f32.mrf.mxu0
    %v1178 = vadd.f32 0.0, %v1177
    %1179 = vdwg.mxu0
    %1180 = vmatprep.subr.bf16.mxu0 %v986
    %1181 = vmatpush1.bf16.msra.mxu0 %v985
    %1182 = vmatprep.subr.bf16.mxu0 %v978
    %1183 = vmatpush1.bf16.msra.mxu0 %v977
    %1184 = vmatprep.subr.bf16.mxu0 %v970
    %1185 = vmatpush1.bf16.msra.mxu0 %v969
    %1186 = vmatprep.subr.bf16.mxu0 %v962
    %1187 = vmatpush1.bf16.msra.mxu0 %v961
    %1188 = vmatprep.subr.bf16.mxu0 %v954
    %1189 = vmatpush1.bf16.msra.mxu0 %v953
    %1190 = vmatprep.subr.bf16.mxu0 %v946
    %1191 = vmatpush1.bf16.msra.mxu0 %v945
    %1192 = vmatprep.subr.bf16.mxu0 %v938
    %1193 = vmatpush1.bf16.msra.mxu0 %v937
    %1194 = vmatprep.subr.bf16.mxu0 %v930
    %1195 = vmatpush1.bf16.msra.mxu0 %v929
    %1196 = vmatprep.subr.bf16.mxu0 0
    %1197 = vmatpush2.bf16.msra.mxu0 0
    %1198 = vmatprep.subr.bf16.mxu0 0
    %1199 = vmatpush2.bf16.msra.mxu0 0
    %1200 = vmatprep.subr.bf16.mxu0 0
    %1201 = vmatpush2.bf16.msra.mxu0 0
    %1202 = vmatprep.subr.bf16.mxu0 0
    %1203 = vmatpush2.bf16.msra.mxu0 0
    %1204 = vmatprep.subr.bf16.mxu0 0
    %1205 = vmatpush2.bf16.msra.mxu0 0
    %1206 = vmatprep.subr.bf16.mxu0 0
    %1207 = vmatpush2.bf16.msra.mxu0 0
    %1208 = vmatprep.subr.bf16.mxu0 0
    %1209 = vmatpush2.bf16.msra.mxu0 0
    %1210 = vmatprep.subr.bf16.mxu0 0
    %1211 = vmatpush2.bf16.msra.mxu0 0
    %1212 = vmatprep.mubr.bf16.mxu0 0
    %1213 = vmatmul.mubr.bf16.gmra.mxu0 %v173
    %v1214 = vpop.f32.mrf.mxu0
    %v1215 = vadd.f32 0.0, %v1214
    %v1216 = vpop.f32.mrf.mxu0
    %v1217 = vadd.f32 0.0, %v1216
    %v1218 = vpop.f32.mrf.mxu0
    %v1219 = vadd.f32 0.0, %v1218
    %v1220 = vpop.f32.mrf.mxu0
    %v1221 = vadd.f32 0.0, %v1220
    %1222 = vdwg.mxu0
    %v1225 = vunpack.c.l.b16 %v103
    %v1226 = vunpack.c.l.b16 %v104
    %v1227 = vpack.c.b16 %v1226, %v1225
    %1229 = vmatprep.subr.bf16.mxu0 %v424
    %1230 = vmatpush1.bf16.msra.mxu0 %v423
    %1231 = vmatprep.subr.bf16.mxu0 %v416
    %1232 = vmatpush1.bf16.msra.mxu0 %v415
    %1233 = vmatprep.subr.bf16.mxu0 %v408
    %1234 = vmatpush1.bf16.msra.mxu0 %v407
    %1235 = vmatprep.subr.bf16.mxu0 %v400
    %1236 = vmatpush1.bf16.msra.mxu0 %v399
    %1237 = vmatprep.subr.bf16.mxu0 %v392
    %1238 = vmatpush1.bf16.msra.mxu0 %v391
    %1239 = vmatprep.subr.bf16.mxu0 %v384
    %1240 = vmatpush1.bf16.msra.mxu0 %v383
    %1241 = vmatprep.subr.bf16.mxu0 %v376
    %1242 = vmatpush1.bf16.msra.mxu0 %v375
    %1243 = vmatprep.subr.bf16.mxu0 %v368
    %1244 = vmatpush1.bf16.msra.mxu0 %v367
    %1245 = vmatprep.subr.bf16.mxu0 0
    %1246 = vmatpush2.bf16.msra.mxu0 0
    %1247 = vmatprep.subr.bf16.mxu0 0
    %1248 = vmatpush2.bf16.msra.mxu0 0
    %1249 = vmatprep.subr.bf16.mxu0 0
    %1250 = vmatpush2.bf16.msra.mxu0 0
    %1251 = vmatprep.subr.bf16.mxu0 0
    %1252 = vmatpush2.bf16.msra.mxu0 0
    %1253 = vmatprep.subr.bf16.mxu0 0
    %1254 = vmatpush2.bf16.msra.mxu0 0
    %1255 = vmatprep.subr.bf16.mxu0 0
    %1256 = vmatpush2.bf16.msra.mxu0 0
    %1257 = vmatprep.subr.bf16.mxu0 0
    %1258 = vmatpush2.bf16.msra.mxu0 0
    %1259 = vmatprep.subr.bf16.mxu0 0
    %1260 = vmatpush2.bf16.msra.mxu0 0
    %1261 = vmatprep.mubr.bf16.mxu0 0
    %1262 = vmatmul.mubr.bf16.gmra.mxu0 %v1227
    %v1263 = vpop.f32.mrf.mxu0
    %v1264 = vadd.f32 0.0, %v1263
    %v1265 = vpop.f32.mrf.mxu0
    %v1266 = vadd.f32 0.0, %v1265
    %v1267 = vpop.f32.mrf.mxu0
    %v1268 = vadd.f32 0.0, %v1267
    %v1269 = vpop.f32.mrf.mxu0
    %v1270 = vadd.f32 0.0, %v1269
    %1271 = vdwg.mxu0
    %1272 = vmatprep.subr.bf16.mxu0 %v426
    %1273 = vmatpush1.bf16.msra.mxu0 %v425
    %1274 = vmatprep.subr.bf16.mxu0 %v418
    %1275 = vmatpush1.bf16.msra.mxu0 %v417
    %1276 = vmatprep.subr.bf16.mxu0 %v410
    %1277 = vmatpush1.bf16.msra.mxu0 %v409
    %1278 = vmatprep.subr.bf16.mxu0 %v402
    %1279 = vmatpush1.bf16.msra.mxu0 %v401
    %1280 = vmatprep.subr.bf16.mxu0 %v394
    %1281 = vmatpush1.bf16.msra.mxu0 %v393
    %1282 = vmatprep.subr.bf16.mxu0 %v386
    %1283 = vmatpush1.bf16.msra.mxu0 %v385
    %1284 = vmatprep.subr.bf16.mxu0 %v378
    %1285 = vmatpush1.bf16.msra.mxu0 %v377
    %1286 = vmatprep.subr.bf16.mxu0 %v370
    %1287 = vmatpush1.bf16.msra.mxu0 %v369
    %1288 = vmatprep.subr.bf16.mxu0 0
    %1289 = vmatpush2.bf16.msra.mxu0 0
    %1290 = vmatprep.subr.bf16.mxu0 0
    %1291 = vmatpush2.bf16.msra.mxu0 0
    %1292 = vmatprep.subr.bf16.mxu0 0
    %1293 = vmatpush2.bf16.msra.mxu0 0
    %1294 = vmatprep.subr.bf16.mxu0 0
    %1295 = vmatpush2.bf16.msra.mxu0 0
    %1296 = vmatprep.subr.bf16.mxu0 0
    %1297 = vmatpush2.bf16.msra.mxu0 0
    %1298 = vmatprep.subr.bf16.mxu0 0
    %1299 = vmatpush2.bf16.msra.mxu0 0
    %1300 = vmatprep.subr.bf16.mxu0 0
    %1301 = vmatpush2.bf16.msra.mxu0 0
    %1302 = vmatprep.subr.bf16.mxu0 0
    %1303 = vmatpush2.bf16.msra.mxu0 0
    %1304 = vmatprep.mubr.bf16.mxu0 0
    %1305 = vmatmul.mubr.bf16.gmra.mxu0 %v1227
    %v1306 = vpop.f32.mrf.mxu0
    %v1307 = vadd.f32 0.0, %v1306
    %v1308 = vpop.f32.mrf.mxu0
    %v1309 = vadd.f32 0.0, %v1308
    %v1310 = vpop.f32.mrf.mxu0
    %v1311 = vadd.f32 0.0, %v1310
    %v1312 = vpop.f32.mrf.mxu0
    %v1313 = vadd.f32 0.0, %v1312
    %1314 = vdwg.mxu0
    %1315 = vmatprep.subr.bf16.mxu0 %v428
    %1316 = vmatpush1.bf16.msra.mxu0 %v427
    %1317 = vmatprep.subr.bf16.mxu0 %v420
    %1318 = vmatpush1.bf16.msra.mxu0 %v419
    %1319 = vmatprep.subr.bf16.mxu0 %v412
    %1320 = vmatpush1.bf16.msra.mxu0 %v411
    %1321 = vmatprep.subr.bf16.mxu0 %v404
    %1322 = vmatpush1.bf16.msra.mxu0 %v403
    %1323 = vmatprep.subr.bf16.mxu0 %v396
    %1324 = vmatpush1.bf16.msra.mxu0 %v395
    %1325 = vmatprep.subr.bf16.mxu0 %v388
    %1326 = vmatpush1.bf16.msra.mxu0 %v387
    %1327 = vmatprep.subr.bf16.mxu0 %v380
    %1328 = vmatpush1.bf16.msra.mxu0 %v379
    %1329 = vmatprep.subr.bf16.mxu0 %v372
    %1330 = vmatpush1.bf16.msra.mxu0 %v371
    %1331 = vmatprep.subr.bf16.mxu0 0
    %1332 = vmatpush2.bf16.msra.mxu0 0
    %1333 = vmatprep.subr.bf16.mxu0 0
    %1334 = vmatpush2.bf16.msra.mxu0 0
    %1335 = vmatprep.subr.bf16.mxu0 0
    %1336 = vmatpush2.bf16.msra.mxu0 0
    %1337 = vmatprep.subr.bf16.mxu0 0
    %1338 = vmatpush2.bf16.msra.mxu0 0
    %1339 = vmatprep.subr.bf16.mxu0 0
    %1340 = vmatpush2.bf16.msra.mxu0 0
    %1341 = vmatprep.subr.bf16.mxu0 0
    %1342 = vmatpush2.bf16.msra.mxu0 0
    %1343 = vmatprep.subr.bf16.mxu0 0
    %1344 = vmatpush2.bf16.msra.mxu0 0
    %1345 = vmatprep.subr.bf16.mxu0 0
    %1346 = vmatpush2.bf16.msra.mxu0 0
    %1347 = vmatprep.mubr.bf16.mxu0 0
    %1348 = vmatmul.mubr.bf16.gmra.mxu0 %v1227
    %v1349 = vpop.f32.mrf.mxu0
    %v1350 = vadd.f32 0.0, %v1349
    %v1351 = vpop.f32.mrf.mxu0
    %v1352 = vadd.f32 0.0, %v1351
    %v1353 = vpop.f32.mrf.mxu0
    %v1354 = vadd.f32 0.0, %v1353
    %v1355 = vpop.f32.mrf.mxu0
    %v1356 = vadd.f32 0.0, %v1355
    %1357 = vdwg.mxu0
    %1358 = vmatprep.subr.bf16.mxu0 %v430
    %1359 = vmatpush1.bf16.msra.mxu0 %v429
    %1360 = vmatprep.subr.bf16.mxu0 %v422
    %1361 = vmatpush1.bf16.msra.mxu0 %v421
    %1362 = vmatprep.subr.bf16.mxu0 %v414
    %1363 = vmatpush1.bf16.msra.mxu0 %v413
    %1364 = vmatprep.subr.bf16.mxu0 %v406
    %1365 = vmatpush1.bf16.msra.mxu0 %v405
    %1366 = vmatprep.subr.bf16.mxu0 %v398
    %1367 = vmatpush1.bf16.msra.mxu0 %v397
    %1368 = vmatprep.subr.bf16.mxu0 %v390
    %1369 = vmatpush1.bf16.msra.mxu0 %v389
    %1370 = vmatprep.subr.bf16.mxu0 %v382
    %1371 = vmatpush1.bf16.msra.mxu0 %v381
    %1372 = vmatprep.subr.bf16.mxu0 %v374
    %1373 = vmatpush1.bf16.msra.mxu0 %v373
    %1374 = vmatprep.subr.bf16.mxu0 0
    %1375 = vmatpush2.bf16.msra.mxu0 0
    %1376 = vmatprep.subr.bf16.mxu0 0
    %1377 = vmatpush2.bf16.msra.mxu0 0
    %1378 = vmatprep.subr.bf16.mxu0 0
    %1379 = vmatpush2.bf16.msra.mxu0 0
    %1380 = vmatprep.subr.bf16.mxu0 0
    %1381 = vmatpush2.bf16.msra.mxu0 0
    %1382 = vmatprep.subr.bf16.mxu0 0
    %1383 = vmatpush2.bf16.msra.mxu0 0
    %1384 = vmatprep.subr.bf16.mxu0 0
    %1385 = vmatpush2.bf16.msra.mxu0 0
    %1386 = vmatprep.subr.bf16.mxu0 0
    %1387 = vmatpush2.bf16.msra.mxu0 0
    %1388 = vmatprep.subr.bf16.mxu0 0
    %1389 = vmatpush2.bf16.msra.mxu0 0
    %1390 = vmatprep.mubr.bf16.mxu0 0
    %1391 = vmatmul.mubr.bf16.gmra.mxu0 %v1227
    %v1392 = vpop.f32.mrf.mxu0
    %v1393 = vadd.f32 0.0, %v1392
    %v1394 = vpop.f32.mrf.mxu0
    %v1395 = vadd.f32 0.0, %v1394
    %v1396 = vpop.f32.mrf.mxu0
    %v1397 = vadd.f32 0.0, %v1396
    %v1398 = vpop.f32.mrf.mxu0
    %v1399 = vadd.f32 0.0, %v1398
    %1400 = vdwg.mxu0
    %1401 = vmatprep.subr.bf16.mxu0 %v980
    %1402 = vmatpush1.bf16.msra.mxu0 %v979
    %1403 = vmatprep.subr.bf16.mxu0 %v972
    %1404 = vmatpush1.bf16.msra.mxu0 %v971
    %1405 = vmatprep.subr.bf16.mxu0 %v964
    %1406 = vmatpush1.bf16.msra.mxu0 %v963
    %1407 = vmatprep.subr.bf16.mxu0 %v956
    %1408 = vmatpush1.bf16.msra.mxu0 %v955
    %1409 = vmatprep.subr.bf16.mxu0 %v948
    %1410 = vmatpush1.bf16.msra.mxu0 %v947
    %1411 = vmatprep.subr.bf16.mxu0 %v940
    %1412 = vmatpush1.bf16.msra.mxu0 %v939
    %1413 = vmatprep.subr.bf16.mxu0 %v932
    %1414 = vmatpush1.bf16.msra.mxu0 %v931
    %1415 = vmatprep.subr.bf16.mxu0 %v924
    %1416 = vmatpush1.bf16.msra.mxu0 %v923
    %1417 = vmatprep.subr.bf16.mxu0 0
    %1418 = vmatpush2.bf16.msra.mxu0 0
    %1419 = vmatprep.subr.bf16.mxu0 0
    %1420 = vmatpush2.bf16.msra.mxu0 0
    %1421 = vmatprep.subr.bf16.mxu0 0
    %1422 = vmatpush2.bf16.msra.mxu0 0
    %1423 = vmatprep.subr.bf16.mxu0 0
    %1424 = vmatpush2.bf16.msra.mxu0 0
    %1425 = vmatprep.subr.bf16.mxu0 0
    %1426 = vmatpush2.bf16.msra.mxu0 0
    %1427 = vmatprep.subr.bf16.mxu0 0
    %1428 = vmatpush2.bf16.msra.mxu0 0
    %1429 = vmatprep.subr.bf16.mxu0 0
    %1430 = vmatpush2.bf16.msra.mxu0 0
    %1431 = vmatprep.subr.bf16.mxu0 0
    %1432 = vmatpush2.bf16.msra.mxu0 0
    %1433 = vmatprep.mubr.bf16.mxu0 0
    %1434 = vmatmul.mubr.bf16.gmra.mxu0 %v1227
    %v1435 = vpop.f32.mrf.mxu0
    %v1436 = vadd.f32 0.0, %v1435
    %v1437 = vpop.f32.mrf.mxu0
    %v1438 = vadd.f32 0.0, %v1437
    %v1439 = vpop.f32.mrf.mxu0
    %v1440 = vadd.f32 0.0, %v1439
    %v1441 = vpop.f32.mrf.mxu0
    %v1442 = vadd.f32 0.0, %v1441
    %1443 = vdwg.mxu0
    %1444 = vmatprep.subr.bf16.mxu0 %v982
    %1445 = vmatpush1.bf16.msra.mxu0 %v981
    %1446 = vmatprep.subr.bf16.mxu0 %v974
    %1447 = vmatpush1.bf16.msra.mxu0 %v973
    %1448 = vmatprep.subr.bf16.mxu0 %v966
    %1449 = vmatpush1.bf16.msra.mxu0 %v965
    %1450 = vmatprep.subr.bf16.mxu0 %v958
    %1451 = vmatpush1.bf16.msra.mxu0 %v957
    %1452 = vmatprep.subr.bf16.mxu0 %v950
    %1453 = vmatpush1.bf16.msra.mxu0 %v949
    %1454 = vmatprep.subr.bf16.mxu0 %v942
    %1455 = vmatpush1.bf16.msra.mxu0 %v941
    %1456 = vmatprep.subr.bf16.mxu0 %v934
    %1457 = vmatpush1.bf16.msra.mxu0 %v933
    %1458 = vmatprep.subr.bf16.mxu0 %v926
    %1459 = vmatpush1.bf16.msra.mxu0 %v925
    %1460 = vmatprep.subr.bf16.mxu0 0
    %1461 = vmatpush2.bf16.msra.mxu0 0
    %1462 = vmatprep.subr.bf16.mxu0 0
    %1463 = vmatpush2.bf16.msra.mxu0 0
    %1464 = vmatprep.subr.bf16.mxu0 0
    %1465 = vmatpush2.bf16.msra.mxu0 0
    %1466 = vmatprep.subr.bf16.mxu0 0
    %1467 = vmatpush2.bf16.msra.mxu0 0
    %1468 = vmatprep.subr.bf16.mxu0 0
    %1469 = vmatpush2.bf16.msra.mxu0 0
    %1470 = vmatprep.subr.bf16.mxu0 0
    %1471 = vmatpush2.bf16.msra.mxu0 0
    %1472 = vmatprep.subr.bf16.mxu0 0
    %1473 = vmatpush2.bf16.msra.mxu0 0
    %1474 = vmatprep.subr.bf16.mxu0 0
    %1475 = vmatpush2.bf16.msra.mxu0 0
    %1476 = vmatprep.mubr.bf16.mxu0 0
    %1477 = vmatmul.mubr.bf16.gmra.mxu0 %v1227
    %v1478 = vpop.f32.mrf.mxu0
    %v1479 = vadd.f32 0.0, %v1478
    %v1480 = vpop.f32.mrf.mxu0
    %v1481 = vadd.f32 0.0, %v1480
    %v1482 = vpop.f32.mrf.mxu0
    %v1483 = vadd.f32 0.0, %v1482
    %v1484 = vpop.f32.mrf.mxu0
    %v1485 = vadd.f32 0.0, %v1484
    %1486 = vdwg.mxu0
    %1487 = vmatprep.subr.bf16.mxu0 %v984
    %1488 = vmatpush1.bf16.msra.mxu0 %v983
    %1489 = vmatprep.subr.bf16.mxu0 %v976
    %1490 = vmatpush1.bf16.msra.mxu0 %v975
    %1491 = vmatprep.subr.bf16.mxu0 %v968
    %1492 = vmatpush1.bf16.msra.mxu0 %v967
    %1493 = vmatprep.subr.bf16.mxu0 %v960
    %1494 = vmatpush1.bf16.msra.mxu0 %v959
    %1495 = vmatprep.subr.bf16.mxu0 %v952
    %1496 = vmatpush1.bf16.msra.mxu0 %v951
    %1497 = vmatprep.subr.bf16.mxu0 %v944
    %1498 = vmatpush1.bf16.msra.mxu0 %v943
    %1499 = vmatprep.subr.bf16.mxu0 %v936
    %1500 = vmatpush1.bf16.msra.mxu0 %v935
    %1501 = vmatprep.subr.bf16.mxu0 %v928
    %1502 = vmatpush1.bf16.msra.mxu0 %v927
    %1503 = vmatprep.subr.bf16.mxu0 0
    %1504 = vmatpush2.bf16.msra.mxu0 0
    %1505 = vmatprep.subr.bf16.mxu0 0
    %1506 = vmatpush2.bf16.msra.mxu0 0
    %1507 = vmatprep.subr.bf16.mxu0 0
    %1508 = vmatpush2.bf16.msra.mxu0 0
    %1509 = vmatprep.subr.bf16.mxu0 0
    %1510 = vmatpush2.bf16.msra.mxu0 0
    %1511 = vmatprep.subr.bf16.mxu0 0
    %1512 = vmatpush2.bf16.msra.mxu0 0
    %1513 = vmatprep.subr.bf16.mxu0 0
    %1514 = vmatpush2.bf16.msra.mxu0 0
    %1515 = vmatprep.subr.bf16.mxu0 0
    %1516 = vmatpush2.bf16.msra.mxu0 0
    %1517 = vmatprep.subr.bf16.mxu0 0
    %1518 = vmatpush2.bf16.msra.mxu0 0
    %1519 = vmatprep.mubr.bf16.mxu0 0
    %1520 = vmatmul.mubr.bf16.gmra.mxu0 %v1227
    %v1521 = vpop.f32.mrf.mxu0
    %v1522 = vadd.f32 0.0, %v1521
    %v1523 = vpop.f32.mrf.mxu0
    %v1524 = vadd.f32 0.0, %v1523
    %v1525 = vpop.f32.mrf.mxu0
    %v1526 = vadd.f32 0.0, %v1525
    %v1527 = vpop.f32.mrf.mxu0
    %v1528 = vadd.f32 0.0, %v1527
    %1529 = vdwg.mxu0
    %1530 = vmatprep.subr.bf16.mxu0 %v986
    %1531 = vmatpush1.bf16.msra.mxu0 %v985
    %1532 = vmatprep.subr.bf16.mxu0 %v978
    %1533 = vmatpush1.bf16.msra.mxu0 %v977
    %1534 = vmatprep.subr.bf16.mxu0 %v970
    %1535 = vmatpush1.bf16.msra.mxu0 %v969
    %1536 = vmatprep.subr.bf16.mxu0 %v962
    %1537 = vmatpush1.bf16.msra.mxu0 %v961
    %1538 = vmatprep.subr.bf16.mxu0 %v954
    %1539 = vmatpush1.bf16.msra.mxu0 %v953
    %1540 = vmatprep.subr.bf16.mxu0 %v946
    %1541 = vmatpush1.bf16.msra.mxu0 %v945
    %1542 = vmatprep.subr.bf16.mxu0 %v938
    %1543 = vmatpush1.bf16.msra.mxu0 %v937
    %1544 = vmatprep.subr.bf16.mxu0 %v930
    %1545 = vmatpush1.bf16.msra.mxu0 %v929
    %1546 = vmatprep.subr.bf16.mxu0 0
    %1547 = vmatpush2.bf16.msra.mxu0 0
    %1548 = vmatprep.subr.bf16.mxu0 0
    %1549 = vmatpush2.bf16.msra.mxu0 0
    %1550 = vmatprep.subr.bf16.mxu0 0
    %1551 = vmatpush2.bf16.msra.mxu0 0
    %1552 = vmatprep.subr.bf16.mxu0 0
    %1553 = vmatpush2.bf16.msra.mxu0 0
    %1554 = vmatprep.subr.bf16.mxu0 0
    %1555 = vmatpush2.bf16.msra.mxu0 0
    %1556 = vmatprep.subr.bf16.mxu0 0
    %1557 = vmatpush2.bf16.msra.mxu0 0
    %1558 = vmatprep.subr.bf16.mxu0 0
    %1559 = vmatpush2.bf16.msra.mxu0 0
    %1560 = vmatprep.subr.bf16.mxu0 0
    %1561 = vmatpush2.bf16.msra.mxu0 0
    %1562 = vmatprep.mubr.bf16.mxu0 0
    %1563 = vmatmul.mubr.bf16.gmra.mxu0 %v1227
    %v1564 = vpop.f32.mrf.mxu0
    %v1565 = vadd.f32 0.0, %v1564
    %v1566 = vpop.f32.mrf.mxu0
    %v1567 = vadd.f32 0.0, %v1566
    %v1568 = vpop.f32.mrf.mxu0
    %v1569 = vadd.f32 0.0, %v1568
    %v1570 = vpop.f32.mrf.mxu0
    %v1571 = vadd.f32 0.0, %v1570
    %1572 = vdwg.mxu0
    %v1573 = vld [vmem:[%s4] sm:$0xf]
    %v1574 = vmax.f32 %v530, %v1086
    %v1575 = vmax.f32 %v532, %v1088
    %v1576 = vmax.f32 %v573, %v1129
    %v1577 = vmax.f32 %v575, %v1131
    %v1578 = vmax.f32 %v616, %v1172
    %v1579 = vmax.f32 %v618, %v1174
    %v1580 = vmax.f32 %v659, %v1215
    %v1581 = vmax.f32 %v661, %v1217
    %v1582 = vmax.f32 %v534, %v1090
    %v1583 = vmax.f32 %v536, %v1092
    %v1584 = vmax.f32 %v577, %v1133
    %v1585 = vmax.f32 %v579, %v1135
    %v1586 = vmax.f32 %v620, %v1176
    %v1587 = vmax.f32 %v622, %v1178
    %v1588 = vmax.f32 %v663, %v1219
    %v1589 = vmax.f32 %v665, %v1221
    %v1590 = vmax.f32 %v1264, %v1436
    %v1591 = vmax.f32 %v1266, %v1438
    %v1592 = vmax.f32 %v1307, %v1479
    %v1593 = vmax.f32 %v1309, %v1481
    %v1594 = vmax.f32 %v1350, %v1522
    %v1595 = vmax.f32 %v1352, %v1524
    %v1596 = vmax.f32 %v1393, %v1565
    %v1597 = vmax.f32 %v1395, %v1567
    %v1598 = vmax.f32 %v1268, %v1440
    %v1599 = vmax.f32 %v1270, %v1442
    %v1600 = vmax.f32 %v1311, %v1483
    %v1601 = vmax.f32 %v1313, %v1485
    %v1602 = vmax.f32 %v1354, %v1526
    %v1603 = vmax.f32 %v1356, %v1528
    %v1604 = vmax.f32 %v1397, %v1569
    %v1605 = vmax.f32 %v1399, %v1571
    %v1606 = vmax.f32 %v1574, %v1578
    %v1607 = vmax.f32 %v1575, %v1579
    %v1608 = vmax.f32 %v1576, %v1580
    %v1609 = vmax.f32 %v1577, %v1581
    %v1610 = vmax.f32 %v1582, %v1586
    %v1611 = vmax.f32 %v1583, %v1587
    %v1612 = vmax.f32 %v1584, %v1588
    %v1613 = vmax.f32 %v1585, %v1589
    %v1614 = vmax.f32 %v1590, %v1594
    %v1615 = vmax.f32 %v1591, %v1595
    %v1616 = vmax.f32 %v1592, %v1596
    %v1617 = vmax.f32 %v1593, %v1597
    %v1618 = vmax.f32 %v1598, %v1602
    %v1619 = vmax.f32 %v1599, %v1603
    %v1620 = vmax.f32 %v1600, %v1604
    %v1621 = vmax.f32 %v1601, %v1605
    %v1623 = vlaneseq
    %v1624 = vshrl.u32 %v1623, 7
    %v1625 = vsub.s32 0, %v1624
    %v1626 = vrot.slane %v1573, %v1625
    %v1627 = vlaneseq
    %v1628 = vshrl.u32 %v1627, 7
    %v1629 = vsub.s32 1, %v1628
    %v1630 = vrot.slane %v1573, %v1629
    %v1631 = vlaneseq
    %v1632 = vshrl.u32 %v1631, 7
    %v1633 = vsub.s32 2, %v1632
    %v1634 = vrot.slane %v1573, %v1633
    %v1635 = vlaneseq
    %v1636 = vshrl.u32 %v1635, 7
    %v1637 = vsub.s32 3, %v1636
    %v1638 = vrot.slane %v1573, %v1637
    %v1643 = vadd.f32 %v1606, %v1626
    %v1644 = vadd.f32 %v1607, %v1630
    %v1645 = vadd.f32 %v1608, %v1634
    %v1646 = vadd.f32 %v1609, %v1638
    %v1647 = vadd.f32 %v1610, %v1626
    %v1648 = vadd.f32 %v1611, %v1630
    %v1649 = vadd.f32 %v1612, %v1634
    %v1650 = vadd.f32 %v1613, %v1638
    %v1651 = vmax.f32 %v1643, 0.0
    %v1652 = vmax.f32 %v1644, 0.0
    %v1653 = vmax.f32 %v1645, 0.0
    %v1654 = vmax.f32 %v1646, 0.0
    %v1655 = vmax.f32 %v1647, 0.0
    %v1656 = vmax.f32 %v1648, 0.0
    %v1657 = vmax.f32 %v1649, 0.0
    %v1658 = vmax.f32 %v1650, 0.0
    %v1659 = vadd.f32 %v1614, %v1626
    %v1660 = vadd.f32 %v1615, %v1630
    %v1661 = vadd.f32 %v1616, %v1634
    %v1662 = vadd.f32 %v1617, %v1638
    %v1663 = vadd.f32 %v1618, %v1626
    %v1664 = vadd.f32 %v1619, %v1630
    %v1665 = vadd.f32 %v1620, %v1634
    %v1666 = vadd.f32 %v1621, %v1638
    %v1667 = vmax.f32 %v1659, 0.0
    %v1668 = vmax.f32 %v1660, 0.0
    %v1669 = vmax.f32 %v1661, 0.0
    %v1670 = vmax.f32 %v1662, 0.0
    %v1671 = vmax.f32 %v1663, 0.0
    %v1672 = vmax.f32 %v1664, 0.0
    %v1673 = vmax.f32 %v1665, 0.0
    %v1674 = vmax.f32 %v1666, 0.0
    %v1675 = vlaneseq
    %v1676 = vshrl.u32 %v1675, 7
    %v1677 = vadd.s32 %v1676, 8
    %vm1678 = vcmp.lt.s32.totalorder %v1676, 0
    %v1679 = vsub.s32 0, %v1676
    %v1680 = vsel %vm1678, %v1679, %v1676
    %v1681 = vshrl.u32 %v1680, 3
    %v1682 = vand.u32 %v1680, 7
    %v1683 = vsub.s32 0, %v1682
    %v1684 = vsel %vm1678, %v1683, %v1682
    %vm1685 = vcmp.lt.s32.totalorder %v1677, 0
    %v1686 = vsub.s32 0, %v1677
    %v1687 = vsel %vm1685, %v1686, %v1677
    %v1688 = vshrl.u32 %v1687, 3
    %v1689 = vand.u32 %v1687, 7
    %v1690 = vsub.s32 0, %v1689
    %v1691 = vsel %vm1685, %v1690, %v1689
    %vm1692 = vcmp.ne.s32.totalorder %v1684, 0
    %vm1693 = vcmp.ne.s32.totalorder %v1691, 0
    %vm1694 = vcmp.lt.s32.totalorder %v1684, 0
    %vm1695 = vcmp.lt.s32.totalorder %v1691, 0
    %vm1696 = vmand %vm1694, %vm1692
    %vm1697 = vmand %vm1695, %vm1693
    %v1698 = vadd.s32 %v1684, 8
    %v1699 = vadd.s32 %v1691, 8
    %v1700 = vsel %vm1696, %v1698, %v1684
    %v1701 = vsel %vm1697, %v1699, %v1691
    %vm1702 = vcmp.ge.s32.totalorder %v1700, 1
    %vm1703 = vcmp.ge.s32.totalorder %v1701, 1
    %v1704 = vsel %vm1702, %v1667, 0.0
    %v1705 = vsel %vm1702, %v1668, 0.0
    %v1706 = vsel %vm1702, %v1669, 0.0
    %v1707 = vsel %vm1702, %v1670, 0.0
    %v1708 = vsel %vm1703, %v1671, 0.0
    %v1709 = vsel %vm1703, %v1672, 0.0
    %v1710 = vsel %vm1703, %v1673, 0.0
    %v1711 = vsel %vm1703, %v1674, 0.0
    %v1712 = vpack.c.bf16 %v1708, %v1704
    %v1713 = vpack.c.bf16 %v1709, %v1705
    %v1714 = vpack.c.bf16 %v1710, %v1706
    %v1715 = vpack.c.bf16 %v1711, %v1707
    %vm1716 = vcmp.le.s32.totalorder %v1700, 6
    %vm1717 = vcmp.le.s32.totalorder %v1701, 6
    %v1718 = vsel %vm1716, %v1651, 0.0
    %v1719 = vsel %vm1716, %v1652, 0.0
    %v1720 = vsel %vm1716, %v1653, 0.0
    %v1721 = vsel %vm1716, %v1654, 0.0
    %v1722 = vsel %vm1717, %v1655, 0.0
    %v1723 = vsel %vm1717, %v1656, 0.0
    %v1724 = vsel %vm1717, %v1657, 0.0
    %v1725 = vsel %vm1717, %v1658, 0.0
    %v1726 = vpack.c.bf16 %v1722, %v1718
    %v1727 = vpack.c.bf16 %v1723, %v1719
    %v1728 = vpack.c.bf16 %v1724, %v1720
    %v1729 = vpack.c.bf16 %v1725, %v1721
    %v1730 = vlaneseq
    %v1731 = vand.u32 %v1730, 127
    %v1732 = vadd.s32 %v1676, 1
    %v1733 = vadd.s32 %v1677, 1
    %vm1734 = vcmp.eq.s32.totalorder %v1731, %v1732
    %vm1735 = vcmp.eq.s32.totalorder %v1731, %v1733
    %v1736 = vsel %vm1734, 1, 0
    %v1737 = vsel %vm1735, 1, 0
    %v1738 = vcvt.s32.f32 %v1736
    %v1739 = vcvt.s32.f32 %v1737
    %v1740 = vpack.c.bf16 %v1739, %v1738
    %vm1741 = vcmask 130048
    %v1743 = vsel %vm1741, %v1740, 0
    %1745 = vmatprep.subr.bf16.mxu0 0
    %1746 = vmatpush1.bf16.msra.mxu0 0
    %1747 = vmatprep.subr.bf16.mxu0 0
    %1748 = vmatpush1.bf16.msra.mxu0 0
    %1749 = vmatprep.subr.bf16.mxu0 0
    %1750 = vmatpush1.bf16.msra.mxu0 0
    %1751 = vmatprep.subr.bf16.mxu0 0
    %1752 = vmatpush1.bf16.msra.mxu0 0
    %1753 = vmatprep.subr.bf16.mxu0 0
    %1754 = vmatpush1.bf16.msra.mxu0 0
    %1755 = vmatprep.subr.bf16.mxu0 0
    %1756 = vmatpush1.bf16.msra.mxu0 0
    %1757 = vmatprep.subr.bf16.mxu0 0
    %1758 = vmatpush1.bf16.msra.mxu0 0
    %1759 = vmatprep.subr.bf16.mxu0 %v1713
    %1760 = vmatpush1.bf16.msra.mxu0 %v1712
    %1761 = vmatprep.subr.bf16.mxu0 0
    %1762 = vmatpush2.bf16.msra.mxu0 0
    %1763 = vmatprep.subr.bf16.mxu0 0
    %1764 = vmatpush2.bf16.msra.mxu0 0
    %1765 = vmatprep.subr.bf16.mxu0 0
    %1766 = vmatpush2.bf16.msra.mxu0 0
    %1767 = vmatprep.subr.bf16.mxu0 0
    %1768 = vmatpush2.bf16.msra.mxu0 0
    %1769 = vmatprep.subr.bf16.mxu0 0
    %1770 = vmatpush2.bf16.msra.mxu0 0
    %1771 = vmatprep.subr.bf16.mxu0 0
    %1772 = vmatpush2.bf16.msra.mxu0 0
    %1773 = vmatprep.subr.bf16.mxu0 0
    %1774 = vmatpush2.bf16.msra.mxu0 0
    %1775 = vmatprep.subr.bf16.mxu0 0
    %1776 = vmatpush2.bf16.msra.mxu0 0
    %1777 = vmatprep.mubr.bf16.mxu0 0
    %1778 = vmatmul.mubr.bf16.gmra.mxu0 %v1743
    %v1779 = vpop.f32.mrf.mxu0
    %v1780 = vadd.f32 0.0, %v1779
    %v1781 = vpop.f32.mrf.mxu0
    %v1782 = vadd.f32 0.0, %v1781
    %v1783 = vpop.f32.mrf.mxu0
    %v1784 = vadd.f32 0.0, %v1783
    %v1785 = vpop.f32.mrf.mxu0
    %v1786 = vadd.f32 0.0, %v1785
    %1787 = vdwg.mxu0
    %1788 = vmatprep.subr.bf16.mxu0 0
    %1789 = vmatpush1.bf16.msra.mxu0 0
    %1790 = vmatprep.subr.bf16.mxu0 0
    %1791 = vmatpush1.bf16.msra.mxu0 0
    %1792 = vmatprep.subr.bf16.mxu0 0
    %1793 = vmatpush1.bf16.msra.mxu0 0
    %1794 = vmatprep.subr.bf16.mxu0 0
    %1795 = vmatpush1.bf16.msra.mxu0 0
    %1796 = vmatprep.subr.bf16.mxu0 0
    %1797 = vmatpush1.bf16.msra.mxu0 0
    %1798 = vmatprep.subr.bf16.mxu0 0
    %1799 = vmatpush1.bf16.msra.mxu0 0
    %1800 = vmatprep.subr.bf16.mxu0 0
    %1801 = vmatpush1.bf16.msra.mxu0 0
    %1802 = vmatprep.subr.bf16.mxu0 %v1715
    %1803 = vmatpush1.bf16.msra.mxu0 %v1714
    %1804 = vmatprep.subr.bf16.mxu0 0
    %1805 = vmatpush2.bf16.msra.mxu0 0
    %1806 = vmatprep.subr.bf16.mxu0 0
    %1807 = vmatpush2.bf16.msra.mxu0 0
    %1808 = vmatprep.subr.bf16.mxu0 0
    %1809 = vmatpush2.bf16.msra.mxu0 0
    %1810 = vmatprep.subr.bf16.mxu0 0
    %1811 = vmatpush2.bf16.msra.mxu0 0
    %1812 = vmatprep.subr.bf16.mxu0 0
    %1813 = vmatpush2.bf16.msra.mxu0 0
    %1814 = vmatprep.subr.bf16.mxu0 0
    %1815 = vmatpush2.bf16.msra.mxu0 0
    %1816 = vmatprep.subr.bf16.mxu0 0
    %1817 = vmatpush2.bf16.msra.mxu0 0
    %1818 = vmatprep.subr.bf16.mxu0 0
    %1819 = vmatpush2.bf16.msra.mxu0 0
    %1820 = vmatprep.mubr.bf16.mxu0 0
    %1821 = vmatmul.mubr.bf16.gmra.mxu0 %v1743
    %v1822 = vpop.f32.mrf.mxu0
    %v1823 = vadd.f32 0.0, %v1822
    %v1824 = vpop.f32.mrf.mxu0
    %v1825 = vadd.f32 0.0, %v1824
    %v1826 = vpop.f32.mrf.mxu0
    %v1827 = vadd.f32 0.0, %v1826
    %v1828 = vpop.f32.mrf.mxu0
    %v1829 = vadd.f32 0.0, %v1828
    %1830 = vdwg.mxu0
    %v1831 = vpack.c.bf16 %v1784, %v1780
    %v1832 = vpack.c.bf16 %v1786, %v1782
    %v1833 = vpack.c.bf16 %v1827, %v1823
    %v1834 = vpack.c.bf16 %v1829, %v1825
    %1835 = vmatprep.subr.bf16.mxu0 0
    %1836 = vmatpush1.bf16.msra.mxu0 0
    %1837 = vmatprep.subr.bf16.mxu0 0
    %1838 = vmatpush1.bf16.msra.mxu0 0
    %1839 = vmatprep.subr.bf16.mxu0 0
    %1840 = vmatpush1.bf16.msra.mxu0 0
    %1841 = vmatprep.subr.bf16.mxu0 0
    %1842 = vmatpush1.bf16.msra.mxu0 0
    %1843 = vmatprep.subr.bf16.mxu0 0
    %1844 = vmatpush1.bf16.msra.mxu0 0
    %1845 = vmatprep.subr.bf16.mxu0 0
    %1846 = vmatpush1.bf16.msra.mxu0 0
    %1847 = vmatprep.subr.bf16.mxu0 0
    %1848 = vmatpush1.bf16.msra.mxu0 0
    %1849 = vmatprep.subr.bf16.mxu0 %v1727
    %1850 = vmatpush1.bf16.msra.mxu0 %v1726
    %1851 = vmatprep.subr.bf16.mxu0 0
    %1852 = vmatpush2.bf16.msra.mxu0 0
    %1853 = vmatprep.subr.bf16.mxu0 0
    %1854 = vmatpush2.bf16.msra.mxu0 0
    %1855 = vmatprep.subr.bf16.mxu0 0
    %1856 = vmatpush2.bf16.msra.mxu0 0
    %1857 = vmatprep.subr.bf16.mxu0 0
    %1858 = vmatpush2.bf16.msra.mxu0 0
    %1859 = vmatprep.subr.bf16.mxu0 0
    %1860 = vmatpush2.bf16.msra.mxu0 0
    %1861 = vmatprep.subr.bf16.mxu0 0
    %1862 = vmatpush2.bf16.msra.mxu0 0
    %1863 = vmatprep.subr.bf16.mxu0 0
    %1864 = vmatpush2.bf16.msra.mxu0 0
    %1865 = vmatprep.subr.bf16.mxu0 0
    %1866 = vmatpush2.bf16.msra.mxu0 0
    %1867 = vmatprep.mubr.bf16.mxu0 0
    %1868 = vmatmul.mubr.bf16.gmra.mxu0 %v1743
    %v1869 = vpop.f32.mrf.mxu0
    %v1870 = vadd.f32 0.0, %v1869
    %v1871 = vpop.f32.mrf.mxu0
    %v1872 = vadd.f32 0.0, %v1871
    %v1873 = vpop.f32.mrf.mxu0
    %v1874 = vadd.f32 0.0, %v1873
    %v1875 = vpop.f32.mrf.mxu0
    %v1876 = vadd.f32 0.0, %v1875
    %1877 = vdwg.mxu0
    %1878 = vmatprep.subr.bf16.mxu0 0
    %1879 = vmatpush1.bf16.msra.mxu0 0
    %1880 = vmatprep.subr.bf16.mxu0 0
    %1881 = vmatpush1.bf16.msra.mxu0 0
    %1882 = vmatprep.subr.bf16.mxu0 0
    %1883 = vmatpush1.bf16.msra.mxu0 0
    %1884 = vmatprep.subr.bf16.mxu0 0
    %1885 = vmatpush1.bf16.msra.mxu0 0
    %1886 = vmatprep.subr.bf16.mxu0 0
    %1887 = vmatpush1.bf16.msra.mxu0 0
    %1888 = vmatprep.subr.bf16.mxu0 0
    %1889 = vmatpush1.bf16.msra.mxu0 0
    %1890 = vmatprep.subr.bf16.mxu0 0
    %1891 = vmatpush1.bf16.msra.mxu0 0
    %1892 = vmatprep.subr.bf16.mxu0 %v1729
    %1893 = vmatpush1.bf16.msra.mxu0 %v1728
    %1894 = vmatprep.subr.bf16.mxu0 0
    %1895 = vmatpush2.bf16.msra.mxu0 0
    %1896 = vmatprep.subr.bf16.mxu0 0
    %1897 = vmatpush2.bf16.msra.mxu0 0
    %1898 = vmatprep.subr.bf16.mxu0 0
    %1899 = vmatpush2.bf16.msra.mxu0 0
    %1900 = vmatprep.subr.bf16.mxu0 0
    %1901 = vmatpush2.bf16.msra.mxu0 0
    %1902 = vmatprep.subr.bf16.mxu0 0
    %1903 = vmatpush2.bf16.msra.mxu0 0
    %1904 = vmatprep.subr.bf16.mxu0 0
    %1905 = vmatpush2.bf16.msra.mxu0 0
    %1906 = vmatprep.subr.bf16.mxu0 0
    %1907 = vmatpush2.bf16.msra.mxu0 0
    %1908 = vmatprep.subr.bf16.mxu0 0
    %1909 = vmatpush2.bf16.msra.mxu0 0
    %1910 = vmatprep.mubr.bf16.mxu0 0
    %1911 = vmatmul.mubr.bf16.gmra.mxu0 %v1743
    %v1912 = vpop.f32.mrf.mxu0
    %v1913 = vadd.f32 0.0, %v1912
    %v1914 = vpop.f32.mrf.mxu0
    %v1915 = vadd.f32 0.0, %v1914
    %v1916 = vpop.f32.mrf.mxu0
    %v1917 = vadd.f32 0.0, %v1916
    %v1918 = vpop.f32.mrf.mxu0
    %v1919 = vadd.f32 0.0, %v1918
    %1920 = vdwg.mxu0
    %v1921 = vpack.c.bf16 %v1874, %v1870
    %v1922 = vpack.c.bf16 %v1876, %v1872
    %v1923 = vpack.c.bf16 %v1917, %v1913
    %v1924 = vpack.c.bf16 %v1919, %v1915
    %v1925 = vld [vmem:[#allocation6] sm:$0xff]
    %v1926 = vld [vmem:[#allocation6 + $0x8] sm:$0xff]
    %v1927 = vld [vmem:[#allocation6 + $0x10] sm:$0xff]
    %v1928 = vld [vmem:[#allocation6 + $0x18] sm:$0xff]
    %v1929 = vld [vmem:[#allocation6 + $0x20] sm:$0xff]
    %v1930 = vld [vmem:[#allocation6 + $0x28] sm:$0xff]
    %v1931 = vld [vmem:[#allocation6 + $0x30] sm:$0xff]
    %v1932 = vld [vmem:[#allocation6 + $0x38] sm:$0xff]
    %v1933 = vld [vmem:[#allocation6 + $0x40] sm:$0xff]
    %v1934 = vld [vmem:[#allocation6 + $0x48] sm:$0xff]
    %v1935 = vld [vmem:[#allocation6 + $0x50] sm:$0xff]
    %v1936 = vld [vmem:[#allocation6 + $0x58] sm:$0xff]
    %v1937 = vld [vmem:[#allocation6 + $0x60] sm:$0xff]
    %v1938 = vld [vmem:[#allocation6 + $0x68] sm:$0xff]
    %v1939 = vld [vmem:[#allocation6 + $0x70] sm:$0xff]
    %v1940 = vld [vmem:[#allocation6 + $0x78] sm:$0xff]
    %v1941 = vld [vmem:[#allocation6 + $0x80] sm:$0xff]
    %v1942 = vld [vmem:[#allocation6 + $0x88] sm:$0xff]
    %v1943 = vld [vmem:[#allocation6 + $0x90] sm:$0xff]
    %v1944 = vld [vmem:[#allocation6 + $0x98] sm:$0xff]
    %v1945 = vld [vmem:[#allocation6 + $0xa0] sm:$0xff]
    %v1946 = vld [vmem:[#allocation6 + $0xa8] sm:$0xff]
    %v1947 = vld [vmem:[#allocation6 + $0xb0] sm:$0xff]
    %v1948 = vld [vmem:[#allocation6 + $0xb8] sm:$0xff]
    %v1949 = vld [vmem:[#allocation6 + $0xc0] sm:$0xff]
    %v1950 = vld [vmem:[#allocation6 + $0xc8] sm:$0xff]
    %v1951 = vld [vmem:[#allocation6 + $0xd0] sm:$0xff]
    %v1952 = vld [vmem:[#allocation6 + $0xd8] sm:$0xff]
    %v1953 = vld [vmem:[#allocation6 + $0xe0] sm:$0xff]
    %v1954 = vld [vmem:[#allocation6 + $0xe8] sm:$0xff]
    %v1955 = vld [vmem:[#allocation6 + $0xf0] sm:$0xff]
    %v1956 = vld [vmem:[#allocation6 + $0xf8] sm:$0xff]
    %v1957 = vld [vmem:[#allocation6 + $0x100] sm:$0xff]
    %v1958 = vld [vmem:[#allocation6 + $0x108] sm:$0xff]
    %v1959 = vld [vmem:[#allocation6 + $0x110] sm:$0xff]
    %v1960 = vld [vmem:[#allocation6 + $0x118] sm:$0xff]
    %v1961 = vld [vmem:[#allocation6 + $0x120] sm:$0xff]
    %v1962 = vld [vmem:[#allocation6 + $0x128] sm:$0xff]
    %v1963 = vld [vmem:[#allocation6 + $0x130] sm:$0xff]
    %v1964 = vld [vmem:[#allocation6 + $0x138] sm:$0xff]
    %v1965 = vld [vmem:[#allocation6 + $0x140] sm:$0xff]
    %v1966 = vld [vmem:[#allocation6 + $0x148] sm:$0xff]
    %v1967 = vld [vmem:[#allocation6 + $0x150] sm:$0xff]
    %v1968 = vld [vmem:[#allocation6 + $0x158] sm:$0xff]
    %v1969 = vld [vmem:[#allocation6 + $0x160] sm:$0xff]
    %v1970 = vld [vmem:[#allocation6 + $0x168] sm:$0xff]
    %v1971 = vld [vmem:[#allocation6 + $0x170] sm:$0xff]
    %v1972 = vld [vmem:[#allocation6 + $0x178] sm:$0xff]
    %v1973 = vld [vmem:[#allocation6 + $0x180] sm:$0xff]
    %v1974 = vld [vmem:[#allocation6 + $0x188] sm:$0xff]
    %v1975 = vld [vmem:[#allocation6 + $0x190] sm:$0xff]
    %v1976 = vld [vmem:[#allocation6 + $0x198] sm:$0xff]
    %v1977 = vld [vmem:[#allocation6 + $0x1a0] sm:$0xff]
    %v1978 = vld [vmem:[#allocation6 + $0x1a8] sm:$0xff]
    %v1979 = vld [vmem:[#allocation6 + $0x1b0] sm:$0xff]
    %v1980 = vld [vmem:[#allocation6 + $0x1b8] sm:$0xff]
    %v1981 = vld [vmem:[#allocation6 + $0x1c0] sm:$0xff]
    %v1982 = vld [vmem:[#allocation6 + $0x1c8] sm:$0xff]
    %v1983 = vld [vmem:[#allocation6 + $0x1d0] sm:$0xff]
    %v1984 = vld [vmem:[#allocation6 + $0x1d8] sm:$0xff]
    %v1985 = vld [vmem:[#allocation6 + $0x1e0] sm:$0xff]
    %v1986 = vld [vmem:[#allocation6 + $0x1e8] sm:$0xff]
    %v1987 = vld [vmem:[#allocation6 + $0x1f0] sm:$0xff]
    %v1988 = vld [vmem:[#allocation6 + $0x1f8] sm:$0xff]
    %v1989 = vld [vmem:[#allocation6 + $0x200] sm:$0xff]
    %v1990 = vld [vmem:[#allocation6 + $0x208] sm:$0xff]
    %v1991 = vld [vmem:[#allocation6 + $0x210] sm:$0xff]
    %v1992 = vld [vmem:[#allocation6 + $0x218] sm:$0xff]
    %v1993 = vld [vmem:[#allocation6 + $0x220] sm:$0xff]
    %v1994 = vld [vmem:[#allocation6 + $0x228] sm:$0xff]
    %v1995 = vld [vmem:[#allocation6 + $0x230] sm:$0xff]
    %v1996 = vld [vmem:[#allocation6 + $0x238] sm:$0xff]
    %v1997 = vld [vmem:[#allocation6 + $0x240] sm:$0xff]
    %v1998 = vld [vmem:[#allocation6 + $0x248] sm:$0xff]
    %v1999 = vld [vmem:[#allocation6 + $0x250] sm:$0xff]
    %v2000 = vld [vmem:[#allocation6 + $0x258] sm:$0xff]
    %v2001 = vld [vmem:[#allocation6 + $0x260] sm:$0xff]
    %v2002 = vld [vmem:[#allocation6 + $0x268] sm:$0xff]
    %v2003 = vld [vmem:[#allocation6 + $0x270] sm:$0xff]
    %v2004 = vld [vmem:[#allocation6 + $0x278] sm:$0xff]
    %v2005 = vld [vmem:[#allocation6 + $0x280] sm:$0xff]
    %v2006 = vld [vmem:[#allocation6 + $0x288] sm:$0xff]
    %v2007 = vld [vmem:[#allocation6 + $0x290] sm:$0xff]
    %v2008 = vld [vmem:[#allocation6 + $0x298] sm:$0xff]
    %v2009 = vld [vmem:[#allocation6 + $0x2a0] sm:$0xff]
    %v2010 = vld [vmem:[#allocation6 + $0x2a8] sm:$0xff]
    %v2011 = vld [vmem:[#allocation6 + $0x2b0] sm:$0xff]
    %v2012 = vld [vmem:[#allocation6 + $0x2b8] sm:$0xff]
    %v2013 = vld [vmem:[#allocation6 + $0x2c0] sm:$0xff]
    %v2014 = vld [vmem:[#allocation6 + $0x2c8] sm:$0xff]
    %v2015 = vld [vmem:[#allocation6 + $0x2d0] sm:$0xff]
    %v2016 = vld [vmem:[#allocation6 + $0x2d8] sm:$0xff]
    %v2017 = vld [vmem:[#allocation6 + $0x2e0] sm:$0xff]
    %v2018 = vld [vmem:[#allocation6 + $0x2e8] sm:$0xff]
    %v2019 = vld [vmem:[#allocation6 + $0x2f0] sm:$0xff]
    %v2020 = vld [vmem:[#allocation6 + $0x2f8] sm:$0xff]
    %v2021 = vld [vmem:[#allocation6 + $0x300] sm:$0xff]
    %v2022 = vld [vmem:[#allocation6 + $0x308] sm:$0xff]
    %v2023 = vld [vmem:[#allocation6 + $0x310] sm:$0xff]
    %v2024 = vld [vmem:[#allocation6 + $0x318] sm:$0xff]
    %v2025 = vld [vmem:[#allocation6 + $0x320] sm:$0xff]
    %v2026 = vld [vmem:[#allocation6 + $0x328] sm:$0xff]
    %v2027 = vld [vmem:[#allocation6 + $0x330] sm:$0xff]
    %v2028 = vld [vmem:[#allocation6 + $0x338] sm:$0xff]
    %v2029 = vld [vmem:[#allocation6 + $0x340] sm:$0xff]
    %v2030 = vld [vmem:[#allocation6 + $0x348] sm:$0xff]
    %v2031 = vld [vmem:[#allocation6 + $0x350] sm:$0xff]
    %v2032 = vld [vmem:[#allocation6 + $0x358] sm:$0xff]
    %v2033 = vld [vmem:[#allocation6 + $0x360] sm:$0xff]
    %v2034 = vld [vmem:[#allocation6 + $0x368] sm:$0xff]
    %v2035 = vld [vmem:[#allocation6 + $0x370] sm:$0xff]
    %v2036 = vld [vmem:[#allocation6 + $0x378] sm:$0xff]
    %v2037 = vld [vmem:[#allocation6 + $0x380] sm:$0xff]
    %v2038 = vld [vmem:[#allocation6 + $0x388] sm:$0xff]
    %v2039 = vld [vmem:[#allocation6 + $0x390] sm:$0xff]
    %v2040 = vld [vmem:[#allocation6 + $0x398] sm:$0xff]
    %v2041 = vld [vmem:[#allocation6 + $0x3a0] sm:$0xff]
    %v2042 = vld [vmem:[#allocation6 + $0x3a8] sm:$0xff]
    %v2043 = vld [vmem:[#allocation6 + $0x3b0] sm:$0xff]
    %v2044 = vld [vmem:[#allocation6 + $0x3b8] sm:$0xff]
    %v2045 = vld [vmem:[#allocation6 + $0x3c0] sm:$0xff]
    %v2046 = vld [vmem:[#allocation6 + $0x3c8] sm:$0xff]
    %v2047 = vld [vmem:[#allocation6 + $0x3d0] sm:$0xff]
    %v2048 = vld [vmem:[#allocation6 + $0x3d8] sm:$0xff]
    %v2049 = vld [vmem:[#allocation6 + $0x3e0] sm:$0xff]
    %v2050 = vld [vmem:[#allocation6 + $0x3e8] sm:$0xff]
    %v2051 = vld [vmem:[#allocation6 + $0x3f0] sm:$0xff]
    %v2052 = vld [vmem:[#allocation6 + $0x3f8] sm:$0xff]
    %v2053 = vld [vmem:[#allocation6 + $0x400] sm:$0xff]
    %v2054 = vld [vmem:[#allocation6 + $0x408] sm:$0xff]
    %v2055 = vld [vmem:[#allocation6 + $0x410] sm:$0xff]
    %v2056 = vld [vmem:[#allocation6 + $0x418] sm:$0xff]
    %v2057 = vld [vmem:[#allocation6 + $0x420] sm:$0xff]
    %v2058 = vld [vmem:[#allocation6 + $0x428] sm:$0xff]
    %v2059 = vld [vmem:[#allocation6 + $0x430] sm:$0xff]
    %v2060 = vld [vmem:[#allocation6 + $0x438] sm:$0xff]
    %v2061 = vld [vmem:[#allocation6 + $0x440] sm:$0xff]
    %v2062 = vld [vmem:[#allocation6 + $0x448] sm:$0xff]
    %v2063 = vld [vmem:[#allocation6 + $0x450] sm:$0xff]
    %v2064 = vld [vmem:[#allocation6 + $0x458] sm:$0xff]
    %v2065 = vld [vmem:[#allocation6 + $0x460] sm:$0xff]
    %v2066 = vld [vmem:[#allocation6 + $0x468] sm:$0xff]
    %v2067 = vld [vmem:[#allocation6 + $0x470] sm:$0xff]
    %v2068 = vld [vmem:[#allocation6 + $0x478] sm:$0xff]
    %v2069 = vld [vmem:[#allocation6 + $0x480] sm:$0xff]
    %v2070 = vld [vmem:[#allocation6 + $0x488] sm:$0xff]
    %v2071 = vld [vmem:[#allocation6 + $0x490] sm:$0xff]
    %v2072 = vld [vmem:[#allocation6 + $0x498] sm:$0xff]
    %v2073 = vld [vmem:[#allocation6 + $0x4a0] sm:$0xff]
    %v2074 = vld [vmem:[#allocation6 + $0x4a8] sm:$0xff]
    %v2075 = vld [vmem:[#allocation6 + $0x4b0] sm:$0xff]
    %v2076 = vld [vmem:[#allocation6 + $0x4b8] sm:$0xff]
    %v2077 = vld [vmem:[#allocation6 + $0x4c0] sm:$0xff]
    %v2078 = vld [vmem:[#allocation6 + $0x4c8] sm:$0xff]
    %v2079 = vld [vmem:[#allocation6 + $0x4d0] sm:$0xff]
    %v2080 = vld [vmem:[#allocation6 + $0x4d8] sm:$0xff]
    %v2081 = vld [vmem:[#allocation6 + $0x4e0] sm:$0xff]
    %v2082 = vld [vmem:[#allocation6 + $0x4e8] sm:$0xff]
    %v2083 = vld [vmem:[#allocation6 + $0x4f0] sm:$0xff]
    %v2084 = vld [vmem:[#allocation6 + $0x4f8] sm:$0xff]
    %v2085 = vld [vmem:[#allocation6 + $0x500] sm:$0xff]
    %v2086 = vld [vmem:[#allocation6 + $0x508] sm:$0xff]
    %v2087 = vld [vmem:[#allocation6 + $0x510] sm:$0xff]
    %v2088 = vld [vmem:[#allocation6 + $0x518] sm:$0xff]
    %v2089 = vld [vmem:[#allocation6 + $0x520] sm:$0xff]
    %v2090 = vld [vmem:[#allocation6 + $0x528] sm:$0xff]
    %v2091 = vld [vmem:[#allocation6 + $0x530] sm:$0xff]
    %v2092 = vld [vmem:[#allocation6 + $0x538] sm:$0xff]
    %v2093 = vld [vmem:[#allocation6 + $0x540] sm:$0xff]
    %v2094 = vld [vmem:[#allocation6 + $0x548] sm:$0xff]
    %v2095 = vld [vmem:[#allocation6 + $0x550] sm:$0xff]
    %v2096 = vld [vmem:[#allocation6 + $0x558] sm:$0xff]
    %v2097 = vld [vmem:[#allocation6 + $0x560] sm:$0xff]
    %v2098 = vld [vmem:[#allocation6 + $0x568] sm:$0xff]
    %v2099 = vld [vmem:[#allocation6 + $0x570] sm:$0xff]
    %v2100 = vld [vmem:[#allocation6 + $0x578] sm:$0xff]
    %v2101 = vld [vmem:[#allocation6 + $0x580] sm:$0xff]
    %v2102 = vld [vmem:[#allocation6 + $0x588] sm:$0xff]
    %v2103 = vld [vmem:[#allocation6 + $0x590] sm:$0xff]
    %v2104 = vld [vmem:[#allocation6 + $0x598] sm:$0xff]
    %v2105 = vld [vmem:[#allocation6 + $0x5a0] sm:$0xff]
    %v2106 = vld [vmem:[#allocation6 + $0x5a8] sm:$0xff]
    %v2107 = vld [vmem:[#allocation6 + $0x5b0] sm:$0xff]
    %v2108 = vld [vmem:[#allocation6 + $0x5b8] sm:$0xff]
    %v2109 = vld [vmem:[#allocation6 + $0x5c0] sm:$0xff]
    %v2110 = vld [vmem:[#allocation6 + $0x5c8] sm:$0xff]
    %v2111 = vld [vmem:[#allocation6 + $0x5d0] sm:$0xff]
    %v2112 = vld [vmem:[#allocation6 + $0x5d8] sm:$0xff]
    %v2113 = vld [vmem:[#allocation6 + $0x5e0] sm:$0xff]
    %v2114 = vld [vmem:[#allocation6 + $0x5e8] sm:$0xff]
    %v2115 = vld [vmem:[#allocation6 + $0x5f0] sm:$0xff]
    %v2116 = vld [vmem:[#allocation6 + $0x5f8] sm:$0xff]
    %v2117 = vld [vmem:[#allocation6 + $0x600] sm:$0xff]
    %v2118 = vld [vmem:[#allocation6 + $0x608] sm:$0xff]
    %v2119 = vld [vmem:[#allocation6 + $0x610] sm:$0xff]
    %v2120 = vld [vmem:[#allocation6 + $0x618] sm:$0xff]
    %v2121 = vld [vmem:[#allocation6 + $0x620] sm:$0xff]
    %v2122 = vld [vmem:[#allocation6 + $0x628] sm:$0xff]
    %v2123 = vld [vmem:[#allocation6 + $0x630] sm:$0xff]
    %v2124 = vld [vmem:[#allocation6 + $0x638] sm:$0xff]
    %v2125 = vld [vmem:[#allocation6 + $0x640] sm:$0xff]
    %v2126 = vld [vmem:[#allocation6 + $0x648] sm:$0xff]
    %v2127 = vld [vmem:[#allocation6 + $0x650] sm:$0xff]
    %v2128 = vld [vmem:[#allocation6 + $0x658] sm:$0xff]
    %v2129 = vld [vmem:[#allocation6 + $0x660] sm:$0xff]
    %v2130 = vld [vmem:[#allocation6 + $0x668] sm:$0xff]
    %v2131 = vld [vmem:[#allocation6 + $0x670] sm:$0xff]
    %v2132 = vld [vmem:[#allocation6 + $0x678] sm:$0xff]
    %v2133 = vld [vmem:[#allocation6 + $0x680] sm:$0xff]
    %v2134 = vld [vmem:[#allocation6 + $0x688] sm:$0xff]
    %v2135 = vld [vmem:[#allocation6 + $0x690] sm:$0xff]
    %v2136 = vld [vmem:[#allocation6 + $0x698] sm:$0xff]
    %v2137 = vld [vmem:[#allocation6 + $0x6a0] sm:$0xff]
    %v2138 = vld [vmem:[#allocation6 + $0x6a8] sm:$0xff]
    %v2139 = vld [vmem:[#allocation6 + $0x6b0] sm:$0xff]
    %v2140 = vld [vmem:[#allocation6 + $0x6b8] sm:$0xff]
    %v2141 = vld [vmem:[#allocation6 + $0x6c0] sm:$0xff]
    %v2142 = vld [vmem:[#allocation6 + $0x6c8] sm:$0xff]
    %v2143 = vld [vmem:[#allocation6 + $0x6d0] sm:$0xff]
    %v2144 = vld [vmem:[#allocation6 + $0x6d8] sm:$0xff]
    %v2145 = vld [vmem:[#allocation6 + $0x6e0] sm:$0xff]
    %v2146 = vld [vmem:[#allocation6 + $0x6e8] sm:$0xff]
    %v2147 = vld [vmem:[#allocation6 + $0x6f0] sm:$0xff]
    %v2148 = vld [vmem:[#allocation6 + $0x6f8] sm:$0xff]
    %v2149 = vld [vmem:[#allocation6 + $0x700] sm:$0xff]
    %v2150 = vld [vmem:[#allocation6 + $0x708] sm:$0xff]
    %v2151 = vld [vmem:[#allocation6 + $0x710] sm:$0xff]
    %v2152 = vld [vmem:[#allocation6 + $0x718] sm:$0xff]
    %v2153 = vld [vmem:[#allocation6 + $0x720] sm:$0xff]
    %v2154 = vld [vmem:[#allocation6 + $0x728] sm:$0xff]
    %v2155 = vld [vmem:[#allocation6 + $0x730] sm:$0xff]
    %v2156 = vld [vmem:[#allocation6 + $0x738] sm:$0xff]
    %v2157 = vld [vmem:[#allocation6 + $0x740] sm:$0xff]
    %v2158 = vld [vmem:[#allocation6 + $0x748] sm:$0xff]
    %v2159 = vld [vmem:[#allocation6 + $0x750] sm:$0xff]
    %v2160 = vld [vmem:[#allocation6 + $0x758] sm:$0xff]
    %v2161 = vld [vmem:[#allocation6 + $0x760] sm:$0xff]
    %v2162 = vld [vmem:[#allocation6 + $0x768] sm:$0xff]
    %v2163 = vld [vmem:[#allocation6 + $0x770] sm:$0xff]
    %v2164 = vld [vmem:[#allocation6 + $0x778] sm:$0xff]
    %v2165 = vld [vmem:[#allocation6 + $0x780] sm:$0xff]
    %v2166 = vld [vmem:[#allocation6 + $0x788] sm:$0xff]
    %v2167 = vld [vmem:[#allocation6 + $0x790] sm:$0xff]
    %v2168 = vld [vmem:[#allocation6 + $0x798] sm:$0xff]
    %v2169 = vld [vmem:[#allocation6 + $0x7a0] sm:$0xff]
    %v2170 = vld [vmem:[#allocation6 + $0x7a8] sm:$0xff]
    %v2171 = vld [vmem:[#allocation6 + $0x7b0] sm:$0xff]
    %v2172 = vld [vmem:[#allocation6 + $0x7b8] sm:$0xff]
    %v2173 = vld [vmem:[#allocation6 + $0x7c0] sm:$0xff]
    %v2174 = vld [vmem:[#allocation6 + $0x7c8] sm:$0xff]
    %v2175 = vld [vmem:[#allocation6 + $0x7d0] sm:$0xff]
    %v2176 = vld [vmem:[#allocation6 + $0x7d8] sm:$0xff]
    %v2177 = vld [vmem:[#allocation6 + $0x7e0] sm:$0xff]
    %v2178 = vld [vmem:[#allocation6 + $0x7e8] sm:$0xff]
    %v2179 = vld [vmem:[#allocation6 + $0x7f0] sm:$0xff]
    %v2180 = vld [vmem:[#allocation6 + $0x7f8] sm:$0xff]
    %v2181 = vld [vmem:[#allocation7] sm:$0xff]
    %v2182 = vld [vmem:[#allocation7 + $0x8] sm:$0xff]
    %v2183 = vld [vmem:[#allocation7 + $0x10] sm:$0xff]
    %v2184 = vld [vmem:[#allocation7 + $0x18] sm:$0xff]
    %v2185 = vld [vmem:[#allocation7 + $0x20] sm:$0xff]
    %v2186 = vld [vmem:[#allocation7 + $0x28] sm:$0xff]
    %v2187 = vld [vmem:[#allocation7 + $0x30] sm:$0xff]
    %v2188 = vld [vmem:[#allocation7 + $0x38] sm:$0xff]
    %v2189 = vld [vmem:[#allocation7 + $0x40] sm:$0xff]
    %v2190 = vld [vmem:[#allocation7 + $0x48] sm:$0xff]
    %v2191 = vld [vmem:[#allocation7 + $0x50] sm:$0xff]
    %v2192 = vld [vmem:[#allocation7 + $0x58] sm:$0xff]
    %v2193 = vld [vmem:[#allocation7 + $0x60] sm:$0xff]
    %v2194 = vld [vmem:[#allocation7 + $0x68] sm:$0xff]
    %v2195 = vld [vmem:[#allocation7 + $0x70] sm:$0xff]
    %v2196 = vld [vmem:[#allocation7 + $0x78] sm:$0xff]
    %v2197 = vld [vmem:[#allocation7 + $0x80] sm:$0xff]
    %v2198 = vld [vmem:[#allocation7 + $0x88] sm:$0xff]
    %v2199 = vld [vmem:[#allocation7 + $0x90] sm:$0xff]
    %v2200 = vld [vmem:[#allocation7 + $0x98] sm:$0xff]
    %v2201 = vld [vmem:[#allocation7 + $0xa0] sm:$0xff]
    %v2202 = vld [vmem:[#allocation7 + $0xa8] sm:$0xff]
    %v2203 = vld [vmem:[#allocation7 + $0xb0] sm:$0xff]
    %v2204 = vld [vmem:[#allocation7 + $0xb8] sm:$0xff]
    %v2205 = vld [vmem:[#allocation7 + $0xc0] sm:$0xff]
    %v2206 = vld [vmem:[#allocation7 + $0xc8] sm:$0xff]
    %v2207 = vld [vmem:[#allocation7 + $0xd0] sm:$0xff]
    %v2208 = vld [vmem:[#allocation7 + $0xd8] sm:$0xff]
    %v2209 = vld [vmem:[#allocation7 + $0xe0] sm:$0xff]
    %v2210 = vld [vmem:[#allocation7 + $0xe8] sm:$0xff]
    %v2211 = vld [vmem:[#allocation7 + $0xf0] sm:$0xff]
    %v2212 = vld [vmem:[#allocation7 + $0xf8] sm:$0xff]
    %v2213 = vld [vmem:[#allocation7 + $0x100] sm:$0xff]
    %v2214 = vld [vmem:[#allocation7 + $0x108] sm:$0xff]
    %v2215 = vld [vmem:[#allocation7 + $0x110] sm:$0xff]
    %v2216 = vld [vmem:[#allocation7 + $0x118] sm:$0xff]
    %v2217 = vld [vmem:[#allocation7 + $0x120] sm:$0xff]
    %v2218 = vld [vmem:[#allocation7 + $0x128] sm:$0xff]
    %v2219 = vld [vmem:[#allocation7 + $0x130] sm:$0xff]
    %v2220 = vld [vmem:[#allocation7 + $0x138] sm:$0xff]
    %v2221 = vld [vmem:[#allocation7 + $0x140] sm:$0xff]
    %v2222 = vld [vmem:[#allocation7 + $0x148] sm:$0xff]
    %v2223 = vld [vmem:[#allocation7 + $0x150] sm:$0xff]
    %v2224 = vld [vmem:[#allocation7 + $0x158] sm:$0xff]
    %v2225 = vld [vmem:[#allocation7 + $0x160] sm:$0xff]
    %v2226 = vld [vmem:[#allocation7 + $0x168] sm:$0xff]
    %v2227 = vld [vmem:[#allocation7 + $0x170] sm:$0xff]
    %v2228 = vld [vmem:[#allocation7 + $0x178] sm:$0xff]
    %v2229 = vld [vmem:[#allocation7 + $0x180] sm:$0xff]
    %v2230 = vld [vmem:[#allocation7 + $0x188] sm:$0xff]
    %v2231 = vld [vmem:[#allocation7 + $0x190] sm:$0xff]
    %v2232 = vld [vmem:[#allocation7 + $0x198] sm:$0xff]
    %v2233 = vld [vmem:[#allocation7 + $0x1a0] sm:$0xff]
    %v2234 = vld [vmem:[#allocation7 + $0x1a8] sm:$0xff]
    %v2235 = vld [vmem:[#allocation7 + $0x1b0] sm:$0xff]
    %v2236 = vld [vmem:[#allocation7 + $0x1b8] sm:$0xff]
    %v2237 = vld [vmem:[#allocation7 + $0x1c0] sm:$0xff]
    %v2238 = vld [vmem:[#allocation7 + $0x1c8] sm:$0xff]
    %v2239 = vld [vmem:[#allocation7 + $0x1d0] sm:$0xff]
    %v2240 = vld [vmem:[#allocation7 + $0x1d8] sm:$0xff]
    %v2241 = vld [vmem:[#allocation7 + $0x1e0] sm:$0xff]
    %v2242 = vld [vmem:[#allocation7 + $0x1e8] sm:$0xff]
    %v2243 = vld [vmem:[#allocation7 + $0x1f0] sm:$0xff]
    %v2244 = vld [vmem:[#allocation7 + $0x1f8] sm:$0xff]
    %v2245 = vld [vmem:[#allocation7 + $0x200] sm:$0xff]
    %v2246 = vld [vmem:[#allocation7 + $0x208] sm:$0xff]
    %v2247 = vld [vmem:[#allocation7 + $0x210] sm:$0xff]
    %v2248 = vld [vmem:[#allocation7 + $0x218] sm:$0xff]
    %v2249 = vld [vmem:[#allocation7 + $0x220] sm:$0xff]
    %v2250 = vld [vmem:[#allocation7 + $0x228] sm:$0xff]
    %v2251 = vld [vmem:[#allocation7 + $0x230] sm:$0xff]
    %v2252 = vld [vmem:[#allocation7 + $0x238] sm:$0xff]
    %v2253 = vld [vmem:[#allocation7 + $0x240] sm:$0xff]
    %v2254 = vld [vmem:[#allocation7 + $0x248] sm:$0xff]
    %v2255 = vld [vmem:[#allocation7 + $0x250] sm:$0xff]
    %v2256 = vld [vmem:[#allocation7 + $0x258] sm:$0xff]
    %v2257 = vld [vmem:[#allocation7 + $0x260] sm:$0xff]
    %v2258 = vld [vmem:[#allocation7 + $0x268] sm:$0xff]
    %v2259 = vld [vmem:[#allocation7 + $0x270] sm:$0xff]
    %v2260 = vld [vmem:[#allocation7 + $0x278] sm:$0xff]
    %v2261 = vld [vmem:[#allocation7 + $0x280] sm:$0xff]
    %v2262 = vld [vmem:[#allocation7 + $0x288] sm:$0xff]
    %v2263 = vld [vmem:[#allocation7 + $0x290] sm:$0xff]
    %v2264 = vld [vmem:[#allocation7 + $0x298] sm:$0xff]
    %v2265 = vld [vmem:[#allocation7 + $0x2a0] sm:$0xff]
    %v2266 = vld [vmem:[#allocation7 + $0x2a8] sm:$0xff]
    %v2267 = vld [vmem:[#allocation7 + $0x2b0] sm:$0xff]
    %v2268 = vld [vmem:[#allocation7 + $0x2b8] sm:$0xff]
    %v2269 = vld [vmem:[#allocation7 + $0x2c0] sm:$0xff]
    %v2270 = vld [vmem:[#allocation7 + $0x2c8] sm:$0xff]
    %v2271 = vld [vmem:[#allocation7 + $0x2d0] sm:$0xff]
    %v2272 = vld [vmem:[#allocation7 + $0x2d8] sm:$0xff]
    %v2273 = vld [vmem:[#allocation7 + $0x2e0] sm:$0xff]
    %v2274 = vld [vmem:[#allocation7 + $0x2e8] sm:$0xff]
    %v2275 = vld [vmem:[#allocation7 + $0x2f0] sm:$0xff]
    %v2276 = vld [vmem:[#allocation7 + $0x2f8] sm:$0xff]
    %v2277 = vld [vmem:[#allocation7 + $0x300] sm:$0xff]
    %v2278 = vld [vmem:[#allocation7 + $0x308] sm:$0xff]
    %v2279 = vld [vmem:[#allocation7 + $0x310] sm:$0xff]
    %v2280 = vld [vmem:[#allocation7 + $0x318] sm:$0xff]
    %v2281 = vld [vmem:[#allocation7 + $0x320] sm:$0xff]
    %v2282 = vld [vmem:[#allocation7 + $0x328] sm:$0xff]
    %v2283 = vld [vmem:[#allocation7 + $0x330] sm:$0xff]
    %v2284 = vld [vmem:[#allocation7 + $0x338] sm:$0xff]
    %v2285 = vld [vmem:[#allocation7 + $0x340] sm:$0xff]
    %v2286 = vld [vmem:[#allocation7 + $0x348] sm:$0xff]
    %v2287 = vld [vmem:[#allocation7 + $0x350] sm:$0xff]
    %v2288 = vld [vmem:[#allocation7 + $0x358] sm:$0xff]
    %v2289 = vld [vmem:[#allocation7 + $0x360] sm:$0xff]
    %v2290 = vld [vmem:[#allocation7 + $0x368] sm:$0xff]
    %v2291 = vld [vmem:[#allocation7 + $0x370] sm:$0xff]
    %v2292 = vld [vmem:[#allocation7 + $0x378] sm:$0xff]
    %v2293 = vld [vmem:[#allocation7 + $0x380] sm:$0xff]
    %v2294 = vld [vmem:[#allocation7 + $0x388] sm:$0xff]
    %v2295 = vld [vmem:[#allocation7 + $0x390] sm:$0xff]
    %v2296 = vld [vmem:[#allocation7 + $0x398] sm:$0xff]
    %v2297 = vld [vmem:[#allocation7 + $0x3a0] sm:$0xff]
    %v2298 = vld [vmem:[#allocation7 + $0x3a8] sm:$0xff]
    %v2299 = vld [vmem:[#allocation7 + $0x3b0] sm:$0xff]
    %v2300 = vld [vmem:[#allocation7 + $0x3b8] sm:$0xff]
    %v2301 = vld [vmem:[#allocation7 + $0x3c0] sm:$0xff]
    %v2302 = vld [vmem:[#allocation7 + $0x3c8] sm:$0xff]
    %v2303 = vld [vmem:[#allocation7 + $0x3d0] sm:$0xff]
    %v2304 = vld [vmem:[#allocation7 + $0x3d8] sm:$0xff]
    %v2305 = vld [vmem:[#allocation7 + $0x3e0] sm:$0xff]
    %v2306 = vld [vmem:[#allocation7 + $0x3e8] sm:$0xff]
    %v2307 = vld [vmem:[#allocation7 + $0x3f0] sm:$0xff]
    %v2308 = vld [vmem:[#allocation7 + $0x3f8] sm:$0xff]
    %v2309 = vld [vmem:[#allocation7 + $0x400] sm:$0xff]
    %v2310 = vld [vmem:[#allocation7 + $0x408] sm:$0xff]
    %v2311 = vld [vmem:[#allocation7 + $0x410] sm:$0xff]
    %v2312 = vld [vmem:[#allocation7 + $0x418] sm:$0xff]
    %v2313 = vld [vmem:[#allocation7 + $0x420] sm:$0xff]
    %v2314 = vld [vmem:[#allocation7 + $0x428] sm:$0xff]
    %v2315 = vld [vmem:[#allocation7 + $0x430] sm:$0xff]
    %v2316 = vld [vmem:[#allocation7 + $0x438] sm:$0xff]
    %v2317 = vld [vmem:[#allocation7 + $0x440] sm:$0xff]
    %v2318 = vld [vmem:[#allocation7 + $0x448] sm:$0xff]
    %v2319 = vld [vmem:[#allocation7 + $0x450] sm:$0xff]
    %v2320 = vld [vmem:[#allocation7 + $0x458] sm:$0xff]
    %v2321 = vld [vmem:[#allocation7 + $0x460] sm:$0xff]
    %v2322 = vld [vmem:[#allocation7 + $0x468] sm:$0xff]
    %v2323 = vld [vmem:[#allocation7 + $0x470] sm:$0xff]
    %v2324 = vld [vmem:[#allocation7 + $0x478] sm:$0xff]
    %v2325 = vld [vmem:[#allocation7 + $0x480] sm:$0xff]
    %v2326 = vld [vmem:[#allocation7 + $0x488] sm:$0xff]
    %v2327 = vld [vmem:[#allocation7 + $0x490] sm:$0xff]
    %v2328 = vld [vmem:[#allocation7 + $0x498] sm:$0xff]
    %v2329 = vld [vmem:[#allocation7 + $0x4a0] sm:$0xff]
    %v2330 = vld [vmem:[#allocation7 + $0x4a8] sm:$0xff]
    %v2331 = vld [vmem:[#allocation7 + $0x4b0] sm:$0xff]
    %v2332 = vld [vmem:[#allocation7 + $0x4b8] sm:$0xff]
    %v2333 = vld [vmem:[#allocation7 + $0x4c0] sm:$0xff]
    %v2334 = vld [vmem:[#allocation7 + $0x4c8] sm:$0xff]
    %v2335 = vld [vmem:[#allocation7 + $0x4d0] sm:$0xff]
    %v2336 = vld [vmem:[#allocation7 + $0x4d8] sm:$0xff]
    %v2337 = vld [vmem:[#allocation7 + $0x4e0] sm:$0xff]
    %v2338 = vld [vmem:[#allocation7 + $0x4e8] sm:$0xff]
    %v2339 = vld [vmem:[#allocation7 + $0x4f0] sm:$0xff]
    %v2340 = vld [vmem:[#allocation7 + $0x4f8] sm:$0xff]
    %v2341 = vld [vmem:[#allocation7 + $0x500] sm:$0xff]
    %v2342 = vld [vmem:[#allocation7 + $0x508] sm:$0xff]
    %v2343 = vld [vmem:[#allocation7 + $0x510] sm:$0xff]
    %v2344 = vld [vmem:[#allocation7 + $0x518] sm:$0xff]
    %v2345 = vld [vmem:[#allocation7 + $0x520] sm:$0xff]
    %v2346 = vld [vmem:[#allocation7 + $0x528] sm:$0xff]
    %v2347 = vld [vmem:[#allocation7 + $0x530] sm:$0xff]
    %v2348 = vld [vmem:[#allocation7 + $0x538] sm:$0xff]
    %v2349 = vld [vmem:[#allocation7 + $0x540] sm:$0xff]
    %v2350 = vld [vmem:[#allocation7 + $0x548] sm:$0xff]
    %v2351 = vld [vmem:[#allocation7 + $0x550] sm:$0xff]
    %v2352 = vld [vmem:[#allocation7 + $0x558] sm:$0xff]
    %v2353 = vld [vmem:[#allocation7 + $0x560] sm:$0xff]
    %v2354 = vld [vmem:[#allocation7 + $0x568] sm:$0xff]
    %v2355 = vld [vmem:[#allocation7 + $0x570] sm:$0xff]
    %v2356 = vld [vmem:[#allocation7 + $0x578] sm:$0xff]
    %v2357 = vld [vmem:[#allocation7 + $0x580] sm:$0xff]
    %v2358 = vld [vmem:[#allocation7 + $0x588] sm:$0xff]
    %v2359 = vld [vmem:[#allocation7 + $0x590] sm:$0xff]
    %v2360 = vld [vmem:[#allocation7 + $0x598] sm:$0xff]
    %v2361 = vld [vmem:[#allocation7 + $0x5a0] sm:$0xff]
    %v2362 = vld [vmem:[#allocation7 + $0x5a8] sm:$0xff]
    %v2363 = vld [vmem:[#allocation7 + $0x5b0] sm:$0xff]
    %v2364 = vld [vmem:[#allocation7 + $0x5b8] sm:$0xff]
    %v2365 = vld [vmem:[#allocation7 + $0x5c0] sm:$0xff]
    %v2366 = vld [vmem:[#allocation7 + $0x5c8] sm:$0xff]
    %v2367 = vld [vmem:[#allocation7 + $0x5d0] sm:$0xff]
    %v2368 = vld [vmem:[#allocation7 + $0x5d8] sm:$0xff]
    %v2369 = vld [vmem:[#allocation7 + $0x5e0] sm:$0xff]
    %v2370 = vld [vmem:[#allocation7 + $0x5e8] sm:$0xff]
    %v2371 = vld [vmem:[#allocation7 + $0x5f0] sm:$0xff]
    %v2372 = vld [vmem:[#allocation7 + $0x5f8] sm:$0xff]
    %v2373 = vld [vmem:[#allocation7 + $0x600] sm:$0xff]
    %v2374 = vld [vmem:[#allocation7 + $0x608] sm:$0xff]
    %v2375 = vld [vmem:[#allocation7 + $0x610] sm:$0xff]
    %v2376 = vld [vmem:[#allocation7 + $0x618] sm:$0xff]
    %v2377 = vld [vmem:[#allocation7 + $0x620] sm:$0xff]
    %v2378 = vld [vmem:[#allocation7 + $0x628] sm:$0xff]
    %v2379 = vld [vmem:[#allocation7 + $0x630] sm:$0xff]
    %v2380 = vld [vmem:[#allocation7 + $0x638] sm:$0xff]
    %v2381 = vld [vmem:[#allocation7 + $0x640] sm:$0xff]
    %v2382 = vld [vmem:[#allocation7 + $0x648] sm:$0xff]
    %v2383 = vld [vmem:[#allocation7 + $0x650] sm:$0xff]
    %v2384 = vld [vmem:[#allocation7 + $0x658] sm:$0xff]
    %v2385 = vld [vmem:[#allocation7 + $0x660] sm:$0xff]
    %v2386 = vld [vmem:[#allocation7 + $0x668] sm:$0xff]
    %v2387 = vld [vmem:[#allocation7 + $0x670] sm:$0xff]
    %v2388 = vld [vmem:[#allocation7 + $0x678] sm:$0xff]
    %v2389 = vld [vmem:[#allocation7 + $0x680] sm:$0xff]
    %v2390 = vld [vmem:[#allocation7 + $0x688] sm:$0xff]
    %v2391 = vld [vmem:[#allocation7 + $0x690] sm:$0xff]
    %v2392 = vld [vmem:[#allocation7 + $0x698] sm:$0xff]
    %v2393 = vld [vmem:[#allocation7 + $0x6a0] sm:$0xff]
    %v2394 = vld [vmem:[#allocation7 + $0x6a8] sm:$0xff]
    %v2395 = vld [vmem:[#allocation7 + $0x6b0] sm:$0xff]
    %v2396 = vld [vmem:[#allocation7 + $0x6b8] sm:$0xff]
    %v2397 = vld [vmem:[#allocation7 + $0x6c0] sm:$0xff]
    %v2398 = vld [vmem:[#allocation7 + $0x6c8] sm:$0xff]
    %v2399 = vld [vmem:[#allocation7 + $0x6d0] sm:$0xff]
    %v2400 = vld [vmem:[#allocation7 + $0x6d8] sm:$0xff]
    %v2401 = vld [vmem:[#allocation7 + $0x6e0] sm:$0xff]
    %v2402 = vld [vmem:[#allocation7 + $0x6e8] sm:$0xff]
    %v2403 = vld [vmem:[#allocation7 + $0x6f0] sm:$0xff]
    %v2404 = vld [vmem:[#allocation7 + $0x6f8] sm:$0xff]
    %v2405 = vld [vmem:[#allocation7 + $0x700] sm:$0xff]
    %v2406 = vld [vmem:[#allocation7 + $0x708] sm:$0xff]
    %v2407 = vld [vmem:[#allocation7 + $0x710] sm:$0xff]
    %v2408 = vld [vmem:[#allocation7 + $0x718] sm:$0xff]
    %v2409 = vld [vmem:[#allocation7 + $0x720] sm:$0xff]
    %v2410 = vld [vmem:[#allocation7 + $0x728] sm:$0xff]
    %v2411 = vld [vmem:[#allocation7 + $0x730] sm:$0xff]
    %v2412 = vld [vmem:[#allocation7 + $0x738] sm:$0xff]
    %v2413 = vld [vmem:[#allocation7 + $0x740] sm:$0xff]
    %v2414 = vld [vmem:[#allocation7 + $0x748] sm:$0xff]
    %v2415 = vld [vmem:[#allocation7 + $0x750] sm:$0xff]
    %v2416 = vld [vmem:[#allocation7 + $0x758] sm:$0xff]
    %v2417 = vld [vmem:[#allocation7 + $0x760] sm:$0xff]
    %v2418 = vld [vmem:[#allocation7 + $0x768] sm:$0xff]
    %v2419 = vld [vmem:[#allocation7 + $0x770] sm:$0xff]
    %v2420 = vld [vmem:[#allocation7 + $0x778] sm:$0xff]
    %v2421 = vld [vmem:[#allocation7 + $0x780] sm:$0xff]
    %v2422 = vld [vmem:[#allocation7 + $0x788] sm:$0xff]
    %v2423 = vld [vmem:[#allocation7 + $0x790] sm:$0xff]
    %v2424 = vld [vmem:[#allocation7 + $0x798] sm:$0xff]
    %v2425 = vld [vmem:[#allocation7 + $0x7a0] sm:$0xff]
    %v2426 = vld [vmem:[#allocation7 + $0x7a8] sm:$0xff]
    %v2427 = vld [vmem:[#allocation7 + $0x7b0] sm:$0xff]
    %v2428 = vld [vmem:[#allocation7 + $0x7b8] sm:$0xff]
    %v2429 = vld [vmem:[#allocation7 + $0x7c0] sm:$0xff]
    %v2430 = vld [vmem:[#allocation7 + $0x7c8] sm:$0xff]
    %v2431 = vld [vmem:[#allocation7 + $0x7d0] sm:$0xff]
    %v2432 = vld [vmem:[#allocation7 + $0x7d8] sm:$0xff]
    %v2433 = vld [vmem:[#allocation7 + $0x7e0] sm:$0xff]
    %v2434 = vld [vmem:[#allocation7 + $0x7e8] sm:$0xff]
    %v2435 = vld [vmem:[#allocation7 + $0x7f0] sm:$0xff]
    %v2436 = vld [vmem:[#allocation7 + $0x7f8] sm:$0xff]
    %v2437 = vld [vmem:[#allocation9] sm:$0xff]
    %v2438 = vld [vmem:[#allocation9 + $0x8] sm:$0xff]
    %v2439 = vld [vmem:[#allocation9 + $0x10] sm:$0xff]
    %v2440 = vld [vmem:[#allocation9 + $0x18] sm:$0xff]
    %v2441 = vld [vmem:[#allocation9 + $0x20] sm:$0xff]
    %v2442 = vld [vmem:[#allocation9 + $0x28] sm:$0xff]
    %v2443 = vld [vmem:[#allocation9 + $0x30] sm:$0xff]
    %v2444 = vld [vmem:[#allocation9 + $0x38] sm:$0xff]
    %v2445 = vld [vmem:[#allocation9 + $0x40] sm:$0xff]
    %v2446 = vld [vmem:[#allocation9 + $0x48] sm:$0xff]
    %v2447 = vld [vmem:[#allocation9 + $0x50] sm:$0xff]
    %v2448 = vld [vmem:[#allocation9 + $0x58] sm:$0xff]
    %v2449 = vld [vmem:[#allocation9 + $0x60] sm:$0xff]
    %v2450 = vld [vmem:[#allocation9 + $0x68] sm:$0xff]
    %v2451 = vld [vmem:[#allocation9 + $0x70] sm:$0xff]
    %v2452 = vld [vmem:[#allocation9 + $0x78] sm:$0xff]
    %v2453 = vld [vmem:[#allocation9 + $0x80] sm:$0xff]
    %v2454 = vld [vmem:[#allocation9 + $0x88] sm:$0xff]
    %v2455 = vld [vmem:[#allocation9 + $0x90] sm:$0xff]
    %v2456 = vld [vmem:[#allocation9 + $0x98] sm:$0xff]
    %v2457 = vld [vmem:[#allocation9 + $0xa0] sm:$0xff]
    %v2458 = vld [vmem:[#allocation9 + $0xa8] sm:$0xff]
    %v2459 = vld [vmem:[#allocation9 + $0xb0] sm:$0xff]
    %v2460 = vld [vmem:[#allocation9 + $0xb8] sm:$0xff]
    %v2461 = vld [vmem:[#allocation9 + $0xc0] sm:$0xff]
    %v2462 = vld [vmem:[#allocation9 + $0xc8] sm:$0xff]
    %v2463 = vld [vmem:[#allocation9 + $0xd0] sm:$0xff]
    %v2464 = vld [vmem:[#allocation9 + $0xd8] sm:$0xff]
    %v2465 = vld [vmem:[#allocation9 + $0xe0] sm:$0xff]
    %v2466 = vld [vmem:[#allocation9 + $0xe8] sm:$0xff]
    %v2467 = vld [vmem:[#allocation9 + $0xf0] sm:$0xff]
    %v2468 = vld [vmem:[#allocation9 + $0xf8] sm:$0xff]
    %v2469 = vld [vmem:[#allocation9 + $0x100] sm:$0xff]
    %v2470 = vld [vmem:[#allocation9 + $0x108] sm:$0xff]
    %v2471 = vld [vmem:[#allocation9 + $0x110] sm:$0xff]
    %v2472 = vld [vmem:[#allocation9 + $0x118] sm:$0xff]
    %v2473 = vld [vmem:[#allocation9 + $0x120] sm:$0xff]
    %v2474 = vld [vmem:[#allocation9 + $0x128] sm:$0xff]
    %v2475 = vld [vmem:[#allocation9 + $0x130] sm:$0xff]
    %v2476 = vld [vmem:[#allocation9 + $0x138] sm:$0xff]
    %v2477 = vld [vmem:[#allocation9 + $0x140] sm:$0xff]
    %v2478 = vld [vmem:[#allocation9 + $0x148] sm:$0xff]
    %v2479 = vld [vmem:[#allocation9 + $0x150] sm:$0xff]
    %v2480 = vld [vmem:[#allocation9 + $0x158] sm:$0xff]
    %v2481 = vld [vmem:[#allocation9 + $0x160] sm:$0xff]
    %v2482 = vld [vmem:[#allocation9 + $0x168] sm:$0xff]
    %v2483 = vld [vmem:[#allocation9 + $0x170] sm:$0xff]
    %v2484 = vld [vmem:[#allocation9 + $0x178] sm:$0xff]
    %v2485 = vld [vmem:[#allocation9 + $0x180] sm:$0xff]
    %v2486 = vld [vmem:[#allocation9 + $0x188] sm:$0xff]
    %v2487 = vld [vmem:[#allocation9 + $0x190] sm:$0xff]
    %v2488 = vld [vmem:[#allocation9 + $0x198] sm:$0xff]
    %v2489 = vld [vmem:[#allocation9 + $0x1a0] sm:$0xff]
    %v2490 = vld [vmem:[#allocation9 + $0x1a8] sm:$0xff]
    %v2491 = vld [vmem:[#allocation9 + $0x1b0] sm:$0xff]
    %v2492 = vld [vmem:[#allocation9 + $0x1b8] sm:$0xff]
    %v2493 = vld [vmem:[#allocation9 + $0x1c0] sm:$0xff]
    %v2494 = vld [vmem:[#allocation9 + $0x1c8] sm:$0xff]
    %v2495 = vld [vmem:[#allocation9 + $0x1d0] sm:$0xff]
    %v2496 = vld [vmem:[#allocation9 + $0x1d8] sm:$0xff]
    %v2497 = vld [vmem:[#allocation9 + $0x1e0] sm:$0xff]
    %v2498 = vld [vmem:[#allocation9 + $0x1e8] sm:$0xff]
    %v2499 = vld [vmem:[#allocation9 + $0x1f0] sm:$0xff]
    %v2500 = vld [vmem:[#allocation9 + $0x1f8] sm:$0xff]
    %v2501 = vld [vmem:[#allocation9 + $0x200] sm:$0xff]
    %v2502 = vld [vmem:[#allocation9 + $0x208] sm:$0xff]
    %v2503 = vld [vmem:[#allocation9 + $0x210] sm:$0xff]
    %v2504 = vld [vmem:[#allocation9 + $0x218] sm:$0xff]
    %v2505 = vld [vmem:[#allocation9 + $0x220] sm:$0xff]
    %v2506 = vld [vmem:[#allocation9 + $0x228] sm:$0xff]
    %v2507 = vld [vmem:[#allocation9 + $0x230] sm:$0xff]
    %v2508 = vld [vmem:[#allocation9 + $0x238] sm:$0xff]
    %v2509 = vld [vmem:[#allocation9 + $0x240] sm:$0xff]
    %v2510 = vld [vmem:[#allocation9 + $0x248] sm:$0xff]
    %v2511 = vld [vmem:[#allocation9 + $0x250] sm:$0xff]
    %v2512 = vld [vmem:[#allocation9 + $0x258] sm:$0xff]
    %v2513 = vld [vmem:[#allocation9 + $0x260] sm:$0xff]
    %v2514 = vld [vmem:[#allocation9 + $0x268] sm:$0xff]
    %v2515 = vld [vmem:[#allocation9 + $0x270] sm:$0xff]
    %v2516 = vld [vmem:[#allocation9 + $0x278] sm:$0xff]
    %v2517 = vld [vmem:[#allocation9 + $0x280] sm:$0xff]
    %v2518 = vld [vmem:[#allocation9 + $0x288] sm:$0xff]
    %v2519 = vld [vmem:[#allocation9 + $0x290] sm:$0xff]
    %v2520 = vld [vmem:[#allocation9 + $0x298] sm:$0xff]
    %v2521 = vld [vmem:[#allocation9 + $0x2a0] sm:$0xff]
    %v2522 = vld [vmem:[#allocation9 + $0x2a8] sm:$0xff]
    %v2523 = vld [vmem:[#allocation9 + $0x2b0] sm:$0xff]
    %v2524 = vld [vmem:[#allocation9 + $0x2b8] sm:$0xff]
    %v2525 = vld [vmem:[#allocation9 + $0x2c0] sm:$0xff]
    %v2526 = vld [vmem:[#allocation9 + $0x2c8] sm:$0xff]
    %v2527 = vld [vmem:[#allocation9 + $0x2d0] sm:$0xff]
    %v2528 = vld [vmem:[#allocation9 + $0x2d8] sm:$0xff]
    %v2529 = vld [vmem:[#allocation9 + $0x2e0] sm:$0xff]
    %v2530 = vld [vmem:[#allocation9 + $0x2e8] sm:$0xff]
    %v2531 = vld [vmem:[#allocation9 + $0x2f0] sm:$0xff]
    %v2532 = vld [vmem:[#allocation9 + $0x2f8] sm:$0xff]
    %v2533 = vld [vmem:[#allocation9 + $0x300] sm:$0xff]
    %v2534 = vld [vmem:[#allocation9 + $0x308] sm:$0xff]
    %v2535 = vld [vmem:[#allocation9 + $0x310] sm:$0xff]
    %v2536 = vld [vmem:[#allocation9 + $0x318] sm:$0xff]
    %v2537 = vld [vmem:[#allocation9 + $0x320] sm:$0xff]
    %v2538 = vld [vmem:[#allocation9 + $0x328] sm:$0xff]
    %v2539 = vld [vmem:[#allocation9 + $0x330] sm:$0xff]
    %v2540 = vld [vmem:[#allocation9 + $0x338] sm:$0xff]
    %v2541 = vld [vmem:[#allocation9 + $0x340] sm:$0xff]
    %v2542 = vld [vmem:[#allocation9 + $0x348] sm:$0xff]
    %v2543 = vld [vmem:[#allocation9 + $0x350] sm:$0xff]
    %v2544 = vld [vmem:[#allocation9 + $0x358] sm:$0xff]
    %v2545 = vld [vmem:[#allocation9 + $0x360] sm:$0xff]
    %v2546 = vld [vmem:[#allocation9 + $0x368] sm:$0xff]
    %v2547 = vld [vmem:[#allocation9 + $0x370] sm:$0xff]
    %v2548 = vld [vmem:[#allocation9 + $0x378] sm:$0xff]
    %v2549 = vld [vmem:[#allocation9 + $0x380] sm:$0xff]
    %v2550 = vld [vmem:[#allocation9 + $0x388] sm:$0xff]
    %v2551 = vld [vmem:[#allocation9 + $0x390] sm:$0xff]
    %v2552 = vld [vmem:[#allocation9 + $0x398] sm:$0xff]
    %v2553 = vld [vmem:[#allocation9 + $0x3a0] sm:$0xff]
    %v2554 = vld [vmem:[#allocation9 + $0x3a8] sm:$0xff]
    %v2555 = vld [vmem:[#allocation9 + $0x3b0] sm:$0xff]
    %v2556 = vld [vmem:[#allocation9 + $0x3b8] sm:$0xff]
    %v2557 = vld [vmem:[#allocation9 + $0x3c0] sm:$0xff]
    %v2558 = vld [vmem:[#allocation9 + $0x3c8] sm:$0xff]
    %v2559 = vld [vmem:[#allocation9 + $0x3d0] sm:$0xff]
    %v2560 = vld [vmem:[#allocation9 + $0x3d8] sm:$0xff]
    %v2561 = vld [vmem:[#allocation9 + $0x3e0] sm:$0xff]
    %v2562 = vld [vmem:[#allocation9 + $0x3e8] sm:$0xff]
    %v2563 = vld [vmem:[#allocation9 + $0x3f0] sm:$0xff]
    %v2564 = vld [vmem:[#allocation9 + $0x3f8] sm:$0xff]
    %v2565 = vld [vmem:[#allocation9 + $0x400] sm:$0xff]
    %v2566 = vld [vmem:[#allocation9 + $0x408] sm:$0xff]
    %v2567 = vld [vmem:[#allocation9 + $0x410] sm:$0xff]
    %v2568 = vld [vmem:[#allocation9 + $0x418] sm:$0xff]
    %v2569 = vld [vmem:[#allocation9 + $0x420] sm:$0xff]
    %v2570 = vld [vmem:[#allocation9 + $0x428] sm:$0xff]
    %v2571 = vld [vmem:[#allocation9 + $0x430] sm:$0xff]
    %v2572 = vld [vmem:[#allocation9 + $0x438] sm:$0xff]
    %v2573 = vld [vmem:[#allocation9 + $0x440] sm:$0xff]
    %v2574 = vld [vmem:[#allocation9 + $0x448] sm:$0xff]
    %v2575 = vld [vmem:[#allocation9 + $0x450] sm:$0xff]
    %v2576 = vld [vmem:[#allocation9 + $0x458] sm:$0xff]
    %v2577 = vld [vmem:[#allocation9 + $0x460] sm:$0xff]
    %v2578 = vld [vmem:[#allocation9 + $0x468] sm:$0xff]
    %v2579 = vld [vmem:[#allocation9 + $0x470] sm:$0xff]
    %v2580 = vld [vmem:[#allocation9 + $0x478] sm:$0xff]
    %v2581 = vld [vmem:[#allocation9 + $0x480] sm:$0xff]
    %v2582 = vld [vmem:[#allocation9 + $0x488] sm:$0xff]
    %v2583 = vld [vmem:[#allocation9 + $0x490] sm:$0xff]
    %v2584 = vld [vmem:[#allocation9 + $0x498] sm:$0xff]
    %v2585 = vld [vmem:[#allocation9 + $0x4a0] sm:$0xff]
    %v2586 = vld [vmem:[#allocation9 + $0x4a8] sm:$0xff]
    %v2587 = vld [vmem:[#allocation9 + $0x4b0] sm:$0xff]
    %v2588 = vld [vmem:[#allocation9 + $0x4b8] sm:$0xff]
    %v2589 = vld [vmem:[#allocation9 + $0x4c0] sm:$0xff]
    %v2590 = vld [vmem:[#allocation9 + $0x4c8] sm:$0xff]
    %v2591 = vld [vmem:[#allocation9 + $0x4d0] sm:$0xff]
    %v2592 = vld [vmem:[#allocation9 + $0x4d8] sm:$0xff]
    %v2593 = vld [vmem:[#allocation9 + $0x4e0] sm:$0xff]
    %v2594 = vld [vmem:[#allocation9 + $0x4e8] sm:$0xff]
    %v2595 = vld [vmem:[#allocation9 + $0x4f0] sm:$0xff]
    %v2596 = vld [vmem:[#allocation9 + $0x4f8] sm:$0xff]
    %v2597 = vld [vmem:[#allocation9 + $0x500] sm:$0xff]
    %v2598 = vld [vmem:[#allocation9 + $0x508] sm:$0xff]
    %v2599 = vld [vmem:[#allocation9 + $0x510] sm:$0xff]
    %v2600 = vld [vmem:[#allocation9 + $0x518] sm:$0xff]
    %v2601 = vld [vmem:[#allocation9 + $0x520] sm:$0xff]
    %v2602 = vld [vmem:[#allocation9 + $0x528] sm:$0xff]
    %v2603 = vld [vmem:[#allocation9 + $0x530] sm:$0xff]
    %v2604 = vld [vmem:[#allocation9 + $0x538] sm:$0xff]
    %v2605 = vld [vmem:[#allocation9 + $0x540] sm:$0xff]
    %v2606 = vld [vmem:[#allocation9 + $0x548] sm:$0xff]
    %v2607 = vld [vmem:[#allocation9 + $0x550] sm:$0xff]
    %v2608 = vld [vmem:[#allocation9 + $0x558] sm:$0xff]
    %v2609 = vld [vmem:[#allocation9 + $0x560] sm:$0xff]
    %v2610 = vld [vmem:[#allocation9 + $0x568] sm:$0xff]
    %v2611 = vld [vmem:[#allocation9 + $0x570] sm:$0xff]
    %v2612 = vld [vmem:[#allocation9 + $0x578] sm:$0xff]
    %v2613 = vld [vmem:[#allocation9 + $0x580] sm:$0xff]
    %v2614 = vld [vmem:[#allocation9 + $0x588] sm:$0xff]
    %v2615 = vld [vmem:[#allocation9 + $0x590] sm:$0xff]
    %v2616 = vld [vmem:[#allocation9 + $0x598] sm:$0xff]
    %v2617 = vld [vmem:[#allocation9 + $0x5a0] sm:$0xff]
    %v2618 = vld [vmem:[#allocation9 + $0x5a8] sm:$0xff]
    %v2619 = vld [vmem:[#allocation9 + $0x5b0] sm:$0xff]
    %v2620 = vld [vmem:[#allocation9 + $0x5b8] sm:$0xff]
    %v2621 = vld [vmem:[#allocation9 + $0x5c0] sm:$0xff]
    %v2622 = vld [vmem:[#allocation9 + $0x5c8] sm:$0xff]
    %v2623 = vld [vmem:[#allocation9 + $0x5d0] sm:$0xff]
    %v2624 = vld [vmem:[#allocation9 + $0x5d8] sm:$0xff]
    %v2625 = vld [vmem:[#allocation9 + $0x5e0] sm:$0xff]
    %v2626 = vld [vmem:[#allocation9 + $0x5e8] sm:$0xff]
    %v2627 = vld [vmem:[#allocation9 + $0x5f0] sm:$0xff]
    %v2628 = vld [vmem:[#allocation9 + $0x5f8] sm:$0xff]
    %v2629 = vld [vmem:[#allocation9 + $0x600] sm:$0xff]
    %v2630 = vld [vmem:[#allocation9 + $0x608] sm:$0xff]
    %v2631 = vld [vmem:[#allocation9 + $0x610] sm:$0xff]
    %v2632 = vld [vmem:[#allocation9 + $0x618] sm:$0xff]
    %v2633 = vld [vmem:[#allocation9 + $0x620] sm:$0xff]
    %v2634 = vld [vmem:[#allocation9 + $0x628] sm:$0xff]
    %v2635 = vld [vmem:[#allocation9 + $0x630] sm:$0xff]
    %v2636 = vld [vmem:[#allocation9 + $0x638] sm:$0xff]
    %v2637 = vld [vmem:[#allocation9 + $0x640] sm:$0xff]
    %v2638 = vld [vmem:[#allocation9 + $0x648] sm:$0xff]
    %v2639 = vld [vmem:[#allocation9 + $0x650] sm:$0xff]
    %v2640 = vld [vmem:[#allocation9 + $0x658] sm:$0xff]
    %v2641 = vld [vmem:[#allocation9 + $0x660] sm:$0xff]
    %v2642 = vld [vmem:[#allocation9 + $0x668] sm:$0xff]
    %v2643 = vld [vmem:[#allocation9 + $0x670] sm:$0xff]
    %v2644 = vld [vmem:[#allocation9 + $0x678] sm:$0xff]
    %v2645 = vld [vmem:[#allocation9 + $0x680] sm:$0xff]
    %v2646 = vld [vmem:[#allocation9 + $0x688] sm:$0xff]
    %v2647 = vld [vmem:[#allocation9 + $0x690] sm:$0xff]
    %v2648 = vld [vmem:[#allocation9 + $0x698] sm:$0xff]
    %v2649 = vld [vmem:[#allocation9 + $0x6a0] sm:$0xff]
    %v2650 = vld [vmem:[#allocation9 + $0x6a8] sm:$0xff]
    %v2651 = vld [vmem:[#allocation9 + $0x6b0] sm:$0xff]
    %v2652 = vld [vmem:[#allocation9 + $0x6b8] sm:$0xff]
    %v2653 = vld [vmem:[#allocation9 + $0x6c0] sm:$0xff]
    %v2654 = vld [vmem:[#allocation9 + $0x6c8] sm:$0xff]
    %v2655 = vld [vmem:[#allocation9 + $0x6d0] sm:$0xff]
    %v2656 = vld [vmem:[#allocation9 + $0x6d8] sm:$0xff]
    %v2657 = vld [vmem:[#allocation9 + $0x6e0] sm:$0xff]
    %v2658 = vld [vmem:[#allocation9 + $0x6e8] sm:$0xff]
    %v2659 = vld [vmem:[#allocation9 + $0x6f0] sm:$0xff]
    %v2660 = vld [vmem:[#allocation9 + $0x6f8] sm:$0xff]
    %v2661 = vld [vmem:[#allocation9 + $0x700] sm:$0xff]
    %v2662 = vld [vmem:[#allocation9 + $0x708] sm:$0xff]
    %v2663 = vld [vmem:[#allocation9 + $0x710] sm:$0xff]
    %v2664 = vld [vmem:[#allocation9 + $0x718] sm:$0xff]
    %v2665 = vld [vmem:[#allocation9 + $0x720] sm:$0xff]
    %v2666 = vld [vmem:[#allocation9 + $0x728] sm:$0xff]
    %v2667 = vld [vmem:[#allocation9 + $0x730] sm:$0xff]
    %v2668 = vld [vmem:[#allocation9 + $0x738] sm:$0xff]
    %v2669 = vld [vmem:[#allocation9 + $0x740] sm:$0xff]
    %v2670 = vld [vmem:[#allocation9 + $0x748] sm:$0xff]
    %v2671 = vld [vmem:[#allocation9 + $0x750] sm:$0xff]
    %v2672 = vld [vmem:[#allocation9 + $0x758] sm:$0xff]
    %v2673 = vld [vmem:[#allocation9 + $0x760] sm:$0xff]
    %v2674 = vld [vmem:[#allocation9 + $0x768] sm:$0xff]
    %v2675 = vld [vmem:[#allocation9 + $0x770] sm:$0xff]
    %v2676 = vld [vmem:[#allocation9 + $0x778] sm:$0xff]
    %v2677 = vld [vmem:[#allocation9 + $0x780] sm:$0xff]
    %v2678 = vld [vmem:[#allocation9 + $0x788] sm:$0xff]
    %v2679 = vld [vmem:[#allocation9 + $0x790] sm:$0xff]
    %v2680 = vld [vmem:[#allocation9 + $0x798] sm:$0xff]
    %v2681 = vld [vmem:[#allocation9 + $0x7a0] sm:$0xff]
    %v2682 = vld [vmem:[#allocation9 + $0x7a8] sm:$0xff]
    %v2683 = vld [vmem:[#allocation9 + $0x7b0] sm:$0xff]
    %v2684 = vld [vmem:[#allocation9 + $0x7b8] sm:$0xff]
    %v2685 = vld [vmem:[#allocation9 + $0x7c0] sm:$0xff]
    %v2686 = vld [vmem:[#allocation9 + $0x7c8] sm:$0xff]
    %v2687 = vld [vmem:[#allocation9 + $0x7d0] sm:$0xff]
    %v2688 = vld [vmem:[#allocation9 + $0x7d8] sm:$0xff]
    %v2689 = vld [vmem:[#allocation9 + $0x7e0] sm:$0xff]
    %v2690 = vld [vmem:[#allocation9 + $0x7e8] sm:$0xff]
    %v2691 = vld [vmem:[#allocation9 + $0x7f0] sm:$0xff]
    %v2692 = vld [vmem:[#allocation9 + $0x7f8] sm:$0xff]
    %v2949 = vunpack.c.l.b16 %v2181
    %v2950 = vunpack.c.h.b16 %v2181
    %v2951 = vunpack.c.l.b16 %v2182
    %v2952 = vunpack.c.h.b16 %v2182
    %v2953 = vunpack.c.l.b16 %v2183
    %v2954 = vunpack.c.h.b16 %v2183
    %v2955 = vunpack.c.l.b16 %v2184
    %v2956 = vunpack.c.h.b16 %v2184
    %v2957 = vunpack.c.l.b16 %v2185
    %v2958 = vunpack.c.h.b16 %v2185
    %v2959 = vunpack.c.l.b16 %v2186
    %v2960 = vunpack.c.h.b16 %v2186
    %v2961 = vunpack.c.l.b16 %v2187
    %v2962 = vunpack.c.h.b16 %v2187
    %v2963 = vunpack.c.l.b16 %v2188
    %v2964 = vunpack.c.h.b16 %v2188
    %v2965 = vunpack.c.l.b16 %v2189
    %v2966 = vunpack.c.h.b16 %v2189
    %v2967 = vunpack.c.l.b16 %v2190
    %v2968 = vunpack.c.h.b16 %v2190
    %v2969 = vunpack.c.l.b16 %v2191
    %v2970 = vunpack.c.h.b16 %v2191
    %v2971 = vunpack.c.l.b16 %v2192
    %v2972 = vunpack.c.h.b16 %v2192
    %v2973 = vunpack.c.l.b16 %v2193
    %v2974 = vunpack.c.h.b16 %v2193
    %v2975 = vunpack.c.l.b16 %v2194
    %v2976 = vunpack.c.h.b16 %v2194
    %v2977 = vunpack.c.l.b16 %v2195
    %v2978 = vunpack.c.h.b16 %v2195
    %v2979 = vunpack.c.l.b16 %v2196
    %v2980 = vunpack.c.h.b16 %v2196
    %v2981 = vunpack.c.l.b16 %v2197
    %v2982 = vunpack.c.h.b16 %v2197
    %v2983 = vunpack.c.l.b16 %v2198
    %v2984 = vunpack.c.h.b16 %v2198
    %v2985 = vunpack.c.l.b16 %v2199
    %v2986 = vunpack.c.h.b16 %v2199
    %v2987 = vunpack.c.l.b16 %v2200
    %v2988 = vunpack.c.h.b16 %v2200
    %v2989 = vunpack.c.l.b16 %v2201
    %v2990 = vunpack.c.h.b16 %v2201
    %v2991 = vunpack.c.l.b16 %v2202
    %v2992 = vunpack.c.h.b16 %v2202
    %v2993 = vunpack.c.l.b16 %v2203
    %v2994 = vunpack.c.h.b16 %v2203
    %v2995 = vunpack.c.l.b16 %v2204
    %v2996 = vunpack.c.h.b16 %v2204
    %v2997 = vunpack.c.l.b16 %v2205
    %v2998 = vunpack.c.h.b16 %v2205
    %v2999 = vunpack.c.l.b16 %v2206
    %v3000 = vunpack.c.h.b16 %v2206
    %v3001 = vunpack.c.l.b16 %v2207
    %v3002 = vunpack.c.h.b16 %v2207
    %v3003 = vunpack.c.l.b16 %v2208
    %v3004 = vunpack.c.h.b16 %v2208
    %v3005 = vunpack.c.l.b16 %v2209
    %v3006 = vunpack.c.h.b16 %v2209
    %v3007 = vunpack.c.l.b16 %v2210
    %v3008 = vunpack.c.h.b16 %v2210
    %v3009 = vunpack.c.l.b16 %v2211
    %v3010 = vunpack.c.h.b16 %v2211
    %v3011 = vunpack.c.l.b16 %v2212
    %v3012 = vunpack.c.h.b16 %v2212
    %v3013 = vunpack.c.l.b16 %v2213
    %v3014 = vunpack.c.h.b16 %v2213
    %v3015 = vunpack.c.l.b16 %v2214
    %v3016 = vunpack.c.h.b16 %v2214
    %v3017 = vunpack.c.l.b16 %v2215
    %v3018 = vunpack.c.h.b16 %v2215
    %v3019 = vunpack.c.l.b16 %v2216
    %v3020 = vunpack.c.h.b16 %v2216
    %v3021 = vunpack.c.l.b16 %v2217
    %v3022 = vunpack.c.h.b16 %v2217
    %v3023 = vunpack.c.l.b16 %v2218
    %v3024 = vunpack.c.h.b16 %v2218
    %v3025 = vunpack.c.l.b16 %v2219
    %v3026 = vunpack.c.h.b16 %v2219
    %v3027 = vunpack.c.l.b16 %v2220
    %v3028 = vunpack.c.h.b16 %v2220
    %v3029 = vunpack.c.l.b16 %v2221
    %v3030 = vunpack.c.h.b16 %v2221
    %v3031 = vunpack.c.l.b16 %v2222
    %v3032 = vunpack.c.h.b16 %v2222
    %v3033 = vunpack.c.l.b16 %v2223
    %v3034 = vunpack.c.h.b16 %v2223
    %v3035 = vunpack.c.l.b16 %v2224
    %v3036 = vunpack.c.h.b16 %v2224
    %v3037 = vunpack.c.l.b16 %v2225
    %v3038 = vunpack.c.h.b16 %v2225
    %v3039 = vunpack.c.l.b16 %v2226
    %v3040 = vunpack.c.h.b16 %v2226
    %v3041 = vunpack.c.l.b16 %v2227
    %v3042 = vunpack.c.h.b16 %v2227
    %v3043 = vunpack.c.l.b16 %v2228
    %v3044 = vunpack.c.h.b16 %v2228
    %v3045 = vunpack.c.l.b16 %v2229
    %v3046 = vunpack.c.h.b16 %v2229
    %v3047 = vunpack.c.l.b16 %v2230
    %v3048 = vunpack.c.h.b16 %v2230
    %v3049 = vunpack.c.l.b16 %v2231
    %v3050 = vunpack.c.h.b16 %v2231
    %v3051 = vunpack.c.l.b16 %v2232
    %v3052 = vunpack.c.h.b16 %v2232
    %v3053 = vunpack.c.l.b16 %v2233
    %v3054 = vunpack.c.h.b16 %v2233
    %v3055 = vunpack.c.l.b16 %v2234
    %v3056 = vunpack.c.h.b16 %v2234
    %v3057 = vunpack.c.l.b16 %v2235
    %v3058 = vunpack.c.h.b16 %v2235
    %v3059 = vunpack.c.l.b16 %v2236
    %v3060 = vunpack.c.h.b16 %v2236
    %v3061 = vunpack.c.l.b16 %v2237
    %v3062 = vunpack.c.h.b16 %v2237
    %v3063 = vunpack.c.l.b16 %v2238
    %v3064 = vunpack.c.h.b16 %v2238
    %v3065 = vunpack.c.l.b16 %v2239
    %v3066 = vunpack.c.h.b16 %v2239
    %v3067 = vunpack.c.l.b16 %v2240
    %v3068 = vunpack.c.h.b16 %v2240
    %v3069 = vunpack.c.l.b16 %v2241
    %v3070 = vunpack.c.h.b16 %v2241
    %v3071 = vunpack.c.l.b16 %v2242
    %v3072 = vunpack.c.h.b16 %v2242
    %v3073 = vunpack.c.l.b16 %v2243
    %v3074 = vunpack.c.h.b16 %v2243
    %v3075 = vunpack.c.l.b16 %v2244
    %v3076 = vunpack.c.h.b16 %v2244
    %v3077 = vunpack.c.l.b16 %v2245
    %v3078 = vunpack.c.h.b16 %v2245
    %v3079 = vunpack.c.l.b16 %v2246
    %v3080 = vunpack.c.h.b16 %v2246
    %v3081 = vunpack.c.l.b16 %v2247
    %v3082 = vunpack.c.h.b16 %v2247
    %v3083 = vunpack.c.l.b16 %v2248
    %v3084 = vunpack.c.h.b16 %v2248
    %v3085 = vunpack.c.l.b16 %v2249
    %v3086 = vunpack.c.h.b16 %v2249
    %v3087 = vunpack.c.l.b16 %v2250
    %v3088 = vunpack.c.h.b16 %v2250
    %v3089 = vunpack.c.l.b16 %v2251
    %v3090 = vunpack.c.h.b16 %v2251
    %v3091 = vunpack.c.l.b16 %v2252
    %v3092 = vunpack.c.h.b16 %v2252
    %v3093 = vunpack.c.l.b16 %v2253
    %v3094 = vunpack.c.h.b16 %v2253
    %v3095 = vunpack.c.l.b16 %v2254
    %v3096 = vunpack.c.h.b16 %v2254
    %v3097 = vunpack.c.l.b16 %v2255
    %v3098 = vunpack.c.h.b16 %v2255
    %v3099 = vunpack.c.l.b16 %v2256
    %v3100 = vunpack.c.h.b16 %v2256
    %v3101 = vunpack.c.l.b16 %v2257
    %v3102 = vunpack.c.h.b16 %v2257
    %v3103 = vunpack.c.l.b16 %v2258
    %v3104 = vunpack.c.h.b16 %v2258
    %v3105 = vunpack.c.l.b16 %v2259
    %v3106 = vunpack.c.h.b16 %v2259
    %v3107 = vunpack.c.l.b16 %v2260
    %v3108 = vunpack.c.h.b16 %v2260
    %v3109 = vunpack.c.l.b16 %v2261
    %v3110 = vunpack.c.h.b16 %v2261
    %v3111 = vunpack.c.l.b16 %v2262
    %v3112 = vunpack.c.h.b16 %v2262
    %v3113 = vunpack.c.l.b16 %v2263
    %v3114 = vunpack.c.h.b16 %v2263
    %v3115 = vunpack.c.l.b16 %v2264
    %v3116 = vunpack.c.h.b16 %v2264
    %v3117 = vunpack.c.l.b16 %v2265
    %v3118 = vunpack.c.h.b16 %v2265
    %v3119 = vunpack.c.l.b16 %v2266
    %v3120 = vunpack.c.h.b16 %v2266
    %v3121 = vunpack.c.l.b16 %v2267
    %v3122 = vunpack.c.h.b16 %v2267
    %v3123 = vunpack.c.l.b16 %v2268
    %v3124 = vunpack.c.h.b16 %v2268
    %v3125 = vunpack.c.l.b16 %v2269
    %v3126 = vunpack.c.h.b16 %v2269
    %v3127 = vunpack.c.l.b16 %v2270
    %v3128 = vunpack.c.h.b16 %v2270
    %v3129 = vunpack.c.l.b16 %v2271
    %v3130 = vunpack.c.h.b16 %v2271
    %v3131 = vunpack.c.l.b16 %v2272
    %v3132 = vunpack.c.h.b16 %v2272
    %v3133 = vunpack.c.l.b16 %v2273
    %v3134 = vunpack.c.h.b16 %v2273
    %v3135 = vunpack.c.l.b16 %v2274
    %v3136 = vunpack.c.h.b16 %v2274
    %v3137 = vunpack.c.l.b16 %v2275
    %v3138 = vunpack.c.h.b16 %v2275
    %v3139 = vunpack.c.l.b16 %v2276
    %v3140 = vunpack.c.h.b16 %v2276
    %v3141 = vunpack.c.l.b16 %v2277
    %v3142 = vunpack.c.h.b16 %v2277
    %v3143 = vunpack.c.l.b16 %v2278
    %v3144 = vunpack.c.h.b16 %v2278
    %v3145 = vunpack.c.l.b16 %v2279
    %v3146 = vunpack.c.h.b16 %v2279
    %v3147 = vunpack.c.l.b16 %v2280
    %v3148 = vunpack.c.h.b16 %v2280
    %v3149 = vunpack.c.l.b16 %v2281
    %v3150 = vunpack.c.h.b16 %v2281
    %v3151 = vunpack.c.l.b16 %v2282
    %v3152 = vunpack.c.h.b16 %v2282
    %v3153 = vunpack.c.l.b16 %v2283
    %v3154 = vunpack.c.h.b16 %v2283
    %v3155 = vunpack.c.l.b16 %v2284
    %v3156 = vunpack.c.h.b16 %v2284
    %v3157 = vunpack.c.l.b16 %v2285
    %v3158 = vunpack.c.h.b16 %v2285
    %v3159 = vunpack.c.l.b16 %v2286
    %v3160 = vunpack.c.h.b16 %v2286
    %v3161 = vunpack.c.l.b16 %v2287
    %v3162 = vunpack.c.h.b16 %v2287
    %v3163 = vunpack.c.l.b16 %v2288
    %v3164 = vunpack.c.h.b16 %v2288
    %v3165 = vunpack.c.l.b16 %v2289
    %v3166 = vunpack.c.h.b16 %v2289
    %v3167 = vunpack.c.l.b16 %v2290
    %v3168 = vunpack.c.h.b16 %v2290
    %v3169 = vunpack.c.l.b16 %v2291
    %v3170 = vunpack.c.h.b16 %v2291
    %v3171 = vunpack.c.l.b16 %v2292
    %v3172 = vunpack.c.h.b16 %v2292
    %v3173 = vunpack.c.l.b16 %v2293
    %v3174 = vunpack.c.h.b16 %v2293
    %v3175 = vunpack.c.l.b16 %v2294
    %v3176 = vunpack.c.h.b16 %v2294
    %v3177 = vunpack.c.l.b16 %v2295
    %v3178 = vunpack.c.h.b16 %v2295
    %v3179 = vunpack.c.l.b16 %v2296
    %v3180 = vunpack.c.h.b16 %v2296
    %v3181 = vunpack.c.l.b16 %v2297
    %v3182 = vunpack.c.h.b16 %v2297
    %v3183 = vunpack.c.l.b16 %v2298
    %v3184 = vunpack.c.h.b16 %v2298
    %v3185 = vunpack.c.l.b16 %v2299
    %v3186 = vunpack.c.h.b16 %v2299
    %v3187 = vunpack.c.l.b16 %v2300
    %v3188 = vunpack.c.h.b16 %v2300
    %v3189 = vunpack.c.l.b16 %v2301
    %v3190 = vunpack.c.h.b16 %v2301
    %v3191 = vunpack.c.l.b16 %v2302
    %v3192 = vunpack.c.h.b16 %v2302
    %v3193 = vunpack.c.l.b16 %v2303
    %v3194 = vunpack.c.h.b16 %v2303
    %v3195 = vunpack.c.l.b16 %v2304
    %v3196 = vunpack.c.h.b16 %v2304
    %v3197 = vunpack.c.l.b16 %v2305
    %v3198 = vunpack.c.h.b16 %v2305
    %v3199 = vunpack.c.l.b16 %v2306
    %v3200 = vunpack.c.h.b16 %v2306
    %v3201 = vunpack.c.l.b16 %v2307
    %v3202 = vunpack.c.h.b16 %v2307
    %v3203 = vunpack.c.l.b16 %v2308
    %v3204 = vunpack.c.h.b16 %v2308
    %v3205 = vunpack.c.l.b16 %v2309
    %v3206 = vunpack.c.h.b16 %v2309
    %v3207 = vunpack.c.l.b16 %v2310
    %v3208 = vunpack.c.h.b16 %v2310
    %v3209 = vunpack.c.l.b16 %v2311
    %v3210 = vunpack.c.h.b16 %v2311
    %v3211 = vunpack.c.l.b16 %v2312
    %v3212 = vunpack.c.h.b16 %v2312
    %v3213 = vunpack.c.l.b16 %v2313
    %v3214 = vunpack.c.h.b16 %v2313
    %v3215 = vunpack.c.l.b16 %v2314
    %v3216 = vunpack.c.h.b16 %v2314
    %v3217 = vunpack.c.l.b16 %v2315
    %v3218 = vunpack.c.h.b16 %v2315
    %v3219 = vunpack.c.l.b16 %v2316
    %v3220 = vunpack.c.h.b16 %v2316
    %v3221 = vunpack.c.l.b16 %v2317
    %v3222 = vunpack.c.h.b16 %v2317
    %v3223 = vunpack.c.l.b16 %v2318
    %v3224 = vunpack.c.h.b16 %v2318
    %v3225 = vunpack.c.l.b16 %v2319
    %v3226 = vunpack.c.h.b16 %v2319
    %v3227 = vunpack.c.l.b16 %v2320
    %v3228 = vunpack.c.h.b16 %v2320
    %v3229 = vunpack.c.l.b16 %v2321
    %v3230 = vunpack.c.h.b16 %v2321
    %v3231 = vunpack.c.l.b16 %v2322
    %v3232 = vunpack.c.h.b16 %v2322
    %v3233 = vunpack.c.l.b16 %v2323
    %v3234 = vunpack.c.h.b16 %v2323
    %v3235 = vunpack.c.l.b16 %v2324
    %v3236 = vunpack.c.h.b16 %v2324
    %v3237 = vunpack.c.l.b16 %v2325
    %v3238 = vunpack.c.h.b16 %v2325
    %v3239 = vunpack.c.l.b16 %v2326
    %v3240 = vunpack.c.h.b16 %v2326
    %v3241 = vunpack.c.l.b16 %v2327
    %v3242 = vunpack.c.h.b16 %v2327
    %v3243 = vunpack.c.l.b16 %v2328
    %v3244 = vunpack.c.h.b16 %v2328
    %v3245 = vunpack.c.l.b16 %v2329
    %v3246 = vunpack.c.h.b16 %v2329
    %v3247 = vunpack.c.l.b16 %v2330
    %v3248 = vunpack.c.h.b16 %v2330
    %v3249 = vunpack.c.l.b16 %v2331
    %v3250 = vunpack.c.h.b16 %v2331
    %v3251 = vunpack.c.l.b16 %v2332
    %v3252 = vunpack.c.h.b16 %v2332
    %v3253 = vunpack.c.l.b16 %v2333
    %v3254 = vunpack.c.h.b16 %v2333
    %v3255 = vunpack.c.l.b16 %v2334
    %v3256 = vunpack.c.h.b16 %v2334
    %v3257 = vunpack.c.l.b16 %v2335
    %v3258 = vunpack.c.h.b16 %v2335
    %v3259 = vunpack.c.l.b16 %v2336
    %v3260 = vunpack.c.h.b16 %v2336
    %v3261 = vunpack.c.l.b16 %v2337
    %v3262 = vunpack.c.h.b16 %v2337
    %v3263 = vunpack.c.l.b16 %v2338
    %v3264 = vunpack.c.h.b16 %v2338
    %v3265 = vunpack.c.l.b16 %v2339
    %v3266 = vunpack.c.h.b16 %v2339
    %v3267 = vunpack.c.l.b16 %v2340
    %v3268 = vunpack.c.h.b16 %v2340
    %v3269 = vunpack.c.l.b16 %v2341
    %v3270 = vunpack.c.h.b16 %v2341
    %v3271 = vunpack.c.l.b16 %v2342
    %v3272 = vunpack.c.h.b16 %v2342
    %v3273 = vunpack.c.l.b16 %v2343
    %v3274 = vunpack.c.h.b16 %v2343
    %v3275 = vunpack.c.l.b16 %v2344
    %v3276 = vunpack.c.h.b16 %v2344
    %v3277 = vunpack.c.l.b16 %v2345
    %v3278 = vunpack.c.h.b16 %v2345
    %v3279 = vunpack.c.l.b16 %v2346
    %v3280 = vunpack.c.h.b16 %v2346
    %v3281 = vunpack.c.l.b16 %v2347
    %v3282 = vunpack.c.h.b16 %v2347
    %v3283 = vunpack.c.l.b16 %v2348
    %v3284 = vunpack.c.h.b16 %v2348
    %v3285 = vunpack.c.l.b16 %v2349
    %v3286 = vunpack.c.h.b16 %v2349
    %v3287 = vunpack.c.l.b16 %v2350
    %v3288 = vunpack.c.h.b16 %v2350
    %v3289 = vunpack.c.l.b16 %v2351
    %v3290 = vunpack.c.h.b16 %v2351
    %v3291 = vunpack.c.l.b16 %v2352
    %v3292 = vunpack.c.h.b16 %v2352
    %v3293 = vunpack.c.l.b16 %v2353
    %v3294 = vunpack.c.h.b16 %v2353
    %v3295 = vunpack.c.l.b16 %v2354
    %v3296 = vunpack.c.h.b16 %v2354
    %v3297 = vunpack.c.l.b16 %v2355
    %v3298 = vunpack.c.h.b16 %v2355
    %v3299 = vunpack.c.l.b16 %v2356
    %v3300 = vunpack.c.h.b16 %v2356
    %v3301 = vunpack.c.l.b16 %v2357
    %v3302 = vunpack.c.h.b16 %v2357
    %v3303 = vunpack.c.l.b16 %v2358
    %v3304 = vunpack.c.h.b16 %v2358
    %v3305 = vunpack.c.l.b16 %v2359
    %v3306 = vunpack.c.h.b16 %v2359
    %v3307 = vunpack.c.l.b16 %v2360
    %v3308 = vunpack.c.h.b16 %v2360
    %v3309 = vunpack.c.l.b16 %v2361
    %v3310 = vunpack.c.h.b16 %v2361
    %v3311 = vunpack.c.l.b16 %v2362
    %v3312 = vunpack.c.h.b16 %v2362
    %v3313 = vunpack.c.l.b16 %v2363
    %v3314 = vunpack.c.h.b16 %v2363
    %v3315 = vunpack.c.l.b16 %v2364
    %v3316 = vunpack.c.h.b16 %v2364
    %v3317 = vunpack.c.l.b16 %v2365
    %v3318 = vunpack.c.h.b16 %v2365
    %v3319 = vunpack.c.l.b16 %v2366
    %v3320 = vunpack.c.h.b16 %v2366
    %v3321 = vunpack.c.l.b16 %v2367
    %v3322 = vunpack.c.h.b16 %v2367
    %v3323 = vunpack.c.l.b16 %v2368
    %v3324 = vunpack.c.h.b16 %v2368
    %v3325 = vunpack.c.l.b16 %v2369
    %v3326 = vunpack.c.h.b16 %v2369
    %v3327 = vunpack.c.l.b16 %v2370
    %v3328 = vunpack.c.h.b16 %v2370
    %v3329 = vunpack.c.l.b16 %v2371
    %v3330 = vunpack.c.h.b16 %v2371
    %v3331 = vunpack.c.l.b16 %v2372
    %v3332 = vunpack.c.h.b16 %v2372
    %v3333 = vunpack.c.l.b16 %v2373
    %v3334 = vunpack.c.h.b16 %v2373
    %v3335 = vunpack.c.l.b16 %v2374
    %v3336 = vunpack.c.h.b16 %v2374
    %v3337 = vunpack.c.l.b16 %v2375
    %v3338 = vunpack.c.h.b16 %v2375
    %v3339 = vunpack.c.l.b16 %v2376
    %v3340 = vunpack.c.h.b16 %v2376
    %v3341 = vunpack.c.l.b16 %v2377
    %v3342 = vunpack.c.h.b16 %v2377
    %v3343 = vunpack.c.l.b16 %v2378
    %v3344 = vunpack.c.h.b16 %v2378
    %v3345 = vunpack.c.l.b16 %v2379
    %v3346 = vunpack.c.h.b16 %v2379
    %v3347 = vunpack.c.l.b16 %v2380
    %v3348 = vunpack.c.h.b16 %v2380
    %v3349 = vunpack.c.l.b16 %v2381
    %v3350 = vunpack.c.h.b16 %v2381
    %v3351 = vunpack.c.l.b16 %v2382
    %v3352 = vunpack.c.h.b16 %v2382
    %v3353 = vunpack.c.l.b16 %v2383
    %v3354 = vunpack.c.h.b16 %v2383
    %v3355 = vunpack.c.l.b16 %v2384
    %v3356 = vunpack.c.h.b16 %v2384
    %v3357 = vunpack.c.l.b16 %v2385
    %v3358 = vunpack.c.h.b16 %v2385
    %v3359 = vunpack.c.l.b16 %v2386
    %v3360 = vunpack.c.h.b16 %v2386
    %v3361 = vunpack.c.l.b16 %v2387
    %v3362 = vunpack.c.h.b16 %v2387
    %v3363 = vunpack.c.l.b16 %v2388
    %v3364 = vunpack.c.h.b16 %v2388
    %v3365 = vunpack.c.l.b16 %v2389
    %v3366 = vunpack.c.h.b16 %v2389
    %v3367 = vunpack.c.l.b16 %v2390
    %v3368 = vunpack.c.h.b16 %v2390
    %v3369 = vunpack.c.l.b16 %v2391
    %v3370 = vunpack.c.h.b16 %v2391
    %v3371 = vunpack.c.l.b16 %v2392
    %v3372 = vunpack.c.h.b16 %v2392
    %v3373 = vunpack.c.l.b16 %v2393
    %v3374 = vunpack.c.h.b16 %v2393
    %v3375 = vunpack.c.l.b16 %v2394
    %v3376 = vunpack.c.h.b16 %v2394
    %v3377 = vunpack.c.l.b16 %v2395
    %v3378 = vunpack.c.h.b16 %v2395
    %v3379 = vunpack.c.l.b16 %v2396
    %v3380 = vunpack.c.h.b16 %v2396
    %v3381 = vunpack.c.l.b16 %v2397
    %v3382 = vunpack.c.h.b16 %v2397
    %v3383 = vunpack.c.l.b16 %v2398
    %v3384 = vunpack.c.h.b16 %v2398
    %v3385 = vunpack.c.l.b16 %v2399
    %v3386 = vunpack.c.h.b16 %v2399
    %v3387 = vunpack.c.l.b16 %v2400
    %v3388 = vunpack.c.h.b16 %v2400
    %v3389 = vunpack.c.l.b16 %v2401
    %v3390 = vunpack.c.h.b16 %v2401
    %v3391 = vunpack.c.l.b16 %v2402
    %v3392 = vunpack.c.h.b16 %v2402
    %v3393 = vunpack.c.l.b16 %v2403
    %v3394 = vunpack.c.h.b16 %v2403
    %v3395 = vunpack.c.l.b16 %v2404
    %v3396 = vunpack.c.h.b16 %v2404
    %v3397 = vunpack.c.l.b16 %v2405
    %v3398 = vunpack.c.h.b16 %v2405
    %v3399 = vunpack.c.l.b16 %v2406
    %v3400 = vunpack.c.h.b16 %v2406
    %v3401 = vunpack.c.l.b16 %v2407
    %v3402 = vunpack.c.h.b16 %v2407
    %v3403 = vunpack.c.l.b16 %v2408
    %v3404 = vunpack.c.h.b16 %v2408
    %v3405 = vunpack.c.l.b16 %v2409
    %v3406 = vunpack.c.h.b16 %v2409
    %v3407 = vunpack.c.l.b16 %v2410
    %v3408 = vunpack.c.h.b16 %v2410
    %v3409 = vunpack.c.l.b16 %v2411
    %v3410 = vunpack.c.h.b16 %v2411
    %v3411 = vunpack.c.l.b16 %v2412
    %v3412 = vunpack.c.h.b16 %v2412
    %v3413 = vunpack.c.l.b16 %v2413
    %v3414 = vunpack.c.h.b16 %v2413
    %v3415 = vunpack.c.l.b16 %v2414
    %v3416 = vunpack.c.h.b16 %v2414
    %v3417 = vunpack.c.l.b16 %v2415
    %v3418 = vunpack.c.h.b16 %v2415
    %v3419 = vunpack.c.l.b16 %v2416
    %v3420 = vunpack.c.h.b16 %v2416
    %v3421 = vunpack.c.l.b16 %v2417
    %v3422 = vunpack.c.h.b16 %v2417
    %v3423 = vunpack.c.l.b16 %v2418
    %v3424 = vunpack.c.h.b16 %v2418
    %v3425 = vunpack.c.l.b16 %v2419
    %v3426 = vunpack.c.h.b16 %v2419
    %v3427 = vunpack.c.l.b16 %v2420
    %v3428 = vunpack.c.h.b16 %v2420
    %v3429 = vunpack.c.l.b16 %v2421
    %v3430 = vunpack.c.h.b16 %v2421
    %v3431 = vunpack.c.l.b16 %v2422
    %v3432 = vunpack.c.h.b16 %v2422
    %v3433 = vunpack.c.l.b16 %v2423
    %v3434 = vunpack.c.h.b16 %v2423
    %v3435 = vunpack.c.l.b16 %v2424
    %v3436 = vunpack.c.h.b16 %v2424
    %v3437 = vunpack.c.l.b16 %v2425
    %v3438 = vunpack.c.h.b16 %v2425
    %v3439 = vunpack.c.l.b16 %v2426
    %v3440 = vunpack.c.h.b16 %v2426
    %v3441 = vunpack.c.l.b16 %v2427
    %v3442 = vunpack.c.h.b16 %v2427
    %v3443 = vunpack.c.l.b16 %v2428
    %v3444 = vunpack.c.h.b16 %v2428
    %v3445 = vunpack.c.l.b16 %v2429
    %v3446 = vunpack.c.h.b16 %v2429
    %v3447 = vunpack.c.l.b16 %v2430
    %v3448 = vunpack.c.h.b16 %v2430
    %v3449 = vunpack.c.l.b16 %v2431
    %v3450 = vunpack.c.h.b16 %v2431
    %v3451 = vunpack.c.l.b16 %v2432
    %v3452 = vunpack.c.h.b16 %v2432
    %v3453 = vunpack.c.l.b16 %v2433
    %v3454 = vunpack.c.h.b16 %v2433
    %v3455 = vunpack.c.l.b16 %v2434
    %v3456 = vunpack.c.h.b16 %v2434
    %v3457 = vunpack.c.l.b16 %v2435
    %v3458 = vunpack.c.h.b16 %v2435
    %v3459 = vunpack.c.l.b16 %v2436
    %v3460 = vunpack.c.h.b16 %v2436
    %v3461 = vpack.c.b16 %v2957, %v2949
    %v3462 = vpack.c.b16 %v2958, %v2950
    %v3463 = vpack.c.b16 %v2959, %v2951
    %v3464 = vpack.c.b16 %v2960, %v2952
    %v3465 = vpack.c.b16 %v2961, %v2953
    %v3466 = vpack.c.b16 %v2962, %v2954
    %v3467 = vpack.c.b16 %v2963, %v2955
    %v3468 = vpack.c.b16 %v2964, %v2956
    %v3469 = vpack.c.b16 %v2973, %v2965
    %v3470 = vpack.c.b16 %v2974, %v2966
    %v3471 = vpack.c.b16 %v2975, %v2967
    %v3472 = vpack.c.b16 %v2976, %v2968
    %v3473 = vpack.c.b16 %v2977, %v2969
    %v3474 = vpack.c.b16 %v2978, %v2970
    %v3475 = vpack.c.b16 %v2979, %v2971
    %v3476 = vpack.c.b16 %v2980, %v2972
    %v3477 = vpack.c.b16 %v2989, %v2981
    %v3478 = vpack.c.b16 %v2990, %v2982
    %v3479 = vpack.c.b16 %v2991, %v2983
    %v3480 = vpack.c.b16 %v2992, %v2984
    %v3481 = vpack.c.b16 %v2993, %v2985
    %v3482 = vpack.c.b16 %v2994, %v2986
    %v3483 = vpack.c.b16 %v2995, %v2987
    %v3484 = vpack.c.b16 %v2996, %v2988
    %v3485 = vpack.c.b16 %v3005, %v2997
    %v3486 = vpack.c.b16 %v3006, %v2998
    %v3487 = vpack.c.b16 %v3007, %v2999
    %v3488 = vpack.c.b16 %v3008, %v3000
    %v3489 = vpack.c.b16 %v3009, %v3001
    %v3490 = vpack.c.b16 %v3010, %v3002
    %v3491 = vpack.c.b16 %v3011, %v3003
    %v3492 = vpack.c.b16 %v3012, %v3004
    %v3493 = vpack.c.b16 %v3021, %v3013
    %v3494 = vpack.c.b16 %v3022, %v3014
    %v3495 = vpack.c.b16 %v3023, %v3015
    %v3496 = vpack.c.b16 %v3024, %v3016
    %v3497 = vpack.c.b16 %v3025, %v3017
    %v3498 = vpack.c.b16 %v3026, %v3018
    %v3499 = vpack.c.b16 %v3027, %v3019
    %v3500 = vpack.c.b16 %v3028, %v3020
    %v3501 = vpack.c.b16 %v3037, %v3029
    %v3502 = vpack.c.b16 %v3038, %v3030
    %v3503 = vpack.c.b16 %v3039, %v3031
    %v3504 = vpack.c.b16 %v3040, %v3032
    %v3505 = vpack.c.b16 %v3041, %v3033
    %v3506 = vpack.c.b16 %v3042, %v3034
    %v3507 = vpack.c.b16 %v3043, %v3035
    %v3508 = vpack.c.b16 %v3044, %v3036
    %v3509 = vpack.c.b16 %v3053, %v3045
    %v3510 = vpack.c.b16 %v3054, %v3046
    %v3511 = vpack.c.b16 %v3055, %v3047
    %v3512 = vpack.c.b16 %v3056, %v3048
    %v3513 = vpack.c.b16 %v3057, %v3049
    %v3514 = vpack.c.b16 %v3058, %v3050
    %v3515 = vpack.c.b16 %v3059, %v3051
    %v3516 = vpack.c.b16 %v3060, %v3052
    %v3517 = vpack.c.b16 %v3069, %v3061
    %v3518 = vpack.c.b16 %v3070, %v3062
    %v3519 = vpack.c.b16 %v3071, %v3063
    %v3520 = vpack.c.b16 %v3072, %v3064
    %v3521 = vpack.c.b16 %v3073, %v3065
    %v3522 = vpack.c.b16 %v3074, %v3066
    %v3523 = vpack.c.b16 %v3075, %v3067
    %v3524 = vpack.c.b16 %v3076, %v3068
    %v3525 = vpack.c.b16 %v3085, %v3077
    %v3526 = vpack.c.b16 %v3086, %v3078
    %v3527 = vpack.c.b16 %v3087, %v3079
    %v3528 = vpack.c.b16 %v3088, %v3080
    %v3529 = vpack.c.b16 %v3089, %v3081
    %v3530 = vpack.c.b16 %v3090, %v3082
    %v3531 = vpack.c.b16 %v3091, %v3083
    %v3532 = vpack.c.b16 %v3092, %v3084
    %v3533 = vpack.c.b16 %v3101, %v3093
    %v3534 = vpack.c.b16 %v3102, %v3094
    %v3535 = vpack.c.b16 %v3103, %v3095
    %v3536 = vpack.c.b16 %v3104, %v3096
    %v3537 = vpack.c.b16 %v3105, %v3097
    %v3538 = vpack.c.b16 %v3106, %v3098
    %v3539 = vpack.c.b16 %v3107, %v3099
    %v3540 = vpack.c.b16 %v3108, %v3100
    %v3541 = vpack.c.b16 %v3117, %v3109
    %v3542 = vpack.c.b16 %v3118, %v3110
    %v3543 = vpack.c.b16 %v3119, %v3111
    %v3544 = vpack.c.b16 %v3120, %v3112
    %v3545 = vpack.c.b16 %v3121, %v3113
    %v3546 = vpack.c.b16 %v3122, %v3114
    %v3547 = vpack.c.b16 %v3123, %v3115
    %v3548 = vpack.c.b16 %v3124, %v3116
    %v3549 = vpack.c.b16 %v3133, %v3125
    %v3550 = vpack.c.b16 %v3134, %v3126
    %v3551 = vpack.c.b16 %v3135, %v3127
    %v3552 = vpack.c.b16 %v3136, %v3128
    %v3553 = vpack.c.b16 %v3137, %v3129
    %v3554 = vpack.c.b16 %v3138, %v3130
    %v3555 = vpack.c.b16 %v3139, %v3131
    %v3556 = vpack.c.b16 %v3140, %v3132
    %v3557 = vpack.c.b16 %v3149, %v3141
    %v3558 = vpack.c.b16 %v3150, %v3142
    %v3559 = vpack.c.b16 %v3151, %v3143
    %v3560 = vpack.c.b16 %v3152, %v3144
    %v3561 = vpack.c.b16 %v3153, %v3145
    %v3562 = vpack.c.b16 %v3154, %v3146
    %v3563 = vpack.c.b16 %v3155, %v3147
    %v3564 = vpack.c.b16 %v3156, %v3148
    %v3565 = vpack.c.b16 %v3165, %v3157
    %v3566 = vpack.c.b16 %v3166, %v3158
    %v3567 = vpack.c.b16 %v3167, %v3159
    %v3568 = vpack.c.b16 %v3168, %v3160
    %v3569 = vpack.c.b16 %v3169, %v3161
    %v3570 = vpack.c.b16 %v3170, %v3162
    %v3571 = vpack.c.b16 %v3171, %v3163
    %v3572 = vpack.c.b16 %v3172, %v3164
    %v3573 = vpack.c.b16 %v3181, %v3173
    %v3574 = vpack.c.b16 %v3182, %v3174
    %v3575 = vpack.c.b16 %v3183, %v3175
    %v3576 = vpack.c.b16 %v3184, %v3176
    %v3577 = vpack.c.b16 %v3185, %v3177
    %v3578 = vpack.c.b16 %v3186, %v3178
    %v3579 = vpack.c.b16 %v3187, %v3179
    %v3580 = vpack.c.b16 %v3188, %v3180
    %v3581 = vpack.c.b16 %v3197, %v3189
    %v3582 = vpack.c.b16 %v3198, %v3190
    %v3583 = vpack.c.b16 %v3199, %v3191
    %v3584 = vpack.c.b16 %v3200, %v3192
    %v3585 = vpack.c.b16 %v3201, %v3193
    %v3586 = vpack.c.b16 %v3202, %v3194
    %v3587 = vpack.c.b16 %v3203, %v3195
    %v3588 = vpack.c.b16 %v3204, %v3196
    %v3589 = vpack.c.b16 %v3213, %v3205
    %v3590 = vpack.c.b16 %v3214, %v3206
    %v3591 = vpack.c.b16 %v3215, %v3207
    %v3592 = vpack.c.b16 %v3216, %v3208
    %v3593 = vpack.c.b16 %v3217, %v3209
    %v3594 = vpack.c.b16 %v3218, %v3210
    %v3595 = vpack.c.b16 %v3219, %v3211
    %v3596 = vpack.c.b16 %v3220, %v3212
    %v3597 = vpack.c.b16 %v3229, %v3221
    %v3598 = vpack.c.b16 %v3230, %v3222
    %v3599 = vpack.c.b16 %v3231, %v3223
    %v3600 = vpack.c.b16 %v3232, %v3224
    %v3601 = vpack.c.b16 %v3233, %v3225
    %v3602 = vpack.c.b16 %v3234, %v3226
    %v3603 = vpack.c.b16 %v3235, %v3227
    %v3604 = vpack.c.b16 %v3236, %v3228
    %v3605 = vpack.c.b16 %v3245, %v3237
    %v3606 = vpack.c.b16 %v3246, %v3238
    %v3607 = vpack.c.b16 %v3247, %v3239
    %v3608 = vpack.c.b16 %v3248, %v3240
    %v3609 = vpack.c.b16 %v3249, %v3241
    %v3610 = vpack.c.b16 %v3250, %v3242
    %v3611 = vpack.c.b16 %v3251, %v3243
    %v3612 = vpack.c.b16 %v3252, %v3244
    %v3613 = vpack.c.b16 %v3261, %v3253
    %v3614 = vpack.c.b16 %v3262, %v3254
    %v3615 = vpack.c.b16 %v3263, %v3255
    %v3616 = vpack.c.b16 %v3264, %v3256
    %v3617 = vpack.c.b16 %v3265, %v3257
    %v3618 = vpack.c.b16 %v3266, %v3258
    %v3619 = vpack.c.b16 %v3267, %v3259
    %v3620 = vpack.c.b16 %v3268, %v3260
    %v3621 = vpack.c.b16 %v3277, %v3269
    %v3622 = vpack.c.b16 %v3278, %v3270
    %v3623 = vpack.c.b16 %v3279, %v3271
    %v3624 = vpack.c.b16 %v3280, %v3272
    %v3625 = vpack.c.b16 %v3281, %v3273
    %v3626 = vpack.c.b16 %v3282, %v3274
    %v3627 = vpack.c.b16 %v3283, %v3275
    %v3628 = vpack.c.b16 %v3284, %v3276
    %v3629 = vpack.c.b16 %v3293, %v3285
    %v3630 = vpack.c.b16 %v3294, %v3286
    %v3631 = vpack.c.b16 %v3295, %v3287
    %v3632 = vpack.c.b16 %v3296, %v3288
    %v3633 = vpack.c.b16 %v3297, %v3289
    %v3634 = vpack.c.b16 %v3298, %v3290
    %v3635 = vpack.c.b16 %v3299, %v3291
    %v3636 = vpack.c.b16 %v3300, %v3292
    %v3637 = vpack.c.b16 %v3309, %v3301
    %v3638 = vpack.c.b16 %v3310, %v3302
    %v3639 = vpack.c.b16 %v3311, %v3303
    %v3640 = vpack.c.b16 %v3312, %v3304
    %v3641 = vpack.c.b16 %v3313, %v3305
    %v3642 = vpack.c.b16 %v3314, %v3306
    %v3643 = vpack.c.b16 %v3315, %v3307
    %v3644 = vpack.c.b16 %v3316, %v3308
    %v3645 = vpack.c.b16 %v3325, %v3317
    %v3646 = vpack.c.b16 %v3326, %v3318
    %v3647 = vpack.c.b16 %v3327, %v3319
    %v3648 = vpack.c.b16 %v3328, %v3320
    %v3649 = vpack.c.b16 %v3329, %v3321
    %v3650 = vpack.c.b16 %v3330, %v3322
    %v3651 = vpack.c.b16 %v3331, %v3323
    %v3652 = vpack.c.b16 %v3332, %v3324
    %v3653 = vpack.c.b16 %v3341, %v3333
    %v3654 = vpack.c.b16 %v3342, %v3334
    %v3655 = vpack.c.b16 %v3343, %v3335
    %v3656 = vpack.c.b16 %v3344, %v3336
    %v3657 = vpack.c.b16 %v3345, %v3337
    %v3658 = vpack.c.b16 %v3346, %v3338
    %v3659 = vpack.c.b16 %v3347, %v3339
    %v3660 = vpack.c.b16 %v3348, %v3340
    %v3661 = vpack.c.b16 %v3357, %v3349
    %v3662 = vpack.c.b16 %v3358, %v3350
    %v3663 = vpack.c.b16 %v3359, %v3351
    %v3664 = vpack.c.b16 %v3360, %v3352
    %v3665 = vpack.c.b16 %v3361, %v3353
    %v3666 = vpack.c.b16 %v3362, %v3354
    %v3667 = vpack.c.b16 %v3363, %v3355
    %v3668 = vpack.c.b16 %v3364, %v3356
    %v3669 = vpack.c.b16 %v3373, %v3365
    %v3670 = vpack.c.b16 %v3374, %v3366
    %v3671 = vpack.c.b16 %v3375, %v3367
    %v3672 = vpack.c.b16 %v3376, %v3368
    %v3673 = vpack.c.b16 %v3377, %v3369
    %v3674 = vpack.c.b16 %v3378, %v3370
    %v3675 = vpack.c.b16 %v3379, %v3371
    %v3676 = vpack.c.b16 %v3380, %v3372
    %v3677 = vpack.c.b16 %v3389, %v3381
    %v3678 = vpack.c.b16 %v3390, %v3382
    %v3679 = vpack.c.b16 %v3391, %v3383
    %v3680 = vpack.c.b16 %v3392, %v3384
    %v3681 = vpack.c.b16 %v3393, %v3385
    %v3682 = vpack.c.b16 %v3394, %v3386
    %v3683 = vpack.c.b16 %v3395, %v3387
    %v3684 = vpack.c.b16 %v3396, %v3388
    %v3685 = vpack.c.b16 %v3405, %v3397
    %v3686 = vpack.c.b16 %v3406, %v3398
    %v3687 = vpack.c.b16 %v3407, %v3399
    %v3688 = vpack.c.b16 %v3408, %v3400
    %v3689 = vpack.c.b16 %v3409, %v3401
    %v3690 = vpack.c.b16 %v3410, %v3402
    %v3691 = vpack.c.b16 %v3411, %v3403
    %v3692 = vpack.c.b16 %v3412, %v3404
    %v3693 = vpack.c.b16 %v3421, %v3413
    %v3694 = vpack.c.b16 %v3422, %v3414
    %v3695 = vpack.c.b16 %v3423, %v3415
    %v3696 = vpack.c.b16 %v3424, %v3416
    %v3697 = vpack.c.b16 %v3425, %v3417
    %v3698 = vpack.c.b16 %v3426, %v3418
    %v3699 = vpack.c.b16 %v3427, %v3419
    %v3700 = vpack.c.b16 %v3428, %v3420
    %v3701 = vpack.c.b16 %v3437, %v3429
    %v3702 = vpack.c.b16 %v3438, %v3430
    %v3703 = vpack.c.b16 %v3439, %v3431
    %v3704 = vpack.c.b16 %v3440, %v3432
    %v3705 = vpack.c.b16 %v3441, %v3433
    %v3706 = vpack.c.b16 %v3442, %v3434
    %v3707 = vpack.c.b16 %v3443, %v3435
    %v3708 = vpack.c.b16 %v3444, %v3436
    %v3709 = vpack.c.b16 %v3453, %v3445
    %v3710 = vpack.c.b16 %v3454, %v3446
    %v3711 = vpack.c.b16 %v3455, %v3447
    %v3712 = vpack.c.b16 %v3456, %v3448
    %v3713 = vpack.c.b16 %v3457, %v3449
    %v3714 = vpack.c.b16 %v3458, %v3450
    %v3715 = vpack.c.b16 %v3459, %v3451
    %v3716 = vpack.c.b16 %v3460, %v3452
    %3973 = vmatprep.subr.bf16.mxu0 %v3518
    %3974 = vmatpush1.bf16.msra.mxu0 %v3517
    %3975 = vmatprep.subr.bf16.mxu0 %v3510
    %3976 = vmatpush1.bf16.msra.mxu0 %v3509
    %3977 = vmatprep.subr.bf16.mxu0 %v3502
    %3978 = vmatpush1.bf16.msra.mxu0 %v3501
    %3979 = vmatprep.subr.bf16.mxu0 %v3494
    %3980 = vmatpush1.bf16.msra.mxu0 %v3493
    %3981 = vmatprep.subr.bf16.mxu0 %v3486
    %3982 = vmatpush1.bf16.msra.mxu0 %v3485
    %3983 = vmatprep.subr.bf16.mxu0 %v3478
    %3984 = vmatpush1.bf16.msra.mxu0 %v3477
    %3985 = vmatprep.subr.bf16.mxu0 %v3470
    %3986 = vmatpush1.bf16.msra.mxu0 %v3469
    %3987 = vmatprep.subr.bf16.mxu0 %v3462
    %3988 = vmatpush1.bf16.msra.mxu0 %v3461
    %3989 = vmatprep.subr.bf16.mxu0 %v3582
    %3990 = vmatpush2.bf16.msra.mxu0 %v3581
    %3991 = vmatprep.subr.bf16.mxu0 %v3574
    %3992 = vmatpush2.bf16.msra.mxu0 %v3573
    %3993 = vmatprep.subr.bf16.mxu0 %v3566
    %3994 = vmatpush2.bf16.msra.mxu0 %v3565
    %3995 = vmatprep.subr.bf16.mxu0 %v3558
    %3996 = vmatpush2.bf16.msra.mxu0 %v3557
    %3997 = vmatprep.subr.bf16.mxu0 %v3550
    %3998 = vmatpush2.bf16.msra.mxu0 %v3549
    %3999 = vmatprep.subr.bf16.mxu0 %v3542
    %4000 = vmatpush2.bf16.msra.mxu0 %v3541
    %4001 = vmatprep.subr.bf16.mxu0 %v3534
    %4002 = vmatpush2.bf16.msra.mxu0 %v3533
    %4003 = vmatprep.subr.bf16.mxu0 %v3526
    %4004 = vmatpush2.bf16.msra.mxu0 %v3525
    %4005 = vmatprep.mubr.bf16.mxu0 %v1727
    %4006 = vmatmul.mubr.bf16.gmra.mxu0 %v1726
    %v4007 = vpop.f32.mrf.mxu0
    %v4008 = vadd.f32 0.0, %v4007
    %v4009 = vpop.f32.mrf.mxu0
    %v4010 = vadd.f32 0.0, %v4009
    %v4011 = vpop.f32.mrf.mxu0
    %v4012 = vadd.f32 0.0, %v4011
    %v4013 = vpop.f32.mrf.mxu0
    %v4014 = vadd.f32 0.0, %v4013
    %4015 = vdwg.mxu0
    %4016 = vmatprep.subr.bf16.mxu0 %v3646
    %4017 = vmatpush1.bf16.msra.mxu0 %v3645
    %4018 = vmatprep.subr.bf16.mxu0 %v3638
    %4019 = vmatpush1.bf16.msra.mxu0 %v3637
    %4020 = vmatprep.subr.bf16.mxu0 %v3630
    %4021 = vmatpush1.bf16.msra.mxu0 %v3629
    %4022 = vmatprep.subr.bf16.mxu0 %v3622
    %4023 = vmatpush1.bf16.msra.mxu0 %v3621
    %4024 = vmatprep.subr.bf16.mxu0 %v3614
    %4025 = vmatpush1.bf16.msra.mxu0 %v3613
    %4026 = vmatprep.subr.bf16.mxu0 %v3606
    %4027 = vmatpush1.bf16.msra.mxu0 %v3605
    %4028 = vmatprep.subr.bf16.mxu0 %v3598
    %4029 = vmatpush1.bf16.msra.mxu0 %v3597
    %4030 = vmatprep.subr.bf16.mxu0 %v3590
    %4031 = vmatpush1.bf16.msra.mxu0 %v3589
    %4032 = vmatprep.subr.bf16.mxu0 %v3710
    %4033 = vmatpush2.bf16.msra.mxu0 %v3709
    %4034 = vmatprep.subr.bf16.mxu0 %v3702
    %4035 = vmatpush2.bf16.msra.mxu0 %v3701
    %4036 = vmatprep.subr.bf16.mxu0 %v3694
    %4037 = vmatpush2.bf16.msra.mxu0 %v3693
    %4038 = vmatprep.subr.bf16.mxu0 %v3686
    %4039 = vmatpush2.bf16.msra.mxu0 %v3685
    %4040 = vmatprep.subr.bf16.mxu0 %v3678
    %4041 = vmatpush2.bf16.msra.mxu0 %v3677
    %4042 = vmatprep.subr.bf16.mxu0 %v3670
    %4043 = vmatpush2.bf16.msra.mxu0 %v3669
    %4044 = vmatprep.subr.bf16.mxu0 %v3662
    %4045 = vmatpush2.bf16.msra.mxu0 %v3661
    %4046 = vmatprep.subr.bf16.mxu0 %v3654
    %4047 = vmatpush2.bf16.msra.mxu0 %v3653
    %4048 = vmatprep.mubr.bf16.mxu0 %v1729
    %4049 = vmatmul.mubr.bf16.gmra.mxu0 %v1728
    %v4050 = vpop.f32.mrf.mxu0
    %v4051 = vadd.f32 %v4008, %v4050
    %v4052 = vpop.f32.mrf.mxu0
    %v4053 = vadd.f32 %v4010, %v4052
    %v4054 = vpop.f32.mrf.mxu0
    %v4055 = vadd.f32 %v4012, %v4054
    %v4056 = vpop.f32.mrf.mxu0
    %v4057 = vadd.f32 %v4014, %v4056
    %4058 = vdwg.mxu0
    %4059 = vmatprep.subr.bf16.mxu0 %v3520
    %4060 = vmatpush1.bf16.msra.mxu0 %v3519
    %4061 = vmatprep.subr.bf16.mxu0 %v3512
    %4062 = vmatpush1.bf16.msra.mxu0 %v3511
    %4063 = vmatprep.subr.bf16.mxu0 %v3504
    %4064 = vmatpush1.bf16.msra.mxu0 %v3503
    %4065 = vmatprep.subr.bf16.mxu0 %v3496
    %4066 = vmatpush1.bf16.msra.mxu0 %v3495
    %4067 = vmatprep.subr.bf16.mxu0 %v3488
    %4068 = vmatpush1.bf16.msra.mxu0 %v3487
    %4069 = vmatprep.subr.bf16.mxu0 %v3480
    %4070 = vmatpush1.bf16.msra.mxu0 %v3479
    %4071 = vmatprep.subr.bf16.mxu0 %v3472
    %4072 = vmatpush1.bf16.msra.mxu0 %v3471
    %4073 = vmatprep.subr.bf16.mxu0 %v3464
    %4074 = vmatpush1.bf16.msra.mxu0 %v3463
    %4075 = vmatprep.subr.bf16.mxu0 %v3584
    %4076 = vmatpush2.bf16.msra.mxu0 %v3583
    %4077 = vmatprep.subr.bf16.mxu0 %v3576
    %4078 = vmatpush2.bf16.msra.mxu0 %v3575
    %4079 = vmatprep.subr.bf16.mxu0 %v3568
    %4080 = vmatpush2.bf16.msra.mxu0 %v3567
    %4081 = vmatprep.subr.bf16.mxu0 %v3560
    %4082 = vmatpush2.bf16.msra.mxu0 %v3559
    %4083 = vmatprep.subr.bf16.mxu0 %v3552
    %4084 = vmatpush2.bf16.msra.mxu0 %v3551
    %4085 = vmatprep.subr.bf16.mxu0 %v3544
    %4086 = vmatpush2.bf16.msra.mxu0 %v3543
    %4087 = vmatprep.subr.bf16.mxu0 %v3536
    %4088 = vmatpush2.bf16.msra.mxu0 %v3535
    %4089 = vmatprep.subr.bf16.mxu0 %v3528
    %4090 = vmatpush2.bf16.msra.mxu0 %v3527
    %4091 = vmatprep.mubr.bf16.mxu0 %v1727
    %4092 = vmatmul.mubr.bf16.gmra.mxu0 %v1726
    %v4093 = vpop.f32.mrf.mxu0
    %v4094 = vadd.f32 0.0, %v4093
    %v4095 = vpop.f32.mrf.mxu0
    %v4096 = vadd.f32 0.0, %v4095
    %v4097 = vpop.f32.mrf.mxu0
    %v4098 = vadd.f32 0.0, %v4097
    %v4099 = vpop.f32.mrf.mxu0
    %v4100 = vadd.f32 0.0, %v4099
    %4101 = vdwg.mxu0
    %4102 = vmatprep.subr.bf16.mxu0 %v3648
    %4103 = vmatpush1.bf16.msra.mxu0 %v3647
    %4104 = vmatprep.subr.bf16.mxu0 %v3640
    %4105 = vmatpush1.bf16.msra.mxu0 %v3639
    %4106 = vmatprep.subr.bf16.mxu0 %v3632
    %4107 = vmatpush1.bf16.msra.mxu0 %v3631
    %4108 = vmatprep.subr.bf16.mxu0 %v3624
    %4109 = vmatpush1.bf16.msra.mxu0 %v3623
    %4110 = vmatprep.subr.bf16.mxu0 %v3616
    %4111 = vmatpush1.bf16.msra.mxu0 %v3615
    %4112 = vmatprep.subr.bf16.mxu0 %v3608
    %4113 = vmatpush1.bf16.msra.mxu0 %v3607
    %4114 = vmatprep.subr.bf16.mxu0 %v3600
    %4115 = vmatpush1.bf16.msra.mxu0 %v3599
    %4116 = vmatprep.subr.bf16.mxu0 %v3592
    %4117 = vmatpush1.bf16.msra.mxu0 %v3591
    %4118 = vmatprep.subr.bf16.mxu0 %v3712
    %4119 = vmatpush2.bf16.msra.mxu0 %v3711
    %4120 = vmatprep.subr.bf16.mxu0 %v3704
    %4121 = vmatpush2.bf16.msra.mxu0 %v3703
    %4122 = vmatprep.subr.bf16.mxu0 %v3696
    %4123 = vmatpush2.bf16.msra.mxu0 %v3695
    %4124 = vmatprep.subr.bf16.mxu0 %v3688
    %4125 = vmatpush2.bf16.msra.mxu0 %v3687
    %4126 = vmatprep.subr.bf16.mxu0 %v3680
    %4127 = vmatpush2.bf16.msra.mxu0 %v3679
    %4128 = vmatprep.subr.bf16.mxu0 %v3672
    %4129 = vmatpush2.bf16.msra.mxu0 %v3671
    %4130 = vmatprep.subr.bf16.mxu0 %v3664
    %4131 = vmatpush2.bf16.msra.mxu0 %v3663
    %4132 = vmatprep.subr.bf16.mxu0 %v3656
    %4133 = vmatpush2.bf16.msra.mxu0 %v3655
    %4134 = vmatprep.mubr.bf16.mxu0 %v1729
    %4135 = vmatmul.mubr.bf16.gmra.mxu0 %v1728
    %v4136 = vpop.f32.mrf.mxu0
    %v4137 = vadd.f32 %v4094, %v4136
    %v4138 = vpop.f32.mrf.mxu0
    %v4139 = vadd.f32 %v4096, %v4138
    %v4140 = vpop.f32.mrf.mxu0
    %v4141 = vadd.f32 %v4098, %v4140
    %v4142 = vpop.f32.mrf.mxu0
    %v4143 = vadd.f32 %v4100, %v4142
    %4144 = vdwg.mxu0
    %4145 = vmatprep.subr.bf16.mxu0 %v3522
    %4146 = vmatpush1.bf16.msra.mxu0 %v3521
    %4147 = vmatprep.subr.bf16.mxu0 %v3514
    %4148 = vmatpush1.bf16.msra.mxu0 %v3513
    %4149 = vmatprep.subr.bf16.mxu0 %v3506
    %4150 = vmatpush1.bf16.msra.mxu0 %v3505
    %4151 = vmatprep.subr.bf16.mxu0 %v3498
    %4152 = vmatpush1.bf16.msra.mxu0 %v3497
    %4153 = vmatprep.subr.bf16.mxu0 %v3490
    %4154 = vmatpush1.bf16.msra.mxu0 %v3489
    %4155 = vmatprep.subr.bf16.mxu0 %v3482
    %4156 = vmatpush1.bf16.msra.mxu0 %v3481
    %4157 = vmatprep.subr.bf16.mxu0 %v3474
    %4158 = vmatpush1.bf16.msra.mxu0 %v3473
    %4159 = vmatprep.subr.bf16.mxu0 %v3466
    %4160 = vmatpush1.bf16.msra.mxu0 %v3465
    %4161 = vmatprep.subr.bf16.mxu0 %v3586
    %4162 = vmatpush2.bf16.msra.mxu0 %v3585
    %4163 = vmatprep.subr.bf16.mxu0 %v3578
    %4164 = vmatpush2.bf16.msra.mxu0 %v3577
    %4165 = vmatprep.subr.bf16.mxu0 %v3570
    %4166 = vmatpush2.bf16.msra.mxu0 %v3569
    %4167 = vmatprep.subr.bf16.mxu0 %v3562
    %4168 = vmatpush2.bf16.msra.mxu0 %v3561
    %4169 = vmatprep.subr.bf16.mxu0 %v3554
    %4170 = vmatpush2.bf16.msra.mxu0 %v3553
    %4171 = vmatprep.subr.bf16.mxu0 %v3546
    %4172 = vmatpush2.bf16.msra.mxu0 %v3545
    %4173 = vmatprep.subr.bf16.mxu0 %v3538
    %4174 = vmatpush2.bf16.msra.mxu0 %v3537
    %4175 = vmatprep.subr.bf16.mxu0 %v3530
    %4176 = vmatpush2.bf16.msra.mxu0 %v3529
    %4177 = vmatprep.mubr.bf16.mxu0 %v1727
    %4178 = vmatmul.mubr.bf16.gmra.mxu0 %v1726
    %v4179 = vpop.f32.mrf.mxu0
    %v4180 = vadd.f32 0.0, %v4179
    %v4181 = vpop.f32.mrf.mxu0
    %v4182 = vadd.f32 0.0, %v4181
    %v4183 = vpop.f32.mrf.mxu0
    %v4184 = vadd.f32 0.0, %v4183
    %v4185 = vpop.f32.mrf.mxu0
    %v4186 = vadd.f32 0.0, %v4185
    %4187 = vdwg.mxu0
    %4188 = vmatprep.subr.bf16.mxu0 %v3650
    %4189 = vmatpush1.bf16.msra.mxu0 %v3649
    %4190 = vmatprep.subr.bf16.mxu0 %v3642
    %4191 = vmatpush1.bf16.msra.mxu0 %v3641
    %4192 = vmatprep.subr.bf16.mxu0 %v3634
    %4193 = vmatpush1.bf16.msra.mxu0 %v3633
    %4194 = vmatprep.subr.bf16.mxu0 %v3626
    %4195 = vmatpush1.bf16.msra.mxu0 %v3625
    %4196 = vmatprep.subr.bf16.mxu0 %v3618
    %4197 = vmatpush1.bf16.msra.mxu0 %v3617
    %4198 = vmatprep.subr.bf16.mxu0 %v3610
    %4199 = vmatpush1.bf16.msra.mxu0 %v3609
    %4200 = vmatprep.subr.bf16.mxu0 %v3602
    %4201 = vmatpush1.bf16.msra.mxu0 %v3601
    %4202 = vmatprep.subr.bf16.mxu0 %v3594
    %4203 = vmatpush1.bf16.msra.mxu0 %v3593
    %4204 = vmatprep.subr.bf16.mxu0 %v3714
    %4205 = vmatpush2.bf16.msra.mxu0 %v3713
    %4206 = vmatprep.subr.bf16.mxu0 %v3706
    %4207 = vmatpush2.bf16.msra.mxu0 %v3705
    %4208 = vmatprep.subr.bf16.mxu0 %v3698
    %4209 = vmatpush2.bf16.msra.mxu0 %v3697
    %4210 = vmatprep.subr.bf16.mxu0 %v3690
    %4211 = vmatpush2.bf16.msra.mxu0 %v3689
    %4212 = vmatprep.subr.bf16.mxu0 %v3682
    %4213 = vmatpush2.bf16.msra.mxu0 %v3681
    %4214 = vmatprep.subr.bf16.mxu0 %v3674
    %4215 = vmatpush2.bf16.msra.mxu0 %v3673
    %4216 = vmatprep.subr.bf16.mxu0 %v3666
    %4217 = vmatpush2.bf16.msra.mxu0 %v3665
    %4218 = vmatprep.subr.bf16.mxu0 %v3658
    %4219 = vmatpush2.bf16.msra.mxu0 %v3657
    %4220 = vmatprep.mubr.bf16.mxu0 %v1729
    %4221 = vmatmul.mubr.bf16.gmra.mxu0 %v1728
    %v4222 = vpop.f32.mrf.mxu0
    %v4223 = vadd.f32 %v4180, %v4222
    %v4224 = vpop.f32.mrf.mxu0
    %v4225 = vadd.f32 %v4182, %v4224
    %v4226 = vpop.f32.mrf.mxu0
    %v4227 = vadd.f32 %v4184, %v4226
    %v4228 = vpop.f32.mrf.mxu0
    %v4229 = vadd.f32 %v4186, %v4228
    %4230 = vdwg.mxu0
    %4231 = vmatprep.subr.bf16.mxu0 %v3524
    %4232 = vmatpush1.bf16.msra.mxu0 %v3523
    %4233 = vmatprep.subr.bf16.mxu0 %v3516
    %4234 = vmatpush1.bf16.msra.mxu0 %v3515
    %4235 = vmatprep.subr.bf16.mxu0 %v3508
    %4236 = vmatpush1.bf16.msra.mxu0 %v3507
    %4237 = vmatprep.subr.bf16.mxu0 %v3500
    %4238 = vmatpush1.bf16.msra.mxu0 %v3499
    %4239 = vmatprep.subr.bf16.mxu0 %v3492
    %4240 = vmatpush1.bf16.msra.mxu0 %v3491
    %4241 = vmatprep.subr.bf16.mxu0 %v3484
    %4242 = vmatpush1.bf16.msra.mxu0 %v3483
    %4243 = vmatprep.subr.bf16.mxu0 %v3476
    %4244 = vmatpush1.bf16.msra.mxu0 %v3475
    %4245 = vmatprep.subr.bf16.mxu0 %v3468
    %4246 = vmatpush1.bf16.msra.mxu0 %v3467
    %4247 = vmatprep.subr.bf16.mxu0 %v3588
    %4248 = vmatpush2.bf16.msra.mxu0 %v3587
    %4249 = vmatprep.subr.bf16.mxu0 %v3580
    %4250 = vmatpush2.bf16.msra.mxu0 %v3579
    %4251 = vmatprep.subr.bf16.mxu0 %v3572
    %4252 = vmatpush2.bf16.msra.mxu0 %v3571
    %4253 = vmatprep.subr.bf16.mxu0 %v3564
    %4254 = vmatpush2.bf16.msra.mxu0 %v3563
    %4255 = vmatprep.subr.bf16.mxu0 %v3556
    %4256 = vmatpush2.bf16.msra.mxu0 %v3555
    %4257 = vmatprep.subr.bf16.mxu0 %v3548
    %4258 = vmatpush2.bf16.msra.mxu0 %v3547
    %4259 = vmatprep.subr.bf16.mxu0 %v3540
    %4260 = vmatpush2.bf16.msra.mxu0 %v3539
    %4261 = vmatprep.subr.bf16.mxu0 %v3532
    %4262 = vmatpush2.bf16.msra.mxu0 %v3531
    %4263 = vmatprep.mubr.bf16.mxu0 %v1727
    %4264 = vmatmul.mubr.bf16.gmra.mxu0 %v1726
    %v4265 = vpop.f32.mrf.mxu0
    %v4266 = vadd.f32 0.0, %v4265
    %v4267 = vpop.f32.mrf.mxu0
    %v4268 = vadd.f32 0.0, %v4267
    %v4269 = vpop.f32.mrf.mxu0
    %v4270 = vadd.f32 0.0, %v4269
    %v4271 = vpop.f32.mrf.mxu0
    %v4272 = vadd.f32 0.0, %v4271
    %4273 = vdwg.mxu0
    %4274 = vmatprep.subr.bf16.mxu0 %v3652
    %4275 = vmatpush1.bf16.msra.mxu0 %v3651
    %4276 = vmatprep.subr.bf16.mxu0 %v3644
    %4277 = vmatpush1.bf16.msra.mxu0 %v3643
    %4278 = vmatprep.subr.bf16.mxu0 %v3636
    %4279 = vmatpush1.bf16.msra.mxu0 %v3635
    %4280 = vmatprep.subr.bf16.mxu0 %v3628
    %4281 = vmatpush1.bf16.msra.mxu0 %v3627
    %4282 = vmatprep.subr.bf16.mxu0 %v3620
    %4283 = vmatpush1.bf16.msra.mxu0 %v3619
    %4284 = vmatprep.subr.bf16.mxu0 %v3612
    %4285 = vmatpush1.bf16.msra.mxu0 %v3611
    %4286 = vmatprep.subr.bf16.mxu0 %v3604
    %4287 = vmatpush1.bf16.msra.mxu0 %v3603
    %4288 = vmatprep.subr.bf16.mxu0 %v3596
    %4289 = vmatpush1.bf16.msra.mxu0 %v3595
    %4290 = vmatprep.subr.bf16.mxu0 %v3716
    %4291 = vmatpush2.bf16.msra.mxu0 %v3715
    %4292 = vmatprep.subr.bf16.mxu0 %v3708
    %4293 = vmatpush2.bf16.msra.mxu0 %v3707
    %4294 = vmatprep.subr.bf16.mxu0 %v3700
    %4295 = vmatpush2.bf16.msra.mxu0 %v3699
    %4296 = vmatprep.subr.bf16.mxu0 %v3692
    %4297 = vmatpush2.bf16.msra.mxu0 %v3691
    %4298 = vmatprep.subr.bf16.mxu0 %v3684
    %4299 = vmatpush2.bf16.msra.mxu0 %v3683
    %4300 = vmatprep.subr.bf16.mxu0 %v3676
    %4301 = vmatpush2.bf16.msra.mxu0 %v3675
    %4302 = vmatprep.subr.bf16.mxu0 %v3668
    %4303 = vmatpush2.bf16.msra.mxu0 %v3667
    %4304 = vmatprep.subr.bf16.mxu0 %v3660
    %4305 = vmatpush2.bf16.msra.mxu0 %v3659
    %4306 = vmatprep.mubr.bf16.mxu0 %v1729
    %4307 = vmatmul.mubr.bf16.gmra.mxu0 %v1728
    %v4308 = vpop.f32.mrf.mxu0
    %v4309 = vadd.f32 %v4266, %v4308
    %v4310 = vpop.f32.mrf.mxu0
    %v4311 = vadd.f32 %v4268, %v4310
    %v4312 = vpop.f32.mrf.mxu0
    %v4313 = vadd.f32 %v4270, %v4312
    %v4314 = vpop.f32.mrf.mxu0
    %v4315 = vadd.f32 %v4272, %v4314
    %4316 = vdwg.mxu0
    %v4573 = vunpack.c.l.b16 %v1925
    %v4574 = vunpack.c.h.b16 %v1925
    %v4575 = vunpack.c.l.b16 %v1926
    %v4576 = vunpack.c.h.b16 %v1926
    %v4577 = vunpack.c.l.b16 %v1927
    %v4578 = vunpack.c.h.b16 %v1927
    %v4579 = vunpack.c.l.b16 %v1928
    %v4580 = vunpack.c.h.b16 %v1928
    %v4581 = vunpack.c.l.b16 %v1929
    %v4582 = vunpack.c.h.b16 %v1929
    %v4583 = vunpack.c.l.b16 %v1930
    %v4584 = vunpack.c.h.b16 %v1930
    %v4585 = vunpack.c.l.b16 %v1931
    %v4586 = vunpack.c.h.b16 %v1931
    %v4587 = vunpack.c.l.b16 %v1932
    %v4588 = vunpack.c.h.b16 %v1932
    %v4589 = vunpack.c.l.b16 %v1933
    %v4590 = vunpack.c.h.b16 %v1933
    %v4591 = vunpack.c.l.b16 %v1934
    %v4592 = vunpack.c.h.b16 %v1934
    %v4593 = vunpack.c.l.b16 %v1935
    %v4594 = vunpack.c.h.b16 %v1935
    %v4595 = vunpack.c.l.b16 %v1936
    %v4596 = vunpack.c.h.b16 %v1936
    %v4597 = vunpack.c.l.b16 %v1937
    %v4598 = vunpack.c.h.b16 %v1937
    %v4599 = vunpack.c.l.b16 %v1938
    %v4600 = vunpack.c.h.b16 %v1938
    %v4601 = vunpack.c.l.b16 %v1939
    %v4602 = vunpack.c.h.b16 %v1939
    %v4603 = vunpack.c.l.b16 %v1940
    %v4604 = vunpack.c.h.b16 %v1940
    %v4605 = vunpack.c.l.b16 %v1941
    %v4606 = vunpack.c.h.b16 %v1941
    %v4607 = vunpack.c.l.b16 %v1942
    %v4608 = vunpack.c.h.b16 %v1942
    %v4609 = vunpack.c.l.b16 %v1943
    %v4610 = vunpack.c.h.b16 %v1943
    %v4611 = vunpack.c.l.b16 %v1944
    %v4612 = vunpack.c.h.b16 %v1944
    %v4613 = vunpack.c.l.b16 %v1945
    %v4614 = vunpack.c.h.b16 %v1945
    %v4615 = vunpack.c.l.b16 %v1946
    %v4616 = vunpack.c.h.b16 %v1946
    %v4617 = vunpack.c.l.b16 %v1947
    %v4618 = vunpack.c.h.b16 %v1947
    %v4619 = vunpack.c.l.b16 %v1948
    %v4620 = vunpack.c.h.b16 %v1948
    %v4621 = vunpack.c.l.b16 %v1949
    %v4622 = vunpack.c.h.b16 %v1949
    %v4623 = vunpack.c.l.b16 %v1950
    %v4624 = vunpack.c.h.b16 %v1950
    %v4625 = vunpack.c.l.b16 %v1951
    %v4626 = vunpack.c.h.b16 %v1951
    %v4627 = vunpack.c.l.b16 %v1952
    %v4628 = vunpack.c.h.b16 %v1952
    %v4629 = vunpack.c.l.b16 %v1953
    %v4630 = vunpack.c.h.b16 %v1953
    %v4631 = vunpack.c.l.b16 %v1954
    %v4632 = vunpack.c.h.b16 %v1954
    %v4633 = vunpack.c.l.b16 %v1955
    %v4634 = vunpack.c.h.b16 %v1955
    %v4635 = vunpack.c.l.b16 %v1956
    %v4636 = vunpack.c.h.b16 %v1956
    %v4637 = vunpack.c.l.b16 %v1957
    %v4638 = vunpack.c.h.b16 %v1957
    %v4639 = vunpack.c.l.b16 %v1958
    %v4640 = vunpack.c.h.b16 %v1958
    %v4641 = vunpack.c.l.b16 %v1959
    %v4642 = vunpack.c.h.b16 %v1959
    %v4643 = vunpack.c.l.b16 %v1960
    %v4644 = vunpack.c.h.b16 %v1960
    %v4645 = vunpack.c.l.b16 %v1961
    %v4646 = vunpack.c.h.b16 %v1961
    %v4647 = vunpack.c.l.b16 %v1962
    %v4648 = vunpack.c.h.b16 %v1962
    %v4649 = vunpack.c.l.b16 %v1963
    %v4650 = vunpack.c.h.b16 %v1963
    %v4651 = vunpack.c.l.b16 %v1964
    %v4652 = vunpack.c.h.b16 %v1964
    %v4653 = vunpack.c.l.b16 %v1965
    %v4654 = vunpack.c.h.b16 %v1965
    %v4655 = vunpack.c.l.b16 %v1966
    %v4656 = vunpack.c.h.b16 %v1966
    %v4657 = vunpack.c.l.b16 %v1967
    %v4658 = vunpack.c.h.b16 %v1967
    %v4659 = vunpack.c.l.b16 %v1968
    %v4660 = vunpack.c.h.b16 %v1968
    %v4661 = vunpack.c.l.b16 %v1969
    %v4662 = vunpack.c.h.b16 %v1969
    %v4663 = vunpack.c.l.b16 %v1970
    %v4664 = vunpack.c.h.b16 %v1970
    %v4665 = vunpack.c.l.b16 %v1971
    %v4666 = vunpack.c.h.b16 %v1971
    %v4667 = vunpack.c.l.b16 %v1972
    %v4668 = vunpack.c.h.b16 %v1972
    %v4669 = vunpack.c.l.b16 %v1973
    %v4670 = vunpack.c.h.b16 %v1973
    %v4671 = vunpack.c.l.b16 %v1974
    %v4672 = vunpack.c.h.b16 %v1974
    %v4673 = vunpack.c.l.b16 %v1975
    %v4674 = vunpack.c.h.b16 %v1975
    %v4675 = vunpack.c.l.b16 %v1976
    %v4676 = vunpack.c.h.b16 %v1976
    %v4677 = vunpack.c.l.b16 %v1977
    %v4678 = vunpack.c.h.b16 %v1977
    %v4679 = vunpack.c.l.b16 %v1978
    %v4680 = vunpack.c.h.b16 %v1978
    %v4681 = vunpack.c.l.b16 %v1979
    %v4682 = vunpack.c.h.b16 %v1979
    %v4683 = vunpack.c.l.b16 %v1980
    %v4684 = vunpack.c.h.b16 %v1980
    %v4685 = vunpack.c.l.b16 %v1981
    %v4686 = vunpack.c.h.b16 %v1981
    %v4687 = vunpack.c.l.b16 %v1982
    %v4688 = vunpack.c.h.b16 %v1982
    %v4689 = vunpack.c.l.b16 %v1983
    %v4690 = vunpack.c.h.b16 %v1983
    %v4691 = vunpack.c.l.b16 %v1984
    %v4692 = vunpack.c.h.b16 %v1984
    %v4693 = vunpack.c.l.b16 %v1985
    %v4694 = vunpack.c.h.b16 %v1985
    %v4695 = vunpack.c.l.b16 %v1986
    %v4696 = vunpack.c.h.b16 %v1986
    %v4697 = vunpack.c.l.b16 %v1987
    %v4698 = vunpack.c.h.b16 %v1987
    %v4699 = vunpack.c.l.b16 %v1988
    %v4700 = vunpack.c.h.b16 %v1988
    %v4701 = vunpack.c.l.b16 %v1989
    %v4702 = vunpack.c.h.b16 %v1989
    %v4703 = vunpack.c.l.b16 %v1990
    %v4704 = vunpack.c.h.b16 %v1990
    %v4705 = vunpack.c.l.b16 %v1991
    %v4706 = vunpack.c.h.b16 %v1991
    %v4707 = vunpack.c.l.b16 %v1992
    %v4708 = vunpack.c.h.b16 %v1992
    %v4709 = vunpack.c.l.b16 %v1993
    %v4710 = vunpack.c.h.b16 %v1993
    %v4711 = vunpack.c.l.b16 %v1994
    %v4712 = vunpack.c.h.b16 %v1994
    %v4713 = vunpack.c.l.b16 %v1995
    %v4714 = vunpack.c.h.b16 %v1995
    %v4715 = vunpack.c.l.b16 %v1996
    %v4716 = vunpack.c.h.b16 %v1996
    %v4717 = vunpack.c.l.b16 %v1997
    %v4718 = vunpack.c.h.b16 %v1997
    %v4719 = vunpack.c.l.b16 %v1998
    %v4720 = vunpack.c.h.b16 %v1998
    %v4721 = vunpack.c.l.b16 %v1999
    %v4722 = vunpack.c.h.b16 %v1999
    %v4723 = vunpack.c.l.b16 %v2000
    %v4724 = vunpack.c.h.b16 %v2000
    %v4725 = vunpack.c.l.b16 %v2001
    %v4726 = vunpack.c.h.b16 %v2001
    %v4727 = vunpack.c.l.b16 %v2002
    %v4728 = vunpack.c.h.b16 %v2002
    %v4729 = vunpack.c.l.b16 %v2003
    %v4730 = vunpack.c.h.b16 %v2003
    %v4731 = vunpack.c.l.b16 %v2004
    %v4732 = vunpack.c.h.b16 %v2004
    %v4733 = vunpack.c.l.b16 %v2005
    %v4734 = vunpack.c.h.b16 %v2005
    %v4735 = vunpack.c.l.b16 %v2006
    %v4736 = vunpack.c.h.b16 %v2006
    %v4737 = vunpack.c.l.b16 %v2007
    %v4738 = vunpack.c.h.b16 %v2007
    %v4739 = vunpack.c.l.b16 %v2008
    %v4740 = vunpack.c.h.b16 %v2008
    %v4741 = vunpack.c.l.b16 %v2009
    %v4742 = vunpack.c.h.b16 %v2009
    %v4743 = vunpack.c.l.b16 %v2010
    %v4744 = vunpack.c.h.b16 %v2010
    %v4745 = vunpack.c.l.b16 %v2011
    %v4746 = vunpack.c.h.b16 %v2011
    %v4747 = vunpack.c.l.b16 %v2012
    %v4748 = vunpack.c.h.b16 %v2012
    %v4749 = vunpack.c.l.b16 %v2013
    %v4750 = vunpack.c.h.b16 %v2013
    %v4751 = vunpack.c.l.b16 %v2014
    %v4752 = vunpack.c.h.b16 %v2014
    %v4753 = vunpack.c.l.b16 %v2015
    %v4754 = vunpack.c.h.b16 %v2015
    %v4755 = vunpack.c.l.b16 %v2016
    %v4756 = vunpack.c.h.b16 %v2016
    %v4757 = vunpack.c.l.b16 %v2017
    %v4758 = vunpack.c.h.b16 %v2017
    %v4759 = vunpack.c.l.b16 %v2018
    %v4760 = vunpack.c.h.b16 %v2018
    %v4761 = vunpack.c.l.b16 %v2019
    %v4762 = vunpack.c.h.b16 %v2019
    %v4763 = vunpack.c.l.b16 %v2020
    %v4764 = vunpack.c.h.b16 %v2020
    %v4765 = vunpack.c.l.b16 %v2021
    %v4766 = vunpack.c.h.b16 %v2021
    %v4767 = vunpack.c.l.b16 %v2022
    %v4768 = vunpack.c.h.b16 %v2022
    %v4769 = vunpack.c.l.b16 %v2023
    %v4770 = vunpack.c.h.b16 %v2023
    %v4771 = vunpack.c.l.b16 %v2024
    %v4772 = vunpack.c.h.b16 %v2024
    %v4773 = vunpack.c.l.b16 %v2025
    %v4774 = vunpack.c.h.b16 %v2025
    %v4775 = vunpack.c.l.b16 %v2026
    %v4776 = vunpack.c.h.b16 %v2026
    %v4777 = vunpack.c.l.b16 %v2027
    %v4778 = vunpack.c.h.b16 %v2027
    %v4779 = vunpack.c.l.b16 %v2028
    %v4780 = vunpack.c.h.b16 %v2028
    %v4781 = vunpack.c.l.b16 %v2029
    %v4782 = vunpack.c.h.b16 %v2029
    %v4783 = vunpack.c.l.b16 %v2030
    %v4784 = vunpack.c.h.b16 %v2030
    %v4785 = vunpack.c.l.b16 %v2031
    %v4786 = vunpack.c.h.b16 %v2031
    %v4787 = vunpack.c.l.b16 %v2032
    %v4788 = vunpack.c.h.b16 %v2032
    %v4789 = vunpack.c.l.b16 %v2033
    %v4790 = vunpack.c.h.b16 %v2033
    %v4791 = vunpack.c.l.b16 %v2034
    %v4792 = vunpack.c.h.b16 %v2034
    %v4793 = vunpack.c.l.b16 %v2035
    %v4794 = vunpack.c.h.b16 %v2035
    %v4795 = vunpack.c.l.b16 %v2036
    %v4796 = vunpack.c.h.b16 %v2036
    %v4797 = vunpack.c.l.b16 %v2037
    %v4798 = vunpack.c.h.b16 %v2037
    %v4799 = vunpack.c.l.b16 %v2038
    %v4800 = vunpack.c.h.b16 %v2038
    %v4801 = vunpack.c.l.b16 %v2039
    %v4802 = vunpack.c.h.b16 %v2039
    %v4803 = vunpack.c.l.b16 %v2040
    %v4804 = vunpack.c.h.b16 %v2040
    %v4805 = vunpack.c.l.b16 %v2041
    %v4806 = vunpack.c.h.b16 %v2041
    %v4807 = vunpack.c.l.b16 %v2042
    %v4808 = vunpack.c.h.b16 %v2042
    %v4809 = vunpack.c.l.b16 %v2043
    %v4810 = vunpack.c.h.b16 %v2043
    %v4811 = vunpack.c.l.b16 %v2044
    %v4812 = vunpack.c.h.b16 %v2044
    %v4813 = vunpack.c.l.b16 %v2045
    %v4814 = vunpack.c.h.b16 %v2045
    %v4815 = vunpack.c.l.b16 %v2046
    %v4816 = vunpack.c.h.b16 %v2046
    %v4817 = vunpack.c.l.b16 %v2047
    %v4818 = vunpack.c.h.b16 %v2047
    %v4819 = vunpack.c.l.b16 %v2048
    %v4820 = vunpack.c.h.b16 %v2048
    %v4821 = vunpack.c.l.b16 %v2049
    %v4822 = vunpack.c.h.b16 %v2049
    %v4823 = vunpack.c.l.b16 %v2050
    %v4824 = vunpack.c.h.b16 %v2050
    %v4825 = vunpack.c.l.b16 %v2051
    %v4826 = vunpack.c.h.b16 %v2051
    %v4827 = vunpack.c.l.b16 %v2052
    %v4828 = vunpack.c.h.b16 %v2052
    %v4829 = vunpack.c.l.b16 %v2053
    %v4830 = vunpack.c.h.b16 %v2053
    %v4831 = vunpack.c.l.b16 %v2054
    %v4832 = vunpack.c.h.b16 %v2054
    %v4833 = vunpack.c.l.b16 %v2055
    %v4834 = vunpack.c.h.b16 %v2055
    %v4835 = vunpack.c.l.b16 %v2056
    %v4836 = vunpack.c.h.b16 %v2056
    %v4837 = vunpack.c.l.b16 %v2057
    %v4838 = vunpack.c.h.b16 %v2057
    %v4839 = vunpack.c.l.b16 %v2058
    %v4840 = vunpack.c.h.b16 %v2058
    %v4841 = vunpack.c.l.b16 %v2059
    %v4842 = vunpack.c.h.b16 %v2059
    %v4843 = vunpack.c.l.b16 %v2060
    %v4844 = vunpack.c.h.b16 %v2060
    %v4845 = vunpack.c.l.b16 %v2061
    %v4846 = vunpack.c.h.b16 %v2061
    %v4847 = vunpack.c.l.b16 %v2062
    %v4848 = vunpack.c.h.b16 %v2062
    %v4849 = vunpack.c.l.b16 %v2063
    %v4850 = vunpack.c.h.b16 %v2063
    %v4851 = vunpack.c.l.b16 %v2064
    %v4852 = vunpack.c.h.b16 %v2064
    %v4853 = vunpack.c.l.b16 %v2065
    %v4854 = vunpack.c.h.b16 %v2065
    %v4855 = vunpack.c.l.b16 %v2066
    %v4856 = vunpack.c.h.b16 %v2066
    %v4857 = vunpack.c.l.b16 %v2067
    %v4858 = vunpack.c.h.b16 %v2067
    %v4859 = vunpack.c.l.b16 %v2068
    %v4860 = vunpack.c.h.b16 %v2068
    %v4861 = vunpack.c.l.b16 %v2069
    %v4862 = vunpack.c.h.b16 %v2069
    %v4863 = vunpack.c.l.b16 %v2070
    %v4864 = vunpack.c.h.b16 %v2070
    %v4865 = vunpack.c.l.b16 %v2071
    %v4866 = vunpack.c.h.b16 %v2071
    %v4867 = vunpack.c.l.b16 %v2072
    %v4868 = vunpack.c.h.b16 %v2072
    %v4869 = vunpack.c.l.b16 %v2073
    %v4870 = vunpack.c.h.b16 %v2073
    %v4871 = vunpack.c.l.b16 %v2074
    %v4872 = vunpack.c.h.b16 %v2074
    %v4873 = vunpack.c.l.b16 %v2075
    %v4874 = vunpack.c.h.b16 %v2075
    %v4875 = vunpack.c.l.b16 %v2076
    %v4876 = vunpack.c.h.b16 %v2076
    %v4877 = vunpack.c.l.b16 %v2077
    %v4878 = vunpack.c.h.b16 %v2077
    %v4879 = vunpack.c.l.b16 %v2078
    %v4880 = vunpack.c.h.b16 %v2078
    %v4881 = vunpack.c.l.b16 %v2079
    %v4882 = vunpack.c.h.b16 %v2079
    %v4883 = vunpack.c.l.b16 %v2080
    %v4884 = vunpack.c.h.b16 %v2080
    %v4885 = vunpack.c.l.b16 %v2081
    %v4886 = vunpack.c.h.b16 %v2081
    %v4887 = vunpack.c.l.b16 %v2082
    %v4888 = vunpack.c.h.b16 %v2082
    %v4889 = vunpack.c.l.b16 %v2083
    %v4890 = vunpack.c.h.b16 %v2083
    %v4891 = vunpack.c.l.b16 %v2084
    %v4892 = vunpack.c.h.b16 %v2084
    %v4893 = vunpack.c.l.b16 %v2085
    %v4894 = vunpack.c.h.b16 %v2085
    %v4895 = vunpack.c.l.b16 %v2086
    %v4896 = vunpack.c.h.b16 %v2086
    %v4897 = vunpack.c.l.b16 %v2087
    %v4898 = vunpack.c.h.b16 %v2087
    %v4899 = vunpack.c.l.b16 %v2088
    %v4900 = vunpack.c.h.b16 %v2088
    %v4901 = vunpack.c.l.b16 %v2089
    %v4902 = vunpack.c.h.b16 %v2089
    %v4903 = vunpack.c.l.b16 %v2090
    %v4904 = vunpack.c.h.b16 %v2090
    %v4905 = vunpack.c.l.b16 %v2091
    %v4906 = vunpack.c.h.b16 %v2091
    %v4907 = vunpack.c.l.b16 %v2092
    %v4908 = vunpack.c.h.b16 %v2092
    %v4909 = vunpack.c.l.b16 %v2093
    %v4910 = vunpack.c.h.b16 %v2093
    %v4911 = vunpack.c.l.b16 %v2094
    %v4912 = vunpack.c.h.b16 %v2094
    %v4913 = vunpack.c.l.b16 %v2095
    %v4914 = vunpack.c.h.b16 %v2095
    %v4915 = vunpack.c.l.b16 %v2096
    %v4916 = vunpack.c.h.b16 %v2096
    %v4917 = vunpack.c.l.b16 %v2097
    %v4918 = vunpack.c.h.b16 %v2097
    %v4919 = vunpack.c.l.b16 %v2098
    %v4920 = vunpack.c.h.b16 %v2098
    %v4921 = vunpack.c.l.b16 %v2099
    %v4922 = vunpack.c.h.b16 %v2099
    %v4923 = vunpack.c.l.b16 %v2100
    %v4924 = vunpack.c.h.b16 %v2100
    %v4925 = vunpack.c.l.b16 %v2101
    %v4926 = vunpack.c.h.b16 %v2101
    %v4927 = vunpack.c.l.b16 %v2102
    %v4928 = vunpack.c.h.b16 %v2102
    %v4929 = vunpack.c.l.b16 %v2103
    %v4930 = vunpack.c.h.b16 %v2103
    %v4931 = vunpack.c.l.b16 %v2104
    %v4932 = vunpack.c.h.b16 %v2104
    %v4933 = vunpack.c.l.b16 %v2105
    %v4934 = vunpack.c.h.b16 %v2105
    %v4935 = vunpack.c.l.b16 %v2106
    %v4936 = vunpack.c.h.b16 %v2106
    %v4937 = vunpack.c.l.b16 %v2107
    %v4938 = vunpack.c.h.b16 %v2107
    %v4939 = vunpack.c.l.b16 %v2108
    %v4940 = vunpack.c.h.b16 %v2108
    %v4941 = vunpack.c.l.b16 %v2109
    %v4942 = vunpack.c.h.b16 %v2109
    %v4943 = vunpack.c.l.b16 %v2110
    %v4944 = vunpack.c.h.b16 %v2110
    %v4945 = vunpack.c.l.b16 %v2111
    %v4946 = vunpack.c.h.b16 %v2111
    %v4947 = vunpack.c.l.b16 %v2112
    %v4948 = vunpack.c.h.b16 %v2112
    %v4949 = vunpack.c.l.b16 %v2113
    %v4950 = vunpack.c.h.b16 %v2113
    %v4951 = vunpack.c.l.b16 %v2114
    %v4952 = vunpack.c.h.b16 %v2114
    %v4953 = vunpack.c.l.b16 %v2115
    %v4954 = vunpack.c.h.b16 %v2115
    %v4955 = vunpack.c.l.b16 %v2116
    %v4956 = vunpack.c.h.b16 %v2116
    %v4957 = vunpack.c.l.b16 %v2117
    %v4958 = vunpack.c.h.b16 %v2117
    %v4959 = vunpack.c.l.b16 %v2118
    %v4960 = vunpack.c.h.b16 %v2118
    %v4961 = vunpack.c.l.b16 %v2119
    %v4962 = vunpack.c.h.b16 %v2119
    %v4963 = vunpack.c.l.b16 %v2120
    %v4964 = vunpack.c.h.b16 %v2120
    %v4965 = vunpack.c.l.b16 %v2121
    %v4966 = vunpack.c.h.b16 %v2121
    %v4967 = vunpack.c.l.b16 %v2122
    %v4968 = vunpack.c.h.b16 %v2122
    %v4969 = vunpack.c.l.b16 %v2123
    %v4970 = vunpack.c.h.b16 %v2123
    %v4971 = vunpack.c.l.b16 %v2124
    %v4972 = vunpack.c.h.b16 %v2124
    %v4973 = vunpack.c.l.b16 %v2125
    %v4974 = vunpack.c.h.b16 %v2125
    %v4975 = vunpack.c.l.b16 %v2126
    %v4976 = vunpack.c.h.b16 %v2126
    %v4977 = vunpack.c.l.b16 %v2127
    %v4978 = vunpack.c.h.b16 %v2127
    %v4979 = vunpack.c.l.b16 %v2128
    %v4980 = vunpack.c.h.b16 %v2128
    %v4981 = vunpack.c.l.b16 %v2129
    %v4982 = vunpack.c.h.b16 %v2129
    %v4983 = vunpack.c.l.b16 %v2130
    %v4984 = vunpack.c.h.b16 %v2130
    %v4985 = vunpack.c.l.b16 %v2131
    %v4986 = vunpack.c.h.b16 %v2131
    %v4987 = vunpack.c.l.b16 %v2132
    %v4988 = vunpack.c.h.b16 %v2132
    %v4989 = vunpack.c.l.b16 %v2133
    %v4990 = vunpack.c.h.b16 %v2133
    %v4991 = vunpack.c.l.b16 %v2134
    %v4992 = vunpack.c.h.b16 %v2134
    %v4993 = vunpack.c.l.b16 %v2135
    %v4994 = vunpack.c.h.b16 %v2135
    %v4995 = vunpack.c.l.b16 %v2136
    %v4996 = vunpack.c.h.b16 %v2136
    %v4997 = vunpack.c.l.b16 %v2137
    %v4998 = vunpack.c.h.b16 %v2137
    %v4999 = vunpack.c.l.b16 %v2138
    %v5000 = vunpack.c.h.b16 %v2138
    %v5001 = vunpack.c.l.b16 %v2139
    %v5002 = vunpack.c.h.b16 %v2139
    %v5003 = vunpack.c.l.b16 %v2140
    %v5004 = vunpack.c.h.b16 %v2140
    %v5005 = vunpack.c.l.b16 %v2141
    %v5006 = vunpack.c.h.b16 %v2141
    %v5007 = vunpack.c.l.b16 %v2142
    %v5008 = vunpack.c.h.b16 %v2142
    %v5009 = vunpack.c.l.b16 %v2143
    %v5010 = vunpack.c.h.b16 %v2143
    %v5011 = vunpack.c.l.b16 %v2144
    %v5012 = vunpack.c.h.b16 %v2144
    %v5013 = vunpack.c.l.b16 %v2145
    %v5014 = vunpack.c.h.b16 %v2145
    %v5015 = vunpack.c.l.b16 %v2146
    %v5016 = vunpack.c.h.b16 %v2146
    %v5017 = vunpack.c.l.b16 %v2147
    %v5018 = vunpack.c.h.b16 %v2147
    %v5019 = vunpack.c.l.b16 %v2148
    %v5020 = vunpack.c.h.b16 %v2148
    %v5021 = vunpack.c.l.b16 %v2149
    %v5022 = vunpack.c.h.b16 %v2149
    %v5023 = vunpack.c.l.b16 %v2150
    %v5024 = vunpack.c.h.b16 %v2150
    %v5025 = vunpack.c.l.b16 %v2151
    %v5026 = vunpack.c.h.b16 %v2151
    %v5027 = vunpack.c.l.b16 %v2152
    %v5028 = vunpack.c.h.b16 %v2152
    %v5029 = vunpack.c.l.b16 %v2153
    %v5030 = vunpack.c.h.b16 %v2153
    %v5031 = vunpack.c.l.b16 %v2154
    %v5032 = vunpack.c.h.b16 %v2154
    %v5033 = vunpack.c.l.b16 %v2155
    %v5034 = vunpack.c.h.b16 %v2155
    %v5035 = vunpack.c.l.b16 %v2156
    %v5036 = vunpack.c.h.b16 %v2156
    %v5037 = vunpack.c.l.b16 %v2157
    %v5038 = vunpack.c.h.b16 %v2157
    %v5039 = vunpack.c.l.b16 %v2158
    %v5040 = vunpack.c.h.b16 %v2158
    %v5041 = vunpack.c.l.b16 %v2159
    %v5042 = vunpack.c.h.b16 %v2159
    %v5043 = vunpack.c.l.b16 %v2160
    %v5044 = vunpack.c.h.b16 %v2160
    %v5045 = vunpack.c.l.b16 %v2161
    %v5046 = vunpack.c.h.b16 %v2161
    %v5047 = vunpack.c.l.b16 %v2162
    %v5048 = vunpack.c.h.b16 %v2162
    %v5049 = vunpack.c.l.b16 %v2163
    %v5050 = vunpack.c.h.b16 %v2163
    %v5051 = vunpack.c.l.b16 %v2164
    %v5052 = vunpack.c.h.b16 %v2164
    %v5053 = vunpack.c.l.b16 %v2165
    %v5054 = vunpack.c.h.b16 %v2165
    %v5055 = vunpack.c.l.b16 %v2166
    %v5056 = vunpack.c.h.b16 %v2166
    %v5057 = vunpack.c.l.b16 %v2167
    %v5058 = vunpack.c.h.b16 %v2167
    %v5059 = vunpack.c.l.b16 %v2168
    %v5060 = vunpack.c.h.b16 %v2168
    %v5061 = vunpack.c.l.b16 %v2169
    %v5062 = vunpack.c.h.b16 %v2169
    %v5063 = vunpack.c.l.b16 %v2170
    %v5064 = vunpack.c.h.b16 %v2170
    %v5065 = vunpack.c.l.b16 %v2171
    %v5066 = vunpack.c.h.b16 %v2171
    %v5067 = vunpack.c.l.b16 %v2172
    %v5068 = vunpack.c.h.b16 %v2172
    %v5069 = vunpack.c.l.b16 %v2173
    %v5070 = vunpack.c.h.b16 %v2173
    %v5071 = vunpack.c.l.b16 %v2174
    %v5072 = vunpack.c.h.b16 %v2174
    %v5073 = vunpack.c.l.b16 %v2175
    %v5074 = vunpack.c.h.b16 %v2175
    %v5075 = vunpack.c.l.b16 %v2176
    %v5076 = vunpack.c.h.b16 %v2176
    %v5077 = vunpack.c.l.b16 %v2177
    %v5078 = vunpack.c.h.b16 %v2177
    %v5079 = vunpack.c.l.b16 %v2178
    %v5080 = vunpack.c.h.b16 %v2178
    %v5081 = vunpack.c.l.b16 %v2179
    %v5082 = vunpack.c.h.b16 %v2179
    %v5083 = vunpack.c.l.b16 %v2180
    %v5084 = vunpack.c.h.b16 %v2180
    %v5085 = vpack.c.b16 %v4581, %v4573
    %v5086 = vpack.c.b16 %v4582, %v4574
    %v5087 = vpack.c.b16 %v4583, %v4575
    %v5088 = vpack.c.b16 %v4584, %v4576
    %v5089 = vpack.c.b16 %v4585, %v4577
    %v5090 = vpack.c.b16 %v4586, %v4578
    %v5091 = vpack.c.b16 %v4587, %v4579
    %v5092 = vpack.c.b16 %v4588, %v4580
    %v5093 = vpack.c.b16 %v4597, %v4589
    %v5094 = vpack.c.b16 %v4598, %v4590
    %v5095 = vpack.c.b16 %v4599, %v4591
    %v5096 = vpack.c.b16 %v4600, %v4592
    %v5097 = vpack.c.b16 %v4601, %v4593
    %v5098 = vpack.c.b16 %v4602, %v4594
    %v5099 = vpack.c.b16 %v4603, %v4595
    %v5100 = vpack.c.b16 %v4604, %v4596
    %v5101 = vpack.c.b16 %v4613, %v4605
    %v5102 = vpack.c.b16 %v4614, %v4606
    %v5103 = vpack.c.b16 %v4615, %v4607
    %v5104 = vpack.c.b16 %v4616, %v4608
    %v5105 = vpack.c.b16 %v4617, %v4609
    %v5106 = vpack.c.b16 %v4618, %v4610
    %v5107 = vpack.c.b16 %v4619, %v4611
    %v5108 = vpack.c.b16 %v4620, %v4612
    %v5109 = vpack.c.b16 %v4629, %v4621
    %v5110 = vpack.c.b16 %v4630, %v4622
    %v5111 = vpack.c.b16 %v4631, %v4623
    %v5112 = vpack.c.b16 %v4632, %v4624
    %v5113 = vpack.c.b16 %v4633, %v4625
    %v5114 = vpack.c.b16 %v4634, %v4626
    %v5115 = vpack.c.b16 %v4635, %v4627
    %v5116 = vpack.c.b16 %v4636, %v4628
    %v5117 = vpack.c.b16 %v4645, %v4637
    %v5118 = vpack.c.b16 %v4646, %v4638
    %v5119 = vpack.c.b16 %v4647, %v4639
    %v5120 = vpack.c.b16 %v4648, %v4640
    %v5121 = vpack.c.b16 %v4649, %v4641
    %v5122 = vpack.c.b16 %v4650, %v4642
    %v5123 = vpack.c.b16 %v4651, %v4643
    %v5124 = vpack.c.b16 %v4652, %v4644
    %v5125 = vpack.c.b16 %v4661, %v4653
    %v5126 = vpack.c.b16 %v4662, %v4654
    %v5127 = vpack.c.b16 %v4663, %v4655
    %v5128 = vpack.c.b16 %v4664, %v4656
    %v5129 = vpack.c.b16 %v4665, %v4657
    %v5130 = vpack.c.b16 %v4666, %v4658
    %v5131 = vpack.c.b16 %v4667, %v4659
    %v5132 = vpack.c.b16 %v4668, %v4660
    %v5133 = vpack.c.b16 %v4677, %v4669
    %v5134 = vpack.c.b16 %v4678, %v4670
    %v5135 = vpack.c.b16 %v4679, %v4671
    %v5136 = vpack.c.b16 %v4680, %v4672
    %v5137 = vpack.c.b16 %v4681, %v4673
    %v5138 = vpack.c.b16 %v4682, %v4674
    %v5139 = vpack.c.b16 %v4683, %v4675
    %v5140 = vpack.c.b16 %v4684, %v4676
    %v5141 = vpack.c.b16 %v4693, %v4685
    %v5142 = vpack.c.b16 %v4694, %v4686
    %v5143 = vpack.c.b16 %v4695, %v4687
    %v5144 = vpack.c.b16 %v4696, %v4688
    %v5145 = vpack.c.b16 %v4697, %v4689
    %v5146 = vpack.c.b16 %v4698, %v4690
    %v5147 = vpack.c.b16 %v4699, %v4691
    %v5148 = vpack.c.b16 %v4700, %v4692
    %v5149 = vpack.c.b16 %v4709, %v4701
    %v5150 = vpack.c.b16 %v4710, %v4702
    %v5151 = vpack.c.b16 %v4711, %v4703
    %v5152 = vpack.c.b16 %v4712, %v4704
    %v5153 = vpack.c.b16 %v4713, %v4705
    %v5154 = vpack.c.b16 %v4714, %v4706
    %v5155 = vpack.c.b16 %v4715, %v4707
    %v5156 = vpack.c.b16 %v4716, %v4708
    %v5157 = vpack.c.b16 %v4725, %v4717
    %v5158 = vpack.c.b16 %v4726, %v4718
    %v5159 = vpack.c.b16 %v4727, %v4719
    %v5160 = vpack.c.b16 %v4728, %v4720
    %v5161 = vpack.c.b16 %v4729, %v4721
    %v5162 = vpack.c.b16 %v4730, %v4722
    %v5163 = vpack.c.b16 %v4731, %v4723
    %v5164 = vpack.c.b16 %v4732, %v4724
    %v5165 = vpack.c.b16 %v4741, %v4733
    %v5166 = vpack.c.b16 %v4742, %v4734
    %v5167 = vpack.c.b16 %v4743, %v4735
    %v5168 = vpack.c.b16 %v4744, %v4736
    %v5169 = vpack.c.b16 %v4745, %v4737
    %v5170 = vpack.c.b16 %v4746, %v4738
    %v5171 = vpack.c.b16 %v4747, %v4739
    %v5172 = vpack.c.b16 %v4748, %v4740
    %v5173 = vpack.c.b16 %v4757, %v4749
    %v5174 = vpack.c.b16 %v4758, %v4750
    %v5175 = vpack.c.b16 %v4759, %v4751
    %v5176 = vpack.c.b16 %v4760, %v4752
    %v5177 = vpack.c.b16 %v4761, %v4753
    %v5178 = vpack.c.b16 %v4762, %v4754
    %v5179 = vpack.c.b16 %v4763, %v4755
    %v5180 = vpack.c.b16 %v4764, %v4756
    %v5181 = vpack.c.b16 %v4773, %v4765
    %v5182 = vpack.c.b16 %v4774, %v4766
    %v5183 = vpack.c.b16 %v4775, %v4767
    %v5184 = vpack.c.b16 %v4776, %v4768
    %v5185 = vpack.c.b16 %v4777, %v4769
    %v5186 = vpack.c.b16 %v4778, %v4770
    %v5187 = vpack.c.b16 %v4779, %v4771
    %v5188 = vpack.c.b16 %v4780, %v4772
    %v5189 = vpack.c.b16 %v4789, %v4781
    %v5190 = vpack.c.b16 %v4790, %v4782
    %v5191 = vpack.c.b16 %v4791, %v4783
    %v5192 = vpack.c.b16 %v4792, %v4784
    %v5193 = vpack.c.b16 %v4793, %v4785
    %v5194 = vpack.c.b16 %v4794, %v4786
    %v5195 = vpack.c.b16 %v4795, %v4787
    %v5196 = vpack.c.b16 %v4796, %v4788
    %v5197 = vpack.c.b16 %v4805, %v4797
    %v5198 = vpack.c.b16 %v4806, %v4798
    %v5199 = vpack.c.b16 %v4807, %v4799
    %v5200 = vpack.c.b16 %v4808, %v4800
    %v5201 = vpack.c.b16 %v4809, %v4801
    %v5202 = vpack.c.b16 %v4810, %v4802
    %v5203 = vpack.c.b16 %v4811, %v4803
    %v5204 = vpack.c.b16 %v4812, %v4804
    %v5205 = vpack.c.b16 %v4821, %v4813
    %v5206 = vpack.c.b16 %v4822, %v4814
    %v5207 = vpack.c.b16 %v4823, %v4815
    %v5208 = vpack.c.b16 %v4824, %v4816
    %v5209 = vpack.c.b16 %v4825, %v4817
    %v5210 = vpack.c.b16 %v4826, %v4818
    %v5211 = vpack.c.b16 %v4827, %v4819
    %v5212 = vpack.c.b16 %v4828, %v4820
    %v5213 = vpack.c.b16 %v4837, %v4829
    %v5214 = vpack.c.b16 %v4838, %v4830
    %v5215 = vpack.c.b16 %v4839, %v4831
    %v5216 = vpack.c.b16 %v4840, %v4832
    %v5217 = vpack.c.b16 %v4841, %v4833
    %v5218 = vpack.c.b16 %v4842, %v4834
    %v5219 = vpack.c.b16 %v4843, %v4835
    %v5220 = vpack.c.b16 %v4844, %v4836
    %v5221 = vpack.c.b16 %v4853, %v4845
    %v5222 = vpack.c.b16 %v4854, %v4846
    %v5223 = vpack.c.b16 %v4855, %v4847
    %v5224 = vpack.c.b16 %v4856, %v4848
    %v5225 = vpack.c.b16 %v4857, %v4849
    %v5226 = vpack.c.b16 %v4858, %v4850
    %v5227 = vpack.c.b16 %v4859, %v4851
    %v5228 = vpack.c.b16 %v4860, %v4852
    %v5229 = vpack.c.b16 %v4869, %v4861
    %v5230 = vpack.c.b16 %v4870, %v4862
    %v5231 = vpack.c.b16 %v4871, %v4863
    %v5232 = vpack.c.b16 %v4872, %v4864
    %v5233 = vpack.c.b16 %v4873, %v4865
    %v5234 = vpack.c.b16 %v4874, %v4866
    %v5235 = vpack.c.b16 %v4875, %v4867
    %v5236 = vpack.c.b16 %v4876, %v4868
    %v5237 = vpack.c.b16 %v4885, %v4877
    %v5238 = vpack.c.b16 %v4886, %v4878
    %v5239 = vpack.c.b16 %v4887, %v4879
    %v5240 = vpack.c.b16 %v4888, %v4880
    %v5241 = vpack.c.b16 %v4889, %v4881
    %v5242 = vpack.c.b16 %v4890, %v4882
    %v5243 = vpack.c.b16 %v4891, %v4883
    %v5244 = vpack.c.b16 %v4892, %v4884
    %v5245 = vpack.c.b16 %v4901, %v4893
    %v5246 = vpack.c.b16 %v4902, %v4894
    %v5247 = vpack.c.b16 %v4903, %v4895
    %v5248 = vpack.c.b16 %v4904, %v4896
    %v5249 = vpack.c.b16 %v4905, %v4897
    %v5250 = vpack.c.b16 %v4906, %v4898
    %v5251 = vpack.c.b16 %v4907, %v4899
    %v5252 = vpack.c.b16 %v4908, %v4900
    %v5253 = vpack.c.b16 %v4917, %v4909
    %v5254 = vpack.c.b16 %v4918, %v4910
    %v5255 = vpack.c.b16 %v4919, %v4911
    %v5256 = vpack.c.b16 %v4920, %v4912
    %v5257 = vpack.c.b16 %v4921, %v4913
    %v5258 = vpack.c.b16 %v4922, %v4914
    %v5259 = vpack.c.b16 %v4923, %v4915
    %v5260 = vpack.c.b16 %v4924, %v4916
    %v5261 = vpack.c.b16 %v4933, %v4925
    %v5262 = vpack.c.b16 %v4934, %v4926
    %v5263 = vpack.c.b16 %v4935, %v4927
    %v5264 = vpack.c.b16 %v4936, %v4928
    %v5265 = vpack.c.b16 %v4937, %v4929
    %v5266 = vpack.c.b16 %v4938, %v4930
    %v5267 = vpack.c.b16 %v4939, %v4931
    %v5268 = vpack.c.b16 %v4940, %v4932
    %v5269 = vpack.c.b16 %v4949, %v4941
    %v5270 = vpack.c.b16 %v4950, %v4942
    %v5271 = vpack.c.b16 %v4951, %v4943
    %v5272 = vpack.c.b16 %v4952, %v4944
    %v5273 = vpack.c.b16 %v4953, %v4945
    %v5274 = vpack.c.b16 %v4954, %v4946
    %v5275 = vpack.c.b16 %v4955, %v4947
    %v5276 = vpack.c.b16 %v4956, %v4948
    %v5277 = vpack.c.b16 %v4965, %v4957
    %v5278 = vpack.c.b16 %v4966, %v4958
    %v5279 = vpack.c.b16 %v4967, %v4959
    %v5280 = vpack.c.b16 %v4968, %v4960
    %v5281 = vpack.c.b16 %v4969, %v4961
    %v5282 = vpack.c.b16 %v4970, %v4962
    %v5283 = vpack.c.b16 %v4971, %v4963
    %v5284 = vpack.c.b16 %v4972, %v4964
    %v5285 = vpack.c.b16 %v4981, %v4973
    %v5286 = vpack.c.b16 %v4982, %v4974
    %v5287 = vpack.c.b16 %v4983, %v4975
    %v5288 = vpack.c.b16 %v4984, %v4976
    %v5289 = vpack.c.b16 %v4985, %v4977
    %v5290 = vpack.c.b16 %v4986, %v4978
    %v5291 = vpack.c.b16 %v4987, %v4979
    %v5292 = vpack.c.b16 %v4988, %v4980
    %v5293 = vpack.c.b16 %v4997, %v4989
    %v5294 = vpack.c.b16 %v4998, %v4990
    %v5295 = vpack.c.b16 %v4999, %v4991
    %v5296 = vpack.c.b16 %v5000, %v4992
    %v5297 = vpack.c.b16 %v5001, %v4993
    %v5298 = vpack.c.b16 %v5002, %v4994
    %v5299 = vpack.c.b16 %v5003, %v4995
    %v5300 = vpack.c.b16 %v5004, %v4996
    %v5301 = vpack.c.b16 %v5013, %v5005
    %v5302 = vpack.c.b16 %v5014, %v5006
    %v5303 = vpack.c.b16 %v5015, %v5007
    %v5304 = vpack.c.b16 %v5016, %v5008
    %v5305 = vpack.c.b16 %v5017, %v5009
    %v5306 = vpack.c.b16 %v5018, %v5010
    %v5307 = vpack.c.b16 %v5019, %v5011
    %v5308 = vpack.c.b16 %v5020, %v5012
    %v5309 = vpack.c.b16 %v5029, %v5021
    %v5310 = vpack.c.b16 %v5030, %v5022
    %v5311 = vpack.c.b16 %v5031, %v5023
    %v5312 = vpack.c.b16 %v5032, %v5024
    %v5313 = vpack.c.b16 %v5033, %v5025
    %v5314 = vpack.c.b16 %v5034, %v5026
    %v5315 = vpack.c.b16 %v5035, %v5027
    %v5316 = vpack.c.b16 %v5036, %v5028
    %v5317 = vpack.c.b16 %v5045, %v5037
    %v5318 = vpack.c.b16 %v5046, %v5038
    %v5319 = vpack.c.b16 %v5047, %v5039
    %v5320 = vpack.c.b16 %v5048, %v5040
    %v5321 = vpack.c.b16 %v5049, %v5041
    %v5322 = vpack.c.b16 %v5050, %v5042
    %v5323 = vpack.c.b16 %v5051, %v5043
    %v5324 = vpack.c.b16 %v5052, %v5044
    %v5325 = vpack.c.b16 %v5061, %v5053
    %v5326 = vpack.c.b16 %v5062, %v5054
    %v5327 = vpack.c.b16 %v5063, %v5055
    %v5328 = vpack.c.b16 %v5064, %v5056
    %v5329 = vpack.c.b16 %v5065, %v5057
    %v5330 = vpack.c.b16 %v5066, %v5058
    %v5331 = vpack.c.b16 %v5067, %v5059
    %v5332 = vpack.c.b16 %v5068, %v5060
    %v5333 = vpack.c.b16 %v5077, %v5069
    %v5334 = vpack.c.b16 %v5078, %v5070
    %v5335 = vpack.c.b16 %v5079, %v5071
    %v5336 = vpack.c.b16 %v5080, %v5072
    %v5337 = vpack.c.b16 %v5081, %v5073
    %v5338 = vpack.c.b16 %v5082, %v5074
    %v5339 = vpack.c.b16 %v5083, %v5075
    %v5340 = vpack.c.b16 %v5084, %v5076
    %5597 = vmatprep.subr.bf16.mxu0 %v5142
    %5598 = vmatpush1.bf16.msra.mxu0 %v5141
    %5599 = vmatprep.subr.bf16.mxu0 %v5134
    %5600 = vmatpush1.bf16.msra.mxu0 %v5133
    %5601 = vmatprep.subr.bf16.mxu0 %v5126
    %5602 = vmatpush1.bf16.msra.mxu0 %v5125
    %5603 = vmatprep.subr.bf16.mxu0 %v5118
    %5604 = vmatpush1.bf16.msra.mxu0 %v5117
    %5605 = vmatprep.subr.bf16.mxu0 %v5110
    %5606 = vmatpush1.bf16.msra.mxu0 %v5109
    %5607 = vmatprep.subr.bf16.mxu0 %v5102
    %5608 = vmatpush1.bf16.msra.mxu0 %v5101
    %5609 = vmatprep.subr.bf16.mxu0 %v5094
    %5610 = vmatpush1.bf16.msra.mxu0 %v5093
    %5611 = vmatprep.subr.bf16.mxu0 %v5086
    %5612 = vmatpush1.bf16.msra.mxu0 %v5085
    %5613 = vmatprep.subr.bf16.mxu0 %v5206
    %5614 = vmatpush2.bf16.msra.mxu0 %v5205
    %5615 = vmatprep.subr.bf16.mxu0 %v5198
    %5616 = vmatpush2.bf16.msra.mxu0 %v5197
    %5617 = vmatprep.subr.bf16.mxu0 %v5190
    %5618 = vmatpush2.bf16.msra.mxu0 %v5189
    %5619 = vmatprep.subr.bf16.mxu0 %v5182
    %5620 = vmatpush2.bf16.msra.mxu0 %v5181
    %5621 = vmatprep.subr.bf16.mxu0 %v5174
    %5622 = vmatpush2.bf16.msra.mxu0 %v5173
    %5623 = vmatprep.subr.bf16.mxu0 %v5166
    %5624 = vmatpush2.bf16.msra.mxu0 %v5165
    %5625 = vmatprep.subr.bf16.mxu0 %v5158
    %5626 = vmatpush2.bf16.msra.mxu0 %v5157
    %5627 = vmatprep.subr.bf16.mxu0 %v5150
    %5628 = vmatpush2.bf16.msra.mxu0 %v5149
    %5629 = vmatprep.mubr.bf16.mxu0 %v1713
    %5630 = vmatmul.mubr.bf16.gmra.mxu0 %v1712
    %v5631 = vpop.f32.mrf.mxu0
    %v5632 = vadd.f32 %v4051, %v5631
    %v5633 = vpop.f32.mrf.mxu0
    %v5634 = vadd.f32 %v4053, %v5633
    %v5635 = vpop.f32.mrf.mxu0
    %v5636 = vadd.f32 %v4055, %v5635
    %v5637 = vpop.f32.mrf.mxu0
    %v5638 = vadd.f32 %v4057, %v5637
    %5639 = vdwg.mxu0
    %5640 = vmatprep.subr.bf16.mxu0 %v5270
    %5641 = vmatpush1.bf16.msra.mxu0 %v5269
    %5642 = vmatprep.subr.bf16.mxu0 %v5262
    %5643 = vmatpush1.bf16.msra.mxu0 %v5261
    %5644 = vmatprep.subr.bf16.mxu0 %v5254
    %5645 = vmatpush1.bf16.msra.mxu0 %v5253
    %5646 = vmatprep.subr.bf16.mxu0 %v5246
    %5647 = vmatpush1.bf16.msra.mxu0 %v5245
    %5648 = vmatprep.subr.bf16.mxu0 %v5238
    %5649 = vmatpush1.bf16.msra.mxu0 %v5237
    %5650 = vmatprep.subr.bf16.mxu0 %v5230
    %5651 = vmatpush1.bf16.msra.mxu0 %v5229
    %5652 = vmatprep.subr.bf16.mxu0 %v5222
    %5653 = vmatpush1.bf16.msra.mxu0 %v5221
    %5654 = vmatprep.subr.bf16.mxu0 %v5214
    %5655 = vmatpush1.bf16.msra.mxu0 %v5213
    %5656 = vmatprep.subr.bf16.mxu0 %v5334
    %5657 = vmatpush2.bf16.msra.mxu0 %v5333
    %5658 = vmatprep.subr.bf16.mxu0 %v5326
    %5659 = vmatpush2.bf16.msra.mxu0 %v5325
    %5660 = vmatprep.subr.bf16.mxu0 %v5318
    %5661 = vmatpush2.bf16.msra.mxu0 %v5317
    %5662 = vmatprep.subr.bf16.mxu0 %v5310
    %5663 = vmatpush2.bf16.msra.mxu0 %v5309
    %5664 = vmatprep.subr.bf16.mxu0 %v5302
    %5665 = vmatpush2.bf16.msra.mxu0 %v5301
    %5666 = vmatprep.subr.bf16.mxu0 %v5294
    %5667 = vmatpush2.bf16.msra.mxu0 %v5293
    %5668 = vmatprep.subr.bf16.mxu0 %v5286
    %5669 = vmatpush2.bf16.msra.mxu0 %v5285
    %5670 = vmatprep.subr.bf16.mxu0 %v5278
    %5671 = vmatpush2.bf16.msra.mxu0 %v5277
    %5672 = vmatprep.mubr.bf16.mxu0 %v1715
    %5673 = vmatmul.mubr.bf16.gmra.mxu0 %v1714
    %v5674 = vpop.f32.mrf.mxu0
    %v5675 = vadd.f32 %v5632, %v5674
    %v5676 = vpop.f32.mrf.mxu0
    %v5677 = vadd.f32 %v5634, %v5676
    %v5678 = vpop.f32.mrf.mxu0
    %v5679 = vadd.f32 %v5636, %v5678
    %v5680 = vpop.f32.mrf.mxu0
    %v5681 = vadd.f32 %v5638, %v5680
    %5682 = vdwg.mxu0
    %5683 = vmatprep.subr.bf16.mxu0 %v5144
    %5684 = vmatpush1.bf16.msra.mxu0 %v5143
    %5685 = vmatprep.subr.bf16.mxu0 %v5136
    %5686 = vmatpush1.bf16.msra.mxu0 %v5135
    %5687 = vmatprep.subr.bf16.mxu0 %v5128
    %5688 = vmatpush1.bf16.msra.mxu0 %v5127
    %5689 = vmatprep.subr.bf16.mxu0 %v5120
    %5690 = vmatpush1.bf16.msra.mxu0 %v5119
    %5691 = vmatprep.subr.bf16.mxu0 %v5112
    %5692 = vmatpush1.bf16.msra.mxu0 %v5111
    %5693 = vmatprep.subr.bf16.mxu0 %v5104
    %5694 = vmatpush1.bf16.msra.mxu0 %v5103
    %5695 = vmatprep.subr.bf16.mxu0 %v5096
    %5696 = vmatpush1.bf16.msra.mxu0 %v5095
    %5697 = vmatprep.subr.bf16.mxu0 %v5088
    %5698 = vmatpush1.bf16.msra.mxu0 %v5087
    %5699 = vmatprep.subr.bf16.mxu0 %v5208
    %5700 = vmatpush2.bf16.msra.mxu0 %v5207
    %5701 = vmatprep.subr.bf16.mxu0 %v5200
    %5702 = vmatpush2.bf16.msra.mxu0 %v5199
    %5703 = vmatprep.subr.bf16.mxu0 %v5192
    %5704 = vmatpush2.bf16.msra.mxu0 %v5191
    %5705 = vmatprep.subr.bf16.mxu0 %v5184
    %5706 = vmatpush2.bf16.msra.mxu0 %v5183
    %5707 = vmatprep.subr.bf16.mxu0 %v5176
    %5708 = vmatpush2.bf16.msra.mxu0 %v5175
    %5709 = vmatprep.subr.bf16.mxu0 %v5168
    %5710 = vmatpush2.bf16.msra.mxu0 %v5167
    %5711 = vmatprep.subr.bf16.mxu0 %v5160
    %5712 = vmatpush2.bf16.msra.mxu0 %v5159
    %5713 = vmatprep.subr.bf16.mxu0 %v5152
    %5714 = vmatpush2.bf16.msra.mxu0 %v5151
    %5715 = vmatprep.mubr.bf16.mxu0 %v1713
    %5716 = vmatmul.mubr.bf16.gmra.mxu0 %v1712
    %v5717 = vpop.f32.mrf.mxu0
    %v5718 = vadd.f32 %v4137, %v5717
    %v5719 = vpop.f32.mrf.mxu0
    %v5720 = vadd.f32 %v4139, %v5719
    %v5721 = vpop.f32.mrf.mxu0
    %v5722 = vadd.f32 %v4141, %v5721
    %v5723 = vpop.f32.mrf.mxu0
    %v5724 = vadd.f32 %v4143, %v5723
    %5725 = vdwg.mxu0
    %5726 = vmatprep.subr.bf16.mxu0 %v5272
    %5727 = vmatpush1.bf16.msra.mxu0 %v5271
    %5728 = vmatprep.subr.bf16.mxu0 %v5264
    %5729 = vmatpush1.bf16.msra.mxu0 %v5263
    %5730 = vmatprep.subr.bf16.mxu0 %v5256
    %5731 = vmatpush1.bf16.msra.mxu0 %v5255
    %5732 = vmatprep.subr.bf16.mxu0 %v5248
    %5733 = vmatpush1.bf16.msra.mxu0 %v5247
    %5734 = vmatprep.subr.bf16.mxu0 %v5240
    %5735 = vmatpush1.bf16.msra.mxu0 %v5239
    %5736 = vmatprep.subr.bf16.mxu0 %v5232
    %5737 = vmatpush1.bf16.msra.mxu0 %v5231
    %5738 = vmatprep.subr.bf16.mxu0 %v5224
    %5739 = vmatpush1.bf16.msra.mxu0 %v5223
    %5740 = vmatprep.subr.bf16.mxu0 %v5216
    %5741 = vmatpush1.bf16.msra.mxu0 %v5215
    %5742 = vmatprep.subr.bf16.mxu0 %v5336
    %5743 = vmatpush2.bf16.msra.mxu0 %v5335
    %5744 = vmatprep.subr.bf16.mxu0 %v5328
    %5745 = vmatpush2.bf16.msra.mxu0 %v5327
    %5746 = vmatprep.subr.bf16.mxu0 %v5320
    %5747 = vmatpush2.bf16.msra.mxu0 %v5319
    %5748 = vmatprep.subr.bf16.mxu0 %v5312
    %5749 = vmatpush2.bf16.msra.mxu0 %v5311
    %5750 = vmatprep.subr.bf16.mxu0 %v5304
    %5751 = vmatpush2.bf16.msra.mxu0 %v5303
    %5752 = vmatprep.subr.bf16.mxu0 %v5296
    %5753 = vmatpush2.bf16.msra.mxu0 %v5295
    %5754 = vmatprep.subr.bf16.mxu0 %v5288
    %5755 = vmatpush2.bf16.msra.mxu0 %v5287
    %5756 = vmatprep.subr.bf16.mxu0 %v5280
    %5757 = vmatpush2.bf16.msra.mxu0 %v5279
    %5758 = vmatprep.mubr.bf16.mxu0 %v1715
    %5759 = vmatmul.mubr.bf16.gmra.mxu0 %v1714
    %v5760 = vpop.f32.mrf.mxu0
    %v5761 = vadd.f32 %v5718, %v5760
    %v5762 = vpop.f32.mrf.mxu0
    %v5763 = vadd.f32 %v5720, %v5762
    %v5764 = vpop.f32.mrf.mxu0
    %v5765 = vadd.f32 %v5722, %v5764
    %v5766 = vpop.f32.mrf.mxu0
    %v5767 = vadd.f32 %v5724, %v5766
    %5768 = vdwg.mxu0
    %5769 = vmatprep.subr.bf16.mxu0 %v5146
    %5770 = vmatpush1.bf16.msra.mxu0 %v5145
    %5771 = vmatprep.subr.bf16.mxu0 %v5138
    %5772 = vmatpush1.bf16.msra.mxu0 %v5137
    %5773 = vmatprep.subr.bf16.mxu0 %v5130
    %5774 = vmatpush1.bf16.msra.mxu0 %v5129
    %5775 = vmatprep.subr.bf16.mxu0 %v5122
    %5776 = vmatpush1.bf16.msra.mxu0 %v5121
    %5777 = vmatprep.subr.bf16.mxu0 %v5114
    %5778 = vmatpush1.bf16.msra.mxu0 %v5113
    %5779 = vmatprep.subr.bf16.mxu0 %v5106
    %5780 = vmatpush1.bf16.msra.mxu0 %v5105
    %5781 = vmatprep.subr.bf16.mxu0 %v5098
    %5782 = vmatpush1.bf16.msra.mxu0 %v5097
    %5783 = vmatprep.subr.bf16.mxu0 %v5090
    %5784 = vmatpush1.bf16.msra.mxu0 %v5089
    %5785 = vmatprep.subr.bf16.mxu0 %v5210
    %5786 = vmatpush2.bf16.msra.mxu0 %v5209
    %5787 = vmatprep.subr.bf16.mxu0 %v5202
    %5788 = vmatpush2.bf16.msra.mxu0 %v5201
    %5789 = vmatprep.subr.bf16.mxu0 %v5194
    %5790 = vmatpush2.bf16.msra.mxu0 %v5193
    %5791 = vmatprep.subr.bf16.mxu0 %v5186
    %5792 = vmatpush2.bf16.msra.mxu0 %v5185
    %5793 = vmatprep.subr.bf16.mxu0 %v5178
    %5794 = vmatpush2.bf16.msra.mxu0 %v5177
    %5795 = vmatprep.subr.bf16.mxu0 %v5170
    %5796 = vmatpush2.bf16.msra.mxu0 %v5169
    %5797 = vmatprep.subr.bf16.mxu0 %v5162
    %5798 = vmatpush2.bf16.msra.mxu0 %v5161
    %5799 = vmatprep.subr.bf16.mxu0 %v5154
    %5800 = vmatpush2.bf16.msra.mxu0 %v5153
    %5801 = vmatprep.mubr.bf16.mxu0 %v1713
    %5802 = vmatmul.mubr.bf16.gmra.mxu0 %v1712
    %v5803 = vpop.f32.mrf.mxu0
    %v5804 = vadd.f32 %v4223, %v5803
    %v5805 = vpop.f32.mrf.mxu0
    %v5806 = vadd.f32 %v4225, %v5805
    %v5807 = vpop.f32.mrf.mxu0
    %v5808 = vadd.f32 %v4227, %v5807
    %v5809 = vpop.f32.mrf.mxu0
    %v5810 = vadd.f32 %v4229, %v5809
    %5811 = vdwg.mxu0
    %5812 = vmatprep.subr.bf16.mxu0 %v5274
    %5813 = vmatpush1.bf16.msra.mxu0 %v5273
    %5814 = vmatprep.subr.bf16.mxu0 %v5266
    %5815 = vmatpush1.bf16.msra.mxu0 %v5265
    %5816 = vmatprep.subr.bf16.mxu0 %v5258
    %5817 = vmatpush1.bf16.msra.mxu0 %v5257
    %5818 = vmatprep.subr.bf16.mxu0 %v5250
    %5819 = vmatpush1.bf16.msra.mxu0 %v5249
    %5820 = vmatprep.subr.bf16.mxu0 %v5242
    %5821 = vmatpush1.bf16.msra.mxu0 %v5241
    %5822 = vmatprep.subr.bf16.mxu0 %v5234
    %5823 = vmatpush1.bf16.msra.mxu0 %v5233
    %5824 = vmatprep.subr.bf16.mxu0 %v5226
    %5825 = vmatpush1.bf16.msra.mxu0 %v5225
    %5826 = vmatprep.subr.bf16.mxu0 %v5218
    %5827 = vmatpush1.bf16.msra.mxu0 %v5217
    %5828 = vmatprep.subr.bf16.mxu0 %v5338
    %5829 = vmatpush2.bf16.msra.mxu0 %v5337
    %5830 = vmatprep.subr.bf16.mxu0 %v5330
    %5831 = vmatpush2.bf16.msra.mxu0 %v5329
    %5832 = vmatprep.subr.bf16.mxu0 %v5322
    %5833 = vmatpush2.bf16.msra.mxu0 %v5321
    %5834 = vmatprep.subr.bf16.mxu0 %v5314
    %5835 = vmatpush2.bf16.msra.mxu0 %v5313
    %5836 = vmatprep.subr.bf16.mxu0 %v5306
    %5837 = vmatpush2.bf16.msra.mxu0 %v5305
    %5838 = vmatprep.subr.bf16.mxu0 %v5298
    %5839 = vmatpush2.bf16.msra.mxu0 %v5297
    %5840 = vmatprep.subr.bf16.mxu0 %v5290
    %5841 = vmatpush2.bf16.msra.mxu0 %v5289
    %5842 = vmatprep.subr.bf16.mxu0 %v5282
    %5843 = vmatpush2.bf16.msra.mxu0 %v5281
    %5844 = vmatprep.mubr.bf16.mxu0 %v1715
    %5845 = vmatmul.mubr.bf16.gmra.mxu0 %v1714
    %v5846 = vpop.f32.mrf.mxu0
    %v5847 = vadd.f32 %v5804, %v5846
    %v5848 = vpop.f32.mrf.mxu0
    %v5849 = vadd.f32 %v5806, %v5848
    %v5850 = vpop.f32.mrf.mxu0
    %v5851 = vadd.f32 %v5808, %v5850
    %v5852 = vpop.f32.mrf.mxu0
    %v5853 = vadd.f32 %v5810, %v5852
    %5854 = vdwg.mxu0
    %5855 = vmatprep.subr.bf16.mxu0 %v5148
    %5856 = vmatpush1.bf16.msra.mxu0 %v5147
    %5857 = vmatprep.subr.bf16.mxu0 %v5140
    %5858 = vmatpush1.bf16.msra.mxu0 %v5139
    %5859 = vmatprep.subr.bf16.mxu0 %v5132
    %5860 = vmatpush1.bf16.msra.mxu0 %v5131
    %5861 = vmatprep.subr.bf16.mxu0 %v5124
    %5862 = vmatpush1.bf16.msra.mxu0 %v5123
    %5863 = vmatprep.subr.bf16.mxu0 %v5116
    %5864 = vmatpush1.bf16.msra.mxu0 %v5115
    %5865 = vmatprep.subr.bf16.mxu0 %v5108
    %5866 = vmatpush1.bf16.msra.mxu0 %v5107
    %5867 = vmatprep.subr.bf16.mxu0 %v5100
    %5868 = vmatpush1.bf16.msra.mxu0 %v5099
    %5869 = vmatprep.subr.bf16.mxu0 %v5092
    %5870 = vmatpush1.bf16.msra.mxu0 %v5091
    %5871 = vmatprep.subr.bf16.mxu0 %v5212
    %5872 = vmatpush2.bf16.msra.mxu0 %v5211
    %5873 = vmatprep.subr.bf16.mxu0 %v5204
    %5874 = vmatpush2.bf16.msra.mxu0 %v5203
    %5875 = vmatprep.subr.bf16.mxu0 %v5196
    %5876 = vmatpush2.bf16.msra.mxu0 %v5195
    %5877 = vmatprep.subr.bf16.mxu0 %v5188
    %5878 = vmatpush2.bf16.msra.mxu0 %v5187
    %5879 = vmatprep.subr.bf16.mxu0 %v5180
    %5880 = vmatpush2.bf16.msra.mxu0 %v5179
    %5881 = vmatprep.subr.bf16.mxu0 %v5172
    %5882 = vmatpush2.bf16.msra.mxu0 %v5171
    %5883 = vmatprep.subr.bf16.mxu0 %v5164
    %5884 = vmatpush2.bf16.msra.mxu0 %v5163
    %5885 = vmatprep.subr.bf16.mxu0 %v5156
    %5886 = vmatpush2.bf16.msra.mxu0 %v5155
    %5887 = vmatprep.mubr.bf16.mxu0 %v1713
    %5888 = vmatmul.mubr.bf16.gmra.mxu0 %v1712
    %v5889 = vpop.f32.mrf.mxu0
    %v5890 = vadd.f32 %v4309, %v5889
    %v5891 = vpop.f32.mrf.mxu0
    %v5892 = vadd.f32 %v4311, %v5891
    %v5893 = vpop.f32.mrf.mxu0
    %v5894 = vadd.f32 %v4313, %v5893
    %v5895 = vpop.f32.mrf.mxu0
    %v5896 = vadd.f32 %v4315, %v5895
    %5897 = vdwg.mxu0
    %5898 = vmatprep.subr.bf16.mxu0 %v5276
    %5899 = vmatpush1.bf16.msra.mxu0 %v5275
    %5900 = vmatprep.subr.bf16.mxu0 %v5268
    %5901 = vmatpush1.bf16.msra.mxu0 %v5267
    %5902 = vmatprep.subr.bf16.mxu0 %v5260
    %5903 = vmatpush1.bf16.msra.mxu0 %v5259
    %5904 = vmatprep.subr.bf16.mxu0 %v5252
    %5905 = vmatpush1.bf16.msra.mxu0 %v5251
    %5906 = vmatprep.subr.bf16.mxu0 %v5244
    %5907 = vmatpush1.bf16.msra.mxu0 %v5243
    %5908 = vmatprep.subr.bf16.mxu0 %v5236
    %5909 = vmatpush1.bf16.msra.mxu0 %v5235
    %5910 = vmatprep.subr.bf16.mxu0 %v5228
    %5911 = vmatpush1.bf16.msra.mxu0 %v5227
    %5912 = vmatprep.subr.bf16.mxu0 %v5220
    %5913 = vmatpush1.bf16.msra.mxu0 %v5219
    %5914 = vmatprep.subr.bf16.mxu0 %v5340
    %5915 = vmatpush2.bf16.msra.mxu0 %v5339
    %5916 = vmatprep.subr.bf16.mxu0 %v5332
    %5917 = vmatpush2.bf16.msra.mxu0 %v5331
    %5918 = vmatprep.subr.bf16.mxu0 %v5324
    %5919 = vmatpush2.bf16.msra.mxu0 %v5323
    %5920 = vmatprep.subr.bf16.mxu0 %v5316
    %5921 = vmatpush2.bf16.msra.mxu0 %v5315
    %5922 = vmatprep.subr.bf16.mxu0 %v5308
    %5923 = vmatpush2.bf16.msra.mxu0 %v5307
    %5924 = vmatprep.subr.bf16.mxu0 %v5300
    %5925 = vmatpush2.bf16.msra.mxu0 %v5299
    %5926 = vmatprep.subr.bf16.mxu0 %v5292
    %5927 = vmatpush2.bf16.msra.mxu0 %v5291
    %5928 = vmatprep.subr.bf16.mxu0 %v5284
    %5929 = vmatpush2.bf16.msra.mxu0 %v5283
    %5930 = vmatprep.mubr.bf16.mxu0 %v1715
    %5931 = vmatmul.mubr.bf16.gmra.mxu0 %v1714
    %v5932 = vpop.f32.mrf.mxu0
    %v5933 = vadd.f32 %v5890, %v5932
    %v5934 = vpop.f32.mrf.mxu0
    %v5935 = vadd.f32 %v5892, %v5934
    %v5936 = vpop.f32.mrf.mxu0
    %v5937 = vadd.f32 %v5894, %v5936
    %v5938 = vpop.f32.mrf.mxu0
    %v5939 = vadd.f32 %v5896, %v5938
    %5940 = vdwg.mxu0
    %v6197 = vunpack.c.l.b16 %v2437
    %v6198 = vunpack.c.h.b16 %v2437
    %v6199 = vunpack.c.l.b16 %v2438
    %v6200 = vunpack.c.h.b16 %v2438
    %v6201 = vunpack.c.l.b16 %v2439
    %v6202 = vunpack.c.h.b16 %v2439
    %v6203 = vunpack.c.l.b16 %v2440
    %v6204 = vunpack.c.h.b16 %v2440
    %v6205 = vunpack.c.l.b16 %v2441
    %v6206 = vunpack.c.h.b16 %v2441
    %v6207 = vunpack.c.l.b16 %v2442
    %v6208 = vunpack.c.h.b16 %v2442
    %v6209 = vunpack.c.l.b16 %v2443
    %v6210 = vunpack.c.h.b16 %v2443
    %v6211 = vunpack.c.l.b16 %v2444
    %v6212 = vunpack.c.h.b16 %v2444
    %v6213 = vunpack.c.l.b16 %v2445
    %v6214 = vunpack.c.h.b16 %v2445
    %v6215 = vunpack.c.l.b16 %v2446
    %v6216 = vunpack.c.h.b16 %v2446
    %v6217 = vunpack.c.l.b16 %v2447
    %v6218 = vunpack.c.h.b16 %v2447
    %v6219 = vunpack.c.l.b16 %v2448
    %v6220 = vunpack.c.h.b16 %v2448
    %v6221 = vunpack.c.l.b16 %v2449
    %v6222 = vunpack.c.h.b16 %v2449
    %v6223 = vunpack.c.l.b16 %v2450
    %v6224 = vunpack.c.h.b16 %v2450
    %v6225 = vunpack.c.l.b16 %v2451
    %v6226 = vunpack.c.h.b16 %v2451
    %v6227 = vunpack.c.l.b16 %v2452
    %v6228 = vunpack.c.h.b16 %v2452
    %v6229 = vunpack.c.l.b16 %v2453
    %v6230 = vunpack.c.h.b16 %v2453
    %v6231 = vunpack.c.l.b16 %v2454
    %v6232 = vunpack.c.h.b16 %v2454
    %v6233 = vunpack.c.l.b16 %v2455
    %v6234 = vunpack.c.h.b16 %v2455
    %v6235 = vunpack.c.l.b16 %v2456
    %v6236 = vunpack.c.h.b16 %v2456
    %v6237 = vunpack.c.l.b16 %v2457
    %v6238 = vunpack.c.h.b16 %v2457
    %v6239 = vunpack.c.l.b16 %v2458
    %v6240 = vunpack.c.h.b16 %v2458
    %v6241 = vunpack.c.l.b16 %v2459
    %v6242 = vunpack.c.h.b16 %v2459
    %v6243 = vunpack.c.l.b16 %v2460
    %v6244 = vunpack.c.h.b16 %v2460
    %v6245 = vunpack.c.l.b16 %v2461
    %v6246 = vunpack.c.h.b16 %v2461
    %v6247 = vunpack.c.l.b16 %v2462
    %v6248 = vunpack.c.h.b16 %v2462
    %v6249 = vunpack.c.l.b16 %v2463
    %v6250 = vunpack.c.h.b16 %v2463
    %v6251 = vunpack.c.l.b16 %v2464
    %v6252 = vunpack.c.h.b16 %v2464
    %v6253 = vunpack.c.l.b16 %v2465
    %v6254 = vunpack.c.h.b16 %v2465
    %v6255 = vunpack.c.l.b16 %v2466
    %v6256 = vunpack.c.h.b16 %v2466
    %v6257 = vunpack.c.l.b16 %v2467
    %v6258 = vunpack.c.h.b16 %v2467
    %v6259 = vunpack.c.l.b16 %v2468
    %v6260 = vunpack.c.h.b16 %v2468
    %v6261 = vunpack.c.l.b16 %v2469
    %v6262 = vunpack.c.h.b16 %v2469
    %v6263 = vunpack.c.l.b16 %v2470
    %v6264 = vunpack.c.h.b16 %v2470
    %v6265 = vunpack.c.l.b16 %v2471
    %v6266 = vunpack.c.h.b16 %v2471
    %v6267 = vunpack.c.l.b16 %v2472
    %v6268 = vunpack.c.h.b16 %v2472
    %v6269 = vunpack.c.l.b16 %v2473
    %v6270 = vunpack.c.h.b16 %v2473
    %v6271 = vunpack.c.l.b16 %v2474
    %v6272 = vunpack.c.h.b16 %v2474
    %v6273 = vunpack.c.l.b16 %v2475
    %v6274 = vunpack.c.h.b16 %v2475
    %v6275 = vunpack.c.l.b16 %v2476
    %v6276 = vunpack.c.h.b16 %v2476
    %v6277 = vunpack.c.l.b16 %v2477
    %v6278 = vunpack.c.h.b16 %v2477
    %v6279 = vunpack.c.l.b16 %v2478
    %v6280 = vunpack.c.h.b16 %v2478
    %v6281 = vunpack.c.l.b16 %v2479
    %v6282 = vunpack.c.h.b16 %v2479
    %v6283 = vunpack.c.l.b16 %v2480
    %v6284 = vunpack.c.h.b16 %v2480
    %v6285 = vunpack.c.l.b16 %v2481
    %v6286 = vunpack.c.h.b16 %v2481
    %v6287 = vunpack.c.l.b16 %v2482
    %v6288 = vunpack.c.h.b16 %v2482
    %v6289 = vunpack.c.l.b16 %v2483
    %v6290 = vunpack.c.h.b16 %v2483
    %v6291 = vunpack.c.l.b16 %v2484
    %v6292 = vunpack.c.h.b16 %v2484
    %v6293 = vunpack.c.l.b16 %v2485
    %v6294 = vunpack.c.h.b16 %v2485
    %v6295 = vunpack.c.l.b16 %v2486
    %v6296 = vunpack.c.h.b16 %v2486
    %v6297 = vunpack.c.l.b16 %v2487
    %v6298 = vunpack.c.h.b16 %v2487
    %v6299 = vunpack.c.l.b16 %v2488
    %v6300 = vunpack.c.h.b16 %v2488
    %v6301 = vunpack.c.l.b16 %v2489
    %v6302 = vunpack.c.h.b16 %v2489
    %v6303 = vunpack.c.l.b16 %v2490
    %v6304 = vunpack.c.h.b16 %v2490
    %v6305 = vunpack.c.l.b16 %v2491
    %v6306 = vunpack.c.h.b16 %v2491
    %v6307 = vunpack.c.l.b16 %v2492
    %v6308 = vunpack.c.h.b16 %v2492
    %v6309 = vunpack.c.l.b16 %v2493
    %v6310 = vunpack.c.h.b16 %v2493
    %v6311 = vunpack.c.l.b16 %v2494
    %v6312 = vunpack.c.h.b16 %v2494
    %v6313 = vunpack.c.l.b16 %v2495
    %v6314 = vunpack.c.h.b16 %v2495
    %v6315 = vunpack.c.l.b16 %v2496
    %v6316 = vunpack.c.h.b16 %v2496
    %v6317 = vunpack.c.l.b16 %v2497
    %v6318 = vunpack.c.h.b16 %v2497
    %v6319 = vunpack.c.l.b16 %v2498
    %v6320 = vunpack.c.h.b16 %v2498
    %v6321 = vunpack.c.l.b16 %v2499
    %v6322 = vunpack.c.h.b16 %v2499
    %v6323 = vunpack.c.l.b16 %v2500
    %v6324 = vunpack.c.h.b16 %v2500
    %v6325 = vunpack.c.l.b16 %v2501
    %v6326 = vunpack.c.h.b16 %v2501
    %v6327 = vunpack.c.l.b16 %v2502
    %v6328 = vunpack.c.h.b16 %v2502
    %v6329 = vunpack.c.l.b16 %v2503
    %v6330 = vunpack.c.h.b16 %v2503
    %v6331 = vunpack.c.l.b16 %v2504
    %v6332 = vunpack.c.h.b16 %v2504
    %v6333 = vunpack.c.l.b16 %v2505
    %v6334 = vunpack.c.h.b16 %v2505
    %v6335 = vunpack.c.l.b16 %v2506
    %v6336 = vunpack.c.h.b16 %v2506
    %v6337 = vunpack.c.l.b16 %v2507
    %v6338 = vunpack.c.h.b16 %v2507
    %v6339 = vunpack.c.l.b16 %v2508
    %v6340 = vunpack.c.h.b16 %v2508
    %v6341 = vunpack.c.l.b16 %v2509
    %v6342 = vunpack.c.h.b16 %v2509
    %v6343 = vunpack.c.l.b16 %v2510
    %v6344 = vunpack.c.h.b16 %v2510
    %v6345 = vunpack.c.l.b16 %v2511
    %v6346 = vunpack.c.h.b16 %v2511
    %v6347 = vunpack.c.l.b16 %v2512
    %v6348 = vunpack.c.h.b16 %v2512
    %v6349 = vunpack.c.l.b16 %v2513
    %v6350 = vunpack.c.h.b16 %v2513
    %v6351 = vunpack.c.l.b16 %v2514
    %v6352 = vunpack.c.h.b16 %v2514
    %v6353 = vunpack.c.l.b16 %v2515
    %v6354 = vunpack.c.h.b16 %v2515
    %v6355 = vunpack.c.l.b16 %v2516
    %v6356 = vunpack.c.h.b16 %v2516
    %v6357 = vunpack.c.l.b16 %v2517
    %v6358 = vunpack.c.h.b16 %v2517
    %v6359 = vunpack.c.l.b16 %v2518
    %v6360 = vunpack.c.h.b16 %v2518
    %v6361 = vunpack.c.l.b16 %v2519
    %v6362 = vunpack.c.h.b16 %v2519
    %v6363 = vunpack.c.l.b16 %v2520
    %v6364 = vunpack.c.h.b16 %v2520
    %v6365 = vunpack.c.l.b16 %v2521
    %v6366 = vunpack.c.h.b16 %v2521
    %v6367 = vunpack.c.l.b16 %v2522
    %v6368 = vunpack.c.h.b16 %v2522
    %v6369 = vunpack.c.l.b16 %v2523
    %v6370 = vunpack.c.h.b16 %v2523
    %v6371 = vunpack.c.l.b16 %v2524
    %v6372 = vunpack.c.h.b16 %v2524
    %v6373 = vunpack.c.l.b16 %v2525
    %v6374 = vunpack.c.h.b16 %v2525
    %v6375 = vunpack.c.l.b16 %v2526
    %v6376 = vunpack.c.h.b16 %v2526
    %v6377 = vunpack.c.l.b16 %v2527
    %v6378 = vunpack.c.h.b16 %v2527
    %v6379 = vunpack.c.l.b16 %v2528
    %v6380 = vunpack.c.h.b16 %v2528
    %v6381 = vunpack.c.l.b16 %v2529
    %v6382 = vunpack.c.h.b16 %v2529
    %v6383 = vunpack.c.l.b16 %v2530
    %v6384 = vunpack.c.h.b16 %v2530
    %v6385 = vunpack.c.l.b16 %v2531
    %v6386 = vunpack.c.h.b16 %v2531
    %v6387 = vunpack.c.l.b16 %v2532
    %v6388 = vunpack.c.h.b16 %v2532
    %v6389 = vunpack.c.l.b16 %v2533
    %v6390 = vunpack.c.h.b16 %v2533
    %v6391 = vunpack.c.l.b16 %v2534
    %v6392 = vunpack.c.h.b16 %v2534
    %v6393 = vunpack.c.l.b16 %v2535
    %v6394 = vunpack.c.h.b16 %v2535
    %v6395 = vunpack.c.l.b16 %v2536
    %v6396 = vunpack.c.h.b16 %v2536
    %v6397 = vunpack.c.l.b16 %v2537
    %v6398 = vunpack.c.h.b16 %v2537
    %v6399 = vunpack.c.l.b16 %v2538
    %v6400 = vunpack.c.h.b16 %v2538
    %v6401 = vunpack.c.l.b16 %v2539
    %v6402 = vunpack.c.h.b16 %v2539
    %v6403 = vunpack.c.l.b16 %v2540
    %v6404 = vunpack.c.h.b16 %v2540
    %v6405 = vunpack.c.l.b16 %v2541
    %v6406 = vunpack.c.h.b16 %v2541
    %v6407 = vunpack.c.l.b16 %v2542
    %v6408 = vunpack.c.h.b16 %v2542
    %v6409 = vunpack.c.l.b16 %v2543
    %v6410 = vunpack.c.h.b16 %v2543
    %v6411 = vunpack.c.l.b16 %v2544
    %v6412 = vunpack.c.h.b16 %v2544
    %v6413 = vunpack.c.l.b16 %v2545
    %v6414 = vunpack.c.h.b16 %v2545
    %v6415 = vunpack.c.l.b16 %v2546
    %v6416 = vunpack.c.h.b16 %v2546
    %v6417 = vunpack.c.l.b16 %v2547
    %v6418 = vunpack.c.h.b16 %v2547
    %v6419 = vunpack.c.l.b16 %v2548
    %v6420 = vunpack.c.h.b16 %v2548
    %v6421 = vunpack.c.l.b16 %v2549
    %v6422 = vunpack.c.h.b16 %v2549
    %v6423 = vunpack.c.l.b16 %v2550
    %v6424 = vunpack.c.h.b16 %v2550
    %v6425 = vunpack.c.l.b16 %v2551
    %v6426 = vunpack.c.h.b16 %v2551
    %v6427 = vunpack.c.l.b16 %v2552
    %v6428 = vunpack.c.h.b16 %v2552
    %v6429 = vunpack.c.l.b16 %v2553
    %v6430 = vunpack.c.h.b16 %v2553
    %v6431 = vunpack.c.l.b16 %v2554
    %v6432 = vunpack.c.h.b16 %v2554
    %v6433 = vunpack.c.l.b16 %v2555
    %v6434 = vunpack.c.h.b16 %v2555
    %v6435 = vunpack.c.l.b16 %v2556
    %v6436 = vunpack.c.h.b16 %v2556
    %v6437 = vunpack.c.l.b16 %v2557
    %v6438 = vunpack.c.h.b16 %v2557
    %v6439 = vunpack.c.l.b16 %v2558
    %v6440 = vunpack.c.h.b16 %v2558
    %v6441 = vunpack.c.l.b16 %v2559
    %v6442 = vunpack.c.h.b16 %v2559
    %v6443 = vunpack.c.l.b16 %v2560
    %v6444 = vunpack.c.h.b16 %v2560
    %v6445 = vunpack.c.l.b16 %v2561
    %v6446 = vunpack.c.h.b16 %v2561
    %v6447 = vunpack.c.l.b16 %v2562
    %v6448 = vunpack.c.h.b16 %v2562
    %v6449 = vunpack.c.l.b16 %v2563
    %v6450 = vunpack.c.h.b16 %v2563
    %v6451 = vunpack.c.l.b16 %v2564
    %v6452 = vunpack.c.h.b16 %v2564
    %v6453 = vunpack.c.l.b16 %v2565
    %v6454 = vunpack.c.h.b16 %v2565
    %v6455 = vunpack.c.l.b16 %v2566
    %v6456 = vunpack.c.h.b16 %v2566
    %v6457 = vunpack.c.l.b16 %v2567
    %v6458 = vunpack.c.h.b16 %v2567
    %v6459 = vunpack.c.l.b16 %v2568
    %v6460 = vunpack.c.h.b16 %v2568
    %v6461 = vunpack.c.l.b16 %v2569
    %v6462 = vunpack.c.h.b16 %v2569
    %v6463 = vunpack.c.l.b16 %v2570
    %v6464 = vunpack.c.h.b16 %v2570
    %v6465 = vunpack.c.l.b16 %v2571
    %v6466 = vunpack.c.h.b16 %v2571
    %v6467 = vunpack.c.l.b16 %v2572
    %v6468 = vunpack.c.h.b16 %v2572
    %v6469 = vunpack.c.l.b16 %v2573
    %v6470 = vunpack.c.h.b16 %v2573
    %v6471 = vunpack.c.l.b16 %v2574
    %v6472 = vunpack.c.h.b16 %v2574
    %v6473 = vunpack.c.l.b16 %v2575
    %v6474 = vunpack.c.h.b16 %v2575
    %v6475 = vunpack.c.l.b16 %v2576
    %v6476 = vunpack.c.h.b16 %v2576
    %v6477 = vunpack.c.l.b16 %v2577
    %v6478 = vunpack.c.h.b16 %v2577
    %v6479 = vunpack.c.l.b16 %v2578
    %v6480 = vunpack.c.h.b16 %v2578
    %v6481 = vunpack.c.l.b16 %v2579
    %v6482 = vunpack.c.h.b16 %v2579
    %v6483 = vunpack.c.l.b16 %v2580
    %v6484 = vunpack.c.h.b16 %v2580
    %v6485 = vunpack.c.l.b16 %v2581
    %v6486 = vunpack.c.h.b16 %v2581
    %v6487 = vunpack.c.l.b16 %v2582
    %v6488 = vunpack.c.h.b16 %v2582
    %v6489 = vunpack.c.l.b16 %v2583
    %v6490 = vunpack.c.h.b16 %v2583
    %v6491 = vunpack.c.l.b16 %v2584
    %v6492 = vunpack.c.h.b16 %v2584
    %v6493 = vunpack.c.l.b16 %v2585
    %v6494 = vunpack.c.h.b16 %v2585
    %v6495 = vunpack.c.l.b16 %v2586
    %v6496 = vunpack.c.h.b16 %v2586
    %v6497 = vunpack.c.l.b16 %v2587
    %v6498 = vunpack.c.h.b16 %v2587
    %v6499 = vunpack.c.l.b16 %v2588
    %v6500 = vunpack.c.h.b16 %v2588
    %v6501 = vunpack.c.l.b16 %v2589
    %v6502 = vunpack.c.h.b16 %v2589
    %v6503 = vunpack.c.l.b16 %v2590
    %v6504 = vunpack.c.h.b16 %v2590
    %v6505 = vunpack.c.l.b16 %v2591
    %v6506 = vunpack.c.h.b16 %v2591
    %v6507 = vunpack.c.l.b16 %v2592
    %v6508 = vunpack.c.h.b16 %v2592
    %v6509 = vunpack.c.l.b16 %v2593
    %v6510 = vunpack.c.h.b16 %v2593
    %v6511 = vunpack.c.l.b16 %v2594
    %v6512 = vunpack.c.h.b16 %v2594
    %v6513 = vunpack.c.l.b16 %v2595
    %v6514 = vunpack.c.h.b16 %v2595
    %v6515 = vunpack.c.l.b16 %v2596
    %v6516 = vunpack.c.h.b16 %v2596
    %v6517 = vunpack.c.l.b16 %v2597
    %v6518 = vunpack.c.h.b16 %v2597
    %v6519 = vunpack.c.l.b16 %v2598
    %v6520 = vunpack.c.h.b16 %v2598
    %v6521 = vunpack.c.l.b16 %v2599
    %v6522 = vunpack.c.h.b16 %v2599
    %v6523 = vunpack.c.l.b16 %v2600
    %v6524 = vunpack.c.h.b16 %v2600
    %v6525 = vunpack.c.l.b16 %v2601
    %v6526 = vunpack.c.h.b16 %v2601
    %v6527 = vunpack.c.l.b16 %v2602
    %v6528 = vunpack.c.h.b16 %v2602
    %v6529 = vunpack.c.l.b16 %v2603
    %v6530 = vunpack.c.h.b16 %v2603
    %v6531 = vunpack.c.l.b16 %v2604
    %v6532 = vunpack.c.h.b16 %v2604
    %v6533 = vunpack.c.l.b16 %v2605
    %v6534 = vunpack.c.h.b16 %v2605
    %v6535 = vunpack.c.l.b16 %v2606
    %v6536 = vunpack.c.h.b16 %v2606
    %v6537 = vunpack.c.l.b16 %v2607
    %v6538 = vunpack.c.h.b16 %v2607
    %v6539 = vunpack.c.l.b16 %v2608
    %v6540 = vunpack.c.h.b16 %v2608
    %v6541 = vunpack.c.l.b16 %v2609
    %v6542 = vunpack.c.h.b16 %v2609
    %v6543 = vunpack.c.l.b16 %v2610
    %v6544 = vunpack.c.h.b16 %v2610
    %v6545 = vunpack.c.l.b16 %v2611
    %v6546 = vunpack.c.h.b16 %v2611
    %v6547 = vunpack.c.l.b16 %v2612
    %v6548 = vunpack.c.h.b16 %v2612
    %v6549 = vunpack.c.l.b16 %v2613
    %v6550 = vunpack.c.h.b16 %v2613
    %v6551 = vunpack.c.l.b16 %v2614
    %v6552 = vunpack.c.h.b16 %v2614
    %v6553 = vunpack.c.l.b16 %v2615
    %v6554 = vunpack.c.h.b16 %v2615
    %v6555 = vunpack.c.l.b16 %v2616
    %v6556 = vunpack.c.h.b16 %v2616
    %v6557 = vunpack.c.l.b16 %v2617
    %v6558 = vunpack.c.h.b16 %v2617
    %v6559 = vunpack.c.l.b16 %v2618
    %v6560 = vunpack.c.h.b16 %v2618
    %v6561 = vunpack.c.l.b16 %v2619
    %v6562 = vunpack.c.h.b16 %v2619
    %v6563 = vunpack.c.l.b16 %v2620
    %v6564 = vunpack.c.h.b16 %v2620
    %v6565 = vunpack.c.l.b16 %v2621
    %v6566 = vunpack.c.h.b16 %v2621
    %v6567 = vunpack.c.l.b16 %v2622
    %v6568 = vunpack.c.h.b16 %v2622
    %v6569 = vunpack.c.l.b16 %v2623
    %v6570 = vunpack.c.h.b16 %v2623
    %v6571 = vunpack.c.l.b16 %v2624
    %v6572 = vunpack.c.h.b16 %v2624
    %v6573 = vunpack.c.l.b16 %v2625
    %v6574 = vunpack.c.h.b16 %v2625
    %v6575 = vunpack.c.l.b16 %v2626
    %v6576 = vunpack.c.h.b16 %v2626
    %v6577 = vunpack.c.l.b16 %v2627
    %v6578 = vunpack.c.h.b16 %v2627
    %v6579 = vunpack.c.l.b16 %v2628
    %v6580 = vunpack.c.h.b16 %v2628
    %v6581 = vunpack.c.l.b16 %v2629
    %v6582 = vunpack.c.h.b16 %v2629
    %v6583 = vunpack.c.l.b16 %v2630
    %v6584 = vunpack.c.h.b16 %v2630
    %v6585 = vunpack.c.l.b16 %v2631
    %v6586 = vunpack.c.h.b16 %v2631
    %v6587 = vunpack.c.l.b16 %v2632
    %v6588 = vunpack.c.h.b16 %v2632
    %v6589 = vunpack.c.l.b16 %v2633
    %v6590 = vunpack.c.h.b16 %v2633
    %v6591 = vunpack.c.l.b16 %v2634
    %v6592 = vunpack.c.h.b16 %v2634
    %v6593 = vunpack.c.l.b16 %v2635
    %v6594 = vunpack.c.h.b16 %v2635
    %v6595 = vunpack.c.l.b16 %v2636
    %v6596 = vunpack.c.h.b16 %v2636
    %v6597 = vunpack.c.l.b16 %v2637
    %v6598 = vunpack.c.h.b16 %v2637
    %v6599 = vunpack.c.l.b16 %v2638
    %v6600 = vunpack.c.h.b16 %v2638
    %v6601 = vunpack.c.l.b16 %v2639
    %v6602 = vunpack.c.h.b16 %v2639
    %v6603 = vunpack.c.l.b16 %v2640
    %v6604 = vunpack.c.h.b16 %v2640
    %v6605 = vunpack.c.l.b16 %v2641
    %v6606 = vunpack.c.h.b16 %v2641
    %v6607 = vunpack.c.l.b16 %v2642
    %v6608 = vunpack.c.h.b16 %v2642
    %v6609 = vunpack.c.l.b16 %v2643
    %v6610 = vunpack.c.h.b16 %v2643
    %v6611 = vunpack.c.l.b16 %v2644
    %v6612 = vunpack.c.h.b16 %v2644
    %v6613 = vunpack.c.l.b16 %v2645
    %v6614 = vunpack.c.h.b16 %v2645
    %v6615 = vunpack.c.l.b16 %v2646
    %v6616 = vunpack.c.h.b16 %v2646
    %v6617 = vunpack.c.l.b16 %v2647
    %v6618 = vunpack.c.h.b16 %v2647
    %v6619 = vunpack.c.l.b16 %v2648
    %v6620 = vunpack.c.h.b16 %v2648
    %v6621 = vunpack.c.l.b16 %v2649
    %v6622 = vunpack.c.h.b16 %v2649
    %v6623 = vunpack.c.l.b16 %v2650
    %v6624 = vunpack.c.h.b16 %v2650
    %v6625 = vunpack.c.l.b16 %v2651
    %v6626 = vunpack.c.h.b16 %v2651
    %v6627 = vunpack.c.l.b16 %v2652
    %v6628 = vunpack.c.h.b16 %v2652
    %v6629 = vunpack.c.l.b16 %v2653
    %v6630 = vunpack.c.h.b16 %v2653
    %v6631 = vunpack.c.l.b16 %v2654
    %v6632 = vunpack.c.h.b16 %v2654
    %v6633 = vunpack.c.l.b16 %v2655
    %v6634 = vunpack.c.h.b16 %v2655
    %v6635 = vunpack.c.l.b16 %v2656
    %v6636 = vunpack.c.h.b16 %v2656
    %v6637 = vunpack.c.l.b16 %v2657
    %v6638 = vunpack.c.h.b16 %v2657
    %v6639 = vunpack.c.l.b16 %v2658
    %v6640 = vunpack.c.h.b16 %v2658
    %v6641 = vunpack.c.l.b16 %v2659
    %v6642 = vunpack.c.h.b16 %v2659
    %v6643 = vunpack.c.l.b16 %v2660
    %v6644 = vunpack.c.h.b16 %v2660
    %v6645 = vunpack.c.l.b16 %v2661
    %v6646 = vunpack.c.h.b16 %v2661
    %v6647 = vunpack.c.l.b16 %v2662
    %v6648 = vunpack.c.h.b16 %v2662
    %v6649 = vunpack.c.l.b16 %v2663
    %v6650 = vunpack.c.h.b16 %v2663
    %v6651 = vunpack.c.l.b16 %v2664
    %v6652 = vunpack.c.h.b16 %v2664
    %v6653 = vunpack.c.l.b16 %v2665
    %v6654 = vunpack.c.h.b16 %v2665
    %v6655 = vunpack.c.l.b16 %v2666
    %v6656 = vunpack.c.h.b16 %v2666
    %v6657 = vunpack.c.l.b16 %v2667
    %v6658 = vunpack.c.h.b16 %v2667
    %v6659 = vunpack.c.l.b16 %v2668
    %v6660 = vunpack.c.h.b16 %v2668
    %v6661 = vunpack.c.l.b16 %v2669
    %v6662 = vunpack.c.h.b16 %v2669
    %v6663 = vunpack.c.l.b16 %v2670
    %v6664 = vunpack.c.h.b16 %v2670
    %v6665 = vunpack.c.l.b16 %v2671
    %v6666 = vunpack.c.h.b16 %v2671
    %v6667 = vunpack.c.l.b16 %v2672
    %v6668 = vunpack.c.h.b16 %v2672
    %v6669 = vunpack.c.l.b16 %v2673
    %v6670 = vunpack.c.h.b16 %v2673
    %v6671 = vunpack.c.l.b16 %v2674
    %v6672 = vunpack.c.h.b16 %v2674
    %v6673 = vunpack.c.l.b16 %v2675
    %v6674 = vunpack.c.h.b16 %v2675
    %v6675 = vunpack.c.l.b16 %v2676
    %v6676 = vunpack.c.h.b16 %v2676
    %v6677 = vunpack.c.l.b16 %v2677
    %v6678 = vunpack.c.h.b16 %v2677
    %v6679 = vunpack.c.l.b16 %v2678
    %v6680 = vunpack.c.h.b16 %v2678
    %v6681 = vunpack.c.l.b16 %v2679
    %v6682 = vunpack.c.h.b16 %v2679
    %v6683 = vunpack.c.l.b16 %v2680
    %v6684 = vunpack.c.h.b16 %v2680
    %v6685 = vunpack.c.l.b16 %v2681
    %v6686 = vunpack.c.h.b16 %v2681
    %v6687 = vunpack.c.l.b16 %v2682
    %v6688 = vunpack.c.h.b16 %v2682
    %v6689 = vunpack.c.l.b16 %v2683
    %v6690 = vunpack.c.h.b16 %v2683
    %v6691 = vunpack.c.l.b16 %v2684
    %v6692 = vunpack.c.h.b16 %v2684
    %v6693 = vunpack.c.l.b16 %v2685
    %v6694 = vunpack.c.h.b16 %v2685
    %v6695 = vunpack.c.l.b16 %v2686
    %v6696 = vunpack.c.h.b16 %v2686
    %v6697 = vunpack.c.l.b16 %v2687
    %v6698 = vunpack.c.h.b16 %v2687
    %v6699 = vunpack.c.l.b16 %v2688
    %v6700 = vunpack.c.h.b16 %v2688
    %v6701 = vunpack.c.l.b16 %v2689
    %v6702 = vunpack.c.h.b16 %v2689
    %v6703 = vunpack.c.l.b16 %v2690
    %v6704 = vunpack.c.h.b16 %v2690
    %v6705 = vunpack.c.l.b16 %v2691
    %v6706 = vunpack.c.h.b16 %v2691
    %v6707 = vunpack.c.l.b16 %v2692
    %v6708 = vunpack.c.h.b16 %v2692
    %v6709 = vpack.c.b16 %v6205, %v6197
    %v6710 = vpack.c.b16 %v6206, %v6198
    %v6711 = vpack.c.b16 %v6207, %v6199
    %v6712 = vpack.c.b16 %v6208, %v6200
    %v6713 = vpack.c.b16 %v6209, %v6201
    %v6714 = vpack.c.b16 %v6210, %v6202
    %v6715 = vpack.c.b16 %v6211, %v6203
    %v6716 = vpack.c.b16 %v6212, %v6204
    %v6717 = vpack.c.b16 %v6221, %v6213
    %v6718 = vpack.c.b16 %v6222, %v6214
    %v6719 = vpack.c.b16 %v6223, %v6215
    %v6720 = vpack.c.b16 %v6224, %v6216
    %v6721 = vpack.c.b16 %v6225, %v6217
    %v6722 = vpack.c.b16 %v6226, %v6218
    %v6723 = vpack.c.b16 %v6227, %v6219
    %v6724 = vpack.c.b16 %v6228, %v6220
    %v6725 = vpack.c.b16 %v6237, %v6229
    %v6726 = vpack.c.b16 %v6238, %v6230
    %v6727 = vpack.c.b16 %v6239, %v6231
    %v6728 = vpack.c.b16 %v6240, %v6232
    %v6729 = vpack.c.b16 %v6241, %v6233
    %v6730 = vpack.c.b16 %v6242, %v6234
    %v6731 = vpack.c.b16 %v6243, %v6235
    %v6732 = vpack.c.b16 %v6244, %v6236
    %v6733 = vpack.c.b16 %v6253, %v6245
    %v6734 = vpack.c.b16 %v6254, %v6246
    %v6735 = vpack.c.b16 %v6255, %v6247
    %v6736 = vpack.c.b16 %v6256, %v6248
    %v6737 = vpack.c.b16 %v6257, %v6249
    %v6738 = vpack.c.b16 %v6258, %v6250
    %v6739 = vpack.c.b16 %v6259, %v6251
    %v6740 = vpack.c.b16 %v6260, %v6252
    %v6741 = vpack.c.b16 %v6269, %v6261
    %v6742 = vpack.c.b16 %v6270, %v6262
    %v6743 = vpack.c.b16 %v6271, %v6263
    %v6744 = vpack.c.b16 %v6272, %v6264
    %v6745 = vpack.c.b16 %v6273, %v6265
    %v6746 = vpack.c.b16 %v6274, %v6266
    %v6747 = vpack.c.b16 %v6275, %v6267
    %v6748 = vpack.c.b16 %v6276, %v6268
    %v6749 = vpack.c.b16 %v6285, %v6277
    %v6750 = vpack.c.b16 %v6286, %v6278
    %v6751 = vpack.c.b16 %v6287, %v6279
    %v6752 = vpack.c.b16 %v6288, %v6280
    %v6753 = vpack.c.b16 %v6289, %v6281
    %v6754 = vpack.c.b16 %v6290, %v6282
    %v6755 = vpack.c.b16 %v6291, %v6283
    %v6756 = vpack.c.b16 %v6292, %v6284
    %v6757 = vpack.c.b16 %v6301, %v6293
    %v6758 = vpack.c.b16 %v6302, %v6294
    %v6759 = vpack.c.b16 %v6303, %v6295
    %v6760 = vpack.c.b16 %v6304, %v6296
    %v6761 = vpack.c.b16 %v6305, %v6297
    %v6762 = vpack.c.b16 %v6306, %v6298
    %v6763 = vpack.c.b16 %v6307, %v6299
    %v6764 = vpack.c.b16 %v6308, %v6300
    %v6765 = vpack.c.b16 %v6317, %v6309
    %v6766 = vpack.c.b16 %v6318, %v6310
    %v6767 = vpack.c.b16 %v6319, %v6311
    %v6768 = vpack.c.b16 %v6320, %v6312
    %v6769 = vpack.c.b16 %v6321, %v6313
    %v6770 = vpack.c.b16 %v6322, %v6314
    %v6771 = vpack.c.b16 %v6323, %v6315
    %v6772 = vpack.c.b16 %v6324, %v6316
    %v6773 = vpack.c.b16 %v6333, %v6325
    %v6774 = vpack.c.b16 %v6334, %v6326
    %v6775 = vpack.c.b16 %v6335, %v6327
    %v6776 = vpack.c.b16 %v6336, %v6328
    %v6777 = vpack.c.b16 %v6337, %v6329
    %v6778 = vpack.c.b16 %v6338, %v6330
    %v6779 = vpack.c.b16 %v6339, %v6331
    %v6780 = vpack.c.b16 %v6340, %v6332
    %v6781 = vpack.c.b16 %v6349, %v6341
    %v6782 = vpack.c.b16 %v6350, %v6342
    %v6783 = vpack.c.b16 %v6351, %v6343
    %v6784 = vpack.c.b16 %v6352, %v6344
    %v6785 = vpack.c.b16 %v6353, %v6345
    %v6786 = vpack.c.b16 %v6354, %v6346
    %v6787 = vpack.c.b16 %v6355, %v6347
    %v6788 = vpack.c.b16 %v6356, %v6348
    %v6789 = vpack.c.b16 %v6365, %v6357
    %v6790 = vpack.c.b16 %v6366, %v6358
    %v6791 = vpack.c.b16 %v6367, %v6359
    %v6792 = vpack.c.b16 %v6368, %v6360
    %v6793 = vpack.c.b16 %v6369, %v6361
    %v6794 = vpack.c.b16 %v6370, %v6362
    %v6795 = vpack.c.b16 %v6371, %v6363
    %v6796 = vpack.c.b16 %v6372, %v6364
    %v6797 = vpack.c.b16 %v6381, %v6373
    %v6798 = vpack.c.b16 %v6382, %v6374
    %v6799 = vpack.c.b16 %v6383, %v6375
    %v6800 = vpack.c.b16 %v6384, %v6376
    %v6801 = vpack.c.b16 %v6385, %v6377
    %v6802 = vpack.c.b16 %v6386, %v6378
    %v6803 = vpack.c.b16 %v6387, %v6379
    %v6804 = vpack.c.b16 %v6388, %v6380
    %v6805 = vpack.c.b16 %v6397, %v6389
    %v6806 = vpack.c.b16 %v6398, %v6390
    %v6807 = vpack.c.b16 %v6399, %v6391
    %v6808 = vpack.c.b16 %v6400, %v6392
    %v6809 = vpack.c.b16 %v6401, %v6393
    %v6810 = vpack.c.b16 %v6402, %v6394
    %v6811 = vpack.c.b16 %v6403, %v6395
    %v6812 = vpack.c.b16 %v6404, %v6396
    %v6813 = vpack.c.b16 %v6413, %v6405
    %v6814 = vpack.c.b16 %v6414, %v6406
    %v6815 = vpack.c.b16 %v6415, %v6407
    %v6816 = vpack.c.b16 %v6416, %v6408
    %v6817 = vpack.c.b16 %v6417, %v6409
    %v6818 = vpack.c.b16 %v6418, %v6410
    %v6819 = vpack.c.b16 %v6419, %v6411
    %v6820 = vpack.c.b16 %v6420, %v6412
    %v6821 = vpack.c.b16 %v6429, %v6421
    %v6822 = vpack.c.b16 %v6430, %v6422
    %v6823 = vpack.c.b16 %v6431, %v6423
    %v6824 = vpack.c.b16 %v6432, %v6424
    %v6825 = vpack.c.b16 %v6433, %v6425
    %v6826 = vpack.c.b16 %v6434, %v6426
    %v6827 = vpack.c.b16 %v6435, %v6427
    %v6828 = vpack.c.b16 %v6436, %v6428
    %v6829 = vpack.c.b16 %v6445, %v6437
    %v6830 = vpack.c.b16 %v6446, %v6438
    %v6831 = vpack.c.b16 %v6447, %v6439
    %v6832 = vpack.c.b16 %v6448, %v6440
    %v6833 = vpack.c.b16 %v6449, %v6441
    %v6834 = vpack.c.b16 %v6450, %v6442
    %v6835 = vpack.c.b16 %v6451, %v6443
    %v6836 = vpack.c.b16 %v6452, %v6444
    %v6837 = vpack.c.b16 %v6461, %v6453
    %v6838 = vpack.c.b16 %v6462, %v6454
    %v6839 = vpack.c.b16 %v6463, %v6455
    %v6840 = vpack.c.b16 %v6464, %v6456
    %v6841 = vpack.c.b16 %v6465, %v6457
    %v6842 = vpack.c.b16 %v6466, %v6458
    %v6843 = vpack.c.b16 %v6467, %v6459
    %v6844 = vpack.c.b16 %v6468, %v6460
    %v6845 = vpack.c.b16 %v6477, %v6469
    %v6846 = vpack.c.b16 %v6478, %v6470
    %v6847 = vpack.c.b16 %v6479, %v6471
    %v6848 = vpack.c.b16 %v6480, %v6472
    %v6849 = vpack.c.b16 %v6481, %v6473
    %v6850 = vpack.c.b16 %v6482, %v6474
    %v6851 = vpack.c.b16 %v6483, %v6475
    %v6852 = vpack.c.b16 %v6484, %v6476
    %v6853 = vpack.c.b16 %v6493, %v6485
    %v6854 = vpack.c.b16 %v6494, %v6486
    %v6855 = vpack.c.b16 %v6495, %v6487
    %v6856 = vpack.c.b16 %v6496, %v6488
    %v6857 = vpack.c.b16 %v6497, %v6489
    %v6858 = vpack.c.b16 %v6498, %v6490
    %v6859 = vpack.c.b16 %v6499, %v6491
    %v6860 = vpack.c.b16 %v6500, %v6492
    %v6861 = vpack.c.b16 %v6509, %v6501
    %v6862 = vpack.c.b16 %v6510, %v6502
    %v6863 = vpack.c.b16 %v6511, %v6503
    %v6864 = vpack.c.b16 %v6512, %v6504
    %v6865 = vpack.c.b16 %v6513, %v6505
    %v6866 = vpack.c.b16 %v6514, %v6506
    %v6867 = vpack.c.b16 %v6515, %v6507
    %v6868 = vpack.c.b16 %v6516, %v6508
    %v6869 = vpack.c.b16 %v6525, %v6517
    %v6870 = vpack.c.b16 %v6526, %v6518
    %v6871 = vpack.c.b16 %v6527, %v6519
    %v6872 = vpack.c.b16 %v6528, %v6520
    %v6873 = vpack.c.b16 %v6529, %v6521
    %v6874 = vpack.c.b16 %v6530, %v6522
    %v6875 = vpack.c.b16 %v6531, %v6523
    %v6876 = vpack.c.b16 %v6532, %v6524
    %v6877 = vpack.c.b16 %v6541, %v6533
    %v6878 = vpack.c.b16 %v6542, %v6534
    %v6879 = vpack.c.b16 %v6543, %v6535
    %v6880 = vpack.c.b16 %v6544, %v6536
    %v6881 = vpack.c.b16 %v6545, %v6537
    %v6882 = vpack.c.b16 %v6546, %v6538
    %v6883 = vpack.c.b16 %v6547, %v6539
    %v6884 = vpack.c.b16 %v6548, %v6540
    %v6885 = vpack.c.b16 %v6557, %v6549
    %v6886 = vpack.c.b16 %v6558, %v6550
    %v6887 = vpack.c.b16 %v6559, %v6551
    %v6888 = vpack.c.b16 %v6560, %v6552
    %v6889 = vpack.c.b16 %v6561, %v6553
    %v6890 = vpack.c.b16 %v6562, %v6554
    %v6891 = vpack.c.b16 %v6563, %v6555
    %v6892 = vpack.c.b16 %v6564, %v6556
    %v6893 = vpack.c.b16 %v6573, %v6565
    %v6894 = vpack.c.b16 %v6574, %v6566
    %v6895 = vpack.c.b16 %v6575, %v6567
    %v6896 = vpack.c.b16 %v6576, %v6568
    %v6897 = vpack.c.b16 %v6577, %v6569
    %v6898 = vpack.c.b16 %v6578, %v6570
    %v6899 = vpack.c.b16 %v6579, %v6571
    %v6900 = vpack.c.b16 %v6580, %v6572
    %v6901 = vpack.c.b16 %v6589, %v6581
    %v6902 = vpack.c.b16 %v6590, %v6582
    %v6903 = vpack.c.b16 %v6591, %v6583
    %v6904 = vpack.c.b16 %v6592, %v6584
    %v6905 = vpack.c.b16 %v6593, %v6585
    %v6906 = vpack.c.b16 %v6594, %v6586
    %v6907 = vpack.c.b16 %v6595, %v6587
    %v6908 = vpack.c.b16 %v6596, %v6588
    %v6909 = vpack.c.b16 %v6605, %v6597
    %v6910 = vpack.c.b16 %v6606, %v6598
    %v6911 = vpack.c.b16 %v6607, %v6599
    %v6912 = vpack.c.b16 %v6608, %v6600
    %v6913 = vpack.c.b16 %v6609, %v6601
    %v6914 = vpack.c.b16 %v6610, %v6602
    %v6915 = vpack.c.b16 %v6611, %v6603
    %v6916 = vpack.c.b16 %v6612, %v6604
    %v6917 = vpack.c.b16 %v6621, %v6613
    %v6918 = vpack.c.b16 %v6622, %v6614
    %v6919 = vpack.c.b16 %v6623, %v6615
    %v6920 = vpack.c.b16 %v6624, %v6616
    %v6921 = vpack.c.b16 %v6625, %v6617
    %v6922 = vpack.c.b16 %v6626, %v6618
    %v6923 = vpack.c.b16 %v6627, %v6619
    %v6924 = vpack.c.b16 %v6628, %v6620
    %v6925 = vpack.c.b16 %v6637, %v6629
    %v6926 = vpack.c.b16 %v6638, %v6630
    %v6927 = vpack.c.b16 %v6639, %v6631
    %v6928 = vpack.c.b16 %v6640, %v6632
    %v6929 = vpack.c.b16 %v6641, %v6633
    %v6930 = vpack.c.b16 %v6642, %v6634
    %v6931 = vpack.c.b16 %v6643, %v6635
    %v6932 = vpack.c.b16 %v6644, %v6636
    %v6933 = vpack.c.b16 %v6653, %v6645
    %v6934 = vpack.c.b16 %v6654, %v6646
    %v6935 = vpack.c.b16 %v6655, %v6647
    %v6936 = vpack.c.b16 %v6656, %v6648
    %v6937 = vpack.c.b16 %v6657, %v6649
    %v6938 = vpack.c.b16 %v6658, %v6650
    %v6939 = vpack.c.b16 %v6659, %v6651
    %v6940 = vpack.c.b16 %v6660, %v6652
    %v6941 = vpack.c.b16 %v6669, %v6661
    %v6942 = vpack.c.b16 %v6670, %v6662
    %v6943 = vpack.c.b16 %v6671, %v6663
    %v6944 = vpack.c.b16 %v6672, %v6664
    %v6945 = vpack.c.b16 %v6673, %v6665
    %v6946 = vpack.c.b16 %v6674, %v6666
    %v6947 = vpack.c.b16 %v6675, %v6667
    %v6948 = vpack.c.b16 %v6676, %v6668
    %v6949 = vpack.c.b16 %v6685, %v6677
    %v6950 = vpack.c.b16 %v6686, %v6678
    %v6951 = vpack.c.b16 %v6687, %v6679
    %v6952 = vpack.c.b16 %v6688, %v6680
    %v6953 = vpack.c.b16 %v6689, %v6681
    %v6954 = vpack.c.b16 %v6690, %v6682
    %v6955 = vpack.c.b16 %v6691, %v6683
    %v6956 = vpack.c.b16 %v6692, %v6684
    %v6957 = vpack.c.b16 %v6701, %v6693
    %v6958 = vpack.c.b16 %v6702, %v6694
    %v6959 = vpack.c.b16 %v6703, %v6695
    %v6960 = vpack.c.b16 %v6704, %v6696
    %v6961 = vpack.c.b16 %v6705, %v6697
    %v6962 = vpack.c.b16 %v6706, %v6698
    %v6963 = vpack.c.b16 %v6707, %v6699
    %v6964 = vpack.c.b16 %v6708, %v6700
    %7221 = vmatprep.subr.bf16.mxu0 %v6766
    %7222 = vmatpush1.bf16.msra.mxu0 %v6765
    %7223 = vmatprep.subr.bf16.mxu0 %v6758
    %7224 = vmatpush1.bf16.msra.mxu0 %v6757
    %7225 = vmatprep.subr.bf16.mxu0 %v6750
    %7226 = vmatpush1.bf16.msra.mxu0 %v6749
    %7227 = vmatprep.subr.bf16.mxu0 %v6742
    %7228 = vmatpush1.bf16.msra.mxu0 %v6741
    %7229 = vmatprep.subr.bf16.mxu0 %v6734
    %7230 = vmatpush1.bf16.msra.mxu0 %v6733
    %7231 = vmatprep.subr.bf16.mxu0 %v6726
    %7232 = vmatpush1.bf16.msra.mxu0 %v6725
    %7233 = vmatprep.subr.bf16.mxu0 %v6718
    %7234 = vmatpush1.bf16.msra.mxu0 %v6717
    %7235 = vmatprep.subr.bf16.mxu0 %v6710
    %7236 = vmatpush1.bf16.msra.mxu0 %v6709
    %7237 = vmatprep.subr.bf16.mxu0 %v6830
    %7238 = vmatpush2.bf16.msra.mxu0 %v6829
    %7239 = vmatprep.subr.bf16.mxu0 %v6822
    %7240 = vmatpush2.bf16.msra.mxu0 %v6821
    %7241 = vmatprep.subr.bf16.mxu0 %v6814
    %7242 = vmatpush2.bf16.msra.mxu0 %v6813
    %7243 = vmatprep.subr.bf16.mxu0 %v6806
    %7244 = vmatpush2.bf16.msra.mxu0 %v6805
    %7245 = vmatprep.subr.bf16.mxu0 %v6798
    %7246 = vmatpush2.bf16.msra.mxu0 %v6797
    %7247 = vmatprep.subr.bf16.mxu0 %v6790
    %7248 = vmatpush2.bf16.msra.mxu0 %v6789
    %7249 = vmatprep.subr.bf16.mxu0 %v6782
    %7250 = vmatpush2.bf16.msra.mxu0 %v6781
    %7251 = vmatprep.subr.bf16.mxu0 %v6774
    %7252 = vmatpush2.bf16.msra.mxu0 %v6773
    %7253 = vmatprep.mubr.bf16.mxu0 %v1832
    %7254 = vmatmul.mubr.bf16.gmra.mxu0 %v1831
    %v7255 = vpop.f32.mrf.mxu0
    %v7256 = vadd.f32 0.0, %v7255
    %v7257 = vpop.f32.mrf.mxu0
    %v7258 = vadd.f32 0.0, %v7257
    %v7259 = vpop.f32.mrf.mxu0
    %v7260 = vadd.f32 0.0, %v7259
    %v7261 = vpop.f32.mrf.mxu0
    %v7262 = vadd.f32 0.0, %v7261
    %7263 = vdwg.mxu0
    %7264 = vmatprep.subr.bf16.mxu0 %v6894
    %7265 = vmatpush1.bf16.msra.mxu0 %v6893
    %7266 = vmatprep.subr.bf16.mxu0 %v6886
    %7267 = vmatpush1.bf16.msra.mxu0 %v6885
    %7268 = vmatprep.subr.bf16.mxu0 %v6878
    %7269 = vmatpush1.bf16.msra.mxu0 %v6877
    %7270 = vmatprep.subr.bf16.mxu0 %v6870
    %7271 = vmatpush1.bf16.msra.mxu0 %v6869
    %7272 = vmatprep.subr.bf16.mxu0 %v6862
    %7273 = vmatpush1.bf16.msra.mxu0 %v6861
    %7274 = vmatprep.subr.bf16.mxu0 %v6854
    %7275 = vmatpush1.bf16.msra.mxu0 %v6853
    %7276 = vmatprep.subr.bf16.mxu0 %v6846
    %7277 = vmatpush1.bf16.msra.mxu0 %v6845
    %7278 = vmatprep.subr.bf16.mxu0 %v6838
    %7279 = vmatpush1.bf16.msra.mxu0 %v6837
    %7280 = vmatprep.subr.bf16.mxu0 %v6958
    %7281 = vmatpush2.bf16.msra.mxu0 %v6957
    %7282 = vmatprep.subr.bf16.mxu0 %v6950
    %7283 = vmatpush2.bf16.msra.mxu0 %v6949
    %7284 = vmatprep.subr.bf16.mxu0 %v6942
    %7285 = vmatpush2.bf16.msra.mxu0 %v6941
    %7286 = vmatprep.subr.bf16.mxu0 %v6934
    %7287 = vmatpush2.bf16.msra.mxu0 %v6933
    %7288 = vmatprep.subr.bf16.mxu0 %v6926
    %7289 = vmatpush2.bf16.msra.mxu0 %v6925
    %7290 = vmatprep.subr.bf16.mxu0 %v6918
    %7291 = vmatpush2.bf16.msra.mxu0 %v6917
    %7292 = vmatprep.subr.bf16.mxu0 %v6910
    %7293 = vmatpush2.bf16.msra.mxu0 %v6909
    %7294 = vmatprep.subr.bf16.mxu0 %v6902
    %7295 = vmatpush2.bf16.msra.mxu0 %v6901
    %7296 = vmatprep.mubr.bf16.mxu0 %v1834
    %7297 = vmatmul.mubr.bf16.gmra.mxu0 %v1833
    %v7298 = vpop.f32.mrf.mxu0
    %v7299 = vadd.f32 %v7256, %v7298
    %v7300 = vpop.f32.mrf.mxu0
    %v7301 = vadd.f32 %v7258, %v7300
    %v7302 = vpop.f32.mrf.mxu0
    %v7303 = vadd.f32 %v7260, %v7302
    %v7304 = vpop.f32.mrf.mxu0
    %v7305 = vadd.f32 %v7262, %v7304
    %7306 = vdwg.mxu0
    %7307 = vmatprep.subr.bf16.mxu0 %v6768
    %7308 = vmatpush1.bf16.msra.mxu0 %v6767
    %7309 = vmatprep.subr.bf16.mxu0 %v6760
    %7310 = vmatpush1.bf16.msra.mxu0 %v6759
    %7311 = vmatprep.subr.bf16.mxu0 %v6752
    %7312 = vmatpush1.bf16.msra.mxu0 %v6751
    %7313 = vmatprep.subr.bf16.mxu0 %v6744
    %7314 = vmatpush1.bf16.msra.mxu0 %v6743
    %7315 = vmatprep.subr.bf16.mxu0 %v6736
    %7316 = vmatpush1.bf16.msra.mxu0 %v6735
    %7317 = vmatprep.subr.bf16.mxu0 %v6728
    %7318 = vmatpush1.bf16.msra.mxu0 %v6727
    %7319 = vmatprep.subr.bf16.mxu0 %v6720
    %7320 = vmatpush1.bf16.msra.mxu0 %v6719
    %7321 = vmatprep.subr.bf16.mxu0 %v6712
    %7322 = vmatpush1.bf16.msra.mxu0 %v6711
    %7323 = vmatprep.subr.bf16.mxu0 %v6832
    %7324 = vmatpush2.bf16.msra.mxu0 %v6831
    %7325 = vmatprep.subr.bf16.mxu0 %v6824
    %7326 = vmatpush2.bf16.msra.mxu0 %v6823
    %7327 = vmatprep.subr.bf16.mxu0 %v6816
    %7328 = vmatpush2.bf16.msra.mxu0 %v6815
    %7329 = vmatprep.subr.bf16.mxu0 %v6808
    %7330 = vmatpush2.bf16.msra.mxu0 %v6807
    %7331 = vmatprep.subr.bf16.mxu0 %v6800
    %7332 = vmatpush2.bf16.msra.mxu0 %v6799
    %7333 = vmatprep.subr.bf16.mxu0 %v6792
    %7334 = vmatpush2.bf16.msra.mxu0 %v6791
    %7335 = vmatprep.subr.bf16.mxu0 %v6784
    %7336 = vmatpush2.bf16.msra.mxu0 %v6783
    %7337 = vmatprep.subr.bf16.mxu0 %v6776
    %7338 = vmatpush2.bf16.msra.mxu0 %v6775
    %7339 = vmatprep.mubr.bf16.mxu0 %v1832
    %7340 = vmatmul.mubr.bf16.gmra.mxu0 %v1831
    %v7341 = vpop.f32.mrf.mxu0
    %v7342 = vadd.f32 0.0, %v7341
    %v7343 = vpop.f32.mrf.mxu0
    %v7344 = vadd.f32 0.0, %v7343
    %v7345 = vpop.f32.mrf.mxu0
    %v7346 = vadd.f32 0.0, %v7345
    %v7347 = vpop.f32.mrf.mxu0
    %v7348 = vadd.f32 0.0, %v7347
    %7349 = vdwg.mxu0
    %7350 = vmatprep.subr.bf16.mxu0 %v6896
    %7351 = vmatpush1.bf16.msra.mxu0 %v6895
    %7352 = vmatprep.subr.bf16.mxu0 %v6888
    %7353 = vmatpush1.bf16.msra.mxu0 %v6887
    %7354 = vmatprep.subr.bf16.mxu0 %v6880
    %7355 = vmatpush1.bf16.msra.mxu0 %v6879
    %7356 = vmatprep.subr.bf16.mxu0 %v6872
    %7357 = vmatpush1.bf16.msra.mxu0 %v6871
    %7358 = vmatprep.subr.bf16.mxu0 %v6864
    %7359 = vmatpush1.bf16.msra.mxu0 %v6863
    %7360 = vmatprep.subr.bf16.mxu0 %v6856
    %7361 = vmatpush1.bf16.msra.mxu0 %v6855
    %7362 = vmatprep.subr.bf16.mxu0 %v6848
    %7363 = vmatpush1.bf16.msra.mxu0 %v6847
    %7364 = vmatprep.subr.bf16.mxu0 %v6840
    %7365 = vmatpush1.bf16.msra.mxu0 %v6839
    %7366 = vmatprep.subr.bf16.mxu0 %v6960
    %7367 = vmatpush2.bf16.msra.mxu0 %v6959
    %7368 = vmatprep.subr.bf16.mxu0 %v6952
    %7369 = vmatpush2.bf16.msra.mxu0 %v6951
    %7370 = vmatprep.subr.bf16.mxu0 %v6944
    %7371 = vmatpush2.bf16.msra.mxu0 %v6943
    %7372 = vmatprep.subr.bf16.mxu0 %v6936
    %7373 = vmatpush2.bf16.msra.mxu0 %v6935
    %7374 = vmatprep.subr.bf16.mxu0 %v6928
    %7375 = vmatpush2.bf16.msra.mxu0 %v6927
    %7376 = vmatprep.subr.bf16.mxu0 %v6920
    %7377 = vmatpush2.bf16.msra.mxu0 %v6919
    %7378 = vmatprep.subr.bf16.mxu0 %v6912
    %7379 = vmatpush2.bf16.msra.mxu0 %v6911
    %7380 = vmatprep.subr.bf16.mxu0 %v6904
    %7381 = vmatpush2.bf16.msra.mxu0 %v6903
    %7382 = vmatprep.mubr.bf16.mxu0 %v1834
    %7383 = vmatmul.mubr.bf16.gmra.mxu0 %v1833
    %v7384 = vpop.f32.mrf.mxu0
    %v7385 = vadd.f32 %v7342, %v7384
    %v7386 = vpop.f32.mrf.mxu0
    %v7387 = vadd.f32 %v7344, %v7386
    %v7388 = vpop.f32.mrf.mxu0
    %v7389 = vadd.f32 %v7346, %v7388
    %v7390 = vpop.f32.mrf.mxu0
    %v7391 = vadd.f32 %v7348, %v7390
    %7392 = vdwg.mxu0
    %7393 = vmatprep.subr.bf16.mxu0 %v6770
    %7394 = vmatpush1.bf16.msra.mxu0 %v6769
    %7395 = vmatprep.subr.bf16.mxu0 %v6762
    %7396 = vmatpush1.bf16.msra.mxu0 %v6761
    %7397 = vmatprep.subr.bf16.mxu0 %v6754
    %7398 = vmatpush1.bf16.msra.mxu0 %v6753
    %7399 = vmatprep.subr.bf16.mxu0 %v6746
    %7400 = vmatpush1.bf16.msra.mxu0 %v6745
    %7401 = vmatprep.subr.bf16.mxu0 %v6738
    %7402 = vmatpush1.bf16.msra.mxu0 %v6737
    %7403 = vmatprep.subr.bf16.mxu0 %v6730
    %7404 = vmatpush1.bf16.msra.mxu0 %v6729
    %7405 = vmatprep.subr.bf16.mxu0 %v6722
    %7406 = vmatpush1.bf16.msra.mxu0 %v6721
    %7407 = vmatprep.subr.bf16.mxu0 %v6714
    %7408 = vmatpush1.bf16.msra.mxu0 %v6713
    %7409 = vmatprep.subr.bf16.mxu0 %v6834
    %7410 = vmatpush2.bf16.msra.mxu0 %v6833
    %7411 = vmatprep.subr.bf16.mxu0 %v6826
    %7412 = vmatpush2.bf16.msra.mxu0 %v6825
    %7413 = vmatprep.subr.bf16.mxu0 %v6818
    %7414 = vmatpush2.bf16.msra.mxu0 %v6817
    %7415 = vmatprep.subr.bf16.mxu0 %v6810
    %7416 = vmatpush2.bf16.msra.mxu0 %v6809
    %7417 = vmatprep.subr.bf16.mxu0 %v6802
    %7418 = vmatpush2.bf16.msra.mxu0 %v6801
    %7419 = vmatprep.subr.bf16.mxu0 %v6794
    %7420 = vmatpush2.bf16.msra.mxu0 %v6793
    %7421 = vmatprep.subr.bf16.mxu0 %v6786
    %7422 = vmatpush2.bf16.msra.mxu0 %v6785
    %7423 = vmatprep.subr.bf16.mxu0 %v6778
    %7424 = vmatpush2.bf16.msra.mxu0 %v6777
    %7425 = vmatprep.mubr.bf16.mxu0 %v1832
    %7426 = vmatmul.mubr.bf16.gmra.mxu0 %v1831
    %v7427 = vpop.f32.mrf.mxu0
    %v7428 = vadd.f32 0.0, %v7427
    %v7429 = vpop.f32.mrf.mxu0
    %v7430 = vadd.f32 0.0, %v7429
    %v7431 = vpop.f32.mrf.mxu0
    %v7432 = vadd.f32 0.0, %v7431
    %v7433 = vpop.f32.mrf.mxu0
    %v7434 = vadd.f32 0.0, %v7433
    %7435 = vdwg.mxu0
    %7436 = vmatprep.subr.bf16.mxu0 %v6898
    %7437 = vmatpush1.bf16.msra.mxu0 %v6897
    %7438 = vmatprep.subr.bf16.mxu0 %v6890
    %7439 = vmatpush1.bf16.msra.mxu0 %v6889
    %7440 = vmatprep.subr.bf16.mxu0 %v6882
    %7441 = vmatpush1.bf16.msra.mxu0 %v6881
    %7442 = vmatprep.subr.bf16.mxu0 %v6874
    %7443 = vmatpush1.bf16.msra.mxu0 %v6873
    %7444 = vmatprep.subr.bf16.mxu0 %v6866
    %7445 = vmatpush1.bf16.msra.mxu0 %v6865
    %7446 = vmatprep.subr.bf16.mxu0 %v6858
    %7447 = vmatpush1.bf16.msra.mxu0 %v6857
    %7448 = vmatprep.subr.bf16.mxu0 %v6850
    %7449 = vmatpush1.bf16.msra.mxu0 %v6849
    %7450 = vmatprep.subr.bf16.mxu0 %v6842
    %7451 = vmatpush1.bf16.msra.mxu0 %v6841
    %7452 = vmatprep.subr.bf16.mxu0 %v6962
    %7453 = vmatpush2.bf16.msra.mxu0 %v6961
    %7454 = vmatprep.subr.bf16.mxu0 %v6954
    %7455 = vmatpush2.bf16.msra.mxu0 %v6953
    %7456 = vmatprep.subr.bf16.mxu0 %v6946
    %7457 = vmatpush2.bf16.msra.mxu0 %v6945
    %7458 = vmatprep.subr.bf16.mxu0 %v6938
    %7459 = vmatpush2.bf16.msra.mxu0 %v6937
    %7460 = vmatprep.subr.bf16.mxu0 %v6930
    %7461 = vmatpush2.bf16.msra.mxu0 %v6929
    %7462 = vmatprep.subr.bf16.mxu0 %v6922
    %7463 = vmatpush2.bf16.msra.mxu0 %v6921
    %7464 = vmatprep.subr.bf16.mxu0 %v6914
    %7465 = vmatpush2.bf16.msra.mxu0 %v6913
    %7466 = vmatprep.subr.bf16.mxu0 %v6906
    %7467 = vmatpush2.bf16.msra.mxu0 %v6905
    %7468 = vmatprep.mubr.bf16.mxu0 %v1834
    %7469 = vmatmul.mubr.bf16.gmra.mxu0 %v1833
    %v7470 = vpop.f32.mrf.mxu0
    %v7471 = vadd.f32 %v7428, %v7470
    %v7472 = vpop.f32.mrf.mxu0
    %v7473 = vadd.f32 %v7430, %v7472
    %v7474 = vpop.f32.mrf.mxu0
    %v7475 = vadd.f32 %v7432, %v7474
    %v7476 = vpop.f32.mrf.mxu0
    %v7477 = vadd.f32 %v7434, %v7476
    %7478 = vdwg.mxu0
    %7479 = vmatprep.subr.bf16.mxu0 %v6772
    %7480 = vmatpush1.bf16.msra.mxu0 %v6771
    %7481 = vmatprep.subr.bf16.mxu0 %v6764
    %7482 = vmatpush1.bf16.msra.mxu0 %v6763
    %7483 = vmatprep.subr.bf16.mxu0 %v6756
    %7484 = vmatpush1.bf16.msra.mxu0 %v6755
    %7485 = vmatprep.subr.bf16.mxu0 %v6748
    %7486 = vmatpush1.bf16.msra.mxu0 %v6747
    %7487 = vmatprep.subr.bf16.mxu0 %v6740
    %7488 = vmatpush1.bf16.msra.mxu0 %v6739
    %7489 = vmatprep.subr.bf16.mxu0 %v6732
    %7490 = vmatpush1.bf16.msra.mxu0 %v6731
    %7491 = vmatprep.subr.bf16.mxu0 %v6724
    %7492 = vmatpush1.bf16.msra.mxu0 %v6723
    %7493 = vmatprep.subr.bf16.mxu0 %v6716
    %7494 = vmatpush1.bf16.msra.mxu0 %v6715
    %7495 = vmatprep.subr.bf16.mxu0 %v6836
    %7496 = vmatpush2.bf16.msra.mxu0 %v6835
    %7497 = vmatprep.subr.bf16.mxu0 %v6828
    %7498 = vmatpush2.bf16.msra.mxu0 %v6827
    %7499 = vmatprep.subr.bf16.mxu0 %v6820
    %7500 = vmatpush2.bf16.msra.mxu0 %v6819
    %7501 = vmatprep.subr.bf16.mxu0 %v6812
    %7502 = vmatpush2.bf16.msra.mxu0 %v6811
    %7503 = vmatprep.subr.bf16.mxu0 %v6804
    %7504 = vmatpush2.bf16.msra.mxu0 %v6803
    %7505 = vmatprep.subr.bf16.mxu0 %v6796
    %7506 = vmatpush2.bf16.msra.mxu0 %v6795
    %7507 = vmatprep.subr.bf16.mxu0 %v6788
    %7508 = vmatpush2.bf16.msra.mxu0 %v6787
    %7509 = vmatprep.subr.bf16.mxu0 %v6780
    %7510 = vmatpush2.bf16.msra.mxu0 %v6779
    %7511 = vmatprep.mubr.bf16.mxu0 %v1832
    %7512 = vmatmul.mubr.bf16.gmra.mxu0 %v1831
    %v7513 = vpop.f32.mrf.mxu0
    %v7514 = vadd.f32 0.0, %v7513
    %v7515 = vpop.f32.mrf.mxu0
    %v7516 = vadd.f32 0.0, %v7515
    %v7517 = vpop.f32.mrf.mxu0
    %v7518 = vadd.f32 0.0, %v7517
    %v7519 = vpop.f32.mrf.mxu0
    %v7520 = vadd.f32 0.0, %v7519
    %7521 = vdwg.mxu0
    %7522 = vmatprep.subr.bf16.mxu0 %v6900
    %7523 = vmatpush1.bf16.msra.mxu0 %v6899
    %7524 = vmatprep.subr.bf16.mxu0 %v6892
    %7525 = vmatpush1.bf16.msra.mxu0 %v6891
    %7526 = vmatprep.subr.bf16.mxu0 %v6884
    %7527 = vmatpush1.bf16.msra.mxu0 %v6883
    %7528 = vmatprep.subr.bf16.mxu0 %v6876
    %7529 = vmatpush1.bf16.msra.mxu0 %v6875
    %7530 = vmatprep.subr.bf16.mxu0 %v6868
    %7531 = vmatpush1.bf16.msra.mxu0 %v6867
    %7532 = vmatprep.subr.bf16.mxu0 %v6860
    %7533 = vmatpush1.bf16.msra.mxu0 %v6859
    %7534 = vmatprep.subr.bf16.mxu0 %v6852
    %7535 = vmatpush1.bf16.msra.mxu0 %v6851
    %7536 = vmatprep.subr.bf16.mxu0 %v6844
    %7537 = vmatpush1.bf16.msra.mxu0 %v6843
    %7538 = vmatprep.subr.bf16.mxu0 %v6964
    %7539 = vmatpush2.bf16.msra.mxu0 %v6963
    %7540 = vmatprep.subr.bf16.mxu0 %v6956
    %7541 = vmatpush2.bf16.msra.mxu0 %v6955
    %7542 = vmatprep.subr.bf16.mxu0 %v6948
    %7543 = vmatpush2.bf16.msra.mxu0 %v6947
    %7544 = vmatprep.subr.bf16.mxu0 %v6940
    %7545 = vmatpush2.bf16.msra.mxu0 %v6939
    %7546 = vmatprep.subr.bf16.mxu0 %v6932
    %7547 = vmatpush2.bf16.msra.mxu0 %v6931
    %7548 = vmatprep.subr.bf16.mxu0 %v6924
    %7549 = vmatpush2.bf16.msra.mxu0 %v6923
    %7550 = vmatprep.subr.bf16.mxu0 %v6916
    %7551 = vmatpush2.bf16.msra.mxu0 %v6915
    %7552 = vmatprep.subr.bf16.mxu0 %v6908
    %7553 = vmatpush2.bf16.msra.mxu0 %v6907
    %7554 = vmatprep.mubr.bf16.mxu0 %v1834
    %7555 = vmatmul.mubr.bf16.gmra.mxu0 %v1833
    %v7556 = vpop.f32.mrf.mxu0
    %v7557 = vadd.f32 %v7514, %v7556
    %v7558 = vpop.f32.mrf.mxu0
    %v7559 = vadd.f32 %v7516, %v7558
    %v7560 = vpop.f32.mrf.mxu0
    %v7561 = vadd.f32 %v7518, %v7560
    %v7562 = vpop.f32.mrf.mxu0
    %v7563 = vadd.f32 %v7520, %v7562
    %7564 = vdwg.mxu0
    %v7565 = vadd.f32 %v5675, %v7299
    %v7566 = vadd.f32 %v5677, %v7301
    %v7567 = vadd.f32 %v5761, %v7385
    %v7568 = vadd.f32 %v5763, %v7387
    %v7569 = vadd.f32 %v5847, %v7471
    %v7570 = vadd.f32 %v5849, %v7473
    %v7571 = vadd.f32 %v5933, %v7557
    %v7572 = vadd.f32 %v5935, %v7559
    %v7573 = vadd.f32 %v5679, %v7303
    %v7574 = vadd.f32 %v5681, %v7305
    %v7575 = vadd.f32 %v5765, %v7389
    %v7576 = vadd.f32 %v5767, %v7391
    %v7577 = vadd.f32 %v5851, %v7475
    %v7578 = vadd.f32 %v5853, %v7477
    %v7579 = vadd.f32 %v5937, %v7561
    %v7580 = vadd.f32 %v5939, %v7563
    %7581 = vmatprep.subr.bf16.mxu0 %v3518
    %7582 = vmatpush1.bf16.msra.mxu0 %v3517
    %7583 = vmatprep.subr.bf16.mxu0 %v3510
    %7584 = vmatpush1.bf16.msra.mxu0 %v3509
    %7585 = vmatprep.subr.bf16.mxu0 %v3502
    %7586 = vmatpush1.bf16.msra.mxu0 %v3501
    %7587 = vmatprep.subr.bf16.mxu0 %v3494
    %7588 = vmatpush1.bf16.msra.mxu0 %v3493
    %7589 = vmatprep.subr.bf16.mxu0 %v3486
    %7590 = vmatpush1.bf16.msra.mxu0 %v3485
    %7591 = vmatprep.subr.bf16.mxu0 %v3478
    %7592 = vmatpush1.bf16.msra.mxu0 %v3477
    %7593 = vmatprep.subr.bf16.mxu0 %v3470
    %7594 = vmatpush1.bf16.msra.mxu0 %v3469
    %7595 = vmatprep.subr.bf16.mxu0 %v3462
    %7596 = vmatpush1.bf16.msra.mxu0 %v3461
    %7597 = vmatprep.subr.bf16.mxu0 %v3582
    %7598 = vmatpush2.bf16.msra.mxu0 %v3581
    %7599 = vmatprep.subr.bf16.mxu0 %v3574
    %7600 = vmatpush2.bf16.msra.mxu0 %v3573
    %7601 = vmatprep.subr.bf16.mxu0 %v3566
    %7602 = vmatpush2.bf16.msra.mxu0 %v3565
    %7603 = vmatprep.subr.bf16.mxu0 %v3558
    %7604 = vmatpush2.bf16.msra.mxu0 %v3557
    %7605 = vmatprep.subr.bf16.mxu0 %v3550
    %7606 = vmatpush2.bf16.msra.mxu0 %v3549
    %7607 = vmatprep.subr.bf16.mxu0 %v3542
    %7608 = vmatpush2.bf16.msra.mxu0 %v3541
    %7609 = vmatprep.subr.bf16.mxu0 %v3534
    %7610 = vmatpush2.bf16.msra.mxu0 %v3533
    %7611 = vmatprep.subr.bf16.mxu0 %v3526
    %7612 = vmatpush2.bf16.msra.mxu0 %v3525
    %7613 = vmatprep.mubr.bf16.mxu0 %v1832
    %7614 = vmatmul.mubr.bf16.gmra.mxu0 %v1831
    %v7615 = vpop.f32.mrf.mxu0
    %v7616 = vadd.f32 0.0, %v7615
    %v7617 = vpop.f32.mrf.mxu0
    %v7618 = vadd.f32 0.0, %v7617
    %v7619 = vpop.f32.mrf.mxu0
    %v7620 = vadd.f32 0.0, %v7619
    %v7621 = vpop.f32.mrf.mxu0
    %v7622 = vadd.f32 0.0, %v7621
    %7623 = vdwg.mxu0
    %7624 = vmatprep.subr.bf16.mxu0 %v3646
    %7625 = vmatpush1.bf16.msra.mxu0 %v3645
    %7626 = vmatprep.subr.bf16.mxu0 %v3638
    %7627 = vmatpush1.bf16.msra.mxu0 %v3637
    %7628 = vmatprep.subr.bf16.mxu0 %v3630
    %7629 = vmatpush1.bf16.msra.mxu0 %v3629
    %7630 = vmatprep.subr.bf16.mxu0 %v3622
    %7631 = vmatpush1.bf16.msra.mxu0 %v3621
    %7632 = vmatprep.subr.bf16.mxu0 %v3614
    %7633 = vmatpush1.bf16.msra.mxu0 %v3613
    %7634 = vmatprep.subr.bf16.mxu0 %v3606
    %7635 = vmatpush1.bf16.msra.mxu0 %v3605
    %7636 = vmatprep.subr.bf16.mxu0 %v3598
    %7637 = vmatpush1.bf16.msra.mxu0 %v3597
    %7638 = vmatprep.subr.bf16.mxu0 %v3590
    %7639 = vmatpush1.bf16.msra.mxu0 %v3589
    %7640 = vmatprep.subr.bf16.mxu0 %v3710
    %7641 = vmatpush2.bf16.msra.mxu0 %v3709
    %7642 = vmatprep.subr.bf16.mxu0 %v3702
    %7643 = vmatpush2.bf16.msra.mxu0 %v3701
    %7644 = vmatprep.subr.bf16.mxu0 %v3694
    %7645 = vmatpush2.bf16.msra.mxu0 %v3693
    %7646 = vmatprep.subr.bf16.mxu0 %v3686
    %7647 = vmatpush2.bf16.msra.mxu0 %v3685
    %7648 = vmatprep.subr.bf16.mxu0 %v3678
    %7649 = vmatpush2.bf16.msra.mxu0 %v3677
    %7650 = vmatprep.subr.bf16.mxu0 %v3670
    %7651 = vmatpush2.bf16.msra.mxu0 %v3669
    %7652 = vmatprep.subr.bf16.mxu0 %v3662
    %7653 = vmatpush2.bf16.msra.mxu0 %v3661
    %7654 = vmatprep.subr.bf16.mxu0 %v3654
    %7655 = vmatpush2.bf16.msra.mxu0 %v3653
    %7656 = vmatprep.mubr.bf16.mxu0 %v1834
    %7657 = vmatmul.mubr.bf16.gmra.mxu0 %v1833
    %v7658 = vpop.f32.mrf.mxu0
    %v7659 = vadd.f32 %v7616, %v7658
    %v7660 = vpop.f32.mrf.mxu0
    %v7661 = vadd.f32 %v7618, %v7660
    %v7662 = vpop.f32.mrf.mxu0
    %v7663 = vadd.f32 %v7620, %v7662
    %v7664 = vpop.f32.mrf.mxu0
    %v7665 = vadd.f32 %v7622, %v7664
    %7666 = vdwg.mxu0
    %7667 = vmatprep.subr.bf16.mxu0 %v3520
    %7668 = vmatpush1.bf16.msra.mxu0 %v3519
    %7669 = vmatprep.subr.bf16.mxu0 %v3512
    %7670 = vmatpush1.bf16.msra.mxu0 %v3511
    %7671 = vmatprep.subr.bf16.mxu0 %v3504
    %7672 = vmatpush1.bf16.msra.mxu0 %v3503
    %7673 = vmatprep.subr.bf16.mxu0 %v3496
    %7674 = vmatpush1.bf16.msra.mxu0 %v3495
    %7675 = vmatprep.subr.bf16.mxu0 %v3488
    %7676 = vmatpush1.bf16.msra.mxu0 %v3487
    %7677 = vmatprep.subr.bf16.mxu0 %v3480
    %7678 = vmatpush1.bf16.msra.mxu0 %v3479
    %7679 = vmatprep.subr.bf16.mxu0 %v3472
    %7680 = vmatpush1.bf16.msra.mxu0 %v3471
    %7681 = vmatprep.subr.bf16.mxu0 %v3464
    %7682 = vmatpush1.bf16.msra.mxu0 %v3463
    %7683 = vmatprep.subr.bf16.mxu0 %v3584
    %7684 = vmatpush2.bf16.msra.mxu0 %v3583
    %7685 = vmatprep.subr.bf16.mxu0 %v3576
    %7686 = vmatpush2.bf16.msra.mxu0 %v3575
    %7687 = vmatprep.subr.bf16.mxu0 %v3568
    %7688 = vmatpush2.bf16.msra.mxu0 %v3567
    %7689 = vmatprep.subr.bf16.mxu0 %v3560
    %7690 = vmatpush2.bf16.msra.mxu0 %v3559
    %7691 = vmatprep.subr.bf16.mxu0 %v3552
    %7692 = vmatpush2.bf16.msra.mxu0 %v3551
    %7693 = vmatprep.subr.bf16.mxu0 %v3544
    %7694 = vmatpush2.bf16.msra.mxu0 %v3543
    %7695 = vmatprep.subr.bf16.mxu0 %v3536
    %7696 = vmatpush2.bf16.msra.mxu0 %v3535
    %7697 = vmatprep.subr.bf16.mxu0 %v3528
    %7698 = vmatpush2.bf16.msra.mxu0 %v3527
    %7699 = vmatprep.mubr.bf16.mxu0 %v1832
    %7700 = vmatmul.mubr.bf16.gmra.mxu0 %v1831
    %v7701 = vpop.f32.mrf.mxu0
    %v7702 = vadd.f32 0.0, %v7701
    %v7703 = vpop.f32.mrf.mxu0
    %v7704 = vadd.f32 0.0, %v7703
    %v7705 = vpop.f32.mrf.mxu0
    %v7706 = vadd.f32 0.0, %v7705
    %v7707 = vpop.f32.mrf.mxu0
    %v7708 = vadd.f32 0.0, %v7707
    %7709 = vdwg.mxu0
    %7710 = vmatprep.subr.bf16.mxu0 %v3648
    %7711 = vmatpush1.bf16.msra.mxu0 %v3647
    %7712 = vmatprep.subr.bf16.mxu0 %v3640
    %7713 = vmatpush1.bf16.msra.mxu0 %v3639
    %7714 = vmatprep.subr.bf16.mxu0 %v3632
    %7715 = vmatpush1.bf16.msra.mxu0 %v3631
    %7716 = vmatprep.subr.bf16.mxu0 %v3624
    %7717 = vmatpush1.bf16.msra.mxu0 %v3623
    %7718 = vmatprep.subr.bf16.mxu0 %v3616
    %7719 = vmatpush1.bf16.msra.mxu0 %v3615
    %7720 = vmatprep.subr.bf16.mxu0 %v3608
    %7721 = vmatpush1.bf16.msra.mxu0 %v3607
    %7722 = vmatprep.subr.bf16.mxu0 %v3600
    %7723 = vmatpush1.bf16.msra.mxu0 %v3599
    %7724 = vmatprep.subr.bf16.mxu0 %v3592
    %7725 = vmatpush1.bf16.msra.mxu0 %v3591
    %7726 = vmatprep.subr.bf16.mxu0 %v3712
    %7727 = vmatpush2.bf16.msra.mxu0 %v3711
    %7728 = vmatprep.subr.bf16.mxu0 %v3704
    %7729 = vmatpush2.bf16.msra.mxu0 %v3703
    %7730 = vmatprep.subr.bf16.mxu0 %v3696
    %7731 = vmatpush2.bf16.msra.mxu0 %v3695
    %7732 = vmatprep.subr.bf16.mxu0 %v3688
    %7733 = vmatpush2.bf16.msra.mxu0 %v3687
    %7734 = vmatprep.subr.bf16.mxu0 %v3680
    %7735 = vmatpush2.bf16.msra.mxu0 %v3679
    %7736 = vmatprep.subr.bf16.mxu0 %v3672
    %7737 = vmatpush2.bf16.msra.mxu0 %v3671
    %7738 = vmatprep.subr.bf16.mxu0 %v3664
    %7739 = vmatpush2.bf16.msra.mxu0 %v3663
    %7740 = vmatprep.subr.bf16.mxu0 %v3656
    %7741 = vmatpush2.bf16.msra.mxu0 %v3655
    %7742 = vmatprep.mubr.bf16.mxu0 %v1834
    %7743 = vmatmul.mubr.bf16.gmra.mxu0 %v1833
    %v7744 = vpop.f32.mrf.mxu0
    %v7745 = vadd.f32 %v7702, %v7744
    %v7746 = vpop.f32.mrf.mxu0
    %v7747 = vadd.f32 %v7704, %v7746
    %v7748 = vpop.f32.mrf.mxu0
    %v7749 = vadd.f32 %v7706, %v7748
    %v7750 = vpop.f32.mrf.mxu0
    %v7751 = vadd.f32 %v7708, %v7750
    %7752 = vdwg.mxu0
    %7753 = vmatprep.subr.bf16.mxu0 %v3522
    %7754 = vmatpush1.bf16.msra.mxu0 %v3521
    %7755 = vmatprep.subr.bf16.mxu0 %v3514
    %7756 = vmatpush1.bf16.msra.mxu0 %v3513
    %7757 = vmatprep.subr.bf16.mxu0 %v3506
    %7758 = vmatpush1.bf16.msra.mxu0 %v3505
    %7759 = vmatprep.subr.bf16.mxu0 %v3498
    %7760 = vmatpush1.bf16.msra.mxu0 %v3497
    %7761 = vmatprep.subr.bf16.mxu0 %v3490
    %7762 = vmatpush1.bf16.msra.mxu0 %v3489
    %7763 = vmatprep.subr.bf16.mxu0 %v3482
    %7764 = vmatpush1.bf16.msra.mxu0 %v3481
    %7765 = vmatprep.subr.bf16.mxu0 %v3474
    %7766 = vmatpush1.bf16.msra.mxu0 %v3473
    %7767 = vmatprep.subr.bf16.mxu0 %v3466
    %7768 = vmatpush1.bf16.msra.mxu0 %v3465
    %7769 = vmatprep.subr.bf16.mxu0 %v3586
    %7770 = vmatpush2.bf16.msra.mxu0 %v3585
    %7771 = vmatprep.subr.bf16.mxu0 %v3578
    %7772 = vmatpush2.bf16.msra.mxu0 %v3577
    %7773 = vmatprep.subr.bf16.mxu0 %v3570
    %7774 = vmatpush2.bf16.msra.mxu0 %v3569
    %7775 = vmatprep.subr.bf16.mxu0 %v3562
    %7776 = vmatpush2.bf16.msra.mxu0 %v3561
    %7777 = vmatprep.subr.bf16.mxu0 %v3554
    %7778 = vmatpush2.bf16.msra.mxu0 %v3553
    %7779 = vmatprep.subr.bf16.mxu0 %v3546
    %7780 = vmatpush2.bf16.msra.mxu0 %v3545
    %7781 = vmatprep.subr.bf16.mxu0 %v3538
    %7782 = vmatpush2.bf16.msra.mxu0 %v3537
    %7783 = vmatprep.subr.bf16.mxu0 %v3530
    %7784 = vmatpush2.bf16.msra.mxu0 %v3529
    %7785 = vmatprep.mubr.bf16.mxu0 %v1832
    %7786 = vmatmul.mubr.bf16.gmra.mxu0 %v1831
    %v7787 = vpop.f32.mrf.mxu0
    %v7788 = vadd.f32 0.0, %v7787
    %v7789 = vpop.f32.mrf.mxu0
    %v7790 = vadd.f32 0.0, %v7789
    %v7791 = vpop.f32.mrf.mxu0
    %v7792 = vadd.f32 0.0, %v7791
    %v7793 = vpop.f32.mrf.mxu0
    %v7794 = vadd.f32 0.0, %v7793
    %7795 = vdwg.mxu0
    %7796 = vmatprep.subr.bf16.mxu0 %v3650
    %7797 = vmatpush1.bf16.msra.mxu0 %v3649
    %7798 = vmatprep.subr.bf16.mxu0 %v3642
    %7799 = vmatpush1.bf16.msra.mxu0 %v3641
    %7800 = vmatprep.subr.bf16.mxu0 %v3634
    %7801 = vmatpush1.bf16.msra.mxu0 %v3633
    %7802 = vmatprep.subr.bf16.mxu0 %v3626
    %7803 = vmatpush1.bf16.msra.mxu0 %v3625
    %7804 = vmatprep.subr.bf16.mxu0 %v3618
    %7805 = vmatpush1.bf16.msra.mxu0 %v3617
    %7806 = vmatprep.subr.bf16.mxu0 %v3610
    %7807 = vmatpush1.bf16.msra.mxu0 %v3609
    %7808 = vmatprep.subr.bf16.mxu0 %v3602
    %7809 = vmatpush1.bf16.msra.mxu0 %v3601
    %7810 = vmatprep.subr.bf16.mxu0 %v3594
    %7811 = vmatpush1.bf16.msra.mxu0 %v3593
    %7812 = vmatprep.subr.bf16.mxu0 %v3714
    %7813 = vmatpush2.bf16.msra.mxu0 %v3713
    %7814 = vmatprep.subr.bf16.mxu0 %v3706
    %7815 = vmatpush2.bf16.msra.mxu0 %v3705
    %7816 = vmatprep.subr.bf16.mxu0 %v3698
    %7817 = vmatpush2.bf16.msra.mxu0 %v3697
    %7818 = vmatprep.subr.bf16.mxu0 %v3690
    %7819 = vmatpush2.bf16.msra.mxu0 %v3689
    %7820 = vmatprep.subr.bf16.mxu0 %v3682
    %7821 = vmatpush2.bf16.msra.mxu0 %v3681
    %7822 = vmatprep.subr.bf16.mxu0 %v3674
    %7823 = vmatpush2.bf16.msra.mxu0 %v3673
    %7824 = vmatprep.subr.bf16.mxu0 %v3666
    %7825 = vmatpush2.bf16.msra.mxu0 %v3665
    %7826 = vmatprep.subr.bf16.mxu0 %v3658
    %7827 = vmatpush2.bf16.msra.mxu0 %v3657
    %7828 = vmatprep.mubr.bf16.mxu0 %v1834
    %7829 = vmatmul.mubr.bf16.gmra.mxu0 %v1833
    %v7830 = vpop.f32.mrf.mxu0
    %v7831 = vadd.f32 %v7788, %v7830
    %v7832 = vpop.f32.mrf.mxu0
    %v7833 = vadd.f32 %v7790, %v7832
    %v7834 = vpop.f32.mrf.mxu0
    %v7835 = vadd.f32 %v7792, %v7834
    %v7836 = vpop.f32.mrf.mxu0
    %v7837 = vadd.f32 %v7794, %v7836
    %7838 = vdwg.mxu0
    %7839 = vmatprep.subr.bf16.mxu0 %v3524
    %7840 = vmatpush1.bf16.msra.mxu0 %v3523
    %7841 = vmatprep.subr.bf16.mxu0 %v3516
    %7842 = vmatpush1.bf16.msra.mxu0 %v3515
    %7843 = vmatprep.subr.bf16.mxu0 %v3508
    %7844 = vmatpush1.bf16.msra.mxu0 %v3507
    %7845 = vmatprep.subr.bf16.mxu0 %v3500
    %7846 = vmatpush1.bf16.msra.mxu0 %v3499
    %7847 = vmatprep.subr.bf16.mxu0 %v3492
    %7848 = vmatpush1.bf16.msra.mxu0 %v3491
    %7849 = vmatprep.subr.bf16.mxu0 %v3484
    %7850 = vmatpush1.bf16.msra.mxu0 %v3483
    %7851 = vmatprep.subr.bf16.mxu0 %v3476
    %7852 = vmatpush1.bf16.msra.mxu0 %v3475
    %7853 = vmatprep.subr.bf16.mxu0 %v3468
    %7854 = vmatpush1.bf16.msra.mxu0 %v3467
    %7855 = vmatprep.subr.bf16.mxu0 %v3588
    %7856 = vmatpush2.bf16.msra.mxu0 %v3587
    %7857 = vmatprep.subr.bf16.mxu0 %v3580
    %7858 = vmatpush2.bf16.msra.mxu0 %v3579
    %7859 = vmatprep.subr.bf16.mxu0 %v3572
    %7860 = vmatpush2.bf16.msra.mxu0 %v3571
    %7861 = vmatprep.subr.bf16.mxu0 %v3564
    %7862 = vmatpush2.bf16.msra.mxu0 %v3563
    %7863 = vmatprep.subr.bf16.mxu0 %v3556
    %7864 = vmatpush2.bf16.msra.mxu0 %v3555
    %7865 = vmatprep.subr.bf16.mxu0 %v3548
    %7866 = vmatpush2.bf16.msra.mxu0 %v3547
    %7867 = vmatprep.subr.bf16.mxu0 %v3540
    %7868 = vmatpush2.bf16.msra.mxu0 %v3539
    %7869 = vmatprep.subr.bf16.mxu0 %v3532
    %7870 = vmatpush2.bf16.msra.mxu0 %v3531
    %7871 = vmatprep.mubr.bf16.mxu0 %v1832
    %7872 = vmatmul.mubr.bf16.gmra.mxu0 %v1831
    %v7873 = vpop.f32.mrf.mxu0
    %v7874 = vadd.f32 0.0, %v7873
    %v7875 = vpop.f32.mrf.mxu0
    %v7876 = vadd.f32 0.0, %v7875
    %v7877 = vpop.f32.mrf.mxu0
    %v7878 = vadd.f32 0.0, %v7877
    %v7879 = vpop.f32.mrf.mxu0
    %v7880 = vadd.f32 0.0, %v7879
    %7881 = vdwg.mxu0
    %7882 = vmatprep.subr.bf16.mxu0 %v3652
    %7883 = vmatpush1.bf16.msra.mxu0 %v3651
    %7884 = vmatprep.subr.bf16.mxu0 %v3644
    %7885 = vmatpush1.bf16.msra.mxu0 %v3643
    %7886 = vmatprep.subr.bf16.mxu0 %v3636
    %7887 = vmatpush1.bf16.msra.mxu0 %v3635
    %7888 = vmatprep.subr.bf16.mxu0 %v3628
    %7889 = vmatpush1.bf16.msra.mxu0 %v3627
    %7890 = vmatprep.subr.bf16.mxu0 %v3620
    %7891 = vmatpush1.bf16.msra.mxu0 %v3619
    %7892 = vmatprep.subr.bf16.mxu0 %v3612
    %7893 = vmatpush1.bf16.msra.mxu0 %v3611
    %7894 = vmatprep.subr.bf16.mxu0 %v3604
    %7895 = vmatpush1.bf16.msra.mxu0 %v3603
    %7896 = vmatprep.subr.bf16.mxu0 %v3596
    %7897 = vmatpush1.bf16.msra.mxu0 %v3595
    %7898 = vmatprep.subr.bf16.mxu0 %v3716
    %7899 = vmatpush2.bf16.msra.mxu0 %v3715
    %7900 = vmatprep.subr.bf16.mxu0 %v3708
    %7901 = vmatpush2.bf16.msra.mxu0 %v3707
    %7902 = vmatprep.subr.bf16.mxu0 %v3700
    %7903 = vmatpush2.bf16.msra.mxu0 %v3699
    %7904 = vmatprep.subr.bf16.mxu0 %v3692
    %7905 = vmatpush2.bf16.msra.mxu0 %v3691
    %7906 = vmatprep.subr.bf16.mxu0 %v3684
    %7907 = vmatpush2.bf16.msra.mxu0 %v3683
    %7908 = vmatprep.subr.bf16.mxu0 %v3676
    %7909 = vmatpush2.bf16.msra.mxu0 %v3675
    %7910 = vmatprep.subr.bf16.mxu0 %v3668
    %7911 = vmatpush2.bf16.msra.mxu0 %v3667
    %7912 = vmatprep.subr.bf16.mxu0 %v3660
    %7913 = vmatpush2.bf16.msra.mxu0 %v3659
    %7914 = vmatprep.mubr.bf16.mxu0 %v1834
    %7915 = vmatmul.mubr.bf16.gmra.mxu0 %v1833
    %v7916 = vpop.f32.mrf.mxu0
    %v7917 = vadd.f32 %v7874, %v7916
    %v7918 = vpop.f32.mrf.mxu0
    %v7919 = vadd.f32 %v7876, %v7918
    %v7920 = vpop.f32.mrf.mxu0
    %v7921 = vadd.f32 %v7878, %v7920
    %v7922 = vpop.f32.mrf.mxu0
    %v7923 = vadd.f32 %v7880, %v7922
    %7924 = vdwg.mxu0
    %7925 = vmatprep.subr.bf16.mxu0 %v5142
    %7926 = vmatpush1.bf16.msra.mxu0 %v5141
    %7927 = vmatprep.subr.bf16.mxu0 %v5134
    %7928 = vmatpush1.bf16.msra.mxu0 %v5133
    %7929 = vmatprep.subr.bf16.mxu0 %v5126
    %7930 = vmatpush1.bf16.msra.mxu0 %v5125
    %7931 = vmatprep.subr.bf16.mxu0 %v5118
    %7932 = vmatpush1.bf16.msra.mxu0 %v5117
    %7933 = vmatprep.subr.bf16.mxu0 %v5110
    %7934 = vmatpush1.bf16.msra.mxu0 %v5109
    %7935 = vmatprep.subr.bf16.mxu0 %v5102
    %7936 = vmatpush1.bf16.msra.mxu0 %v5101
    %7937 = vmatprep.subr.bf16.mxu0 %v5094
    %7938 = vmatpush1.bf16.msra.mxu0 %v5093
    %7939 = vmatprep.subr.bf16.mxu0 %v5086
    %7940 = vmatpush1.bf16.msra.mxu0 %v5085
    %7941 = vmatprep.subr.bf16.mxu0 %v5206
    %7942 = vmatpush2.bf16.msra.mxu0 %v5205
    %7943 = vmatprep.subr.bf16.mxu0 %v5198
    %7944 = vmatpush2.bf16.msra.mxu0 %v5197
    %7945 = vmatprep.subr.bf16.mxu0 %v5190
    %7946 = vmatpush2.bf16.msra.mxu0 %v5189
    %7947 = vmatprep.subr.bf16.mxu0 %v5182
    %7948 = vmatpush2.bf16.msra.mxu0 %v5181
    %7949 = vmatprep.subr.bf16.mxu0 %v5174
    %7950 = vmatpush2.bf16.msra.mxu0 %v5173
    %7951 = vmatprep.subr.bf16.mxu0 %v5166
    %7952 = vmatpush2.bf16.msra.mxu0 %v5165
    %7953 = vmatprep.subr.bf16.mxu0 %v5158
    %7954 = vmatpush2.bf16.msra.mxu0 %v5157
    %7955 = vmatprep.subr.bf16.mxu0 %v5150
    %7956 = vmatpush2.bf16.msra.mxu0 %v5149
    %7957 = vmatprep.mubr.bf16.mxu0 %v1727
    %7958 = vmatmul.mubr.bf16.gmra.mxu0 %v1726
    %v7959 = vpop.f32.mrf.mxu0
    %v7960 = vadd.f32 %v7659, %v7959
    %v7961 = vpop.f32.mrf.mxu0
    %v7962 = vadd.f32 %v7661, %v7961
    %v7963 = vpop.f32.mrf.mxu0
    %v7964 = vadd.f32 %v7663, %v7963
    %v7965 = vpop.f32.mrf.mxu0
    %v7966 = vadd.f32 %v7665, %v7965
    %7967 = vdwg.mxu0
    %7968 = vmatprep.subr.bf16.mxu0 %v5270
    %7969 = vmatpush1.bf16.msra.mxu0 %v5269
    %7970 = vmatprep.subr.bf16.mxu0 %v5262
    %7971 = vmatpush1.bf16.msra.mxu0 %v5261
    %7972 = vmatprep.subr.bf16.mxu0 %v5254
    %7973 = vmatpush1.bf16.msra.mxu0 %v5253
    %7974 = vmatprep.subr.bf16.mxu0 %v5246
    %7975 = vmatpush1.bf16.msra.mxu0 %v5245
    %7976 = vmatprep.subr.bf16.mxu0 %v5238
    %7977 = vmatpush1.bf16.msra.mxu0 %v5237
    %7978 = vmatprep.subr.bf16.mxu0 %v5230
    %7979 = vmatpush1.bf16.msra.mxu0 %v5229
    %7980 = vmatprep.subr.bf16.mxu0 %v5222
    %7981 = vmatpush1.bf16.msra.mxu0 %v5221
    %7982 = vmatprep.subr.bf16.mxu0 %v5214
    %7983 = vmatpush1.bf16.msra.mxu0 %v5213
    %7984 = vmatprep.subr.bf16.mxu0 %v5334
    %7985 = vmatpush2.bf16.msra.mxu0 %v5333
    %7986 = vmatprep.subr.bf16.mxu0 %v5326
    %7987 = vmatpush2.bf16.msra.mxu0 %v5325
    %7988 = vmatprep.subr.bf16.mxu0 %v5318
    %7989 = vmatpush2.bf16.msra.mxu0 %v5317
    %7990 = vmatprep.subr.bf16.mxu0 %v5310
    %7991 = vmatpush2.bf16.msra.mxu0 %v5309
    %7992 = vmatprep.subr.bf16.mxu0 %v5302
    %7993 = vmatpush2.bf16.msra.mxu0 %v5301
    %7994 = vmatprep.subr.bf16.mxu0 %v5294
    %7995 = vmatpush2.bf16.msra.mxu0 %v5293
    %7996 = vmatprep.subr.bf16.mxu0 %v5286
    %7997 = vmatpush2.bf16.msra.mxu0 %v5285
    %7998 = vmatprep.subr.bf16.mxu0 %v5278
    %7999 = vmatpush2.bf16.msra.mxu0 %v5277
    %8000 = vmatprep.mubr.bf16.mxu0 %v1729
    %8001 = vmatmul.mubr.bf16.gmra.mxu0 %v1728
    %v8002 = vpop.f32.mrf.mxu0
    %v8003 = vadd.f32 %v7960, %v8002
    %v8004 = vpop.f32.mrf.mxu0
    %v8005 = vadd.f32 %v7962, %v8004
    %v8006 = vpop.f32.mrf.mxu0
    %v8007 = vadd.f32 %v7964, %v8006
    %v8008 = vpop.f32.mrf.mxu0
    %v8009 = vadd.f32 %v7966, %v8008
    %8010 = vdwg.mxu0
    %8011 = vmatprep.subr.bf16.mxu0 %v5144
    %8012 = vmatpush1.bf16.msra.mxu0 %v5143
    %8013 = vmatprep.subr.bf16.mxu0 %v5136
    %8014 = vmatpush1.bf16.msra.mxu0 %v5135
    %8015 = vmatprep.subr.bf16.mxu0 %v5128
    %8016 = vmatpush1.bf16.msra.mxu0 %v5127
    %8017 = vmatprep.subr.bf16.mxu0 %v5120
    %8018 = vmatpush1.bf16.msra.mxu0 %v5119
    %8019 = vmatprep.subr.bf16.mxu0 %v5112
    %8020 = vmatpush1.bf16.msra.mxu0 %v5111
    %8021 = vmatprep.subr.bf16.mxu0 %v5104
    %8022 = vmatpush1.bf16.msra.mxu0 %v5103
    %8023 = vmatprep.subr.bf16.mxu0 %v5096
    %8024 = vmatpush1.bf16.msra.mxu0 %v5095
    %8025 = vmatprep.subr.bf16.mxu0 %v5088
    %8026 = vmatpush1.bf16.msra.mxu0 %v5087
    %8027 = vmatprep.subr.bf16.mxu0 %v5208
    %8028 = vmatpush2.bf16.msra.mxu0 %v5207
    %8029 = vmatprep.subr.bf16.mxu0 %v5200
    %8030 = vmatpush2.bf16.msra.mxu0 %v5199
    %8031 = vmatprep.subr.bf16.mxu0 %v5192
    %8032 = vmatpush2.bf16.msra.mxu0 %v5191
    %8033 = vmatprep.subr.bf16.mxu0 %v5184
    %8034 = vmatpush2.bf16.msra.mxu0 %v5183
    %8035 = vmatprep.subr.bf16.mxu0 %v5176
    %8036 = vmatpush2.bf16.msra.mxu0 %v5175
    %8037 = vmatprep.subr.bf16.mxu0 %v5168
    %8038 = vmatpush2.bf16.msra.mxu0 %v5167
    %8039 = vmatprep.subr.bf16.mxu0 %v5160
    %8040 = vmatpush2.bf16.msra.mxu0 %v5159
    %8041 = vmatprep.subr.bf16.mxu0 %v5152
    %8042 = vmatpush2.bf16.msra.mxu0 %v5151
    %8043 = vmatprep.mubr.bf16.mxu0 %v1727
    %8044 = vmatmul.mubr.bf16.gmra.mxu0 %v1726
    %v8045 = vpop.f32.mrf.mxu0
    %v8046 = vadd.f32 %v7745, %v8045
    %v8047 = vpop.f32.mrf.mxu0
    %v8048 = vadd.f32 %v7747, %v8047
    %v8049 = vpop.f32.mrf.mxu0
    %v8050 = vadd.f32 %v7749, %v8049
    %v8051 = vpop.f32.mrf.mxu0
    %v8052 = vadd.f32 %v7751, %v8051
    %8053 = vdwg.mxu0
    %8054 = vmatprep.subr.bf16.mxu0 %v5272
    %8055 = vmatpush1.bf16.msra.mxu0 %v5271
    %8056 = vmatprep.subr.bf16.mxu0 %v5264
    %8057 = vmatpush1.bf16.msra.mxu0 %v5263
    %8058 = vmatprep.subr.bf16.mxu0 %v5256
    %8059 = vmatpush1.bf16.msra.mxu0 %v5255
    %8060 = vmatprep.subr.bf16.mxu0 %v5248
    %8061 = vmatpush1.bf16.msra.mxu0 %v5247
    %8062 = vmatprep.subr.bf16.mxu0 %v5240
    %8063 = vmatpush1.bf16.msra.mxu0 %v5239
    %8064 = vmatprep.subr.bf16.mxu0 %v5232
    %8065 = vmatpush1.bf16.msra.mxu0 %v5231
    %8066 = vmatprep.subr.bf16.mxu0 %v5224
    %8067 = vmatpush1.bf16.msra.mxu0 %v5223
    %8068 = vmatprep.subr.bf16.mxu0 %v5216
    %8069 = vmatpush1.bf16.msra.mxu0 %v5215
    %8070 = vmatprep.subr.bf16.mxu0 %v5336
    %8071 = vmatpush2.bf16.msra.mxu0 %v5335
    %8072 = vmatprep.subr.bf16.mxu0 %v5328
    %8073 = vmatpush2.bf16.msra.mxu0 %v5327
    %8074 = vmatprep.subr.bf16.mxu0 %v5320
    %8075 = vmatpush2.bf16.msra.mxu0 %v5319
    %8076 = vmatprep.subr.bf16.mxu0 %v5312
    %8077 = vmatpush2.bf16.msra.mxu0 %v5311
    %8078 = vmatprep.subr.bf16.mxu0 %v5304
    %8079 = vmatpush2.bf16.msra.mxu0 %v5303
    %8080 = vmatprep.subr.bf16.mxu0 %v5296
    %8081 = vmatpush2.bf16.msra.mxu0 %v5295
    %8082 = vmatprep.subr.bf16.mxu0 %v5288
    %8083 = vmatpush2.bf16.msra.mxu0 %v5287
    %8084 = vmatprep.subr.bf16.mxu0 %v5280
    %8085 = vmatpush2.bf16.msra.mxu0 %v5279
    %8086 = vmatprep.mubr.bf16.mxu0 %v1729
    %8087 = vmatmul.mubr.bf16.gmra.mxu0 %v1728
    %v8088 = vpop.f32.mrf.mxu0
    %v8089 = vadd.f32 %v8046, %v8088
    %v8090 = vpop.f32.mrf.mxu0
    %v8091 = vadd.f32 %v8048, %v8090
    %v8092 = vpop.f32.mrf.mxu0
    %v8093 = vadd.f32 %v8050, %v8092
    %v8094 = vpop.f32.mrf.mxu0
    %v8095 = vadd.f32 %v8052, %v8094
    %8096 = vdwg.mxu0
    %8097 = vmatprep.subr.bf16.mxu0 %v5146
    %8098 = vmatpush1.bf16.msra.mxu0 %v5145
    %8099 = vmatprep.subr.bf16.mxu0 %v5138
    %8100 = vmatpush1.bf16.msra.mxu0 %v5137
    %8101 = vmatprep.subr.bf16.mxu0 %v5130
    %8102 = vmatpush1.bf16.msra.mxu0 %v5129
    %8103 = vmatprep.subr.bf16.mxu0 %v5122
    %8104 = vmatpush1.bf16.msra.mxu0 %v5121
    %8105 = vmatprep.subr.bf16.mxu0 %v5114
    %8106 = vmatpush1.bf16.msra.mxu0 %v5113
    %8107 = vmatprep.subr.bf16.mxu0 %v5106
    %8108 = vmatpush1.bf16.msra.mxu0 %v5105
    %8109 = vmatprep.subr.bf16.mxu0 %v5098
    %8110 = vmatpush1.bf16.msra.mxu0 %v5097
    %8111 = vmatprep.subr.bf16.mxu0 %v5090
    %8112 = vmatpush1.bf16.msra.mxu0 %v5089
    %8113 = vmatprep.subr.bf16.mxu0 %v5210
    %8114 = vmatpush2.bf16.msra.mxu0 %v5209
    %8115 = vmatprep.subr.bf16.mxu0 %v5202
    %8116 = vmatpush2.bf16.msra.mxu0 %v5201
    %8117 = vmatprep.subr.bf16.mxu0 %v5194
    %8118 = vmatpush2.bf16.msra.mxu0 %v5193
    %8119 = vmatprep.subr.bf16.mxu0 %v5186
    %8120 = vmatpush2.bf16.msra.mxu0 %v5185
    %8121 = vmatprep.subr.bf16.mxu0 %v5178
    %8122 = vmatpush2.bf16.msra.mxu0 %v5177
    %8123 = vmatprep.subr.bf16.mxu0 %v5170
    %8124 = vmatpush2.bf16.msra.mxu0 %v5169
    %8125 = vmatprep.subr.bf16.mxu0 %v5162
    %8126 = vmatpush2.bf16.msra.mxu0 %v5161
    %8127 = vmatprep.subr.bf16.mxu0 %v5154
    %8128 = vmatpush2.bf16.msra.mxu0 %v5153
    %8129 = vmatprep.mubr.bf16.mxu0 %v1727
    %8130 = vmatmul.mubr.bf16.gmra.mxu0 %v1726
    %v8131 = vpop.f32.mrf.mxu0
    %v8132 = vadd.f32 %v7831, %v8131
    %v8133 = vpop.f32.mrf.mxu0
    %v8134 = vadd.f32 %v7833, %v8133
    %v8135 = vpop.f32.mrf.mxu0
    %v8136 = vadd.f32 %v7835, %v8135
    %v8137 = vpop.f32.mrf.mxu0
    %v8138 = vadd.f32 %v7837, %v8137
    %8139 = vdwg.mxu0
    %8140 = vmatprep.subr.bf16.mxu0 %v5274
    %8141 = vmatpush1.bf16.msra.mxu0 %v5273
    %8142 = vmatprep.subr.bf16.mxu0 %v5266
    %8143 = vmatpush1.bf16.msra.mxu0 %v5265
    %8144 = vmatprep.subr.bf16.mxu0 %v5258
    %8145 = vmatpush1.bf16.msra.mxu0 %v5257
    %8146 = vmatprep.subr.bf16.mxu0 %v5250
    %8147 = vmatpush1.bf16.msra.mxu0 %v5249
    %8148 = vmatprep.subr.bf16.mxu0 %v5242
    %8149 = vmatpush1.bf16.msra.mxu0 %v5241
    %8150 = vmatprep.subr.bf16.mxu0 %v5234
    %8151 = vmatpush1.bf16.msra.mxu0 %v5233
    %8152 = vmatprep.subr.bf16.mxu0 %v5226
    %8153 = vmatpush1.bf16.msra.mxu0 %v5225
    %8154 = vmatprep.subr.bf16.mxu0 %v5218
    %8155 = vmatpush1.bf16.msra.mxu0 %v5217
    %8156 = vmatprep.subr.bf16.mxu0 %v5338
    %8157 = vmatpush2.bf16.msra.mxu0 %v5337
    %8158 = vmatprep.subr.bf16.mxu0 %v5330
    %8159 = vmatpush2.bf16.msra.mxu0 %v5329
    %8160 = vmatprep.subr.bf16.mxu0 %v5322
    %8161 = vmatpush2.bf16.msra.mxu0 %v5321
    %8162 = vmatprep.subr.bf16.mxu0 %v5314
    %8163 = vmatpush2.bf16.msra.mxu0 %v5313
    %8164 = vmatprep.subr.bf16.mxu0 %v5306
    %8165 = vmatpush2.bf16.msra.mxu0 %v5305
    %8166 = vmatprep.subr.bf16.mxu0 %v5298
    %8167 = vmatpush2.bf16.msra.mxu0 %v5297
    %8168 = vmatprep.subr.bf16.mxu0 %v5290
    %8169 = vmatpush2.bf16.msra.mxu0 %v5289
    %8170 = vmatprep.subr.bf16.mxu0 %v5282
    %8171 = vmatpush2.bf16.msra.mxu0 %v5281
    %8172 = vmatprep.mubr.bf16.mxu0 %v1729
    %8173 = vmatmul.mubr.bf16.gmra.mxu0 %v1728
    %v8174 = vpop.f32.mrf.mxu0
    %v8175 = vadd.f32 %v8132, %v8174
    %v8176 = vpop.f32.mrf.mxu0
    %v8177 = vadd.f32 %v8134, %v8176
    %v8178 = vpop.f32.mrf.mxu0
    %v8179 = vadd.f32 %v8136, %v8178
    %v8180 = vpop.f32.mrf.mxu0
    %v8181 = vadd.f32 %v8138, %v8180
    %8182 = vdwg.mxu0
    %8183 = vmatprep.subr.bf16.mxu0 %v5148
    %8184 = vmatpush1.bf16.msra.mxu0 %v5147
    %8185 = vmatprep.subr.bf16.mxu0 %v5140
    %8186 = vmatpush1.bf16.msra.mxu0 %v5139
    %8187 = vmatprep.subr.bf16.mxu0 %v5132
    %8188 = vmatpush1.bf16.msra.mxu0 %v5131
    %8189 = vmatprep.subr.bf16.mxu0 %v5124
    %8190 = vmatpush1.bf16.msra.mxu0 %v5123
    %8191 = vmatprep.subr.bf16.mxu0 %v5116
    %8192 = vmatpush1.bf16.msra.mxu0 %v5115
    %8193 = vmatprep.subr.bf16.mxu0 %v5108
    %8194 = vmatpush1.bf16.msra.mxu0 %v5107
    %8195 = vmatprep.subr.bf16.mxu0 %v5100
    %8196 = vmatpush1.bf16.msra.mxu0 %v5099
    %8197 = vmatprep.subr.bf16.mxu0 %v5092
    %8198 = vmatpush1.bf16.msra.mxu0 %v5091
    %8199 = vmatprep.subr.bf16.mxu0 %v5212
    %8200 = vmatpush2.bf16.msra.mxu0 %v5211
    %8201 = vmatprep.subr.bf16.mxu0 %v5204
    %8202 = vmatpush2.bf16.msra.mxu0 %v5203
    %8203 = vmatprep.subr.bf16.mxu0 %v5196
    %8204 = vmatpush2.bf16.msra.mxu0 %v5195
    %8205 = vmatprep.subr.bf16.mxu0 %v5188
    %8206 = vmatpush2.bf16.msra.mxu0 %v5187
    %8207 = vmatprep.subr.bf16.mxu0 %v5180
    %8208 = vmatpush2.bf16.msra.mxu0 %v5179
    %8209 = vmatprep.subr.bf16.mxu0 %v5172
    %8210 = vmatpush2.bf16.msra.mxu0 %v5171
    %8211 = vmatprep.subr.bf16.mxu0 %v5164
    %8212 = vmatpush2.bf16.msra.mxu0 %v5163
    %8213 = vmatprep.subr.bf16.mxu0 %v5156
    %8214 = vmatpush2.bf16.msra.mxu0 %v5155
    %8215 = vmatprep.mubr.bf16.mxu0 %v1727
    %8216 = vmatmul.mubr.bf16.gmra.mxu0 %v1726
    %v8217 = vpop.f32.mrf.mxu0
    %v8218 = vadd.f32 %v7917, %v8217
    %v8219 = vpop.f32.mrf.mxu0
    %v8220 = vadd.f32 %v7919, %v8219
    %v8221 = vpop.f32.mrf.mxu0
    %v8222 = vadd.f32 %v7921, %v8221
    %v8223 = vpop.f32.mrf.mxu0
    %v8224 = vadd.f32 %v7923, %v8223
    %8225 = vdwg.mxu0
    %8226 = vmatprep.subr.bf16.mxu0 %v5276
    %8227 = vmatpush1.bf16.msra.mxu0 %v5275
    %8228 = vmatprep.subr.bf16.mxu0 %v5268
    %8229 = vmatpush1.bf16.msra.mxu0 %v5267
    %8230 = vmatprep.subr.bf16.mxu0 %v5260
    %8231 = vmatpush1.bf16.msra.mxu0 %v5259
    %8232 = vmatprep.subr.bf16.mxu0 %v5252
    %8233 = vmatpush1.bf16.msra.mxu0 %v5251
    %8234 = vmatprep.subr.bf16.mxu0 %v5244
    %8235 = vmatpush1.bf16.msra.mxu0 %v5243
    %8236 = vmatprep.subr.bf16.mxu0 %v5236
    %8237 = vmatpush1.bf16.msra.mxu0 %v5235
    %8238 = vmatprep.subr.bf16.mxu0 %v5228
    %8239 = vmatpush1.bf16.msra.mxu0 %v5227
    %8240 = vmatprep.subr.bf16.mxu0 %v5220
    %8241 = vmatpush1.bf16.msra.mxu0 %v5219
    %8242 = vmatprep.subr.bf16.mxu0 %v5340
    %8243 = vmatpush2.bf16.msra.mxu0 %v5339
    %8244 = vmatprep.subr.bf16.mxu0 %v5332
    %8245 = vmatpush2.bf16.msra.mxu0 %v5331
    %8246 = vmatprep.subr.bf16.mxu0 %v5324
    %8247 = vmatpush2.bf16.msra.mxu0 %v5323
    %8248 = vmatprep.subr.bf16.mxu0 %v5316
    %8249 = vmatpush2.bf16.msra.mxu0 %v5315
    %8250 = vmatprep.subr.bf16.mxu0 %v5308
    %8251 = vmatpush2.bf16.msra.mxu0 %v5307
    %8252 = vmatprep.subr.bf16.mxu0 %v5300
    %8253 = vmatpush2.bf16.msra.mxu0 %v5299
    %8254 = vmatprep.subr.bf16.mxu0 %v5292
    %8255 = vmatpush2.bf16.msra.mxu0 %v5291
    %8256 = vmatprep.subr.bf16.mxu0 %v5284
    %8257 = vmatpush2.bf16.msra.mxu0 %v5283
    %8258 = vmatprep.mubr.bf16.mxu0 %v1729
    %8259 = vmatmul.mubr.bf16.gmra.mxu0 %v1728
    %v8260 = vpop.f32.mrf.mxu0
    %v8261 = vadd.f32 %v8218, %v8260
    %v8262 = vpop.f32.mrf.mxu0
    %v8263 = vadd.f32 %v8220, %v8262
    %v8264 = vpop.f32.mrf.mxu0
    %v8265 = vadd.f32 %v8222, %v8264
    %v8266 = vpop.f32.mrf.mxu0
    %v8267 = vadd.f32 %v8224, %v8266
    %8268 = vdwg.mxu0
    %8269 = vmatprep.subr.bf16.mxu0 %v6766
    %8270 = vmatpush1.bf16.msra.mxu0 %v6765
    %8271 = vmatprep.subr.bf16.mxu0 %v6758
    %8272 = vmatpush1.bf16.msra.mxu0 %v6757
    %8273 = vmatprep.subr.bf16.mxu0 %v6750
    %8274 = vmatpush1.bf16.msra.mxu0 %v6749
    %8275 = vmatprep.subr.bf16.mxu0 %v6742
    %8276 = vmatpush1.bf16.msra.mxu0 %v6741
    %8277 = vmatprep.subr.bf16.mxu0 %v6734
    %8278 = vmatpush1.bf16.msra.mxu0 %v6733
    %8279 = vmatprep.subr.bf16.mxu0 %v6726
    %8280 = vmatpush1.bf16.msra.mxu0 %v6725
    %8281 = vmatprep.subr.bf16.mxu0 %v6718
    %8282 = vmatpush1.bf16.msra.mxu0 %v6717
    %8283 = vmatprep.subr.bf16.mxu0 %v6710
    %8284 = vmatpush1.bf16.msra.mxu0 %v6709
    %8285 = vmatprep.subr.bf16.mxu0 %v6830
    %8286 = vmatpush2.bf16.msra.mxu0 %v6829
    %8287 = vmatprep.subr.bf16.mxu0 %v6822
    %8288 = vmatpush2.bf16.msra.mxu0 %v6821
    %8289 = vmatprep.subr.bf16.mxu0 %v6814
    %8290 = vmatpush2.bf16.msra.mxu0 %v6813
    %8291 = vmatprep.subr.bf16.mxu0 %v6806
    %8292 = vmatpush2.bf16.msra.mxu0 %v6805
    %8293 = vmatprep.subr.bf16.mxu0 %v6798
    %8294 = vmatpush2.bf16.msra.mxu0 %v6797
    %8295 = vmatprep.subr.bf16.mxu0 %v6790
    %8296 = vmatpush2.bf16.msra.mxu0 %v6789
    %8297 = vmatprep.subr.bf16.mxu0 %v6782
    %8298 = vmatpush2.bf16.msra.mxu0 %v6781
    %8299 = vmatprep.subr.bf16.mxu0 %v6774
    %8300 = vmatpush2.bf16.msra.mxu0 %v6773
    %8301 = vmatprep.mubr.bf16.mxu0 %v1922
    %8302 = vmatmul.mubr.bf16.gmra.mxu0 %v1921
    %v8303 = vpop.f32.mrf.mxu0
    %v8304 = vadd.f32 0.0, %v8303
    %v8305 = vpop.f32.mrf.mxu0
    %v8306 = vadd.f32 0.0, %v8305
    %v8307 = vpop.f32.mrf.mxu0
    %v8308 = vadd.f32 0.0, %v8307
    %v8309 = vpop.f32.mrf.mxu0
    %v8310 = vadd.f32 0.0, %v8309
    %8311 = vdwg.mxu0
    %8312 = vmatprep.subr.bf16.mxu0 %v6894
    %8313 = vmatpush1.bf16.msra.mxu0 %v6893
    %8314 = vmatprep.subr.bf16.mxu0 %v6886
    %8315 = vmatpush1.bf16.msra.mxu0 %v6885
    %8316 = vmatprep.subr.bf16.mxu0 %v6878
    %8317 = vmatpush1.bf16.msra.mxu0 %v6877
    %8318 = vmatprep.subr.bf16.mxu0 %v6870
    %8319 = vmatpush1.bf16.msra.mxu0 %v6869
    %8320 = vmatprep.subr.bf16.mxu0 %v6862
    %8321 = vmatpush1.bf16.msra.mxu0 %v6861
    %8322 = vmatprep.subr.bf16.mxu0 %v6854
    %8323 = vmatpush1.bf16.msra.mxu0 %v6853
    %8324 = vmatprep.subr.bf16.mxu0 %v6846
    %8325 = vmatpush1.bf16.msra.mxu0 %v6845
    %8326 = vmatprep.subr.bf16.mxu0 %v6838
    %8327 = vmatpush1.bf16.msra.mxu0 %v6837
    %8328 = vmatprep.subr.bf16.mxu0 %v6958
    %8329 = vmatpush2.bf16.msra.mxu0 %v6957
    %8330 = vmatprep.subr.bf16.mxu0 %v6950
    %8331 = vmatpush2.bf16.msra.mxu0 %v6949
    %8332 = vmatprep.subr.bf16.mxu0 %v6942
    %8333 = vmatpush2.bf16.msra.mxu0 %v6941
    %8334 = vmatprep.subr.bf16.mxu0 %v6934
    %8335 = vmatpush2.bf16.msra.mxu0 %v6933
    %8336 = vmatprep.subr.bf16.mxu0 %v6926
    %8337 = vmatpush2.bf16.msra.mxu0 %v6925
    %8338 = vmatprep.subr.bf16.mxu0 %v6918
    %8339 = vmatpush2.bf16.msra.mxu0 %v6917
    %8340 = vmatprep.subr.bf16.mxu0 %v6910
    %8341 = vmatpush2.bf16.msra.mxu0 %v6909
    %8342 = vmatprep.subr.bf16.mxu0 %v6902
    %8343 = vmatpush2.bf16.msra.mxu0 %v6901
    %8344 = vmatprep.mubr.bf16.mxu0 %v1924
    %8345 = vmatmul.mubr.bf16.gmra.mxu0 %v1923
    %v8346 = vpop.f32.mrf.mxu0
    %v8347 = vadd.f32 %v8304, %v8346
    %v8348 = vpop.f32.mrf.mxu0
    %v8349 = vadd.f32 %v8306, %v8348
    %v8350 = vpop.f32.mrf.mxu0
    %v8351 = vadd.f32 %v8308, %v8350
    %v8352 = vpop.f32.mrf.mxu0
    %v8353 = vadd.f32 %v8310, %v8352
    %8354 = vdwg.mxu0
    %8355 = vmatprep.subr.bf16.mxu0 %v6768
    %8356 = vmatpush1.bf16.msra.mxu0 %v6767
    %8357 = vmatprep.subr.bf16.mxu0 %v6760
    %8358 = vmatpush1.bf16.msra.mxu0 %v6759
    %8359 = vmatprep.subr.bf16.mxu0 %v6752
    %8360 = vmatpush1.bf16.msra.mxu0 %v6751
    %8361 = vmatprep.subr.bf16.mxu0 %v6744
    %8362 = vmatpush1.bf16.msra.mxu0 %v6743
    %8363 = vmatprep.subr.bf16.mxu0 %v6736
    %8364 = vmatpush1.bf16.msra.mxu0 %v6735
    %8365 = vmatprep.subr.bf16.mxu0 %v6728
    %8366 = vmatpush1.bf16.msra.mxu0 %v6727
    %8367 = vmatprep.subr.bf16.mxu0 %v6720
    %8368 = vmatpush1.bf16.msra.mxu0 %v6719
    %8369 = vmatprep.subr.bf16.mxu0 %v6712
    %8370 = vmatpush1.bf16.msra.mxu0 %v6711
    %8371 = vmatprep.subr.bf16.mxu0 %v6832
    %8372 = vmatpush2.bf16.msra.mxu0 %v6831
    %8373 = vmatprep.subr.bf16.mxu0 %v6824
    %8374 = vmatpush2.bf16.msra.mxu0 %v6823
    %8375 = vmatprep.subr.bf16.mxu0 %v6816
    %8376 = vmatpush2.bf16.msra.mxu0 %v6815
    %8377 = vmatprep.subr.bf16.mxu0 %v6808
    %8378 = vmatpush2.bf16.msra.mxu0 %v6807
    %8379 = vmatprep.subr.bf16.mxu0 %v6800
    %8380 = vmatpush2.bf16.msra.mxu0 %v6799
    %8381 = vmatprep.subr.bf16.mxu0 %v6792
    %8382 = vmatpush2.bf16.msra.mxu0 %v6791
    %8383 = vmatprep.subr.bf16.mxu0 %v6784
    %8384 = vmatpush2.bf16.msra.mxu0 %v6783
    %8385 = vmatprep.subr.bf16.mxu0 %v6776
    %8386 = vmatpush2.bf16.msra.mxu0 %v6775
    %8387 = vmatprep.mubr.bf16.mxu0 %v1922
    %8388 = vmatmul.mubr.bf16.gmra.mxu0 %v1921
    %v8389 = vpop.f32.mrf.mxu0
    %v8390 = vadd.f32 0.0, %v8389
    %v8391 = vpop.f32.mrf.mxu0
    %v8392 = vadd.f32 0.0, %v8391
    %v8393 = vpop.f32.mrf.mxu0
    %v8394 = vadd.f32 0.0, %v8393
    %v8395 = vpop.f32.mrf.mxu0
    %v8396 = vadd.f32 0.0, %v8395
    %8397 = vdwg.mxu0
    %8398 = vmatprep.subr.bf16.mxu0 %v6896
    %8399 = vmatpush1.bf16.msra.mxu0 %v6895
    %8400 = vmatprep.subr.bf16.mxu0 %v6888
    %8401 = vmatpush1.bf16.msra.mxu0 %v6887
    %8402 = vmatprep.subr.bf16.mxu0 %v6880
    %8403 = vmatpush1.bf16.msra.mxu0 %v6879
    %8404 = vmatprep.subr.bf16.mxu0 %v6872
    %8405 = vmatpush1.bf16.msra.mxu0 %v6871
    %8406 = vmatprep.subr.bf16.mxu0 %v6864
    %8407 = vmatpush1.bf16.msra.mxu0 %v6863
    %8408 = vmatprep.subr.bf16.mxu0 %v6856
    %8409 = vmatpush1.bf16.msra.mxu0 %v6855
    %8410 = vmatprep.subr.bf16.mxu0 %v6848
    %8411 = vmatpush1.bf16.msra.mxu0 %v6847
    %8412 = vmatprep.subr.bf16.mxu0 %v6840
    %8413 = vmatpush1.bf16.msra.mxu0 %v6839
    %8414 = vmatprep.subr.bf16.mxu0 %v6960
    %8415 = vmatpush2.bf16.msra.mxu0 %v6959
    %8416 = vmatprep.subr.bf16.mxu0 %v6952
    %8417 = vmatpush2.bf16.msra.mxu0 %v6951
    %8418 = vmatprep.subr.bf16.mxu0 %v6944
    %8419 = vmatpush2.bf16.msra.mxu0 %v6943
    %8420 = vmatprep.subr.bf16.mxu0 %v6936
    %8421 = vmatpush2.bf16.msra.mxu0 %v6935
    %8422 = vmatprep.subr.bf16.mxu0 %v6928
    %8423 = vmatpush2.bf16.msra.mxu0 %v6927
    %8424 = vmatprep.subr.bf16.mxu0 %v6920
    %8425 = vmatpush2.bf16.msra.mxu0 %v6919
    %8426 = vmatprep.subr.bf16.mxu0 %v6912
    %8427 = vmatpush2.bf16.msra.mxu0 %v6911
    %8428 = vmatprep.subr.bf16.mxu0 %v6904
    %8429 = vmatpush2.bf16.msra.mxu0 %v6903
    %8430 = vmatprep.mubr.bf16.mxu0 %v1924
    %8431 = vmatmul.mubr.bf16.gmra.mxu0 %v1923
    %v8432 = vpop.f32.mrf.mxu0
    %v8433 = vadd.f32 %v8390, %v8432
    %v8434 = vpop.f32.mrf.mxu0
    %v8435 = vadd.f32 %v8392, %v8434
    %v8436 = vpop.f32.mrf.mxu0
    %v8437 = vadd.f32 %v8394, %v8436
    %v8438 = vpop.f32.mrf.mxu0
    %v8439 = vadd.f32 %v8396, %v8438
    %8440 = vdwg.mxu0
    %8441 = vmatprep.subr.bf16.mxu0 %v6770
    %8442 = vmatpush1.bf16.msra.mxu0 %v6769
    %8443 = vmatprep.subr.bf16.mxu0 %v6762
    %8444 = vmatpush1.bf16.msra.mxu0 %v6761
    %8445 = vmatprep.subr.bf16.mxu0 %v6754
    %8446 = vmatpush1.bf16.msra.mxu0 %v6753
    %8447 = vmatprep.subr.bf16.mxu0 %v6746
    %8448 = vmatpush1.bf16.msra.mxu0 %v6745
    %8449 = vmatprep.subr.bf16.mxu0 %v6738
    %8450 = vmatpush1.bf16.msra.mxu0 %v6737
    %8451 = vmatprep.subr.bf16.mxu0 %v6730
    %8452 = vmatpush1.bf16.msra.mxu0 %v6729
    %8453 = vmatprep.subr.bf16.mxu0 %v6722
    %8454 = vmatpush1.bf16.msra.mxu0 %v6721
    %8455 = vmatprep.subr.bf16.mxu0 %v6714
    %8456 = vmatpush1.bf16.msra.mxu0 %v6713
    %8457 = vmatprep.subr.bf16.mxu0 %v6834
    %8458 = vmatpush2.bf16.msra.mxu0 %v6833
    %8459 = vmatprep.subr.bf16.mxu0 %v6826
    %8460 = vmatpush2.bf16.msra.mxu0 %v6825
    %8461 = vmatprep.subr.bf16.mxu0 %v6818
    %8462 = vmatpush2.bf16.msra.mxu0 %v6817
    %8463 = vmatprep.subr.bf16.mxu0 %v6810
    %8464 = vmatpush2.bf16.msra.mxu0 %v6809
    %8465 = vmatprep.subr.bf16.mxu0 %v6802
    %8466 = vmatpush2.bf16.msra.mxu0 %v6801
    %8467 = vmatprep.subr.bf16.mxu0 %v6794
    %8468 = vmatpush2.bf16.msra.mxu0 %v6793
    %8469 = vmatprep.subr.bf16.mxu0 %v6786
    %8470 = vmatpush2.bf16.msra.mxu0 %v6785
    %8471 = vmatprep.subr.bf16.mxu0 %v6778
    %8472 = vmatpush2.bf16.msra.mxu0 %v6777
    %8473 = vmatprep.mubr.bf16.mxu0 %v1922
    %8474 = vmatmul.mubr.bf16.gmra.mxu0 %v1921
    %v8475 = vpop.f32.mrf.mxu0
    %v8476 = vadd.f32 0.0, %v8475
    %v8477 = vpop.f32.mrf.mxu0
    %v8478 = vadd.f32 0.0, %v8477
    %v8479 = vpop.f32.mrf.mxu0
    %v8480 = vadd.f32 0.0, %v8479
    %v8481 = vpop.f32.mrf.mxu0
    %v8482 = vadd.f32 0.0, %v8481
    %8483 = vdwg.mxu0
    %8484 = vmatprep.subr.bf16.mxu0 %v6898
    %8485 = vmatpush1.bf16.msra.mxu0 %v6897
    %8486 = vmatprep.subr.bf16.mxu0 %v6890
    %8487 = vmatpush1.bf16.msra.mxu0 %v6889
    %8488 = vmatprep.subr.bf16.mxu0 %v6882
    %8489 = vmatpush1.bf16.msra.mxu0 %v6881
    %8490 = vmatprep.subr.bf16.mxu0 %v6874
    %8491 = vmatpush1.bf16.msra.mxu0 %v6873
    %8492 = vmatprep.subr.bf16.mxu0 %v6866
    %8493 = vmatpush1.bf16.msra.mxu0 %v6865
    %8494 = vmatprep.subr.bf16.mxu0 %v6858
    %8495 = vmatpush1.bf16.msra.mxu0 %v6857
    %8496 = vmatprep.subr.bf16.mxu0 %v6850
    %8497 = vmatpush1.bf16.msra.mxu0 %v6849
    %8498 = vmatprep.subr.bf16.mxu0 %v6842
    %8499 = vmatpush1.bf16.msra.mxu0 %v6841
    %8500 = vmatprep.subr.bf16.mxu0 %v6962
    %8501 = vmatpush2.bf16.msra.mxu0 %v6961
    %8502 = vmatprep.subr.bf16.mxu0 %v6954
    %8503 = vmatpush2.bf16.msra.mxu0 %v6953
    %8504 = vmatprep.subr.bf16.mxu0 %v6946
    %8505 = vmatpush2.bf16.msra.mxu0 %v6945
    %8506 = vmatprep.subr.bf16.mxu0 %v6938
    %8507 = vmatpush2.bf16.msra.mxu0 %v6937
    %8508 = vmatprep.subr.bf16.mxu0 %v6930
    %8509 = vmatpush2.bf16.msra.mxu0 %v6929
    %8510 = vmatprep.subr.bf16.mxu0 %v6922
    %8511 = vmatpush2.bf16.msra.mxu0 %v6921
    %8512 = vmatprep.subr.bf16.mxu0 %v6914
    %8513 = vmatpush2.bf16.msra.mxu0 %v6913
    %8514 = vmatprep.subr.bf16.mxu0 %v6906
    %8515 = vmatpush2.bf16.msra.mxu0 %v6905
    %8516 = vmatprep.mubr.bf16.mxu0 %v1924
    %8517 = vmatmul.mubr.bf16.gmra.mxu0 %v1923
    %v8518 = vpop.f32.mrf.mxu0
    %v8519 = vadd.f32 %v8476, %v8518
    %v8520 = vpop.f32.mrf.mxu0
    %v8521 = vadd.f32 %v8478, %v8520
    %v8522 = vpop.f32.mrf.mxu0
    %v8523 = vadd.f32 %v8480, %v8522
    %v8524 = vpop.f32.mrf.mxu0
    %v8525 = vadd.f32 %v8482, %v8524
    %8526 = vdwg.mxu0
    %8527 = vmatprep.subr.bf16.mxu0 %v6772
    %8528 = vmatpush1.bf16.msra.mxu0 %v6771
    %8529 = vmatprep.subr.bf16.mxu0 %v6764
    %8530 = vmatpush1.bf16.msra.mxu0 %v6763
    %8531 = vmatprep.subr.bf16.mxu0 %v6756
    %8532 = vmatpush1.bf16.msra.mxu0 %v6755
    %8533 = vmatprep.subr.bf16.mxu0 %v6748
    %8534 = vmatpush1.bf16.msra.mxu0 %v6747
    %8535 = vmatprep.subr.bf16.mxu0 %v6740
    %8536 = vmatpush1.bf16.msra.mxu0 %v6739
    %8537 = vmatprep.subr.bf16.mxu0 %v6732
    %8538 = vmatpush1.bf16.msra.mxu0 %v6731
    %8539 = vmatprep.subr.bf16.mxu0 %v6724
    %8540 = vmatpush1.bf16.msra.mxu0 %v6723
    %8541 = vmatprep.subr.bf16.mxu0 %v6716
    %8542 = vmatpush1.bf16.msra.mxu0 %v6715
    %8543 = vmatprep.subr.bf16.mxu0 %v6836
    %8544 = vmatpush2.bf16.msra.mxu0 %v6835
    %8545 = vmatprep.subr.bf16.mxu0 %v6828
    %8546 = vmatpush2.bf16.msra.mxu0 %v6827
    %8547 = vmatprep.subr.bf16.mxu0 %v6820
    %8548 = vmatpush2.bf16.msra.mxu0 %v6819
    %8549 = vmatprep.subr.bf16.mxu0 %v6812
    %8550 = vmatpush2.bf16.msra.mxu0 %v6811
    %8551 = vmatprep.subr.bf16.mxu0 %v6804
    %8552 = vmatpush2.bf16.msra.mxu0 %v6803
    %8553 = vmatprep.subr.bf16.mxu0 %v6796
    %8554 = vmatpush2.bf16.msra.mxu0 %v6795
    %8555 = vmatprep.subr.bf16.mxu0 %v6788
    %8556 = vmatpush2.bf16.msra.mxu0 %v6787
    %8557 = vmatprep.subr.bf16.mxu0 %v6780
    %8558 = vmatpush2.bf16.msra.mxu0 %v6779
    %8559 = vmatprep.mubr.bf16.mxu0 %v1922
    %8560 = vmatmul.mubr.bf16.gmra.mxu0 %v1921
    %v8561 = vpop.f32.mrf.mxu0
    %v8562 = vadd.f32 0.0, %v8561
    %v8563 = vpop.f32.mrf.mxu0
    %v8564 = vadd.f32 0.0, %v8563
    %v8565 = vpop.f32.mrf.mxu0
    %v8566 = vadd.f32 0.0, %v8565
    %v8567 = vpop.f32.mrf.mxu0
    %v8568 = vadd.f32 0.0, %v8567
    %8569 = vdwg.mxu0
    %8570 = vmatprep.subr.bf16.mxu0 %v6900
    %8571 = vmatpush1.bf16.msra.mxu0 %v6899
    %8572 = vmatprep.subr.bf16.mxu0 %v6892
    %8573 = vmatpush1.bf16.msra.mxu0 %v6891
    %8574 = vmatprep.subr.bf16.mxu0 %v6884
    %8575 = vmatpush1.bf16.msra.mxu0 %v6883
    %8576 = vmatprep.subr.bf16.mxu0 %v6876
    %8577 = vmatpush1.bf16.msra.mxu0 %v6875
    %8578 = vmatprep.subr.bf16.mxu0 %v6868
    %8579 = vmatpush1.bf16.msra.mxu0 %v6867
    %8580 = vmatprep.subr.bf16.mxu0 %v6860
    %8581 = vmatpush1.bf16.msra.mxu0 %v6859
    %8582 = vmatprep.subr.bf16.mxu0 %v6852
    %8583 = vmatpush1.bf16.msra.mxu0 %v6851
    %8584 = vmatprep.subr.bf16.mxu0 %v6844
    %8585 = vmatpush1.bf16.msra.mxu0 %v6843
    %8586 = vmatprep.subr.bf16.mxu0 %v6964
    %8587 = vmatpush2.bf16.msra.mxu0 %v6963
    %8588 = vmatprep.subr.bf16.mxu0 %v6956
    %8589 = vmatpush2.bf16.msra.mxu0 %v6955
    %8590 = vmatprep.subr.bf16.mxu0 %v6948
    %8591 = vmatpush2.bf16.msra.mxu0 %v6947
    %8592 = vmatprep.subr.bf16.mxu0 %v6940
    %8593 = vmatpush2.bf16.msra.mxu0 %v6939
    %8594 = vmatprep.subr.bf16.mxu0 %v6932
    %8595 = vmatpush2.bf16.msra.mxu0 %v6931
    %8596 = vmatprep.subr.bf16.mxu0 %v6924
    %8597 = vmatpush2.bf16.msra.mxu0 %v6923
    %8598 = vmatprep.subr.bf16.mxu0 %v6916
    %8599 = vmatpush2.bf16.msra.mxu0 %v6915
    %8600 = vmatprep.subr.bf16.mxu0 %v6908
    %8601 = vmatpush2.bf16.msra.mxu0 %v6907
    %8602 = vmatprep.mubr.bf16.mxu0 %v1924
    %8603 = vmatmul.mubr.bf16.gmra.mxu0 %v1923
    %v8604 = vpop.f32.mrf.mxu0
    %v8605 = vadd.f32 %v8562, %v8604
    %v8606 = vpop.f32.mrf.mxu0
    %v8607 = vadd.f32 %v8564, %v8606
    %v8608 = vpop.f32.mrf.mxu0
    %v8609 = vadd.f32 %v8566, %v8608
    %v8610 = vpop.f32.mrf.mxu0
    %v8611 = vadd.f32 %v8568, %v8610
    %8612 = vdwg.mxu0
    %v8613 = vadd.f32 %v8003, %v8347
    %v8614 = vadd.f32 %v8005, %v8349
    %v8615 = vadd.f32 %v8089, %v8433
    %v8616 = vadd.f32 %v8091, %v8435
    %v8617 = vadd.f32 %v8175, %v8519
    %v8618 = vadd.f32 %v8177, %v8521
    %v8619 = vadd.f32 %v8261, %v8605
    %v8620 = vadd.f32 %v8263, %v8607
    %v8621 = vadd.f32 %v8007, %v8351
    %v8622 = vadd.f32 %v8009, %v8353
    %v8623 = vadd.f32 %v8093, %v8437
    %v8624 = vadd.f32 %v8095, %v8439
    %v8625 = vadd.f32 %v8179, %v8523
    %v8626 = vadd.f32 %v8181, %v8525
    %v8627 = vadd.f32 %v8265, %v8609
    %v8628 = vadd.f32 %v8267, %v8611
    %v8629 = vmax.f32 %v7565, %v8613
    %v8630 = vmax.f32 %v7566, %v8614
    %v8631 = vmax.f32 %v7567, %v8615
    %v8632 = vmax.f32 %v7568, %v8616
    %v8633 = vmax.f32 %v7569, %v8617
    %v8634 = vmax.f32 %v7570, %v8618
    %v8635 = vmax.f32 %v7571, %v8619
    %v8636 = vmax.f32 %v7572, %v8620
    %v8637 = vmax.f32 %v7573, %v8621
    %v8638 = vmax.f32 %v7574, %v8622
    %v8639 = vmax.f32 %v7575, %v8623
    %v8640 = vmax.f32 %v7576, %v8624
    %v8641 = vmax.f32 %v7577, %v8625
    %v8642 = vmax.f32 %v7578, %v8626
    %v8643 = vmax.f32 %v7579, %v8627
    %v8644 = vmax.f32 %v7580, %v8628
    %v8645 = vmax.f32 %v8629, %v8633
    %v8646 = vmax.f32 %v8630, %v8634
    %v8647 = vmax.f32 %v8631, %v8635
    %v8648 = vmax.f32 %v8632, %v8636
    %v8649 = vmax.f32 %v8637, %v8641
    %v8650 = vmax.f32 %v8638, %v8642
    %v8651 = vmax.f32 %v8639, %v8643
    %v8652 = vmax.f32 %v8640, %v8644
    %v8653 = vld [vmem:[%s8] sm:$0xf]
    %v8655 = vlaneseq
    %v8656 = vshrl.u32 %v8655, 7
    %v8657 = vsub.s32 0, %v8656
    %v8658 = vrot.slane %v8653, %v8657
    %v8659 = vlaneseq
    %v8660 = vshrl.u32 %v8659, 7
    %v8661 = vsub.s32 1, %v8660
    %v8662 = vrot.slane %v8653, %v8661
    %v8663 = vlaneseq
    %v8664 = vshrl.u32 %v8663, 7
    %v8665 = vsub.s32 2, %v8664
    %v8666 = vrot.slane %v8653, %v8665
    %v8667 = vlaneseq
    %v8668 = vshrl.u32 %v8667, 7
    %v8669 = vsub.s32 3, %v8668
    %v8670 = vrot.slane %v8653, %v8669
    %v8675 = vadd.f32 %v8645, %v8658
    %v8676 = vadd.f32 %v8646, %v8662
    %v8677 = vadd.f32 %v8647, %v8666
    %v8678 = vadd.f32 %v8648, %v8670
    %v8679 = vadd.f32 %v8649, %v8658
    %v8680 = vadd.f32 %v8650, %v8662
    %v8681 = vadd.f32 %v8651, %v8666
    %v8682 = vadd.f32 %v8652, %v8670
    %v8683 = vmax.f32 %v8675, 0.0
    %v8684 = vmax.f32 %v8676, 0.0
    %v8685 = vmax.f32 %v8677, 0.0
    %v8686 = vmax.f32 %v8678, 0.0
    %v8687 = vmax.f32 %v8679, 0.0
    %v8688 = vmax.f32 %v8680, 0.0
    %v8689 = vmax.f32 %v8681, 0.0
    %v8690 = vmax.f32 %v8682, 0.0
    %v8691 = vpack.c.bf16 %v8687, %v8683
    %v8692 = vpack.c.bf16 %v8688, %v8684
    %v8693 = vpack.c.bf16 %v8689, %v8685
    %v8694 = vpack.c.bf16 %v8690, %v8686
    %v8699 = vunpack.c.l.b16 %v8691
    %v8700 = vunpack.c.l.b16 %v8692
    %v8701 = vunpack.c.l.b16 %v8693
    %v8702 = vunpack.c.l.b16 %v8694
    %v8703 = vunpack.c.h.b16 %v8691
    %v8704 = vunpack.c.h.b16 %v8692
    %v8705 = vunpack.c.h.b16 %v8693
    %v8706 = vunpack.c.h.b16 %v8694
    %v8707 = vpack.c.b16 %v8700, %v8699
    %v8708 = vpack.c.b16 %v8702, %v8701
    %v8709 = vpack.c.b16 %v8704, %v8703
    %v8710 = vpack.c.b16 %v8706, %v8705
    %8715 = vst [vmem:[%s9] sm:$0xff] %v8707
    %8716 = vst [vmem:[%s9 + $0x8] sm:$0xff] %v8708
    %8717 = vst [vmem:[%s9 + $0x10] sm:$0xff] %v8709
    %8718 = vst [vmem:[%s9 + $0x18] sm:$0xff] %v8710
    // Predicated region
    $region58: #{forward.2} parent=1 // pred_check
      _
    $region59: #{forward.2} parent=1 // pred_check_branch
      %8720 = sbr.rel (0) target = $region61
    $region60: #{forward.2} parent=1 // pred_region
      _
    $region61: #{forward.2} parent=1 // pred_fallthru
      _
    // Predicated region
    $region62: #{forward.2} parent=1 // pred_check
      _
    $region63: #{forward.2} parent=1 // pred_check_branch
      %8722 = sbr.rel (0) target = $region65
    $region64: #{forward.2} parent=1 // pred_region
      _
    $region65: #{forward.2} parent=1 // pred_fallthru
      _
    %8723 = vsyncpa [#allocation3], 1
    %8724 = vsyncpa [#allocation5], 1
    %8725 = vsyncpa [#allocation8], 1

</llo_original>
